<compile_context>
chip_gen: v7x
topology: tpu7x:2x2x1
jax: 0.10.0
libtpu: 0.0.40
codegen_flags: <defaults>
</compile_context>

<pallas_src>
import math
import functools

import jax
import jax.numpy as jnp
from jax.experimental import pallas as pl
from jax.experimental.pallas import tpu as pltpu

LN_EPS = 1e-5
EMBED_SCALE = math.sqrt(512.0)   # the reference module scales by sqrt(512) regardless of d_model
LANE = 128


def _round_up(x, m):
    return ((x + m - 1) // m) * m


def _vmem_limit_bytes():
    # v7x has only 64 MiB physical VMEM per TensorCore -> leave headroom (~48 MiB);
    # v5e / v6e have 128 MiB -> allow up to ~100 MiB.
    try:
        cap = pltpu.get_tpu_info().vmem_capacity_bytes
    except Exception:
        cap = 64 * 1024 * 1024
    return int(max(32 * 1024 * 1024, min(100 * 1024 * 1024, cap - 16 * 1024 * 1024)))


def _pick_bt(B, S, row_target=256):
    """Batch elements per grid step: fill the MXU M dimension (Bt*S rows, <= row_target)
    while keeping >=2 batch grid steps (v7x has 2 TensorCores sharing the parallel axis)
    whenever there are enough total rows to afford it."""
    best = 1
    for bt in range(1, B + 1):
        if B % bt:
            continue
        if bt * S > row_target:
            break
        if B // bt < 2 and B * S > row_target:
            continue
        best = bt
    return best


# ------------------------------ in-kernel helpers -----------------------------

def _layernorm_f32(x, g, b):
    # x: (M, D) f32, g/b: (1, D) f32
    mu = jnp.mean(x, axis=-1, keepdims=True)
    xc = x - mu
    var = jnp.mean(xc * xc, axis=-1, keepdims=True)
    return xc * jax.lax.rsqrt(var + LN_EPS) * g + b


# --------------------------------- the kernel ---------------------------------

def model_kernel(tok_ref, pe_ref, emb_ref, cw_ref, cb_ref, ln1g_ref, ln1b_ref,
                 wqkv_ref, bqkv_ref, wo_ref, bo_ref, n1g_ref, n1b_ref,
                 w1_ref, b1_ref, w2_ref, b2_ref, n2g_ref, n2b_ref,
                 ln2g_ref, ln2b_ref, fc1w_ref, fc1b_ref, fc2w_ref, fc2b_ref,
                 logits_ref, h_ref, pad_ref, *, nhead):
    l = pl.program_id(1)
    num_layers = pl.num_programs(1)
    Bt, S, _ = tok_ref.shape
    N, D = h_ref.shape                       # N = Bt * S rows fed to every matmul
    Vp = emb_ref.shape[0]
    dh = D // nhead
    scale = 1.0 / math.sqrt(dh)
    bf16 = jnp.bfloat16

    # ---- frontend: embed + PE + conv1/2/3(+ReLU) + LayerNorm1 (first layer step only) ----
    @pl.when(l == 0)
    def _frontend():
        # Exact embedding gather as a one-hot f32 matmul (padded vocab rows are zero).
        tok = tok_ref[...].reshape(N, 1)
        onehot = (jax.lax.broadcasted_iota(jnp.int32, (N, Vp), 1) == tok).astype(jnp.float32)
        emb = jnp.dot(onehot, emb_ref[...], preferred_element_type=jnp.float32)       # (N, D)
        # NOTE: faithful to the reference module, the PE row is indexed by BATCH element
        # (pe[:x.size(0)] with batch_first inputs) and broadcast over the sequence.
        h = (emb.reshape(Bt, S, D) * EMBED_SCALE + pe_ref[...]).reshape(N, D)

        # sequence-position edge masks (also kill cross-batch-element leakage in the shifts)
        s_pos = jax.lax.broadcasted_iota(jnp.int32, (Bt, S, D), 1).reshape(N, D)
        first = s_pos == 0
        last = s_pos == S - 1

        # Conv1d(k=3, pad=1) as three accumulated (D, D) matmuls on row-shifted copies.
        # Shifted copies come from a halo scratch; halo rows are never zeroed -- their
        # uninitialised values are masked away by the edge masks above.
        for ci in range(3):
            pad_ref[8:N + 8, :] = h                                   # aligned store
            prev = jnp.where(first, 0.0, pad_ref[7:N + 7, :])         # row t -> h[t-1]
            nxt = jnp.where(last, 0.0, pad_ref[9:N + 9, :])           # row t -> h[t+1]
            y = jnp.dot(prev.astype(bf16), cw_ref[3 * ci + 0], preferred_element_type=jnp.float32)
            y = y + jnp.dot(h.astype(bf16), cw_ref[3 * ci + 1], preferred_element_type=jnp.float32)
            y = y + jnp.dot(nxt.astype(bf16), cw_ref[3 * ci + 2], preferred_element_type=jnp.float32)
            h = jnp.maximum(y + cb_ref[ci], 0.0)

        h_ref[...] = _layernorm_f32(h, ln1g_ref[...], ln1b_ref[...])

    # ---- one post-norm TransformerEncoderLayer (every layer step) ----
    x32 = h_ref[...]                                                  # (N, D) f32
    x = x32.astype(bf16)

    # fused Q/K/V projection: one (N, D) @ (D, 3D) matmul
    qkv = jnp.dot(x, wqkv_ref[...], preferred_element_type=jnp.float32) + bqkv_ref[...]
    q3 = (qkv[:, 0:D] * scale).astype(bf16).reshape(Bt, S, D)
    k3 = qkv[:, D:2 * D].astype(bf16).reshape(Bt, S, D)
    v3 = qkv[:, 2 * D:3 * D].astype(bf16).reshape(Bt, S, D)

    heads = []
    for hh in range(nhead):                                           # unrolled at trace time
        sl = slice(hh * dh, (hh + 1) * dh)
        s = jnp.einsum('bqd,bkd->bqk', q3[:, :, sl], k3[:, :, sl],
                       preferred_element_type=jnp.float32)            # (Bt, S, S) f32
        s = s - jnp.max(s, axis=-1, keepdims=True)
        p = jnp.exp(s)
        p = p * pl.reciprocal(jnp.sum(p, axis=-1, keepdims=True), approx=True)
        heads.append(jnp.einsum('bqk,bkd->bqd', p.astype(bf16), v3[:, :, sl],
                                preferred_element_type=jnp.float32))  # (Bt, S, dh)
    attn = jnp.concatenate(heads, axis=-1).reshape(N, D)              # lane-dense concat
    attn = jnp.dot(attn.astype(bf16), wo_ref[...],
                   preferred_element_type=jnp.float32) + bo_ref[...]

    y = _layernorm_f32(x32 + attn, n1g_ref[...], n1b_ref[...])        # residual + norm1

    ff = jnp.dot(y.astype(bf16), w1_ref[...], preferred_element_type=jnp.float32) + b1_ref[...]
    ff = jnp.maximum(ff, 0.0)
    ff = jnp.dot(ff.astype(bf16), w2_ref[...], preferred_element_type=jnp.float32) + b2_ref[...]

    out = _layernorm_f32(y + ff, n2g_ref[...], n2b_ref[...])          # residual + norm2
    h_ref[...] = out

    # ---- classifier head: LayerNorm2 + seq mean + fc1(+ReLU) + fc2 (last step only) ----
    @pl.when(l == num_layers - 1)
    def _head():
        z = _layernorm_f32(out, ln2g_ref[...], ln2b_ref[...])
        pooled = jnp.mean(z.reshape(Bt, S, D), axis=1)                # (Bt, D)
        hd = jnp.dot(pooled.astype(bf16), fc1w_ref[...],
                     preferred_element_type=jnp.float32) + fc1b_ref[...]
        hd = jnp.maximum(hd, 0.0)
        logits = jnp.dot(hd.astype(bf16), fc2w_ref[...],
                         preferred_element_type=jnp.float32) + fc2b_ref[...]
        logits_ref[...] = logits.reshape(Bt, 1, logits.shape[-1])


# ------------------------------- call wrapper ---------------------------------

def _const_spec(a):
    # full-array block, constant index (weights resident across the whole grid)
    nd = a.ndim
    return pl.BlockSpec(a.shape, lambda b, l, _nd=nd: (0,) * _nd)


def _layer_spec(a):
    # (L, ...) stacked per-layer weight; leading layer dim squeezed, indexed by the L axis
    nd = a.ndim
    return pl.BlockSpec((None,) + a.shape[1:], lambda b, l, _nd=nd: (l,) + (0,) * (_nd - 1))


def smotif_transformer_forward(tokens, kp, *, nhead, num_smotifs):
    B, S = tokens.shape
    D = kp['emb'].shape[1]
    num_layers = kp['wqkv'].shape[0]
    Npad = kp['fc2_w'].shape[1]
    assert D % nhead == 0

    Bt = _pick_bt(B, S)
    nb = B // Bt

    tok3 = tokens.astype(jnp.int32).reshape(B, S, 1)
    # Faithful to the reference module: pe[:x.size(0)] with batch_first data, i.e. the PE
    # row is indexed by the batch element and broadcast over the sequence.
    pe_b = kp['pe'][:B][:, None, :]                                    # (B, 1, D) f32

    const_ws = [kp['emb'], kp['conv_w'], kp['conv_b'], kp['ln1_g'], kp['ln1_b']]
    layer_ws = [kp['wqkv'], kp['bqkv'], kp['wo'], kp['bo'], kp['n1g'], kp['n1b'],
                kp['w1'], kp['b1'], kp['w2'], kp['b2'], kp['n2g'], kp['n2b']]
    head_ws = [kp['ln2_g'], kp['ln2_b'], kp['fc1_w'], kp['fc1_b'], kp['fc2_w'], kp['fc2_b']]

    in_specs = ([pl.BlockSpec((Bt, S, 1), lambda b, l: (b, 0, 0)),
                 pl.BlockSpec((Bt, 1, D), lambda b, l: (b, 0, 0))]
                + [_const_spec(w) for w in const_ws]
                + [_layer_spec(w) for w in layer_ws]
                + [_const_spec(w) for w in head_ws])

    logits = pl.pallas_call(
        functools.partial(model_kernel, nhead=nhead),
        out_shape=jax.ShapeDtypeStruct((B, 1, Npad), jnp.float32),
        grid=(nb, num_layers),
        in_specs=in_specs,
        out_specs=pl.BlockSpec((Bt, 1, Npad), lambda b, l: (b, 0, 0)),
        scratch_shapes=[pltpu.VMEM((Bt * S, D), jnp.float32),          # resident activation
                        pltpu.VMEM((Bt * S + 16, D), jnp.float32)],    # conv halo scratch
        compiler_params=pltpu.CompilerParams(
            dimension_semantics=("parallel", "arbitrary"),
            vmem_limit_bytes=_vmem_limit_bytes()),
    )(tok3, pe_b, *const_ws, *layer_ws, *head_ws)

    return logits.reshape(B, Npad)[:, :num_smotifs]


# ------------------------------ params / prep ---------------------------------

def make_positional_encoding(max_len, d_model):
    position = jnp.arange(max_len, dtype=jnp.float32)[:, None]
    div_term = jnp.exp(jnp.arange(0, d_model, 2, dtype=jnp.float32)
                       * (-math.log(10000.0) / d_model))
    pe = jnp.zeros((max_len, d_model), dtype=jnp.float32)
    pe = pe.at[:, 0::2].set(jnp.sin(position * div_term))
    pe = pe.at[:, 1::2].set(jnp.cos(position * div_term))
    return pe


def init_params(key, vocab_size, num_smotifs, d_model, nhead, num_layers, dim_ff,
                max_len=64):
    keys = iter(jax.random.split(key, 16 + 8 * num_layers))

    def dense(shape, scale=0.05):
        return scale * jax.random.normal(next(keys), shape, dtype=jnp.float32)

    params = {
        'embedding': dense((vocab_size, d_model), 0.02),
        'pe': make_positional_encoding(max_len, d_model),
        'ln1_g': jnp.ones((d_model,), jnp.float32),
        'ln1_b': jnp.zeros((d_model,), jnp.float32),
        'ln2_g': jnp.ones((d_model,), jnp.float32),
        'ln2_b': jnp.zeros((d_model,), jnp.float32),
        'fc1_w': dense((d_model, d_model // 2)),
        'fc1_b': dense((d_model // 2,)),
        'fc2_w': dense((d_model // 2, num_smotifs)),
        'fc2_b': dense((num_smotifs,)),
    }
    for ci in (1, 2, 3):
        # (kernel=3, in, out)  == torch Conv1d weight.permute(2, 1, 0)
        params[f'conv{ci}_w'] = dense((3, d_model, d_model))
        params[f'conv{ci}_b'] = dense((d_model,))
    layers = []
    for _ in range(num_layers):
        layers.append({
            'in_proj_w': dense((d_model, 3 * d_model)),   # (in, out) == torch in_proj_weight.T
            'in_proj_b': dense((3 * d_model,)),
            'out_proj_w': dense((d_model, d_model)),
            'out_proj_b': dense((d_model,)),
            'lin1_w': dense((d_model, dim_ff)),
            'lin1_b': dense((dim_ff,)),
            'lin2_w': dense((dim_ff, d_model)),
            'lin2_b': dense((d_model,)),
            'norm1_g': jnp.ones((d_model,), jnp.float32),
            'norm1_b': jnp.zeros((d_model,), jnp.float32),
            'norm2_g': jnp.ones((d_model,), jnp.float32),
            'norm2_b': jnp.zeros((d_model,), jnp.float32),
        })
    params['layers'] = layers
    return params


def prepare_params(params, *, nhead, lane=LANE):
    """One-time conversion to the kernel-ready layout: bf16 matmul weights, per-layer
    tensors stacked on a leading layer axis, vocab / classifier lane padding."""
    bf16 = jnp.bfloat16
    V, D = params['embedding'].shape
    assert D % nhead == 0

    def row(v):
        return v.reshape(1, -1).astype(jnp.float32)

    Vp = _round_up(V, lane)
    kp = {
        'emb': jnp.zeros((Vp, D), jnp.float32).at[:V].set(params['embedding'].astype(jnp.float32)),
        'pe': params['pe'].astype(jnp.float32),
        'ln1_g': row(params['ln1_g']), 'ln1_b': row(params['ln1_b']),
        'ln2_g': row(params['ln2_g']), 'ln2_b': row(params['ln2_b']),
    }
    # conv weights: (3 convs x 3 taps, D, D) bf16; tap k multiplies the input row t + k - 1
    kp['conv_w'] = jnp.concatenate(
        [params[f'conv{ci}_w'] for ci in (1, 2, 3)], axis=0).astype(bf16)        # (9, D, D)
    kp['conv_b'] = jnp.stack(
        [params[f'conv{ci}_b'] for ci in (1, 2, 3)])[:, None, :].astype(jnp.float32)

    # classifier head, zero-padded to lane multiples (padding sliced away after the kernel)
    H = params['fc1_w'].shape[1]
    Ncls = params['fc2_w'].shape[1]
    Hp, Npad = _round_up(H, lane), _round_up(Ncls, lane)
    kp['fc1_w'] = jnp.zeros((D, Hp), jnp.float32).at[:, :H].set(params['fc1_w']).astype(bf16)
    kp['fc1_b'] = jnp.zeros((1, Hp), jnp.float32).at[0, :H].set(params['fc1_b'])
    kp['fc2_w'] = jnp.zeros((Hp, Npad), jnp.float32).at[:H, :Ncls].set(params['fc2_w']).astype(bf16)
    kp['fc2_b'] = jnp.zeros((1, Npad), jnp.float32).at[0, :Ncls].set(params['fc2_b'])

    # per-layer encoder weights stacked on a leading layer axis (indexed by the layer grid axis)
    def stack(get, dtype):
        return jnp.stack([get(lp) for lp in params['layers']]).astype(dtype)

    kp['wqkv'] = stack(lambda lp: lp['in_proj_w'], bf16)                         # (L, D, 3D)
    kp['bqkv'] = stack(lambda lp: lp['in_proj_b'][None, :], jnp.float32)         # (L, 1, 3D)
    kp['wo'] = stack(lambda lp: lp['out_proj_w'], bf16)
    kp['bo'] = stack(lambda lp: lp['out_proj_b'][None, :], jnp.float32)
    kp['n1g'] = stack(lambda lp: lp['norm1_g'][None, :], jnp.float32)
    kp['n1b'] = stack(lambda lp: lp['norm1_b'][None, :], jnp.float32)
    kp['w1'] = stack(lambda lp: lp['lin1_w'], bf16)
    kp['b1'] = stack(lambda lp: lp['lin1_b'][None, :], jnp.float32)
    kp['w2'] = stack(lambda lp: lp['lin2_w'], bf16)
    kp['b2'] = stack(lambda lp: lp['lin2_b'][None, :], jnp.float32)
    kp['n2g'] = stack(lambda lp: lp['norm2_g'][None, :], jnp.float32)
    kp['n2b'] = stack(lambda lp: lp['norm2_b'][None, :], jnp.float32)
    return kp


# ------------------------------------ main ------------------------------------

if __name__ == "__main__":
    VOCAB, NUM_SMOTIFS = 20, 10
    D_MODEL, NHEAD, NUM_LAYERS, DIM_FF = 256, 2, 2, 512
    B, S = 2, 16

    key = jax.random.PRNGKey(0)
    pkey, tkey = jax.random.split(key)
    params = init_params(pkey, VOCAB, NUM_SMOTIFS, D_MODEL, NHEAD, NUM_LAYERS, DIM_FF)
    kparams = prepare_params(params, nhead=NHEAD)
    tokens = jax.random.randint(tkey, (B, S), 0, VOCAB, dtype=jnp.int32)

    fwd = jax.jit(functools.partial(smotif_transformer_forward,
                                    nhead=NHEAD, num_smotifs=NUM_SMOTIFS))
    out = fwd(tokens, kparams)
    jax.block_until_ready(out)
    assert out.shape == (B, NUM_SMOTIFS), out.shape
    assert bool(jnp.all(jnp.isfinite(out)))
    print("KERNEL_OK")
</pallas_src>

<mosaic_0001>
module attributes {stable_mosaic.version = 11 : i64} {
  func.func @model_kernel(%arg0: i32, %arg1: i32, %arg2: memref<2x16x1xi32, #tpu.memory_space<vmem>>, %arg3: memref<2x1x256xf32, #tpu.memory_space<vmem>>, %arg4: memref<128x256xf32, #tpu.memory_space<vmem>>, %arg5: memref<9x256x256xbf16, #tpu.memory_space<vmem>>, %arg6: memref<3x1x256xf32, #tpu.memory_space<vmem>>, %arg7: memref<1x256xf32, #tpu.memory_space<vmem>>, %arg8: memref<1x256xf32, #tpu.memory_space<vmem>>, %arg9: memref<1x256x768xbf16, #tpu.memory_space<vmem>>, %arg10: memref<1x1x768xf32, #tpu.memory_space<vmem>>, %arg11: memref<1x256x256xbf16, #tpu.memory_space<vmem>>, %arg12: memref<1x1x256xf32, #tpu.memory_space<vmem>>, %arg13: memref<1x1x256xf32, #tpu.memory_space<vmem>>, %arg14: memref<1x1x256xf32, #tpu.memory_space<vmem>>, %arg15: memref<1x256x512xbf16, #tpu.memory_space<vmem>>, %arg16: memref<1x1x512xf32, #tpu.memory_space<vmem>>, %arg17: memref<1x512x256xbf16, #tpu.memory_space<vmem>>, %arg18: memref<1x1x256xf32, #tpu.memory_space<vmem>>, %arg19: memref<1x1x256xf32, #tpu.memory_space<vmem>>, %arg20: memref<1x1x256xf32, #tpu.memory_space<vmem>>, %arg21: memref<1x256xf32, #tpu.memory_space<vmem>>, %arg22: memref<1x256xf32, #tpu.memory_space<vmem>>, %arg23: memref<256x128xbf16, #tpu.memory_space<vmem>>, %arg24: memref<1x128xf32, #tpu.memory_space<vmem>>, %arg25: memref<128x128xbf16, #tpu.memory_space<vmem>>, %arg26: memref<1x128xf32, #tpu.memory_space<vmem>>, %arg27: memref<2x1x128xf32, #tpu.memory_space<vmem>>, %arg28: memref<32x256xf32, #tpu.memory_space<vmem>>, %arg29: memref<48x256xf32, #tpu.memory_space<vmem>>) attributes {dimension_semantics = [#tpu.dimension_semantics<parallel>, #tpu.dimension_semantics<arbitrary>], iteration_bounds = array<i64: 1, 2>, scalar_prefetch = 0 : i64, scratch_operands = 2 : i64, tpu.core_type = #tpu.core_type<tc>, window_params = [{transform_indices = @transform_0, window_bounds = array<i64: 2, 16, 1>}, {transform_indices = @transform_1, window_bounds = array<i64: 2, 1, 256>}, {pipeline_mode = #tpu.pipeline_mode<synchronous>, transform_indices = @transform_2, window_bounds = array<i64: 128, 256>}, {pipeline_mode = #tpu.pipeline_mode<synchronous>, transform_indices = @transform_3, window_bounds = array<i64: 9, 256, 256>}, {pipeline_mode = #tpu.pipeline_mode<synchronous>, transform_indices = @transform_4, window_bounds = array<i64: 3, 1, 256>}, {pipeline_mode = #tpu.pipeline_mode<synchronous>, transform_indices = @transform_5, window_bounds = array<i64: 1, 256>}, {pipeline_mode = #tpu.pipeline_mode<synchronous>, transform_indices = @transform_6, window_bounds = array<i64: 1, 256>}, {transform_indices = @transform_7, window_bounds = array<i64: 1, 256, 768>}, {transform_indices = @transform_8, window_bounds = array<i64: 1, 1, 768>}, {transform_indices = @transform_9, window_bounds = array<i64: 1, 256, 256>}, {transform_indices = @transform_10, window_bounds = array<i64: 1, 1, 256>}, {transform_indices = @transform_11, window_bounds = array<i64: 1, 1, 256>}, {transform_indices = @transform_12, window_bounds = array<i64: 1, 1, 256>}, {transform_indices = @transform_13, window_bounds = array<i64: 1, 256, 512>}, {transform_indices = @transform_14, window_bounds = array<i64: 1, 1, 512>}, {transform_indices = @transform_15, window_bounds = array<i64: 1, 512, 256>}, {transform_indices = @transform_16, window_bounds = array<i64: 1, 1, 256>}, {transform_indices = @transform_17, window_bounds = array<i64: 1, 1, 256>}, {transform_indices = @transform_18, window_bounds = array<i64: 1, 1, 256>}, {pipeline_mode = #tpu.pipeline_mode<synchronous>, transform_indices = @transform_19, window_bounds = array<i64: 1, 256>}, {pipeline_mode = #tpu.pipeline_mode<synchronous>, transform_indices = @transform_20, window_bounds = array<i64: 1, 256>}, {pipeline_mode = #tpu.pipeline_mode<synchronous>, transform_indices = @transform_21, window_bounds = array<i64: 256, 128>}, {pipeline_mode = #tpu.pipeline_mode<synchronous>, transform_indices = @transform_22, window_bounds = array<i64: 1, 128>}, {pipeline_mode = #tpu.pipeline_mode<synchronous>, transform_indices = @transform_23, window_bounds = array<i64: 128, 128>}, {pipeline_mode = #tpu.pipeline_mode<synchronous>, transform_indices = @transform_24, window_bounds = array<i64: 1, 128>}, {transform_indices = @transform_25, window_bounds = array<i64: 2, 1, 128>}]} {
    %c0_i32 = arith.constant 0 : i32
    %0 = arith.cmpi eq, %arg1, %c0_i32 : i32
    %1 = arith.extui %0 : i1 to i32
    %c0_i32_0 = arith.constant 0 : i32
    %2 = arith.cmpi ne, %1, %c0_i32_0 : i32
    scf.if %2 {
      %c0_64 = arith.constant 0 : index
      %c0_65 = arith.constant 0 : index
      %c0_66 = arith.constant 0 : index
      %137 = vector.load %arg2[%c0_64, %c0_65, %c0_66] : memref<2x16x1xi32, #tpu.memory_space<vmem>>, vector<2x16x1xi32>
      %138 = vector.shape_cast %137 : vector<2x16x1xi32> to vector<32x1xi32>
      %139 = tpu.iota {dimensions = array<i32: 1>} : vector<32x128xi32>
      %140 = vector.broadcast %138 : vector<32x1xi32> to vector<32x128xi32>
      %141 = arith.cmpi eq, %139, %140 : vector<32x128xi32>
      %142 = arith.extui %141 : vector<32x128xi1> to vector<32x128xi32>
      %143 = arith.sitofp %142 : vector<32x128xi32> to vector<32x128xf32>
      %c0_67 = arith.constant 0 : index
      %c0_68 = arith.constant 0 : index
      %144 = vector.load %arg4[%c0_67, %c0_68] : memref<128x256xf32, #tpu.memory_space<vmem>>, vector<128x256xf32>
      %cst_69 = arith.constant dense<0.000000e+00> : vector<32x256xf32>
      %145 = tpu.matmul %143, %144, %cst_69 {dimension_numbers = #tpu.dot_dimension_numbers<[1], [0], [0], [1], [0, 0, 1, 1], [], []>} : vector<32x128xf32>, vector<128x256xf32>, vector<32x256xf32> -> vector<32x256xf32>
      %146 = vector.shape_cast %145 : vector<32x256xf32> to vector<2x16x256xf32>
      %cst_70 = arith.constant 22.6274166 : f32
      %147 = vector.broadcast %cst_70 : f32 to vector<2x16x256xf32>
      %148 = arith.mulf %146, %147 : vector<2x16x256xf32>
      %c0_71 = arith.constant 0 : index
      %c0_72 = arith.constant 0 : index
      %c0_73 = arith.constant 0 : index
      %149 = vector.load %arg3[%c0_71, %c0_72, %c0_73] : memref<2x1x256xf32, #tpu.memory_space<vmem>>, vector<2x1x256xf32>
      %150 = vector.broadcast %149 : vector<2x1x256xf32> to vector<2x16x256xf32>
      %151 = arith.addf %148, %150 : vector<2x16x256xf32>
      %152 = vector.shape_cast %151 : vector<2x16x256xf32> to vector<32x256xf32>
      %153 = tpu.iota {dimensions = array<i32: 1>} : vector<2x16x256xi32>
      %154 = vector.shape_cast %153 : vector<2x16x256xi32> to vector<32x256xi32>
      %c0_i32_74 = arith.constant 0 : i32
      %155 = vector.broadcast %c0_i32_74 : i32 to vector<32x256xi32>
      %156 = arith.cmpi eq, %154, %155 : vector<32x256xi32>
      %c15_i32 = arith.constant 15 : i32
      %157 = vector.broadcast %c15_i32 : i32 to vector<32x256xi32>
      %158 = arith.cmpi eq, %154, %157 : vector<32x256xi32>
      %c8 = arith.constant 8 : index
      %c0_75 = arith.constant 0 : index
      %159 = vector.load %arg29[%c8, %c0_75] : memref<48x256xf32, #tpu.memory_space<vmem>>, vector<32x256xf32>
      tpu.vector_store %arg29[%c8, %c0_75], %152 {strides = array<i32>} : memref<48x256xf32, #tpu.memory_space<vmem>>, vector<32x256xf32>,
      %c7 = arith.constant 7 : index
      %c0_76 = arith.constant 0 : index
      %160 = vector.load %arg29[%c7, %c0_76] : memref<48x256xf32, #tpu.memory_space<vmem>>, vector<32x256xf32>
      %cst_77 = arith.constant 0.000000e+00 : f32
      %161 = vector.broadcast %cst_77 : f32 to vector<32x256xf32>
      %162 = arith.select %156, %161, %160 : vector<32x256xi1>, vector<32x256xf32>
      %c9 = arith.constant 9 : index
      %c0_78 = arith.constant 0 : index
      %163 = vector.load %arg29[%c9, %c0_78] : memref<48x256xf32, #tpu.memory_space<vmem>>, vector<32x256xf32>
      %cst_79 = arith.constant 0.000000e+00 : f32
      %164 = vector.broadcast %cst_79 : f32 to vector<32x256xf32>
      %165 = arith.select %158, %164, %163 : vector<32x256xi1>, vector<32x256xf32>
      %166 = arith.truncf %162 : vector<32x256xf32> to vector<32x256xbf16>
      %c0_80 = arith.constant 0 : index
      %c0_81 = arith.constant 0 : index
      %c0_82 = arith.constant 0 : index
      %167 = vector.load %arg5[%c0_80, %c0_81, %c0_82] : memref<9x256x256xbf16, #tpu.memory_space<vmem>>, vector<1x256x256xbf16>
      %168 = vector.shape_cast %167 : vector<1x256x256xbf16> to vector<256x256xbf16>
      %cst_83 = arith.constant dense<0.000000e+00> : vector<32x256xf32>
      %169 = tpu.matmul %166, %168, %cst_83 {dimension_numbers = #tpu.dot_dimension_numbers<[1], [0], [0], [1], [0, 0, 1, 1], [], []>} : vector<32x256xbf16>, vector<256x256xbf16>, vector<32x256xf32> -> vector<32x256xf32>
      %170 = arith.truncf %152 : vector<32x256xf32> to vector<32x256xbf16>
      %c1 = arith.constant 1 : index
      %c0_84 = arith.constant 0 : index
      %c0_85 = arith.constant 0 : index
      %171 = vector.load %arg5[%c1, %c0_84, %c0_85] : memref<9x256x256xbf16, #tpu.memory_space<vmem>>, vector<1x256x256xbf16>
      %172 = vector.shape_cast %171 : vector<1x256x256xbf16> to vector<256x256xbf16>
      %cst_86 = arith.constant dense<0.000000e+00> : vector<32x256xf32>
      %173 = tpu.matmul %170, %172, %cst_86 {dimension_numbers = #tpu.dot_dimension_numbers<[1], [0], [0], [1], [0, 0, 1, 1], [], []>} : vector<32x256xbf16>, vector<256x256xbf16>, vector<32x256xf32> -> vector<32x256xf32>
      %174 = arith.addf %169, %173 : vector<32x256xf32>
      %175 = arith.truncf %165 : vector<32x256xf32> to vector<32x256xbf16>
      %c2 = arith.constant 2 : index
      %c0_87 = arith.constant 0 : index
      %c0_88 = arith.constant 0 : index
      %176 = vector.load %arg5[%c2, %c0_87, %c0_88] : memref<9x256x256xbf16, #tpu.memory_space<vmem>>, vector<1x256x256xbf16>
      %177 = vector.shape_cast %176 : vector<1x256x256xbf16> to vector<256x256xbf16>
      %cst_89 = arith.constant dense<0.000000e+00> : vector<32x256xf32>
      %178 = tpu.matmul %175, %177, %cst_89 {dimension_numbers = #tpu.dot_dimension_numbers<[1], [0], [0], [1], [0, 0, 1, 1], [], []>} : vector<32x256xbf16>, vector<256x256xbf16>, vector<32x256xf32> -> vector<32x256xf32>
      %179 = arith.addf %174, %178 : vector<32x256xf32>
      %c0_90 = arith.constant 0 : index
      %c0_91 = arith.constant 0 : index
      %c0_92 = arith.constant 0 : index
      %180 = vector.load %arg6[%c0_90, %c0_91, %c0_92] : memref<3x1x256xf32, #tpu.memory_space<vmem>>, vector<1x1x256xf32>
      %181 = vector.shape_cast %180 : vector<1x1x256xf32> to vector<1x256xf32>
      %182 = vector.broadcast %181 : vector<1x256xf32> to vector<32x256xf32>
      %183 = arith.addf %179, %182 : vector<32x256xf32>
      %cst_93 = arith.constant 0.000000e+00 : f32
      %184 = vector.broadcast %cst_93 : f32 to vector<32x256xf32>
      %185 = arith.maximumf %183, %184 : vector<32x256xf32>
      %c8_94 = arith.constant 8 : index
      %c0_95 = arith.constant 0 : index
      %186 = vector.load %arg29[%c8_94, %c0_95] : memref<48x256xf32, #tpu.memory_space<vmem>>, vector<32x256xf32>
      tpu.vector_store %arg29[%c8_94, %c0_95], %185 {strides = array<i32>} : memref<48x256xf32, #tpu.memory_space<vmem>>, vector<32x256xf32>,
      %c7_96 = arith.constant 7 : index
      %c0_97 = arith.constant 0 : index
      %187 = vector.load %arg29[%c7_96, %c0_97] : memref<48x256xf32, #tpu.memory_space<vmem>>, vector<32x256xf32>
      %cst_98 = arith.constant 0.000000e+00 : f32
      %188 = vector.broadcast %cst_98 : f32 to vector<32x256xf32>
      %189 = arith.select %156, %188, %187 : vector<32x256xi1>, vector<32x256xf32>
      %c9_99 = arith.constant 9 : index
      %c0_100 = arith.constant 0 : index
      %190 = vector.load %arg29[%c9_99, %c0_100] : memref<48x256xf32, #tpu.memory_space<vmem>>, vector<32x256xf32>
      %cst_101 = arith.constant 0.000000e+00 : f32
      %191 = vector.broadcast %cst_101 : f32 to vector<32x256xf32>
      %192 = arith.select %158, %191, %190 : vector<32x256xi1>, vector<32x256xf32>
      %193 = arith.truncf %189 : vector<32x256xf32> to vector<32x256xbf16>
      %c3 = arith.constant 3 : index
      %c0_102 = arith.constant 0 : index
      %c0_103 = arith.constant 0 : index
      %194 = vector.load %arg5[%c3, %c0_102, %c0_103] : memref<9x256x256xbf16, #tpu.memory_space<vmem>>, vector<1x256x256xbf16>
      %195 = vector.shape_cast %194 : vector<1x256x256xbf16> to vector<256x256xbf16>
      %cst_104 = arith.constant dense<0.000000e+00> : vector<32x256xf32>
      %196 = tpu.matmul %193, %195, %cst_104 {dimension_numbers = #tpu.dot_dimension_numbers<[1], [0], [0], [1], [0, 0, 1, 1], [], []>} : vector<32x256xbf16>, vector<256x256xbf16>, vector<32x256xf32> -> vector<32x256xf32>
      %197 = arith.truncf %185 : vector<32x256xf32> to vector<32x256xbf16>
      %c4 = arith.constant 4 : index
      %c0_105 = arith.constant 0 : index
      %c0_106 = arith.constant 0 : index
      %198 = vector.load %arg5[%c4, %c0_105, %c0_106] : memref<9x256x256xbf16, #tpu.memory_space<vmem>>, vector<1x256x256xbf16>
      %199 = vector.shape_cast %198 : vector<1x256x256xbf16> to vector<256x256xbf16>
      %cst_107 = arith.constant dense<0.000000e+00> : vector<32x256xf32>
      %200 = tpu.matmul %197, %199, %cst_107 {dimension_numbers = #tpu.dot_dimension_numbers<[1], [0], [0], [1], [0, 0, 1, 1], [], []>} : vector<32x256xbf16>, vector<256x256xbf16>, vector<32x256xf32> -> vector<32x256xf32>
      %201 = arith.addf %196, %200 : vector<32x256xf32>
      %202 = arith.truncf %192 : vector<32x256xf32> to vector<32x256xbf16>
      %c5 = arith.constant 5 : index
      %c0_108 = arith.constant 0 : index
      %c0_109 = arith.constant 0 : index
      %203 = vector.load %arg5[%c5, %c0_108, %c0_109] : memref<9x256x256xbf16, #tpu.memory_space<vmem>>, vector<1x256x256xbf16>
      %204 = vector.shape_cast %203 : vector<1x256x256xbf16> to vector<256x256xbf16>
      %cst_110 = arith.constant dense<0.000000e+00> : vector<32x256xf32>
      %205 = tpu.matmul %202, %204, %cst_110 {dimension_numbers = #tpu.dot_dimension_numbers<[1], [0], [0], [1], [0, 0, 1, 1], [], []>} : vector<32x256xbf16>, vector<256x256xbf16>, vector<32x256xf32> -> vector<32x256xf32>
      %206 = arith.addf %201, %205 : vector<32x256xf32>
      %c1_111 = arith.constant 1 : index
      %c0_112 = arith.constant 0 : index
      %c0_113 = arith.constant 0 : index
      %207 = vector.load %arg6[%c1_111, %c0_112, %c0_113] : memref<3x1x256xf32, #tpu.memory_space<vmem>>, vector<1x1x256xf32>
      %208 = vector.shape_cast %207 : vector<1x1x256xf32> to vector<1x256xf32>
      %209 = vector.broadcast %208 : vector<1x256xf32> to vector<32x256xf32>
      %210 = arith.addf %206, %209 : vector<32x256xf32>
      %cst_114 = arith.constant 0.000000e+00 : f32
      %211 = vector.broadcast %cst_114 : f32 to vector<32x256xf32>
      %212 = arith.maximumf %210, %211 : vector<32x256xf32>
      %c8_115 = arith.constant 8 : index
      %c0_116 = arith.constant 0 : index
      %213 = vector.load %arg29[%c8_115, %c0_116] : memref<48x256xf32, #tpu.memory_space<vmem>>, vector<32x256xf32>
      tpu.vector_store %arg29[%c8_115, %c0_116], %212 {strides = array<i32>} : memref<48x256xf32, #tpu.memory_space<vmem>>, vector<32x256xf32>,
      %c7_117 = arith.constant 7 : index
      %c0_118 = arith.constant 0 : index
      %214 = vector.load %arg29[%c7_117, %c0_118] : memref<48x256xf32, #tpu.memory_space<vmem>>, vector<32x256xf32>
      %cst_119 = arith.constant 0.000000e+00 : f32
      %215 = vector.broadcast %cst_119 : f32 to vector<32x256xf32>
      %216 = arith.select %156, %215, %214 : vector<32x256xi1>, vector<32x256xf32>
      %c9_120 = arith.constant 9 : index
      %c0_121 = arith.constant 0 : index
      %217 = vector.load %arg29[%c9_120, %c0_121] : memref<48x256xf32, #tpu.memory_space<vmem>>, vector<32x256xf32>
      %cst_122 = arith.constant 0.000000e+00 : f32
      %218 = vector.broadcast %cst_122 : f32 to vector<32x256xf32>
      %219 = arith.select %158, %218, %217 : vector<32x256xi1>, vector<32x256xf32>
      %220 = arith.truncf %216 : vector<32x256xf32> to vector<32x256xbf16>
      %c6 = arith.constant 6 : index
      %c0_123 = arith.constant 0 : index
      %c0_124 = arith.constant 0 : index
      %221 = vector.load %arg5[%c6, %c0_123, %c0_124] : memref<9x256x256xbf16, #tpu.memory_space<vmem>>, vector<1x256x256xbf16>
      %222 = vector.shape_cast %221 : vector<1x256x256xbf16> to vector<256x256xbf16>
      %cst_125 = arith.constant dense<0.000000e+00> : vector<32x256xf32>
      %223 = tpu.matmul %220, %222, %cst_125 {dimension_numbers = #tpu.dot_dimension_numbers<[1], [0], [0], [1], [0, 0, 1, 1], [], []>} : vector<32x256xbf16>, vector<256x256xbf16>, vector<32x256xf32> -> vector<32x256xf32>
      %224 = arith.truncf %212 : vector<32x256xf32> to vector<32x256xbf16>
      %c7_126 = arith.constant 7 : index
      %c0_127 = arith.constant 0 : index
      %c0_128 = arith.constant 0 : index
      %225 = vector.load %arg5[%c7_126, %c0_127, %c0_128] : memref<9x256x256xbf16, #tpu.memory_space<vmem>>, vector<1x256x256xbf16>
      %226 = vector.shape_cast %225 : vector<1x256x256xbf16> to vector<256x256xbf16>
      %cst_129 = arith.constant dense<0.000000e+00> : vector<32x256xf32>
      %227 = tpu.matmul %224, %226, %cst_129 {dimension_numbers = #tpu.dot_dimension_numbers<[1], [0], [0], [1], [0, 0, 1, 1], [], []>} : vector<32x256xbf16>, vector<256x256xbf16>, vector<32x256xf32> -> vector<32x256xf32>
      %228 = arith.addf %223, %227 : vector<32x256xf32>
      %229 = arith.truncf %219 : vector<32x256xf32> to vector<32x256xbf16>
      %c8_130 = arith.constant 8 : index
      %c0_131 = arith.constant 0 : index
      %c0_132 = arith.constant 0 : index
      %230 = vector.load %arg5[%c8_130, %c0_131, %c0_132] : memref<9x256x256xbf16, #tpu.memory_space<vmem>>, vector<1x256x256xbf16>
      %231 = vector.shape_cast %230 : vector<1x256x256xbf16> to vector<256x256xbf16>
      %cst_133 = arith.constant dense<0.000000e+00> : vector<32x256xf32>
      %232 = tpu.matmul %229, %231, %cst_133 {dimension_numbers = #tpu.dot_dimension_numbers<[1], [0], [0], [1], [0, 0, 1, 1], [], []>} : vector<32x256xbf16>, vector<256x256xbf16>, vector<32x256xf32> -> vector<32x256xf32>
      %233 = arith.addf %228, %232 : vector<32x256xf32>
      %c2_134 = arith.constant 2 : index
      %c0_135 = arith.constant 0 : index
      %c0_136 = arith.constant 0 : index
      %234 = vector.load %arg6[%c2_134, %c0_135, %c0_136] : memref<3x1x256xf32, #tpu.memory_space<vmem>>, vector<1x1x256xf32>
      %235 = vector.shape_cast %234 : vector<1x1x256xf32> to vector<1x256xf32>
      %236 = vector.broadcast %235 : vector<1x256xf32> to vector<32x256xf32>
      %237 = arith.addf %233, %236 : vector<32x256xf32>
      %cst_137 = arith.constant 0.000000e+00 : f32
      %238 = vector.broadcast %cst_137 : f32 to vector<32x256xf32>
      %239 = arith.maximumf %237, %238 : vector<32x256xf32>
      %c0_138 = arith.constant 0 : index
      %c0_139 = arith.constant 0 : index
      %240 = vector.load %arg7[%c0_138, %c0_139] : memref<1x256xf32, #tpu.memory_space<vmem>>, vector<1x256xf32>
      %c0_140 = arith.constant 0 : index
      %c0_141 = arith.constant 0 : index
      %241 = vector.load %arg8[%c0_140, %c0_141] : memref<1x256xf32, #tpu.memory_space<vmem>>, vector<1x256xf32>
      %cst_142 = arith.constant dense<0.000000e+00> : vector<32xf32>
      %242 = vector.multi_reduction <add>, %239, %cst_142 [1] : vector<32x256xf32> to vector<32xf32>
      %243 = vector.shape_cast %242 : vector<32xf32> to vector<32x1xf32>
      %cst_143 = arith.constant 2.560000e+02 : f32
      %244 = vector.broadcast %cst_143 : f32 to vector<32x1xf32>
      %245 = arith.divf %243, %244 : vector<32x1xf32>
      %246 = vector.broadcast %245 : vector<32x1xf32> to vector<32x256xf32>
      %247 = arith.subf %239, %246 : vector<32x256xf32>
      %248 = arith.mulf %247, %247 : vector<32x256xf32>
      %cst_144 = arith.constant dense<0.000000e+00> : vector<32xf32>
      %249 = vector.multi_reduction <add>, %248, %cst_144 [1] : vector<32x256xf32> to vector<32xf32>
      %250 = vector.shape_cast %249 : vector<32xf32> to vector<32x1xf32>
      %cst_145 = arith.constant 2.560000e+02 : f32
      %251 = vector.broadcast %cst_145 : f32 to vector<32x1xf32>
      %252 = arith.divf %250, %251 : vector<32x1xf32>
      %cst_146 = arith.constant 9.99999974E-6 : f32
      %253 = vector.broadcast %cst_146 : f32 to vector<32x1xf32>
      %254 = arith.addf %252, %253 : vector<32x1xf32>
      %255 = math.rsqrt %254 : vector<32x1xf32>
      %256 = vector.broadcast %255 : vector<32x1xf32> to vector<32x256xf32>
      %257 = arith.mulf %247, %256 : vector<32x256xf32>
      %258 = vector.broadcast %240 : vector<1x256xf32> to vector<32x256xf32>
      %259 = arith.mulf %257, %258 : vector<32x256xf32>
      %260 = vector.broadcast %241 : vector<1x256xf32> to vector<32x256xf32>
      %261 = arith.addf %259, %260 : vector<32x256xf32>
      %c0_147 = arith.constant 0 : index
      %c0_148 = arith.constant 0 : index
      %262 = vector.load %arg28[%c0_147, %c0_148] : memref<32x256xf32, #tpu.memory_space<vmem>>, vector<32x256xf32>
      tpu.vector_store %arg28[%c0_147, %c0_148], %261 {strides = array<i32>} : memref<32x256xf32, #tpu.memory_space<vmem>>, vector<32x256xf32>,
    } else {
    }
    %c0 = arith.constant 0 : index
    %c0_1 = arith.constant 0 : index
    %3 = vector.load %arg28[%c0, %c0_1] : memref<32x256xf32, #tpu.memory_space<vmem>>, vector<32x256xf32>
    %4 = arith.truncf %3 : vector<32x256xf32> to vector<32x256xbf16>
    %c0_2 = arith.constant 0 : index
    %c0_3 = arith.constant 0 : index
    %c0_4 = arith.constant 0 : index
    %5 = vector.load %arg9[%c0_2, %c0_3, %c0_4] : memref<1x256x768xbf16, #tpu.memory_space<vmem>>, vector<1x256x768xbf16>
    %6 = vector.shape_cast %5 : vector<1x256x768xbf16> to vector<256x768xbf16>
    %cst = arith.constant dense<0.000000e+00> : vector<32x768xf32>
    %7 = tpu.matmul %4, %6, %cst {dimension_numbers = #tpu.dot_dimension_numbers<[1], [0], [0], [1], [0, 0, 1, 1], [], []>} : vector<32x256xbf16>, vector<256x768xbf16>, vector<32x768xf32> -> vector<32x768xf32>
    %c0_5 = arith.constant 0 : index
    %c0_6 = arith.constant 0 : index
    %c0_7 = arith.constant 0 : index
    %8 = vector.load %arg10[%c0_5, %c0_6, %c0_7] : memref<1x1x768xf32, #tpu.memory_space<vmem>>, vector<1x1x768xf32>
    %9 = vector.shape_cast %8 : vector<1x1x768xf32> to vector<1x768xf32>
    %10 = vector.broadcast %9 : vector<1x768xf32> to vector<32x768xf32>
    %11 = arith.addf %7, %10 : vector<32x768xf32>
    %12 = vector.extract_strided_slice %11 {offsets = [0, 0], sizes = [32, 256], strides = [1, 1]} : vector<32x768xf32> to vector<32x256xf32>
    %cst_8 = arith.constant 0.0883883461 : f32
    %13 = vector.broadcast %cst_8 : f32 to vector<32x256xf32>
    %14 = arith.mulf %12, %13 : vector<32x256xf32>
    %15 = arith.truncf %14 : vector<32x256xf32> to vector<32x256xbf16>
    %16 = vector.shape_cast %15 : vector<32x256xbf16> to vector<2x16x256xbf16>
    %17 = vector.extract_strided_slice %11 {offsets = [0, 256], sizes = [32, 256], strides = [1, 1]} : vector<32x768xf32> to vector<32x256xf32>
    %18 = arith.truncf %17 : vector<32x256xf32> to vector<32x256xbf16>
    %19 = vector.shape_cast %18 : vector<32x256xbf16> to vector<2x16x256xbf16>
    %20 = vector.extract_strided_slice %11 {offsets = [0, 512], sizes = [32, 256], strides = [1, 1]} : vector<32x768xf32> to vector<32x256xf32>
    %21 = arith.truncf %20 : vector<32x256xf32> to vector<32x256xbf16>
    %22 = vector.shape_cast %21 : vector<32x256xbf16> to vector<2x16x256xbf16>
    %23 = vector.extract_strided_slice %16 {offsets = [0, 0, 0], sizes = [2, 16, 128], strides = [1, 1, 1]} : vector<2x16x256xbf16> to vector<2x16x128xbf16>
    %24 = vector.extract_strided_slice %19 {offsets = [0, 0, 0], sizes = [2, 16, 128], strides = [1, 1, 1]} : vector<2x16x256xbf16> to vector<2x16x128xbf16>
    "tpu.trace_start"() <{level = 10 : i32, message = "bqd,bkd->bqk"}> : () -> ()
    %cst_9 = arith.constant dense<0.000000e+00> : vector<2x16x16xf32>
    %25 = tpu.matmul %23, %24, %cst_9 {dimension_numbers = #tpu.dot_dimension_numbers<[2], [2], [1], [1], [0, 0, 0, 1, 1, 1], [0], [0]>} : vector<2x16x128xbf16>, vector<2x16x128xbf16>, vector<2x16x16xf32> -> vector<2x16x16xf32>
    "tpu.trace_stop"() : () -> ()
    %cst_10 = arith.constant dense<0xFF800000> : vector<2x16xf32>
    %26 = vector.multi_reduction <maximumf>, %25, %cst_10 [2] : vector<2x16x16xf32> to vector<2x16xf32>
    %27 = vector.shape_cast %26 : vector<2x16xf32> to vector<2x16x1xf32>
    %28 = vector.broadcast %27 : vector<2x16x1xf32> to vector<2x16x16xf32>
    %29 = arith.subf %25, %28 : vector<2x16x16xf32>
    %30 = math.exp %29 : vector<2x16x16xf32>
    %cst_11 = arith.constant dense<0.000000e+00> : vector<2x16xf32>
    %31 = vector.multi_reduction <add>, %30, %cst_11 [2] : vector<2x16x16xf32> to vector<2x16xf32>
    %32 = vector.shape_cast %31 : vector<2x16xf32> to vector<2x16x1xf32>
    %33 = tpu.reciprocal %32 {approx = true} : vector<2x16x1xf32> -> vector<2x16x1xf32>
    %34 = vector.broadcast %33 : vector<2x16x1xf32> to vector<2x16x16xf32>
    %35 = arith.mulf %30, %34 : vector<2x16x16xf32>
    %36 = arith.truncf %35 : vector<2x16x16xf32> to vector<2x16x16xbf16>
    %37 = vector.extract_strided_slice %22 {offsets = [0, 0, 0], sizes = [2, 16, 128], strides = [1, 1, 1]} : vector<2x16x256xbf16> to vector<2x16x128xbf16>
    "tpu.trace_start"() <{level = 10 : i32, message = "bqk,bkd->bqd"}> : () -> ()
    %cst_12 = arith.constant dense<0.000000e+00> : vector<2x16x128xf32>
    %38 = tpu.matmul %36, %37, %cst_12 {dimension_numbers = #tpu.dot_dimension_numbers<[2], [1], [1], [2], [0, 0, 0, 1, 1, 2], [0], [0]>} : vector<2x16x16xbf16>, vector<2x16x128xbf16>, vector<2x16x128xf32> -> vector<2x16x128xf32>
    "tpu.trace_stop"() : () -> ()
    %39 = vector.extract_strided_slice %16 {offsets = [0, 0, 128], sizes = [2, 16, 128], strides = [1, 1, 1]} : vector<2x16x256xbf16> to vector<2x16x128xbf16>
    %40 = vector.extract_strided_slice %19 {offsets = [0, 0, 128], sizes = [2, 16, 128], strides = [1, 1, 1]} : vector<2x16x256xbf16> to vector<2x16x128xbf16>
    "tpu.trace_start"() <{level = 10 : i32, message = "bqd,bkd->bqk"}> : () -> ()
    %cst_13 = arith.constant dense<0.000000e+00> : vector<2x16x16xf32>
    %41 = tpu.matmul %39, %40, %cst_13 {dimension_numbers = #tpu.dot_dimension_numbers<[2], [2], [1], [1], [0, 0, 0, 1, 1, 1], [0], [0]>} : vector<2x16x128xbf16>, vector<2x16x128xbf16>, vector<2x16x16xf32> -> vector<2x16x16xf32>
    "tpu.trace_stop"() : () -> ()
    %cst_14 = arith.constant dense<0xFF800000> : vector<2x16xf32>
    %42 = vector.multi_reduction <maximumf>, %41, %cst_14 [2] : vector<2x16x16xf32> to vector<2x16xf32>
    %43 = vector.shape_cast %42 : vector<2x16xf32> to vector<2x16x1xf32>
    %44 = vector.broadcast %43 : vector<2x16x1xf32> to vector<2x16x16xf32>
    %45 = arith.subf %41, %44 : vector<2x16x16xf32>
    %46 = math.exp %45 : vector<2x16x16xf32>
    %cst_15 = arith.constant dense<0.000000e+00> : vector<2x16xf32>
    %47 = vector.multi_reduction <add>, %46, %cst_15 [2] : vector<2x16x16xf32> to vector<2x16xf32>
    %48 = vector.shape_cast %47 : vector<2x16xf32> to vector<2x16x1xf32>
    %49 = tpu.reciprocal %48 {approx = true} : vector<2x16x1xf32> -> vector<2x16x1xf32>
    %50 = vector.broadcast %49 : vector<2x16x1xf32> to vector<2x16x16xf32>
    %51 = arith.mulf %46, %50 : vector<2x16x16xf32>
    %52 = arith.truncf %51 : vector<2x16x16xf32> to vector<2x16x16xbf16>
    %53 = vector.extract_strided_slice %22 {offsets = [0, 0, 128], sizes = [2, 16, 128], strides = [1, 1, 1]} : vector<2x16x256xbf16> to vector<2x16x128xbf16>
    "tpu.trace_start"() <{level = 10 : i32, message = "bqk,bkd->bqd"}> : () -> ()
    %cst_16 = arith.constant dense<0.000000e+00> : vector<2x16x128xf32>
    %54 = tpu.matmul %52, %53, %cst_16 {dimension_numbers = #tpu.dot_dimension_numbers<[2], [1], [1], [2], [0, 0, 0, 1, 1, 2], [0], [0]>} : vector<2x16x16xbf16>, vector<2x16x128xbf16>, vector<2x16x128xf32> -> vector<2x16x128xf32>
    "tpu.trace_stop"() : () -> ()
    %55 = tpu.concatenate %38, %54 in 2 : vector<2x16x128xf32>, vector<2x16x128xf32> -> vector<2x16x256xf32>
    %56 = vector.shape_cast %55 : vector<2x16x256xf32> to vector<32x256xf32>
    %57 = arith.truncf %56 : vector<32x256xf32> to vector<32x256xbf16>
    %c0_17 = arith.constant 0 : index
    %c0_18 = arith.constant 0 : index
    %c0_19 = arith.constant 0 : index
    %58 = vector.load %arg11[%c0_17, %c0_18, %c0_19] : memref<1x256x256xbf16, #tpu.memory_space<vmem>>, vector<1x256x256xbf16>
    %59 = vector.shape_cast %58 : vector<1x256x256xbf16> to vector<256x256xbf16>
    %cst_20 = arith.constant dense<0.000000e+00> : vector<32x256xf32>
    %60 = tpu.matmul %57, %59, %cst_20 {dimension_numbers = #tpu.dot_dimension_numbers<[1], [0], [0], [1], [0, 0, 1, 1], [], []>} : vector<32x256xbf16>, vector<256x256xbf16>, vector<32x256xf32> -> vector<32x256xf32>
    %c0_21 = arith.constant 0 : index
    %c0_22 = arith.constant 0 : index
    %c0_23 = arith.constant 0 : index
    %61 = vector.load %arg12[%c0_21, %c0_22, %c0_23] : memref<1x1x256xf32, #tpu.memory_space<vmem>>, vector<1x1x256xf32>
    %62 = vector.shape_cast %61 : vector<1x1x256xf32> to vector<1x256xf32>
    %63 = vector.broadcast %62 : vector<1x256xf32> to vector<32x256xf32>
    %64 = arith.addf %60, %63 : vector<32x256xf32>
    %65 = arith.addf %3, %64 : vector<32x256xf32>
    %c0_24 = arith.constant 0 : index
    %c0_25 = arith.constant 0 : index
    %c0_26 = arith.constant 0 : index
    %66 = vector.load %arg13[%c0_24, %c0_25, %c0_26] : memref<1x1x256xf32, #tpu.memory_space<vmem>>, vector<1x1x256xf32>
    %67 = vector.shape_cast %66 : vector<1x1x256xf32> to vector<1x256xf32>
    %c0_27 = arith.constant 0 : index
    %c0_28 = arith.constant 0 : index
    %c0_29 = arith.constant 0 : index
    %68 = vector.load %arg14[%c0_27, %c0_28, %c0_29] : memref<1x1x256xf32, #tpu.memory_space<vmem>>, vector<1x1x256xf32>
    %69 = vector.shape_cast %68 : vector<1x1x256xf32> to vector<1x256xf32>
    %cst_30 = arith.constant dense<0.000000e+00> : vector<32xf32>
    %70 = vector.multi_reduction <add>, %65, %cst_30 [1] : vector<32x256xf32> to vector<32xf32>
    %71 = vector.shape_cast %70 : vector<32xf32> to vector<32x1xf32>
    %cst_31 = arith.constant 2.560000e+02 : f32
    %72 = vector.broadcast %cst_31 : f32 to vector<32x1xf32>
    %73 = arith.divf %71, %72 : vector<32x1xf32>
    %74 = vector.broadcast %73 : vector<32x1xf32> to vector<32x256xf32>
    %75 = arith.subf %65, %74 : vector<32x256xf32>
    %76 = arith.mulf %75, %75 : vector<32x256xf32>
    %cst_32 = arith.constant dense<0.000000e+00> : vector<32xf32>
    %77 = vector.multi_reduction <add>, %76, %cst_32 [1] : vector<32x256xf32> to vector<32xf32>
    %78 = vector.shape_cast %77 : vector<32xf32> to vector<32x1xf32>
    %cst_33 = arith.constant 2.560000e+02 : f32
    %79 = vector.broadcast %cst_33 : f32 to vector<32x1xf32>
    %80 = arith.divf %78, %79 : vector<32x1xf32>
    %cst_34 = arith.constant 9.99999974E-6 : f32
    %81 = vector.broadcast %cst_34 : f32 to vector<32x1xf32>
    %82 = arith.addf %80, %81 : vector<32x1xf32>
    %83 = math.rsqrt %82 : vector<32x1xf32>
    %84 = vector.broadcast %83 : vector<32x1xf32> to vector<32x256xf32>
    %85 = arith.mulf %75, %84 : vector<32x256xf32>
    %86 = vector.broadcast %67 : vector<1x256xf32> to vector<32x256xf32>
    %87 = arith.mulf %85, %86 : vector<32x256xf32>
    %88 = vector.broadcast %69 : vector<1x256xf32> to vector<32x256xf32>
    %89 = arith.addf %87, %88 : vector<32x256xf32>
    %90 = arith.truncf %89 : vector<32x256xf32> to vector<32x256xbf16>
    %c0_35 = arith.constant 0 : index
    %c0_36 = arith.constant 0 : index
    %c0_37 = arith.constant 0 : index
    %91 = vector.load %arg15[%c0_35, %c0_36, %c0_37] : memref<1x256x512xbf16, #tpu.memory_space<vmem>>, vector<1x256x512xbf16>
    %92 = vector.shape_cast %91 : vector<1x256x512xbf16> to vector<256x512xbf16>
    %cst_38 = arith.constant dense<0.000000e+00> : vector<32x512xf32>
    %93 = tpu.matmul %90, %92, %cst_38 {dimension_numbers = #tpu.dot_dimension_numbers<[1], [0], [0], [1], [0, 0, 1, 1], [], []>} : vector<32x256xbf16>, vector<256x512xbf16>, vector<32x512xf32> -> vector<32x512xf32>
    %c0_39 = arith.constant 0 : index
    %c0_40 = arith.constant 0 : index
    %c0_41 = arith.constant 0 : index
    %94 = vector.load %arg16[%c0_39, %c0_40, %c0_41] : memref<1x1x512xf32, #tpu.memory_space<vmem>>, vector<1x1x512xf32>
    %95 = vector.shape_cast %94 : vector<1x1x512xf32> to vector<1x512xf32>
    %96 = vector.broadcast %95 : vector<1x512xf32> to vector<32x512xf32>
    %97 = arith.addf %93, %96 : vector<32x512xf32>
    %cst_42 = arith.constant 0.000000e+00 : f32
    %98 = vector.broadcast %cst_42 : f32 to vector<32x512xf32>
    %99 = arith.maximumf %97, %98 : vector<32x512xf32>
    %100 = arith.truncf %99 : vector<32x512xf32> to vector<32x512xbf16>
    %c0_43 = arith.constant 0 : index
    %c0_44 = arith.constant 0 : index
    %c0_45 = arith.constant 0 : index
    %101 = vector.load %arg17[%c0_43, %c0_44, %c0_45] : memref<1x512x256xbf16, #tpu.memory_space<vmem>>, vector<1x512x256xbf16>
    %102 = vector.shape_cast %101 : vector<1x512x256xbf16> to vector<512x256xbf16>
    %cst_46 = arith.constant dense<0.000000e+00> : vector<32x256xf32>
    %103 = tpu.matmul %100, %102, %cst_46 {dimension_numbers = #tpu.dot_dimension_numbers<[1], [0], [0], [1], [0, 0, 1, 1], [], []>} : vector<32x512xbf16>, vector<512x256xbf16>, vector<32x256xf32> -> vector<32x256xf32>
    %c0_47 = arith.constant 0 : index
    %c0_48 = arith.constant 0 : index
    %c0_49 = arith.constant 0 : index
    %104 = vector.load %arg18[%c0_47, %c0_48, %c0_49] : memref<1x1x256xf32, #tpu.memory_space<vmem>>, vector<1x1x256xf32>
    %105 = vector.shape_cast %104 : vector<1x1x256xf32> to vector<1x256xf32>
    %106 = vector.broadcast %105 : vector<1x256xf32> to vector<32x256xf32>
    %107 = arith.addf %103, %106 : vector<32x256xf32>
    %108 = arith.addf %89, %107 : vector<32x256xf32>
    %c0_50 = arith.constant 0 : index
    %c0_51 = arith.constant 0 : index
    %c0_52 = arith.constant 0 : index
    %109 = vector.load %arg19[%c0_50, %c0_51, %c0_52] : memref<1x1x256xf32, #tpu.memory_space<vmem>>, vector<1x1x256xf32>
    %110 = vector.shape_cast %109 : vector<1x1x256xf32> to vector<1x256xf32>
    %c0_53 = arith.constant 0 : index
    %c0_54 = arith.constant 0 : index
    %c0_55 = arith.constant 0 : index
    %111 = vector.load %arg20[%c0_53, %c0_54, %c0_55] : memref<1x1x256xf32, #tpu.memory_space<vmem>>, vector<1x1x256xf32>
    %112 = vector.shape_cast %111 : vector<1x1x256xf32> to vector<1x256xf32>
    %cst_56 = arith.constant dense<0.000000e+00> : vector<32xf32>
    %113 = vector.multi_reduction <add>, %108, %cst_56 [1] : vector<32x256xf32> to vector<32xf32>
    %114 = vector.shape_cast %113 : vector<32xf32> to vector<32x1xf32>
    %cst_57 = arith.constant 2.560000e+02 : f32
    %115 = vector.broadcast %cst_57 : f32 to vector<32x1xf32>
    %116 = arith.divf %114, %115 : vector<32x1xf32>
    %117 = vector.broadcast %116 : vector<32x1xf32> to vector<32x256xf32>
    %118 = arith.subf %108, %117 : vector<32x256xf32>
    %119 = arith.mulf %118, %118 : vector<32x256xf32>
    %cst_58 = arith.constant dense<0.000000e+00> : vector<32xf32>
    %120 = vector.multi_reduction <add>, %119, %cst_58 [1] : vector<32x256xf32> to vector<32xf32>
    %121 = vector.shape_cast %120 : vector<32xf32> to vector<32x1xf32>
    %cst_59 = arith.constant 2.560000e+02 : f32
    %122 = vector.broadcast %cst_59 : f32 to vector<32x1xf32>
    %123 = arith.divf %121, %122 : vector<32x1xf32>
    %cst_60 = arith.constant 9.99999974E-6 : f32
    %124 = vector.broadcast %cst_60 : f32 to vector<32x1xf32>
    %125 = arith.addf %123, %124 : vector<32x1xf32>
    %126 = math.rsqrt %125 : vector<32x1xf32>
    %127 = vector.broadcast %126 : vector<32x1xf32> to vector<32x256xf32>
    %128 = arith.mulf %118, %127 : vector<32x256xf32>
    %129 = vector.broadcast %110 : vector<1x256xf32> to vector<32x256xf32>
    %130 = arith.mulf %128, %129 : vector<32x256xf32>
    %131 = vector.broadcast %112 : vector<1x256xf32> to vector<32x256xf32>
    %132 = arith.addf %130, %131 : vector<32x256xf32>
    %c0_61 = arith.constant 0 : index
    %c0_62 = arith.constant 0 : index
    %133 = vector.load %arg28[%c0_61, %c0_62] : memref<32x256xf32, #tpu.memory_space<vmem>>, vector<32x256xf32>
    tpu.vector_store %arg28[%c0_61, %c0_62], %132 {strides = array<i32>} : memref<32x256xf32, #tpu.memory_space<vmem>>, vector<32x256xf32>,
    %c1_i32 = arith.constant 1 : i32
    %134 = arith.cmpi eq, %arg1, %c1_i32 : i32
    %135 = arith.extui %134 : i1 to i32
    %c0_i32_63 = arith.constant 0 : i32
    %136 = arith.cmpi ne, %135, %c0_i32_63 : i32
    scf.if %136 {
      %c0_64 = arith.constant 0 : index
      %c0_65 = arith.constant 0 : index
      %137 = vector.load %arg21[%c0_64, %c0_65] : memref<1x256xf32, #tpu.memory_space<vmem>>, vector<1x256xf32>
      %c0_66 = arith.constant 0 : index
      %c0_67 = arith.constant 0 : index
      %138 = vector.load %arg22[%c0_66, %c0_67] : memref<1x256xf32, #tpu.memory_space<vmem>>, vector<1x256xf32>
      %cst_68 = arith.constant dense<0.000000e+00> : vector<32xf32>
      %139 = vector.multi_reduction <add>, %132, %cst_68 [1] : vector<32x256xf32> to vector<32xf32>
      %140 = vector.shape_cast %139 : vector<32xf32> to vector<32x1xf32>
      %cst_69 = arith.constant 2.560000e+02 : f32
      %141 = vector.broadcast %cst_69 : f32 to vector<32x1xf32>
      %142 = arith.divf %140, %141 : vector<32x1xf32>
      %143 = vector.broadcast %142 : vector<32x1xf32> to vector<32x256xf32>
      %144 = arith.subf %132, %143 : vector<32x256xf32>
      %145 = arith.mulf %144, %144 : vector<32x256xf32>
      %cst_70 = arith.constant dense<0.000000e+00> : vector<32xf32>
      %146 = vector.multi_reduction <add>, %145, %cst_70 [1] : vector<32x256xf32> to vector<32xf32>
      %147 = vector.shape_cast %146 : vector<32xf32> to vector<32x1xf32>
      %cst_71 = arith.constant 2.560000e+02 : f32
      %148 = vector.broadcast %cst_71 : f32 to vector<32x1xf32>
      %149 = arith.divf %147, %148 : vector<32x1xf32>
      %cst_72 = arith.constant 9.99999974E-6 : f32
      %150 = vector.broadcast %cst_72 : f32 to vector<32x1xf32>
      %151 = arith.addf %149, %150 : vector<32x1xf32>
      %152 = math.rsqrt %151 : vector<32x1xf32>
      %153 = vector.broadcast %152 : vector<32x1xf32> to vector<32x256xf32>
      %154 = arith.mulf %144, %153 : vector<32x256xf32>
      %155 = vector.broadcast %137 : vector<1x256xf32> to vector<32x256xf32>
      %156 = arith.mulf %154, %155 : vector<32x256xf32>
      %157 = vector.broadcast %138 : vector<1x256xf32> to vector<32x256xf32>
      %158 = arith.addf %156, %157 : vector<32x256xf32>
      %159 = vector.shape_cast %158 : vector<32x256xf32> to vector<2x16x256xf32>
      %cst_73 = arith.constant dense<0.000000e+00> : vector<2x256xf32>
      %160 = vector.multi_reduction <add>, %159, %cst_73 [1] : vector<2x16x256xf32> to vector<2x256xf32>
      %cst_74 = arith.constant 1.600000e+01 : f32
      %161 = vector.broadcast %cst_74 : f32 to vector<2x256xf32>
      %162 = arith.divf %160, %161 : vector<2x256xf32>
      %163 = arith.truncf %162 : vector<2x256xf32> to vector<2x256xbf16>
      %c0_75 = arith.constant 0 : index
      %c0_76 = arith.constant 0 : index
      %164 = vector.load %arg23[%c0_75, %c0_76] : memref<256x128xbf16, #tpu.memory_space<vmem>>, vector<256x128xbf16>
      %cst_77 = arith.constant dense<0.000000e+00> : vector<2x128xf32>
      %165 = tpu.matmul %163, %164, %cst_77 {dimension_numbers = #tpu.dot_dimension_numbers<[1], [0], [0], [1], [0, 0, 1, 1], [], []>} : vector<2x256xbf16>, vector<256x128xbf16>, vector<2x128xf32> -> vector<2x128xf32>
      %c0_78 = arith.constant 0 : index
      %c0_79 = arith.constant 0 : index
      %166 = vector.load %arg24[%c0_78, %c0_79] : memref<1x128xf32, #tpu.memory_space<vmem>>, vector<1x128xf32>
      %167 = vector.broadcast %166 : vector<1x128xf32> to vector<2x128xf32>
      %168 = arith.addf %165, %167 : vector<2x128xf32>
      %cst_80 = arith.constant 0.000000e+00 : f32
      %169 = vector.broadcast %cst_80 : f32 to vector<2x128xf32>
      %170 = arith.maximumf %168, %169 : vector<2x128xf32>
      %171 = arith.truncf %170 : vector<2x128xf32> to vector<2x128xbf16>
      %c0_81 = arith.constant 0 : index
      %c0_82 = arith.constant 0 : index
      %172 = vector.load %arg25[%c0_81, %c0_82] : memref<128x128xbf16, #tpu.memory_space<vmem>>, vector<128x128xbf16>
      %cst_83 = arith.constant dense<0.000000e+00> : vector<2x128xf32>
      %173 = tpu.matmul %171, %172, %cst_83 {dimension_numbers = #tpu.dot_dimension_numbers<[1], [0], [0], [1], [0, 0, 1, 1], [], []>} : vector<2x128xbf16>, vector<128x128xbf16>, vector<2x128xf32> -> vector<2x128xf32>
      %c0_84 = arith.constant 0 : index
      %c0_85 = arith.constant 0 : index
      %174 = vector.load %arg26[%c0_84, %c0_85] : memref<1x128xf32, #tpu.memory_space<vmem>>, vector<1x128xf32>
      %175 = vector.broadcast %174 : vector<1x128xf32> to vector<2x128xf32>
      %176 = arith.addf %173, %175 : vector<2x128xf32>
      %177 = vector.shape_cast %176 : vector<2x128xf32> to vector<2x1x128xf32>
      %c0_86 = arith.constant 0 : index
      %c0_87 = arith.constant 0 : index
      %c0_88 = arith.constant 0 : index
      %178 = vector.load %arg27[%c0_86, %c0_87, %c0_88] : memref<2x1x128xf32, #tpu.memory_space<vmem>>, vector<2x1x128xf32>
      tpu.vector_store %arg27[%c0_86, %c0_87, %c0_88], %177 {strides = array<i32>} : memref<2x1x128xf32, #tpu.memory_space<vmem>>, vector<2x1x128xf32>,
    } else {
    }
    return
  }
  func.func @transform_0(%arg0: i32, %arg1: i32) -> (i32, i32, i32) {
    %c0_i32 = arith.constant 0 : i32
    %c0_i32_0 = arith.constant 0 : i32
    %c0_i32_1 = arith.constant 0 : i32
    return %arg0, %c0_i32, %c0_i32_0 : i32, i32, i32
  }
  func.func @transform_1(%arg0: i32, %arg1: i32) -> (i32, i32, i32) {
    %c0_i32 = arith.constant 0 : i32
    %c0_i32_0 = arith.constant 0 : i32
    %c0_i32_1 = arith.constant 0 : i32
    return %arg0, %c0_i32, %c0_i32_0 : i32, i32, i32
  }
  func.func @transform_2(%arg0: i32, %arg1: i32) -> (i32, i32) {
    %c0_i32 = arith.constant 0 : i32
    %c0_i32_0 = arith.constant 0 : i32
    %c0_i32_1 = arith.constant 0 : i32
    return %c0_i32, %c0_i32_0 : i32, i32
  }
  func.func @transform_3(%arg0: i32, %arg1: i32) -> (i32, i32, i32) {
    %c0_i32 = arith.constant 0 : i32
    %c0_i32_0 = arith.constant 0 : i32
    %c0_i32_1 = arith.constant 0 : i32
    %c0_i32_2 = arith.constant 0 : i32
    return %c0_i32, %c0_i32_0, %c0_i32_1 : i32, i32, i32
  }
  func.func @transform_4(%arg0: i32, %arg1: i32) -> (i32, i32, i32) {
    %c0_i32 = arith.constant 0 : i32
    %c0_i32_0 = arith.constant 0 : i32
    %c0_i32_1 = arith.constant 0 : i32
    %c0_i32_2 = arith.constant 0 : i32
    return %c0_i32, %c0_i32_0, %c0_i32_1 : i32, i32, i32
  }
  func.func @transform_5(%arg0: i32, %arg1: i32) -> (i32, i32) {
    %c0_i32 = arith.constant 0 : i32
    %c0_i32_0 = arith.constant 0 : i32
    %c0_i32_1 = arith.constant 0 : i32
    return %c0_i32, %c0_i32_0 : i32, i32
  }
  func.func @transform_6(%arg0: i32, %arg1: i32) -> (i32, i32) {
    %c0_i32 = arith.constant 0 : i32
    %c0_i32_0 = arith.constant 0 : i32
    %c0_i32_1 = arith.constant 0 : i32
    return %c0_i32, %c0_i32_0 : i32, i32
  }
  func.func @transform_7(%arg0: i32, %arg1: i32) -> (i32, i32, i32) {
    %c0_i32 = arith.constant 0 : i32
    %c0_i32_0 = arith.constant 0 : i32
    %c0_i32_1 = arith.constant 0 : i32
    return %arg1, %c0_i32, %c0_i32_0 : i32, i32, i32
  }
  func.func @transform_8(%arg0: i32, %arg1: i32) -> (i32, i32, i32) {
    %c0_i32 = arith.constant 0 : i32
    %c0_i32_0 = arith.constant 0 : i32
    %c0_i32_1 = arith.constant 0 : i32
    return %arg1, %c0_i32, %c0_i32_0 : i32, i32, i32
  }
  func.func @transform_9(%arg0: i32, %arg1: i32) -> (i32, i32, i32) {
    %c0_i32 = arith.constant 0 : i32
    %c0_i32_0 = arith.constant 0 : i32
    %c0_i32_1 = arith.constant 0 : i32
    return %arg1, %c0_i32, %c0_i32_0 : i32, i32, i32
  }
  func.func @transform_10(%arg0: i32, %arg1: i32) -> (i32, i32, i32) {
    %c0_i32 = arith.constant 0 : i32
    %c0_i32_0 = arith.constant 0 : i32
    %c0_i32_1 = arith.constant 0 : i32
    return %arg1, %c0_i32, %c0_i32_0 : i32, i32, i32
  }
  func.func @transform_11(%arg0: i32, %arg1: i32) -> (i32, i32, i32) {
    %c0_i32 = arith.constant 0 : i32
    %c0_i32_0 = arith.constant 0 : i32
    %c0_i32_1 = arith.constant 0 : i32
    return %arg1, %c0_i32, %c0_i32_0 : i32, i32, i32
  }
  func.func @transform_12(%arg0: i32, %arg1: i32) -> (i32, i32, i32) {
    %c0_i32 = arith.constant 0 : i32
    %c0_i32_0 = arith.constant 0 : i32
    %c0_i32_1 = arith.constant 0 : i32
    return %arg1, %c0_i32, %c0_i32_0 : i32, i32, i32
  }
  func.func @transform_13(%arg0: i32, %arg1: i32) -> (i32, i32, i32) {
    %c0_i32 = arith.constant 0 : i32
    %c0_i32_0 = arith.constant 0 : i32
    %c0_i32_1 = arith.constant 0 : i32
    return %arg1, %c0_i32, %c0_i32_0 : i32, i32, i32
  }
  func.func @transform_14(%arg0: i32, %arg1: i32) -> (i32, i32, i32) {
    %c0_i32 = arith.constant 0 : i32
    %c0_i32_0 = arith.constant 0 : i32
    %c0_i32_1 = arith.constant 0 : i32
    return %arg1, %c0_i32, %c0_i32_0 : i32, i32, i32
  }
  func.func @transform_15(%arg0: i32, %arg1: i32) -> (i32, i32, i32) {
    %c0_i32 = arith.constant 0 : i32
    %c0_i32_0 = arith.constant 0 : i32
    %c0_i32_1 = arith.constant 0 : i32
    return %arg1, %c0_i32, %c0_i32_0 : i32, i32, i32
  }
  func.func @transform_16(%arg0: i32, %arg1: i32) -> (i32, i32, i32) {
    %c0_i32 = arith.constant 0 : i32
    %c0_i32_0 = arith.constant 0 : i32
    %c0_i32_1 = arith.constant 0 : i32
    return %arg1, %c0_i32, %c0_i32_0 : i32, i32, i32
  }
  func.func @transform_17(%arg0: i32, %arg1: i32) -> (i32, i32, i32) {
    %c0_i32 = arith.constant 0 : i32
    %c0_i32_0 = arith.constant 0 : i32
    %c0_i32_1 = arith.constant 0 : i32
    return %arg1, %c0_i32, %c0_i32_0 : i32, i32, i32
  }
  func.func @transform_18(%arg0: i32, %arg1: i32) -> (i32, i32, i32) {
    %c0_i32 = arith.constant 0 : i32
    %c0_i32_0 = arith.constant 0 : i32
    %c0_i32_1 = arith.constant 0 : i32
    return %arg1, %c0_i32, %c0_i32_0 : i32, i32, i32
  }
  func.func @transform_19(%arg0: i32, %arg1: i32) -> (i32, i32) {
    %c0_i32 = arith.constant 0 : i32
    %c0_i32_0 = arith.constant 0 : i32
    %c0_i32_1 = arith.constant 0 : i32
    return %c0_i32, %c0_i32_0 : i32, i32
  }
  func.func @transform_20(%arg0: i32, %arg1: i32) -> (i32, i32) {
    %c0_i32 = arith.constant 0 : i32
    %c0_i32_0 = arith.constant 0 : i32
    %c0_i32_1 = arith.constant 0 : i32
    return %c0_i32, %c0_i32_0 : i32, i32
  }
  func.func @transform_21(%arg0: i32, %arg1: i32) -> (i32, i32) {
    %c0_i32 = arith.constant 0 : i32
    %c0_i32_0 = arith.constant 0 : i32
    %c0_i32_1 = arith.constant 0 : i32
    return %c0_i32, %c0_i32_0 : i32, i32
  }
  func.func @transform_22(%arg0: i32, %arg1: i32) -> (i32, i32) {
    %c0_i32 = arith.constant 0 : i32
    %c0_i32_0 = arith.constant 0 : i32
    %c0_i32_1 = arith.constant 0 : i32
    return %c0_i32, %c0_i32_0 : i32, i32
  }
  func.func @transform_23(%arg0: i32, %arg1: i32) -> (i32, i32) {
    %c0_i32 = arith.constant 0 : i32
    %c0_i32_0 = arith.constant 0 : i32
    %c0_i32_1 = arith.constant 0 : i32
    return %c0_i32, %c0_i32_0 : i32, i32
  }
  func.func @transform_24(%arg0: i32, %arg1: i32) -> (i32, i32) {
    %c0_i32 = arith.constant 0 : i32
    %c0_i32_0 = arith.constant 0 : i32
    %c0_i32_1 = arith.constant 0 : i32
    return %c0_i32, %c0_i32_0 : i32, i32
  }
  func.func @transform_25(%arg0: i32, %arg1: i32) -> (i32, i32, i32) {
    %c0_i32 = arith.constant 0 : i32
    %c0_i32_0 = arith.constant 0 : i32
    %c0_i32_1 = arith.constant 0 : i32
    return %arg0, %c0_i32, %c0_i32_0 : i32, i32, i32
  }
}

</mosaic_0001>

<llo_original>
// kernel: smotif_transformer_forward.1
$region0: #{smotif_transformer_forward.1}
  #allocation0 [shape = 'u32[]', space=smem, size = 0x4, offset = 0x4, fixed_abs, tag = 'smem constant byte address 0x4 - core index']
  #allocation1 [shape = 'u32[144,128]{1,0:T(1,128)}', space=vmem, size = 0x12000, scoped, tag = 'internal scratch']
  #allocation2 [shape = 'f32[32,256]{1,0:T(8,128)}', space=vmem, size = 0x8000, scoped, tag = 'scratch operand']
  #allocation3 [shape = 'f32[48,256]{1,0:T(8,128)}', space=vmem, size = 0xc000, scoped, tag = 'scratch operand']
  %s0 = inlined_call_operand.vmem [shape: s32[2,16,1], index: 0, kind: input, shape index: {}]
  %s1 = inlined_call_operand.vmem [shape: f32[2,1,256], index: 1, kind: input, shape index: {}]
  %s2 = inlined_call_operand.hbm [shape: f32[128,256], index: 2, kind: input, shape index: {}]
  %s3 = inlined_call_operand.hbm [shape: bf16[9,256,256], index: 3, kind: input, shape index: {}]
  %s4 = inlined_call_operand.hbm [shape: f32[3,1,256], index: 4, kind: input, shape index: {}]
  %s5 = inlined_call_operand.hbm [shape: f32[1,256], index: 5, kind: input, shape index: {}]
  %s6 = inlined_call_operand.hbm [shape: f32[1,256], index: 6, kind: input, shape index: {}]
  %s7 = inlined_call_operand.hbm [shape: bf16[2,256,768], index: 7, kind: input, shape index: {}]
  %s8 = inlined_call_operand.hbm [shape: f32[2,1,768], index: 8, kind: input, shape index: {}]
  %s9 = inlined_call_operand.hbm [shape: bf16[2,256,256], index: 9, kind: input, shape index: {}]
  %s10 = inlined_call_operand.hbm [shape: f32[2,1,256], index: 10, kind: input, shape index: {}]
  %s11 = inlined_call_operand.hbm [shape: f32[2,1,256], index: 11, kind: input, shape index: {}]
  %s12 = inlined_call_operand.hbm [shape: f32[2,1,256], index: 12, kind: input, shape index: {}]
  %s13 = inlined_call_operand.hbm [shape: bf16[2,256,512], index: 13, kind: input, shape index: {}]
  %s14 = inlined_call_operand.hbm [shape: f32[2,1,512], index: 14, kind: input, shape index: {}]
  %s15 = inlined_call_operand.hbm [shape: bf16[2,512,256], index: 15, kind: input, shape index: {}]
  %s16 = inlined_call_operand.hbm [shape: f32[2,1,256], index: 16, kind: input, shape index: {}]
  %s17 = inlined_call_operand.hbm [shape: f32[2,1,256], index: 17, kind: input, shape index: {}]
  %s18 = inlined_call_operand.hbm [shape: f32[2,1,256], index: 18, kind: input, shape index: {}]
  %s19 = inlined_call_operand.hbm [shape: f32[1,256], index: 19, kind: input, shape index: {}]
  %s20 = inlined_call_operand.hbm [shape: f32[1,256], index: 20, kind: input, shape index: {}]
  %s21 = inlined_call_operand.hbm [shape: bf16[256,128], index: 21, kind: input, shape index: {}]
  %s22 = inlined_call_operand.hbm [shape: f32[1,128], index: 22, kind: input, shape index: {}]
  %s23 = inlined_call_operand.hbm [shape: bf16[128,128], index: 23, kind: input, shape index: {}]
  %s24 = inlined_call_operand.hbm [shape: f32[1,128], index: 24, kind: input, shape index: {}]
  %s25 = inlined_call_operand.hbm [shape: f32[2,1,128], index: 25, kind: output, shape index: {}]
  %s26 = sld [smem:[#allocation0]]
  $region233: #{smotif_transformer_forward.1} parent=0
    _
  %s28 = ssub.s32 1, %s26
  %s29 = scalar_select 0, %s28, %s26
  $region1: #{smotif_transformer_forward.1} parent=0
    #allocation4 [shape = 'u8[131072]{0}', space=vmem, size = 0x20000, scoped, tag = 'input window, operand 2, single buffered']
    #allocation5 [shape = 's32[2]{0}', space=sflag, size = 0x8, scoped, tag = 'scoped memory for smotif_transformer_forward.1']
    #allocation6 [shape = 's32[2]{0}', space=sflag, size = 0x8, scoped, tag = 'scoped memory for smotif_transformer_forward.1']
    #allocation7 [shape = 'u8[1179648]{0}', space=vmem, size = 0x120000, scoped, tag = 'input window, operand 3, single buffered']
    #allocation8 [shape = 's32[1]{0}', space=sflag, size = 0x4, scoped, tag = 'scoped memory for smotif_transformer_forward.1']
    #allocation9 [shape = 'u8[3072]{0}', space=vmem, size = 0xc00, scoped, tag = 'input window, operand 4, single buffered']
    #allocation10 [shape = 'u8[1024]{0}', space=vmem, size = 0x400, scoped, tag = 'input window, operand 5, single buffered']
    #allocation11 [shape = 's32[1]{0}', space=sflag, size = 0x4, scoped, tag = 'scoped memory for smotif_transformer_forward.1']
    #allocation12 [shape = 'u8[1024]{0}', space=vmem, size = 0x400, scoped, tag = 'input window, operand 6, single buffered']
    #allocation13 [shape = 'u8[786432]{0}', space=vmem, size = 0xc0000, scoped, tag = 'input window, operand 7']
    #allocation14 [shape = 's32[2]{0}', space=sflag, size = 0x8, scoped, tag = 'scoped memory for smotif_transformer_forward.1']
    #allocation15 [shape = 'u8[6144]{0}', space=vmem, size = 0x1800, scoped, tag = 'input window, operand 8']
    #allocation16 [shape = 'u8[262144]{0}', space=vmem, size = 0x40000, scoped, tag = 'input window, operand 9']
    #allocation17 [shape = 's32[2]{0}', space=sflag, size = 0x8, scoped, tag = 'scoped memory for smotif_transformer_forward.1']
    #allocation18 [shape = 'u8[2048]{0}', space=vmem, size = 0x800, scoped, tag = 'input window, operand 10']
    #allocation19 [shape = 'u8[2048]{0}', space=vmem, size = 0x800, scoped, tag = 'input window, operand 11']
    #allocation20 [shape = 's32[2]{0}', space=sflag, size = 0x8, scoped, tag = 'scoped memory for smotif_transformer_forward.1']
    #allocation21 [shape = 'u8[2048]{0}', space=vmem, size = 0x800, scoped, tag = 'input window, operand 12']
    #allocation22 [shape = 'u8[524288]{0}', space=vmem, size = 0x80000, scoped, tag = 'input window, operand 13']
    #allocation23 [shape = 's32[2]{0}', space=sflag, size = 0x8, scoped, tag = 'scoped memory for smotif_transformer_forward.1']
    #allocation24 [shape = 'u8[4096]{0}', space=vmem, size = 0x1000, scoped, tag = 'input window, operand 14']
    #allocation25 [shape = 'u8[524288]{0}', space=vmem, size = 0x80000, scoped, tag = 'input window, operand 15']
    #allocation26 [shape = 's32[2]{0}', space=sflag, size = 0x8, scoped, tag = 'scoped memory for smotif_transformer_forward.1']
    #allocation27 [shape = 'u8[2048]{0}', space=vmem, size = 0x800, scoped, tag = 'input window, operand 16']
    #allocation28 [shape = 'u8[2048]{0}', space=vmem, size = 0x800, scoped, tag = 'input window, operand 17']
    #allocation29 [shape = 's32[2]{0}', space=sflag, size = 0x8, scoped, tag = 'scoped memory for smotif_transformer_forward.1']
    #allocation30 [shape = 'u8[2048]{0}', space=vmem, size = 0x800, scoped, tag = 'input window, operand 18']
    #allocation31 [shape = 'u8[1024]{0}', space=vmem, size = 0x400, scoped, tag = 'input window, operand 19, single buffered']
    #allocation32 [shape = 's32[1]{0}', space=sflag, size = 0x4, scoped, tag = 'scoped memory for smotif_transformer_forward.1']
    #allocation33 [shape = 'u8[1024]{0}', space=vmem, size = 0x400, scoped, tag = 'input window, operand 20, single buffered']
    #allocation34 [shape = 'u8[65536]{0}', space=vmem, size = 0x10000, scoped, tag = 'input window, operand 21, single buffered']
    #allocation35 [shape = 's32[1]{0}', space=sflag, size = 0x4, scoped, tag = 'scoped memory for smotif_transformer_forward.1']
    #allocation36 [shape = 'u8[512]{0}', space=vmem, size = 0x400, scoped, tag = 'input window, operand 22, single buffered']
    #allocation37 [shape = 'u8[32768]{0}', space=vmem, size = 0x8000, scoped, tag = 'input window, operand 23, single buffered']
    #allocation38 [shape = 's32[1]{0}', space=sflag, size = 0x4, scoped, tag = 'scoped memory for smotif_transformer_forward.1']
    #allocation39 [shape = 'u8[512]{0}', space=vmem, size = 0x400, scoped, tag = 'input window, operand 24, single buffered']
    #allocation40 [shape = 'u8[1024]{0}', space=vmem, size = 0x400, scoped, tag = 'output window, operand 0, single buffered']
    %30 = vsyncpa [#allocation5], 0
    %31 = vsyncpa [#allocation8], 0
    %32 = vsyncpa [#allocation11], 0
    %33 = vsyncpa [#allocation14], 0
    %s34 = scalar_lea.sflag [#allocation14], 1
    %35 = vsyncpa %s34, 0
    %36 = vsyncpa [#allocation17], 0
    %s37 = scalar_lea.sflag [#allocation17], 1
    %38 = vsyncpa %s37, 0
    %39 = vsyncpa [#allocation20], 0
    %s40 = scalar_lea.sflag [#allocation20], 1
    %41 = vsyncpa %s40, 0
    %42 = vsyncpa [#allocation23], 0
    %s43 = scalar_lea.sflag [#allocation23], 1
    %44 = vsyncpa %s43, 0
    %45 = vsyncpa [#allocation26], 0
    %s46 = scalar_lea.sflag [#allocation26], 1
    %47 = vsyncpa %s46, 0
    %48 = vsyncpa [#allocation29], 0
    %s49 = scalar_lea.sflag [#allocation29], 1
    %50 = vsyncpa %s49, 0
    %51 = vsyncpa [#allocation32], 0
    %52 = vsyncpa [#allocation35], 0
    %53 = vsyncpa [#allocation38], 0
    %54 = vsyncpa [#allocation6], 0
    loop: start=0, step=1, limit=4
    $region2: #{smotif_transformer_forward.1} parent=1 // loop_pre_header
      _
    $region3: #{smotif_transformer_forward.1} parent=1 // loop_header
      %s56 = sphi 0, %s60
      %p57 = scmp.ge.s32.totalorder %s56, 4
      %s63 = sphi 0, %s75
      %s64 = sphi 0, %s71
      %s65 = sphi 0, %s63
      %s66 = sphi 0, %s64
      %s67 = sphi 0, %s65
      %s68 = sphi 0, %s66
      %s78 = sphi 0, %s80
      %s81 = sphi 0, %s78
      %s82 = sphi 0, %s81
      %s98 = sphi 0, %s82
      %s104 = sphi 0, %s106
      %s107 = sphi 0, %s104
      %s108 = sphi 0, %s107
      %s124 = sphi 0, %s108
      %s128 = sphi 0, %s128
      %s130 = sphi 0, %s128
      %s131 = sphi 0, %s130
      %s145 = sphi 0, %s131
      %s149 = sphi 0, %s149
      %s151 = sphi 0, %s149
      %s152 = sphi 0, %s151
      %s166 = sphi 0, %s152
      %s170 = sphi 0, %s170
      %s172 = sphi 0, %s170
      %s173 = sphi 0, %s172
      %s187 = sphi 0, %s173
      %s191 = sphi 0, %s191
      %s193 = sphi 0, %s191
      %s194 = sphi 0, %s193
      %s208 = sphi 0, %s194
      %s212 = sphi 0, %s212
      %s214 = sphi 0, %s212
      %s215 = sphi 0, %s214
      %s229 = sphi 0, %s215
      %s235 = sphi 0, %s237
      %s238 = sphi 0, %s235
      %s239 = sphi 0, %s238
      %s255 = sphi 0, %s239
      %s261 = sphi 0, %s263
      %s264 = sphi 0, %s261
      %s265 = sphi 0, %s264
      %s281 = sphi 0, %s265
      %s287 = sphi 0, %s289
      %s290 = sphi 0, %s287
      %s291 = sphi 0, %s290
      %s307 = sphi 0, %s291
      %s313 = sphi 0, %s315
      %s316 = sphi 0, %s313
      %s317 = sphi 0, %s316
      %s333 = sphi 0, %s317
      %s339 = sphi 0, %s341
      %s342 = sphi 0, %s339
      %s343 = sphi 0, %s342
      %s359 = sphi 0, %s343
      %s365 = sphi 0, %s367
      %s368 = sphi 0, %s365
      %s369 = sphi 0, %s368
      %s385 = sphi 0, %s369
      %s391 = sphi 0, %s393
      %s394 = sphi 0, %s391
      %s395 = sphi 0, %s394
      %s411 = sphi 0, %s395
      %s417 = sphi 0, %s419
      %s420 = sphi 0, %s417
      %s421 = sphi 0, %s420
      %s437 = sphi 0, %s421
      %s443 = sphi 0, %s445
      %s446 = sphi 0, %s443
      %s447 = sphi 0, %s446
      %s463 = sphi 0, %s447
      %s469 = sphi 0, %s471
      %s472 = sphi 0, %s469
      %s473 = sphi 0, %s472
      %s489 = sphi 0, %s473
      %s495 = sphi 0, %s497
      %s498 = sphi 0, %s495
      %s499 = sphi 0, %s498
      %s515 = sphi 0, %s499
      %s521 = sphi 0, %s523
      %s524 = sphi 0, %s521
      %s525 = sphi 0, %s524
      %s541 = sphi 0, %s525
      %s545 = sphi 0, %s545
      %s547 = sphi 0, %s545
      %s548 = sphi 0, %s547
      %s562 = sphi 0, %s548
      %s566 = sphi 0, %s566
      %s568 = sphi 0, %s566
      %s569 = sphi 0, %s568
      %s583 = sphi 0, %s569
      %s587 = sphi 0, %s587
      %s589 = sphi 0, %s587
      %s590 = sphi 0, %s589
      %s604 = sphi 0, %s590
      %s608 = sphi 0, %s608
      %s610 = sphi 0, %s608
      %s611 = sphi 0, %s610
      %s625 = sphi 0, %s611
      %s629 = sphi 0, %s629
      %s631 = sphi 0, %s629
      %s632 = sphi 0, %s631
      %s646 = sphi 0, %s632
      %s650 = sphi 0, %s650
      %s652 = sphi 0, %s650
      %s653 = sphi 0, %s652
      %s667 = sphi 0, %s653
      %s673 = sphi 0, %s675
      %s676 = sphi 0, %s673
      %s677 = sphi 0, %s676
      %s693 = sphi 0, %s677
    $region4: #{smotif_transformer_forward.1} parent=1 // loop_header_branch
      %59 = sbr.rel (%p57) target = $region8
    $region5: #{smotif_transformer_forward.1} parent=1 // loop_body
      %s61 = ssub.s32 %s56, 1
      %s62 = ssub.s32 %s56, 2
      %s69 = sadd.s32 1, %s64
      %p70 = scmp.ge.s32.totalorder %s69, 2
      %s71 = scalar_select %p70, 0, %s69
      %s72 = sadd.s32 1, %s63
      %s73 = scalar_select %p70, %s72, %s63
      %p74 = scmp.ge.s32.totalorder %s73, 1
      %s75 = scalar_select %p74, 0, %s73
      %s76 = ssub.s32 %s63, %s75
      %p77 = scmp.eq.s32.totalorder %s76, 0
      %s79 = sadd.s32 %s78, 1
      %s80 = scalar_select %p77, %s78, %s79
      %p83 = pneg %p77
      %p84 = scmp.eq.s32.totalorder %s56, 1
      %p85 = por %p83, %p84
      %p86 = scmp.ne.s32.totalorder %s78, %s81
      %p87 = scmp.eq.s32.totalorder %s56, 0
      %p88 = por %p86, %p87
      %p89 = scmp.ne.s32.totalorder %s78, %s81
      %p90 = scmp.eq.s32.totalorder %s61, 1
      %p91 = por %p89, %p90
      %p92 = scmp.ne.s32.totalorder %s81, %s82
      %p93 = scmp.eq.s32.totalorder %s61, 0
      %p94 = por %p92, %p93
      %p95 = scmp.ne.s32.totalorder %s81, %s82
      %p96 = scmp.eq.s32.totalorder %s62, 1
      %p97 = por %p95, %p96
      %p99 = scmp.ne.s32.totalorder %s82, %s98
      %p100 = scmp.eq.s32.totalorder %s62, 0
      %p101 = por %p99, %p100
      %s102 = ssub.s32 %s63, %s75
      %p103 = scmp.eq.s32.totalorder %s102, 0
      %s105 = sadd.s32 %s104, 1
      %s106 = scalar_select %p103, %s104, %s105
      %p109 = pneg %p103
      %p110 = scmp.eq.s32.totalorder %s56, 1
      %p111 = por %p109, %p110
      %p112 = scmp.ne.s32.totalorder %s104, %s107
      %p113 = scmp.eq.s32.totalorder %s56, 0
      %p114 = por %p112, %p113
      %p115 = scmp.ne.s32.totalorder %s104, %s107
      %p116 = scmp.eq.s32.totalorder %s61, 1
      %p117 = por %p115, %p116
      %p118 = scmp.ne.s32.totalorder %s107, %s108
      %p119 = scmp.eq.s32.totalorder %s61, 0
      %p120 = por %p118, %p119
      %p121 = scmp.ne.s32.totalorder %s107, %s108
      %p122 = scmp.eq.s32.totalorder %s62, 1
      %p123 = por %p121, %p122
      %p125 = scmp.ne.s32.totalorder %s108, %s124
      %p126 = scmp.eq.s32.totalorder %s62, 0
      %p127 = por %p125, %p126
      %s129 = sadd.s32 %s128, 1
      %p132 = scmp.eq.s32.totalorder %s56, 1
      %p133 = scmp.ne.s32.totalorder %s128, %s130
      %p134 = scmp.eq.s32.totalorder %s56, 0
      %p135 = por %p133, %p134
      %p136 = scmp.ne.s32.totalorder %s128, %s130
      %p137 = scmp.eq.s32.totalorder %s61, 1
      %p138 = por %p136, %p137
      %p139 = scmp.ne.s32.totalorder %s130, %s131
      %p140 = scmp.eq.s32.totalorder %s61, 0
      %p141 = por %p139, %p140
      %p142 = scmp.ne.s32.totalorder %s130, %s131
      %p143 = scmp.eq.s32.totalorder %s62, 1
      %p144 = por %p142, %p143
      %p146 = scmp.ne.s32.totalorder %s131, %s145
      %p147 = scmp.eq.s32.totalorder %s62, 0
      %p148 = por %p146, %p147
      %s150 = sadd.s32 %s149, 1
      %p153 = scmp.eq.s32.totalorder %s56, 1
      %p154 = scmp.ne.s32.totalorder %s149, %s151
      %p155 = scmp.eq.s32.totalorder %s56, 0
      %p156 = por %p154, %p155
      %p157 = scmp.ne.s32.totalorder %s149, %s151
      %p158 = scmp.eq.s32.totalorder %s61, 1
      %p159 = por %p157, %p158
      %p160 = scmp.ne.s32.totalorder %s151, %s152
      %p161 = scmp.eq.s32.totalorder %s61, 0
      %p162 = por %p160, %p161
      %p163 = scmp.ne.s32.totalorder %s151, %s152
      %p164 = scmp.eq.s32.totalorder %s62, 1
      %p165 = por %p163, %p164
      %p167 = scmp.ne.s32.totalorder %s152, %s166
      %p168 = scmp.eq.s32.totalorder %s62, 0
      %p169 = por %p167, %p168
      %s171 = sadd.s32 %s170, 1
      %p174 = scmp.eq.s32.totalorder %s56, 1
      %p175 = scmp.ne.s32.totalorder %s170, %s172
      %p176 = scmp.eq.s32.totalorder %s56, 0
      %p177 = por %p175, %p176
      %p178 = scmp.ne.s32.totalorder %s170, %s172
      %p179 = scmp.eq.s32.totalorder %s61, 1
      %p180 = por %p178, %p179
      %p181 = scmp.ne.s32.totalorder %s172, %s173
      %p182 = scmp.eq.s32.totalorder %s61, 0
      %p183 = por %p181, %p182
      %p184 = scmp.ne.s32.totalorder %s172, %s173
      %p185 = scmp.eq.s32.totalorder %s62, 1
      %p186 = por %p184, %p185
      %p188 = scmp.ne.s32.totalorder %s173, %s187
      %p189 = scmp.eq.s32.totalorder %s62, 0
      %p190 = por %p188, %p189
      %s192 = sadd.s32 %s191, 1
      %p195 = scmp.eq.s32.totalorder %s56, 1
      %p196 = scmp.ne.s32.totalorder %s191, %s193
      %p197 = scmp.eq.s32.totalorder %s56, 0
      %p198 = por %p196, %p197
      %p199 = scmp.ne.s32.totalorder %s191, %s193
      %p200 = scmp.eq.s32.totalorder %s61, 1
      %p201 = por %p199, %p200
      %p202 = scmp.ne.s32.totalorder %s193, %s194
      %p203 = scmp.eq.s32.totalorder %s61, 0
      %p204 = por %p202, %p203
      %p205 = scmp.ne.s32.totalorder %s193, %s194
      %p206 = scmp.eq.s32.totalorder %s62, 1
      %p207 = por %p205, %p206
      %p209 = scmp.ne.s32.totalorder %s194, %s208
      %p210 = scmp.eq.s32.totalorder %s62, 0
      %p211 = por %p209, %p210
      %s213 = sadd.s32 %s212, 1
      %p216 = scmp.eq.s32.totalorder %s56, 1
      %p217 = scmp.ne.s32.totalorder %s212, %s214
      %p218 = scmp.eq.s32.totalorder %s56, 0
      %p219 = por %p217, %p218
      %p220 = scmp.ne.s32.totalorder %s212, %s214
      %p221 = scmp.eq.s32.totalorder %s61, 1
      %p222 = por %p220, %p221
      %p223 = scmp.ne.s32.totalorder %s214, %s215
      %p224 = scmp.eq.s32.totalorder %s61, 0
      %p225 = por %p223, %p224
      %p226 = scmp.ne.s32.totalorder %s214, %s215
      %p227 = scmp.eq.s32.totalorder %s62, 1
      %p228 = por %p226, %p227
      %p230 = scmp.ne.s32.totalorder %s215, %s229
      %p231 = scmp.eq.s32.totalorder %s62, 0
      %p232 = por %p230, %p231
      %s233 = ssub.s32 %s64, %s71
      %p234 = scmp.eq.s32.totalorder %s233, 0
      %s236 = sadd.s32 %s235, 1
      %s237 = scalar_select %p234, %s235, %s236
      %p240 = pneg %p234
      %p241 = scmp.eq.s32.totalorder %s56, 1
      %p242 = por %p240, %p241
      %p243 = scmp.ne.s32.totalorder %s235, %s238
      %p244 = scmp.eq.s32.totalorder %s56, 0
      %p245 = por %p243, %p244
      %p246 = scmp.ne.s32.totalorder %s235, %s238
      %p247 = scmp.eq.s32.totalorder %s61, 1
      %p248 = por %p246, %p247
      %p249 = scmp.ne.s32.totalorder %s238, %s239
      %p250 = scmp.eq.s32.totalorder %s61, 0
      %p251 = por %p249, %p250
      %p252 = scmp.ne.s32.totalorder %s238, %s239
      %p253 = scmp.eq.s32.totalorder %s62, 1
      %p254 = por %p252, %p253
      %p256 = scmp.ne.s32.totalorder %s239, %s255
      %p257 = scmp.eq.s32.totalorder %s62, 0
      %p258 = por %p256, %p257
      %s259 = ssub.s32 %s64, %s71
      %p260 = scmp.eq.s32.totalorder %s259, 0
      %s262 = sadd.s32 %s261, 1
      %s263 = scalar_select %p260, %s261, %s262
      %p266 = pneg %p260
      %p267 = scmp.eq.s32.totalorder %s56, 1
      %p268 = por %p266, %p267
      %p269 = scmp.ne.s32.totalorder %s261, %s264
      %p270 = scmp.eq.s32.totalorder %s56, 0
      %p271 = por %p269, %p270
      %p272 = scmp.ne.s32.totalorder %s261, %s264
      %p273 = scmp.eq.s32.totalorder %s61, 1
      %p274 = por %p272, %p273
      %p275 = scmp.ne.s32.totalorder %s264, %s265
      %p276 = scmp.eq.s32.totalorder %s61, 0
      %p277 = por %p275, %p276
      %p278 = scmp.ne.s32.totalorder %s264, %s265
      %p279 = scmp.eq.s32.totalorder %s62, 1
      %p280 = por %p278, %p279
      %p282 = scmp.ne.s32.totalorder %s265, %s281
      %p283 = scmp.eq.s32.totalorder %s62, 0
      %p284 = por %p282, %p283
      %s285 = ssub.s32 %s64, %s71
      %p286 = scmp.eq.s32.totalorder %s285, 0
      %s288 = sadd.s32 %s287, 1
      %s289 = scalar_select %p286, %s287, %s288
      %p292 = pneg %p286
      %p293 = scmp.eq.s32.totalorder %s56, 1
      %p294 = por %p292, %p293
      %p295 = scmp.ne.s32.totalorder %s287, %s290
      %p296 = scmp.eq.s32.totalorder %s56, 0
      %p297 = por %p295, %p296
      %p298 = scmp.ne.s32.totalorder %s287, %s290
      %p299 = scmp.eq.s32.totalorder %s61, 1
      %p300 = por %p298, %p299
      %p301 = scmp.ne.s32.totalorder %s290, %s291
      %p302 = scmp.eq.s32.totalorder %s61, 0
      %p303 = por %p301, %p302
      %p304 = scmp.ne.s32.totalorder %s290, %s291
      %p305 = scmp.eq.s32.totalorder %s62, 1
      %p306 = por %p304, %p305
      %p308 = scmp.ne.s32.totalorder %s291, %s307
      %p309 = scmp.eq.s32.totalorder %s62, 0
      %p310 = por %p308, %p309
      %s311 = ssub.s32 %s64, %s71
      %p312 = scmp.eq.s32.totalorder %s311, 0
      %s314 = sadd.s32 %s313, 1
      %s315 = scalar_select %p312, %s313, %s314
      %p318 = pneg %p312
      %p319 = scmp.eq.s32.totalorder %s56, 1
      %p320 = por %p318, %p319
      %p321 = scmp.ne.s32.totalorder %s313, %s316
      %p322 = scmp.eq.s32.totalorder %s56, 0
      %p323 = por %p321, %p322
      %p324 = scmp.ne.s32.totalorder %s313, %s316
      %p325 = scmp.eq.s32.totalorder %s61, 1
      %p326 = por %p324, %p325
      %p327 = scmp.ne.s32.totalorder %s316, %s317
      %p328 = scmp.eq.s32.totalorder %s61, 0
      %p329 = por %p327, %p328
      %p330 = scmp.ne.s32.totalorder %s316, %s317
      %p331 = scmp.eq.s32.totalorder %s62, 1
      %p332 = por %p330, %p331
      %p334 = scmp.ne.s32.totalorder %s317, %s333
      %p335 = scmp.eq.s32.totalorder %s62, 0
      %p336 = por %p334, %p335
      %s337 = ssub.s32 %s64, %s71
      %p338 = scmp.eq.s32.totalorder %s337, 0
      %s340 = sadd.s32 %s339, 1
      %s341 = scalar_select %p338, %s339, %s340
      %p344 = pneg %p338
      %p345 = scmp.eq.s32.totalorder %s56, 1
      %p346 = por %p344, %p345
      %p347 = scmp.ne.s32.totalorder %s339, %s342
      %p348 = scmp.eq.s32.totalorder %s56, 0
      %p349 = por %p347, %p348
      %p350 = scmp.ne.s32.totalorder %s339, %s342
      %p351 = scmp.eq.s32.totalorder %s61, 1
      %p352 = por %p350, %p351
      %p353 = scmp.ne.s32.totalorder %s342, %s343
      %p354 = scmp.eq.s32.totalorder %s61, 0
      %p355 = por %p353, %p354
      %p356 = scmp.ne.s32.totalorder %s342, %s343
      %p357 = scmp.eq.s32.totalorder %s62, 1
      %p358 = por %p356, %p357
      %p360 = scmp.ne.s32.totalorder %s343, %s359
      %p361 = scmp.eq.s32.totalorder %s62, 0
      %p362 = por %p360, %p361
      %s363 = ssub.s32 %s64, %s71
      %p364 = scmp.eq.s32.totalorder %s363, 0
      %s366 = sadd.s32 %s365, 1
      %s367 = scalar_select %p364, %s365, %s366
      %p370 = pneg %p364
      %p371 = scmp.eq.s32.totalorder %s56, 1
      %p372 = por %p370, %p371
      %p373 = scmp.ne.s32.totalorder %s365, %s368
      %p374 = scmp.eq.s32.totalorder %s56, 0
      %p375 = por %p373, %p374
      %p376 = scmp.ne.s32.totalorder %s365, %s368
      %p377 = scmp.eq.s32.totalorder %s61, 1
      %p378 = por %p376, %p377
      %p379 = scmp.ne.s32.totalorder %s368, %s369
      %p380 = scmp.eq.s32.totalorder %s61, 0
      %p381 = por %p379, %p380
      %p382 = scmp.ne.s32.totalorder %s368, %s369
      %p383 = scmp.eq.s32.totalorder %s62, 1
      %p384 = por %p382, %p383
      %p386 = scmp.ne.s32.totalorder %s369, %s385
      %p387 = scmp.eq.s32.totalorder %s62, 0
      %p388 = por %p386, %p387
      %s389 = ssub.s32 %s64, %s71
      %p390 = scmp.eq.s32.totalorder %s389, 0
      %s392 = sadd.s32 %s391, 1
      %s393 = scalar_select %p390, %s391, %s392
      %p396 = pneg %p390
      %p397 = scmp.eq.s32.totalorder %s56, 1
      %p398 = por %p396, %p397
      %p399 = scmp.ne.s32.totalorder %s391, %s394
      %p400 = scmp.eq.s32.totalorder %s56, 0
      %p401 = por %p399, %p400
      %p402 = scmp.ne.s32.totalorder %s391, %s394
      %p403 = scmp.eq.s32.totalorder %s61, 1
      %p404 = por %p402, %p403
      %p405 = scmp.ne.s32.totalorder %s394, %s395
      %p406 = scmp.eq.s32.totalorder %s61, 0
      %p407 = por %p405, %p406
      %p408 = scmp.ne.s32.totalorder %s394, %s395
      %p409 = scmp.eq.s32.totalorder %s62, 1
      %p410 = por %p408, %p409
      %p412 = scmp.ne.s32.totalorder %s395, %s411
      %p413 = scmp.eq.s32.totalorder %s62, 0
      %p414 = por %p412, %p413
      %s415 = ssub.s32 %s64, %s71
      %p416 = scmp.eq.s32.totalorder %s415, 0
      %s418 = sadd.s32 %s417, 1
      %s419 = scalar_select %p416, %s417, %s418
      %p422 = pneg %p416
      %p423 = scmp.eq.s32.totalorder %s56, 1
      %p424 = por %p422, %p423
      %p425 = scmp.ne.s32.totalorder %s417, %s420
      %p426 = scmp.eq.s32.totalorder %s56, 0
      %p427 = por %p425, %p426
      %p428 = scmp.ne.s32.totalorder %s417, %s420
      %p429 = scmp.eq.s32.totalorder %s61, 1
      %p430 = por %p428, %p429
      %p431 = scmp.ne.s32.totalorder %s420, %s421
      %p432 = scmp.eq.s32.totalorder %s61, 0
      %p433 = por %p431, %p432
      %p434 = scmp.ne.s32.totalorder %s420, %s421
      %p435 = scmp.eq.s32.totalorder %s62, 1
      %p436 = por %p434, %p435
      %p438 = scmp.ne.s32.totalorder %s421, %s437
      %p439 = scmp.eq.s32.totalorder %s62, 0
      %p440 = por %p438, %p439
      %s441 = ssub.s32 %s64, %s71
      %p442 = scmp.eq.s32.totalorder %s441, 0
      %s444 = sadd.s32 %s443, 1
      %s445 = scalar_select %p442, %s443, %s444
      %p448 = pneg %p442
      %p449 = scmp.eq.s32.totalorder %s56, 1
      %p450 = por %p448, %p449
      %p451 = scmp.ne.s32.totalorder %s443, %s446
      %p452 = scmp.eq.s32.totalorder %s56, 0
      %p453 = por %p451, %p452
      %p454 = scmp.ne.s32.totalorder %s443, %s446
      %p455 = scmp.eq.s32.totalorder %s61, 1
      %p456 = por %p454, %p455
      %p457 = scmp.ne.s32.totalorder %s446, %s447
      %p458 = scmp.eq.s32.totalorder %s61, 0
      %p459 = por %p457, %p458
      %p460 = scmp.ne.s32.totalorder %s446, %s447
      %p461 = scmp.eq.s32.totalorder %s62, 1
      %p462 = por %p460, %p461
      %p464 = scmp.ne.s32.totalorder %s447, %s463
      %p465 = scmp.eq.s32.totalorder %s62, 0
      %p466 = por %p464, %p465
      %s467 = ssub.s32 %s64, %s71
      %p468 = scmp.eq.s32.totalorder %s467, 0
      %s470 = sadd.s32 %s469, 1
      %s471 = scalar_select %p468, %s469, %s470
      %p474 = pneg %p468
      %p475 = scmp.eq.s32.totalorder %s56, 1
      %p476 = por %p474, %p475
      %p477 = scmp.ne.s32.totalorder %s469, %s472
      %p478 = scmp.eq.s32.totalorder %s56, 0
      %p479 = por %p477, %p478
      %p480 = scmp.ne.s32.totalorder %s469, %s472
      %p481 = scmp.eq.s32.totalorder %s61, 1
      %p482 = por %p480, %p481
      %p483 = scmp.ne.s32.totalorder %s472, %s473
      %p484 = scmp.eq.s32.totalorder %s61, 0
      %p485 = por %p483, %p484
      %p486 = scmp.ne.s32.totalorder %s472, %s473
      %p487 = scmp.eq.s32.totalorder %s62, 1
      %p488 = por %p486, %p487
      %p490 = scmp.ne.s32.totalorder %s473, %s489
      %p491 = scmp.eq.s32.totalorder %s62, 0
      %p492 = por %p490, %p491
      %s493 = ssub.s32 %s64, %s71
      %p494 = scmp.eq.s32.totalorder %s493, 0
      %s496 = sadd.s32 %s495, 1
      %s497 = scalar_select %p494, %s495, %s496
      %p500 = pneg %p494
      %p501 = scmp.eq.s32.totalorder %s56, 1
      %p502 = por %p500, %p501
      %p503 = scmp.ne.s32.totalorder %s495, %s498
      %p504 = scmp.eq.s32.totalorder %s56, 0
      %p505 = por %p503, %p504
      %p506 = scmp.ne.s32.totalorder %s495, %s498
      %p507 = scmp.eq.s32.totalorder %s61, 1
      %p508 = por %p506, %p507
      %p509 = scmp.ne.s32.totalorder %s498, %s499
      %p510 = scmp.eq.s32.totalorder %s61, 0
      %p511 = por %p509, %p510
      %p512 = scmp.ne.s32.totalorder %s498, %s499
      %p513 = scmp.eq.s32.totalorder %s62, 1
      %p514 = por %p512, %p513
      %p516 = scmp.ne.s32.totalorder %s499, %s515
      %p517 = scmp.eq.s32.totalorder %s62, 0
      %p518 = por %p516, %p517
      %s519 = ssub.s32 %s64, %s71
      %p520 = scmp.eq.s32.totalorder %s519, 0
      %s522 = sadd.s32 %s521, 1
      %s523 = scalar_select %p520, %s521, %s522
      %p526 = pneg %p520
      %p527 = scmp.eq.s32.totalorder %s56, 1
      %p528 = por %p526, %p527
      %p529 = scmp.ne.s32.totalorder %s521, %s524
      %p530 = scmp.eq.s32.totalorder %s56, 0
      %p531 = por %p529, %p530
      %p532 = scmp.ne.s32.totalorder %s521, %s524
      %p533 = scmp.eq.s32.totalorder %s61, 1
      %p534 = por %p532, %p533
      %p535 = scmp.ne.s32.totalorder %s524, %s525
      %p536 = scmp.eq.s32.totalorder %s61, 0
      %p537 = por %p535, %p536
      %p538 = scmp.ne.s32.totalorder %s524, %s525
      %p539 = scmp.eq.s32.totalorder %s62, 1
      %p540 = por %p538, %p539
      %p542 = scmp.ne.s32.totalorder %s525, %s541
      %p543 = scmp.eq.s32.totalorder %s62, 0
      %p544 = por %p542, %p543
      %s546 = sadd.s32 %s545, 1
      %p549 = scmp.eq.s32.totalorder %s56, 1
      %p550 = scmp.ne.s32.totalorder %s545, %s547
      %p551 = scmp.eq.s32.totalorder %s56, 0
      %p552 = por %p550, %p551
      %p553 = scmp.ne.s32.totalorder %s545, %s547
      %p554 = scmp.eq.s32.totalorder %s61, 1
      %p555 = por %p553, %p554
      %p556 = scmp.ne.s32.totalorder %s547, %s548
      %p557 = scmp.eq.s32.totalorder %s61, 0
      %p558 = por %p556, %p557
      %p559 = scmp.ne.s32.totalorder %s547, %s548
      %p560 = scmp.eq.s32.totalorder %s62, 1
      %p561 = por %p559, %p560
      %p563 = scmp.ne.s32.totalorder %s548, %s562
      %p564 = scmp.eq.s32.totalorder %s62, 0
      %p565 = por %p563, %p564
      %s567 = sadd.s32 %s566, 1
      %p570 = scmp.eq.s32.totalorder %s56, 1
      %p571 = scmp.ne.s32.totalorder %s566, %s568
      %p572 = scmp.eq.s32.totalorder %s56, 0
      %p573 = por %p571, %p572
      %p574 = scmp.ne.s32.totalorder %s566, %s568
      %p575 = scmp.eq.s32.totalorder %s61, 1
      %p576 = por %p574, %p575
      %p577 = scmp.ne.s32.totalorder %s568, %s569
      %p578 = scmp.eq.s32.totalorder %s61, 0
      %p579 = por %p577, %p578
      %p580 = scmp.ne.s32.totalorder %s568, %s569
      %p581 = scmp.eq.s32.totalorder %s62, 1
      %p582 = por %p580, %p581
      %p584 = scmp.ne.s32.totalorder %s569, %s583
      %p585 = scmp.eq.s32.totalorder %s62, 0
      %p586 = por %p584, %p585
      %s588 = sadd.s32 %s587, 1
      %p591 = scmp.eq.s32.totalorder %s56, 1
      %p592 = scmp.ne.s32.totalorder %s587, %s589
      %p593 = scmp.eq.s32.totalorder %s56, 0
      %p594 = por %p592, %p593
      %p595 = scmp.ne.s32.totalorder %s587, %s589
      %p596 = scmp.eq.s32.totalorder %s61, 1
      %p597 = por %p595, %p596
      %p598 = scmp.ne.s32.totalorder %s589, %s590
      %p599 = scmp.eq.s32.totalorder %s61, 0
      %p600 = por %p598, %p599
      %p601 = scmp.ne.s32.totalorder %s589, %s590
      %p602 = scmp.eq.s32.totalorder %s62, 1
      %p603 = por %p601, %p602
      %p605 = scmp.ne.s32.totalorder %s590, %s604
      %p606 = scmp.eq.s32.totalorder %s62, 0
      %p607 = por %p605, %p606
      %s609 = sadd.s32 %s608, 1
      %p612 = scmp.eq.s32.totalorder %s56, 1
      %p613 = scmp.ne.s32.totalorder %s608, %s610
      %p614 = scmp.eq.s32.totalorder %s56, 0
      %p615 = por %p613, %p614
      %p616 = scmp.ne.s32.totalorder %s608, %s610
      %p617 = scmp.eq.s32.totalorder %s61, 1
      %p618 = por %p616, %p617
      %p619 = scmp.ne.s32.totalorder %s610, %s611
      %p620 = scmp.eq.s32.totalorder %s61, 0
      %p621 = por %p619, %p620
      %p622 = scmp.ne.s32.totalorder %s610, %s611
      %p623 = scmp.eq.s32.totalorder %s62, 1
      %p624 = por %p622, %p623
      %p626 = scmp.ne.s32.totalorder %s611, %s625
      %p627 = scmp.eq.s32.totalorder %s62, 0
      %p628 = por %p626, %p627
      %s630 = sadd.s32 %s629, 1
      %p633 = scmp.eq.s32.totalorder %s56, 1
      %p634 = scmp.ne.s32.totalorder %s629, %s631
      %p635 = scmp.eq.s32.totalorder %s56, 0
      %p636 = por %p634, %p635
      %p637 = scmp.ne.s32.totalorder %s629, %s631
      %p638 = scmp.eq.s32.totalorder %s61, 1
      %p639 = por %p637, %p638
      %p640 = scmp.ne.s32.totalorder %s631, %s632
      %p641 = scmp.eq.s32.totalorder %s61, 0
      %p642 = por %p640, %p641
      %p643 = scmp.ne.s32.totalorder %s631, %s632
      %p644 = scmp.eq.s32.totalorder %s62, 1
      %p645 = por %p643, %p644
      %p647 = scmp.ne.s32.totalorder %s632, %s646
      %p648 = scmp.eq.s32.totalorder %s62, 0
      %p649 = por %p647, %p648
      %s651 = sadd.s32 %s650, 1
      %p654 = scmp.eq.s32.totalorder %s56, 1
      %p655 = scmp.ne.s32.totalorder %s650, %s652
      %p656 = scmp.eq.s32.totalorder %s56, 0
      %p657 = por %p655, %p656
      %p658 = scmp.ne.s32.totalorder %s650, %s652
      %p659 = scmp.eq.s32.totalorder %s61, 1
      %p660 = por %p658, %p659
      %p661 = scmp.ne.s32.totalorder %s652, %s653
      %p662 = scmp.eq.s32.totalorder %s61, 0
      %p663 = por %p661, %p662
      %p664 = scmp.ne.s32.totalorder %s652, %s653
      %p665 = scmp.eq.s32.totalorder %s62, 1
      %p666 = por %p664, %p665
      %p668 = scmp.ne.s32.totalorder %s653, %s667
      %p669 = scmp.eq.s32.totalorder %s62, 0
      %p670 = por %p668, %p669
      %s671 = ssub.s32 %s63, %s75
      %p672 = scmp.eq.s32.totalorder %s671, 0
      %s674 = sadd.s32 %s673, 1
      %s675 = scalar_select %p672, %s673, %s674
      %p678 = pneg %p672
      %p679 = scmp.eq.s32.totalorder %s56, 1
      %p680 = por %p678, %p679
      %p681 = scmp.ne.s32.totalorder %s673, %s676
      %p682 = scmp.eq.s32.totalorder %s56, 0
      %p683 = por %p681, %p682
      %p684 = scmp.ne.s32.totalorder %s673, %s676
      %p685 = scmp.eq.s32.totalorder %s61, 1
      %p686 = por %p684, %p685
      %p687 = scmp.ne.s32.totalorder %s676, %s677
      %p688 = scmp.eq.s32.totalorder %s61, 0
      %p689 = por %p687, %p688
      %p690 = scmp.ne.s32.totalorder %s676, %s677
      %p691 = scmp.eq.s32.totalorder %s62, 1
      %p692 = por %p690, %p691
      %p694 = scmp.ne.s32.totalorder %s677, %s693
      %p695 = scmp.eq.s32.totalorder %s62, 0
      %p696 = por %p694, %p695
      %p697 = scmp.le.s32.totalorder 1, %s56
      %p698 = scmp.lt.s32.totalorder %s56, 3
      %p699 = pnand %p697, %p698
      %p700 = pneg %p699
      // Predicated region
      $region9: #{smotif_transformer_forward.1} parent=5 // pred_check
        _
      $region10: #{smotif_transformer_forward.1} parent=5 // pred_check_branch
        %702 = sbr.rel (%p699) target = $region12
      $region11: #{smotif_transformer_forward.1} parent=5 // pred_region
        %s703 = ssub.s32 %s56, 1
        // Predicated region
        $region13: #{smotif_transformer_forward.1} parent=11 // pred_check
          %p704 = pneg %p94
        $region14: #{smotif_transformer_forward.1} parent=11 // pred_check_branch
          %706 = sbr.rel (%p704) target = $region16
        $region15: #{smotif_transformer_forward.1} parent=11 // pred_region
          %s707 = smul.u32 2, %s65
          %p708 = scmp.lt.s32.totalorder %s707, 1
          %s709 = scalar_select %p708, %s707, 1
          %s710 = smul.addr %s709, 2
          %s711 = smul.addr %s710, 8
          %s712 = scalar_lea.vmem %s0, %s711
          %s713 = smul.u32 2, %s65
        $region16: #{smotif_transformer_forward.1} parent=11 // pred_fallthru
          _
        // Predicated region
        $region17: #{smotif_transformer_forward.1} parent=11 // pred_check
          %p714 = pneg %p120
        $region18: #{smotif_transformer_forward.1} parent=11 // pred_check_branch
          %716 = sbr.rel (%p714) target = $region20
        $region19: #{smotif_transformer_forward.1} parent=11 // pred_region
          %s717 = smul.u32 2, %s65
          %p718 = scmp.lt.s32.totalorder %s717, 1
          %s719 = scalar_select %p718, %s717, 1
          %s720 = smul.addr %s719, 2
          %s721 = scalar_lea.vmem %s1, %s720
          %s722 = smul.u32 2, %s65
        $region20: #{smotif_transformer_forward.1} parent=11 // pred_fallthru
          _
        // Predicated region
        $region21: #{smotif_transformer_forward.1} parent=11 // pred_check
          %p723 = pneg %p141
        $region22: #{smotif_transformer_forward.1} parent=11 // pred_check_branch
          %725 = sbr.rel (%p723) target = $region24
        $region23: #{smotif_transformer_forward.1} parent=11 // pred_region
          %s727 = ssub.s32 4096, 4096
          %728 = vsyncadd [#allocation5], %s727
          %s729 = sshll.u32 [#allocation4], 4
          %s730 = int_to_ptr.vmem [resolvable:$true] %s729
          %735 = dma.hbm_to_vmem [thread:$0]  %s2, 4096, %s730, [#allocation5], 256, 256, 16
        $region24: #{smotif_transformer_forward.1} parent=11 // pred_fallthru
          _
        // Predicated region
        $region25: #{smotif_transformer_forward.1} parent=11 // pred_check
          %p736 = pneg %p162
        $region26: #{smotif_transformer_forward.1} parent=11 // pred_check_branch
          %738 = sbr.rel (%p736) target = $region28
        $region27: #{smotif_transformer_forward.1} parent=11 // pred_region
          %s740 = ssub.s32 36864, 36864
          %741 = vsyncadd [#allocation8], %s740
          %s742 = sshll.u32 [#allocation7], 4
          %s743 = int_to_ptr.vmem [resolvable:$true] %s742
          %748 = dma.hbm_to_vmem [thread:$0]  %s3, 36864, %s743, [#allocation8], 128, 128, 8
        $region28: #{smotif_transformer_forward.1} parent=11 // pred_fallthru
          _
        // Predicated region
        $region29: #{smotif_transformer_forward.1} parent=11 // pred_check
          %p749 = pneg %p183
        $region30: #{smotif_transformer_forward.1} parent=11 // pred_check_branch
          %751 = sbr.rel (%p749) target = $region32
        $region31: #{smotif_transformer_forward.1} parent=11 // pred_region
          %s753 = ssub.s32 96, 96
          %754 = vsyncadd [#allocation8], %s753
          %s755 = sshll.u32 [#allocation9], 4
          %s756 = int_to_ptr.vmem [resolvable:$true] %s755
          %761 = dma.hbm_to_vmem [thread:$0]  %s4, 96, %s756, [#allocation8], 32, 32, 2
        $region32: #{smotif_transformer_forward.1} parent=11 // pred_fallthru
          _
        // Predicated region
        $region33: #{smotif_transformer_forward.1} parent=11 // pred_check
          %p762 = pneg %p204
        $region34: #{smotif_transformer_forward.1} parent=11 // pred_check_branch
          %764 = sbr.rel (%p762) target = $region36
        $region35: #{smotif_transformer_forward.1} parent=11 // pred_region
          %s766 = ssub.s32 32, 32
          %767 = vsyncadd [#allocation11], %s766
          %s769 = sshll.u32 [#allocation10], 4
          %s770 = int_to_ptr.vmem [resolvable:$true] %s769
          %772 = dma.hbm_to_vmem [thread:$0]  %s5, 32, %s770, [#allocation11]
        $region36: #{smotif_transformer_forward.1} parent=11 // pred_fallthru
          _
        // Predicated region
        $region37: #{smotif_transformer_forward.1} parent=11 // pred_check
          %p773 = pneg %p225
        $region38: #{smotif_transformer_forward.1} parent=11 // pred_check_branch
          %775 = sbr.rel (%p773) target = $region40
        $region39: #{smotif_transformer_forward.1} parent=11 // pred_region
          %s777 = ssub.s32 32, 32
          %778 = vsyncadd [#allocation11], %s777
          %s780 = sshll.u32 [#allocation12], 4
          %s781 = int_to_ptr.vmem [resolvable:$true] %s780
          %783 = dma.hbm_to_vmem [thread:$0]  %s6, 32, %s781, [#allocation11]
        $region40: #{smotif_transformer_forward.1} parent=11 // pred_fallthru
          _
        // Predicated region
        $region41: #{smotif_transformer_forward.1} parent=11 // pred_check
          %p784 = pneg %p558
        $region42: #{smotif_transformer_forward.1} parent=11 // pred_check_branch
          %786 = sbr.rel (%p784) target = $region44
        $region43: #{smotif_transformer_forward.1} parent=11 // pred_region
          %s788 = ssub.s32 32, 32
          %789 = vsyncadd [#allocation32], %s788
          %s791 = sshll.u32 [#allocation31], 4
          %s792 = int_to_ptr.vmem [resolvable:$true] %s791
          %794 = dma.hbm_to_vmem [thread:$0]  %s19, 32, %s792, [#allocation32]
        $region44: #{smotif_transformer_forward.1} parent=11 // pred_fallthru
          _
        // Predicated region
        $region45: #{smotif_transformer_forward.1} parent=11 // pred_check
          %p795 = pneg %p579
        $region46: #{smotif_transformer_forward.1} parent=11 // pred_check_branch
          %797 = sbr.rel (%p795) target = $region48
        $region47: #{smotif_transformer_forward.1} parent=11 // pred_region
          %s799 = ssub.s32 32, 32
          %800 = vsyncadd [#allocation32], %s799
          %s802 = sshll.u32 [#allocation33], 4
          %s803 = int_to_ptr.vmem [resolvable:$true] %s802
          %805 = dma.hbm_to_vmem [thread:$0]  %s20, 32, %s803, [#allocation32]
        $region48: #{smotif_transformer_forward.1} parent=11 // pred_fallthru
          _
        // Predicated region
        $region49: #{smotif_transformer_forward.1} parent=11 // pred_check
          %p806 = pneg %p600
        $region50: #{smotif_transformer_forward.1} parent=11 // pred_check_branch
          %808 = sbr.rel (%p806) target = $region52
        $region51: #{smotif_transformer_forward.1} parent=11 // pred_region
          %s810 = ssub.s32 2048, 2048
          %811 = vsyncadd [#allocation35], %s810
          %s812 = sshll.u32 [#allocation34], 4
          %s813 = int_to_ptr.vmem [resolvable:$true] %s812
          %818 = dma.hbm_to_vmem [thread:$0]  %s21, 2048, %s813, [#allocation35], 64, 64, 4
        $region52: #{smotif_transformer_forward.1} parent=11 // pred_fallthru
          _
        // Predicated region
        $region53: #{smotif_transformer_forward.1} parent=11 // pred_check
          %p819 = pneg %p621
        $region54: #{smotif_transformer_forward.1} parent=11 // pred_check_branch
          %821 = sbr.rel (%p819) target = $region56
        $region55: #{smotif_transformer_forward.1} parent=11 // pred_region
          %s823 = ssub.s32 16, 16
          %824 = vsyncadd [#allocation35], %s823
          %s826 = sshll.u32 [#allocation36], 4
          %s827 = int_to_ptr.vmem [resolvable:$true] %s826
          %829 = dma.hbm_to_vmem [thread:$0]  %s22, 16, %s827, [#allocation35]
        $region56: #{smotif_transformer_forward.1} parent=11 // pred_fallthru
          _
        // Predicated region
        $region57: #{smotif_transformer_forward.1} parent=11 // pred_check
          %p830 = pneg %p642
        $region58: #{smotif_transformer_forward.1} parent=11 // pred_check_branch
          %832 = sbr.rel (%p830) target = $region60
        $region59: #{smotif_transformer_forward.1} parent=11 // pred_region
          %s834 = ssub.s32 1024, 1024
          %835 = vsyncadd [#allocation38], %s834
          %s836 = sshll.u32 [#allocation37], 4
          %s837 = int_to_ptr.vmem [resolvable:$true] %s836
          %842 = dma.hbm_to_vmem [thread:$0]  %s23, 1024, %s837, [#allocation38], 64, 64, 4
        $region60: #{smotif_transformer_forward.1} parent=11 // pred_fallthru
          _
        // Predicated region
        $region61: #{smotif_transformer_forward.1} parent=11 // pred_check
          %p843 = pneg %p663
        $region62: #{smotif_transformer_forward.1} parent=11 // pred_check_branch
          %845 = sbr.rel (%p843) target = $region64
        $region63: #{smotif_transformer_forward.1} parent=11 // pred_region
          %s847 = ssub.s32 16, 16
          %848 = vsyncadd [#allocation38], %s847
          %s850 = sshll.u32 [#allocation39], 4
          %s851 = int_to_ptr.vmem [resolvable:$true] %s850
          %853 = dma.hbm_to_vmem [thread:$0]  %s24, 16, %s851, [#allocation38]
        $region64: #{smotif_transformer_forward.1} parent=11 // pred_fallthru
          _
      $region12: #{smotif_transformer_forward.1} parent=5 // pred_fallthru
        _
      %p854 = scmp.lt.s32.totalorder %s56, 2
      // Predicated region
      $region65: #{smotif_transformer_forward.1} parent=5 // pred_check
        %p855 = pneg %p854
      $region66: #{smotif_transformer_forward.1} parent=5 // pred_check_branch
        %857 = sbr.rel (%p855) target = $region68
      $region67: #{smotif_transformer_forward.1} parent=5 // pred_region
        // Predicated region
        $region69: #{smotif_transformer_forward.1} parent=67 // pred_check
          %p858 = pneg %p245
        $region70: #{smotif_transformer_forward.1} parent=67 // pred_check_branch
          %860 = sbr.rel (%p858) target = $region72
        $region71: #{smotif_transformer_forward.1} parent=67 // pred_region
          %s861 = sand.u32 %s56, 1
          %s862 = scalar_lea.sflag [#allocation14], %s861
          %s863 = sand.u32 %s235, 1
          %s864 = smul.addr %s863, 768
          %s865 = scalar_lea.vmem [#allocation13], %s864
          %s867 = ssub.s32 12288, 12288
          %868 = vsyncadd %s862, %s867
          %s869 = smul.addr %s64, 192
          %s870 = smul.addr %s869, 64
          %s871 = scalar_lea.hbm %s7, %s870
          %s872 = sshll.u32 %s865, 4
          %s873 = int_to_ptr.vmem [resolvable:$true] %s872
          %878 = dma.hbm_to_vmem [thread:$0]  %s871, 12288, %s873, %s862, 384, 384, 24
        $region72: #{smotif_transformer_forward.1} parent=67 // pred_fallthru
          _
        // Predicated region
        $region73: #{smotif_transformer_forward.1} parent=67 // pred_check
          %p879 = pneg %p271
        $region74: #{smotif_transformer_forward.1} parent=67 // pred_check_branch
          %881 = sbr.rel (%p879) target = $region76
        $region75: #{smotif_transformer_forward.1} parent=67 // pred_region
          %s882 = sand.u32 %s56, 1
          %s883 = scalar_lea.sflag [#allocation14], %s882
          %s884 = sand.u32 %s261, 1
          %s885 = smul.addr %s884, 6
          %s886 = scalar_lea.vmem [#allocation15], %s885
          %s888 = ssub.s32 96, 96
          %889 = vsyncadd %s883, %s888
          %s890 = smul.addr %s64, 6
          %s891 = smul.addr %s890, 16
          %s892 = scalar_lea.hbm %s8, %s891
          %s894 = sshll.u32 %s886, 4
          %s895 = int_to_ptr.vmem [resolvable:$true] %s894
          %897 = dma.hbm_to_vmem [thread:$0]  %s892, 96, %s895, %s883
        $region76: #{smotif_transformer_forward.1} parent=67 // pred_fallthru
          _
        // Predicated region
        $region77: #{smotif_transformer_forward.1} parent=67 // pred_check
          %p898 = pneg %p297
        $region78: #{smotif_transformer_forward.1} parent=67 // pred_check_branch
          %900 = sbr.rel (%p898) target = $region80
        $region79: #{smotif_transformer_forward.1} parent=67 // pred_region
          %s901 = sand.u32 %s56, 1
          %s902 = scalar_lea.sflag [#allocation17], %s901
          %s903 = sand.u32 %s287, 1
          %s904 = smul.addr %s903, 256
          %s905 = scalar_lea.vmem [#allocation16], %s904
          %s907 = ssub.s32 4096, 4096
          %908 = vsyncadd %s902, %s907
          %s909 = smul.addr %s64, 64
          %s910 = smul.addr %s909, 64
          %s911 = scalar_lea.hbm %s9, %s910
          %s912 = sshll.u32 %s905, 4
          %s913 = int_to_ptr.vmem [resolvable:$true] %s912
          %918 = dma.hbm_to_vmem [thread:$0]  %s911, 4096, %s913, %s902, 128, 128, 8
        $region80: #{smotif_transformer_forward.1} parent=67 // pred_fallthru
          _
        // Predicated region
        $region81: #{smotif_transformer_forward.1} parent=67 // pred_check
          %p919 = pneg %p323
        $region82: #{smotif_transformer_forward.1} parent=67 // pred_check_branch
          %921 = sbr.rel (%p919) target = $region84
        $region83: #{smotif_transformer_forward.1} parent=67 // pred_region
          %s922 = sand.u32 %s56, 1
          %s923 = scalar_lea.sflag [#allocation17], %s922
          %s924 = sand.u32 %s313, 1
          %s925 = smul.addr %s924, 2
          %s926 = scalar_lea.vmem [#allocation18], %s925
          %s928 = ssub.s32 32, 32
          %929 = vsyncadd %s923, %s928
          %s930 = smul.addr %s64, 2
          %s931 = smul.addr %s930, 16
          %s932 = scalar_lea.hbm %s10, %s931
          %s934 = sshll.u32 %s926, 4
          %s935 = int_to_ptr.vmem [resolvable:$true] %s934
          %937 = dma.hbm_to_vmem [thread:$0]  %s932, 32, %s935, %s923
        $region84: #{smotif_transformer_forward.1} parent=67 // pred_fallthru
          _
        // Predicated region
        $region85: #{smotif_transformer_forward.1} parent=67 // pred_check
          %p938 = pneg %p349
        $region86: #{smotif_transformer_forward.1} parent=67 // pred_check_branch
          %940 = sbr.rel (%p938) target = $region88
        $region87: #{smotif_transformer_forward.1} parent=67 // pred_region
          %s941 = sand.u32 %s56, 1
          %s942 = scalar_lea.sflag [#allocation20], %s941
          %s943 = sand.u32 %s339, 1
          %s944 = smul.addr %s943, 2
          %s945 = scalar_lea.vmem [#allocation19], %s944
          %s947 = ssub.s32 32, 32
          %948 = vsyncadd %s942, %s947
          %s949 = smul.addr %s64, 2
          %s950 = smul.addr %s949, 16
          %s951 = scalar_lea.hbm %s11, %s950
          %s953 = sshll.u32 %s945, 4
          %s954 = int_to_ptr.vmem [resolvable:$true] %s953
          %956 = dma.hbm_to_vmem [thread:$0]  %s951, 32, %s954, %s942
        $region88: #{smotif_transformer_forward.1} parent=67 // pred_fallthru
          _
        // Predicated region
        $region89: #{smotif_transformer_forward.1} parent=67 // pred_check
          %p957 = pneg %p375
        $region90: #{smotif_transformer_forward.1} parent=67 // pred_check_branch
          %959 = sbr.rel (%p957) target = $region92
        $region91: #{smotif_transformer_forward.1} parent=67 // pred_region
          %s960 = sand.u32 %s56, 1
          %s961 = scalar_lea.sflag [#allocation20], %s960
          %s962 = sand.u32 %s365, 1
          %s963 = smul.addr %s962, 2
          %s964 = scalar_lea.vmem [#allocation21], %s963
          %s966 = ssub.s32 32, 32
          %967 = vsyncadd %s961, %s966
          %s968 = smul.addr %s64, 2
          %s969 = smul.addr %s968, 16
          %s970 = scalar_lea.hbm %s12, %s969
          %s972 = sshll.u32 %s964, 4
          %s973 = int_to_ptr.vmem [resolvable:$true] %s972
          %975 = dma.hbm_to_vmem [thread:$0]  %s970, 32, %s973, %s961
        $region92: #{smotif_transformer_forward.1} parent=67 // pred_fallthru
          _
        // Predicated region
        $region93: #{smotif_transformer_forward.1} parent=67 // pred_check
          %p976 = pneg %p401
        $region94: #{smotif_transformer_forward.1} parent=67 // pred_check_branch
          %978 = sbr.rel (%p976) target = $region96
        $region95: #{smotif_transformer_forward.1} parent=67 // pred_region
          %s979 = sand.u32 %s56, 1
          %s980 = scalar_lea.sflag [#allocation23], %s979
          %s981 = sand.u32 %s391, 1
          %s982 = smul.addr %s981, 512
          %s983 = scalar_lea.vmem [#allocation22], %s982
          %s985 = ssub.s32 8192, 8192
          %986 = vsyncadd %s980, %s985
          %s987 = smul.addr %s64, 128
          %s988 = smul.addr %s987, 64
          %s989 = scalar_lea.hbm %s13, %s988
          %s990 = sshll.u32 %s983, 4
          %s991 = int_to_ptr.vmem [resolvable:$true] %s990
          %996 = dma.hbm_to_vmem [thread:$0]  %s989, 8192, %s991, %s980, 256, 256, 16
        $region96: #{smotif_transformer_forward.1} parent=67 // pred_fallthru
          _
        // Predicated region
        $region97: #{smotif_transformer_forward.1} parent=67 // pred_check
          %p997 = pneg %p427
        $region98: #{smotif_transformer_forward.1} parent=67 // pred_check_branch
          %999 = sbr.rel (%p997) target = $region100
        $region99: #{smotif_transformer_forward.1} parent=67 // pred_region
          %s1000 = sand.u32 %s56, 1
          %s1001 = scalar_lea.sflag [#allocation23], %s1000
          %s1002 = sand.u32 %s417, 1
          %s1003 = smul.addr %s1002, 4
          %s1004 = scalar_lea.vmem [#allocation24], %s1003
          %s1006 = ssub.s32 64, 64
          %1007 = vsyncadd %s1001, %s1006
          %s1008 = smul.addr %s64, 4
          %s1009 = smul.addr %s1008, 16
          %s1010 = scalar_lea.hbm %s14, %s1009
          %s1012 = sshll.u32 %s1004, 4
          %s1013 = int_to_ptr.vmem [resolvable:$true] %s1012
          %1015 = dma.hbm_to_vmem [thread:$0]  %s1010, 64, %s1013, %s1001
        $region100: #{smotif_transformer_forward.1} parent=67 // pred_fallthru
          _
        // Predicated region
        $region101: #{smotif_transformer_forward.1} parent=67 // pred_check
          %p1016 = pneg %p453
        $region102: #{smotif_transformer_forward.1} parent=67 // pred_check_branch
          %1018 = sbr.rel (%p1016) target = $region104
        $region103: #{smotif_transformer_forward.1} parent=67 // pred_region
          %s1019 = sand.u32 %s56, 1
          %s1020 = scalar_lea.sflag [#allocation26], %s1019
          %s1021 = sand.u32 %s443, 1
          %s1022 = smul.addr %s1021, 512
          %s1023 = scalar_lea.vmem [#allocation25], %s1022
          %s1025 = ssub.s32 8192, 8192
          %1026 = vsyncadd %s1020, %s1025
          %s1027 = smul.addr %s64, 128
          %s1028 = smul.addr %s1027, 64
          %s1029 = scalar_lea.hbm %s15, %s1028
          %s1030 = sshll.u32 %s1023, 4
          %s1031 = int_to_ptr.vmem [resolvable:$true] %s1030
          %1036 = dma.hbm_to_vmem [thread:$0]  %s1029, 8192, %s1031, %s1020, 128, 128, 8
        $region104: #{smotif_transformer_forward.1} parent=67 // pred_fallthru
          _
        // Predicated region
        $region105: #{smotif_transformer_forward.1} parent=67 // pred_check
          %p1037 = pneg %p479
        $region106: #{smotif_transformer_forward.1} parent=67 // pred_check_branch
          %1039 = sbr.rel (%p1037) target = $region108
        $region107: #{smotif_transformer_forward.1} parent=67 // pred_region
          %s1040 = sand.u32 %s56, 1
          %s1041 = scalar_lea.sflag [#allocation26], %s1040
          %s1042 = sand.u32 %s469, 1
          %s1043 = smul.addr %s1042, 2
          %s1044 = scalar_lea.vmem [#allocation27], %s1043
          %s1046 = ssub.s32 32, 32
          %1047 = vsyncadd %s1041, %s1046
          %s1048 = smul.addr %s64, 2
          %s1049 = smul.addr %s1048, 16
          %s1050 = scalar_lea.hbm %s16, %s1049
          %s1052 = sshll.u32 %s1044, 4
          %s1053 = int_to_ptr.vmem [resolvable:$true] %s1052
          %1055 = dma.hbm_to_vmem [thread:$0]  %s1050, 32, %s1053, %s1041
        $region108: #{smotif_transformer_forward.1} parent=67 // pred_fallthru
          _
        // Predicated region
        $region109: #{smotif_transformer_forward.1} parent=67 // pred_check
          %p1056 = pneg %p505
        $region110: #{smotif_transformer_forward.1} parent=67 // pred_check_branch
          %1058 = sbr.rel (%p1056) target = $region112
        $region111: #{smotif_transformer_forward.1} parent=67 // pred_region
          %s1059 = sand.u32 %s56, 1
          %s1060 = scalar_lea.sflag [#allocation29], %s1059
          %s1061 = sand.u32 %s495, 1
          %s1062 = smul.addr %s1061, 2
          %s1063 = scalar_lea.vmem [#allocation28], %s1062
          %s1065 = ssub.s32 32, 32
          %1066 = vsyncadd %s1060, %s1065
          %s1067 = smul.addr %s64, 2
          %s1068 = smul.addr %s1067, 16
          %s1069 = scalar_lea.hbm %s17, %s1068
          %s1071 = sshll.u32 %s1063, 4
          %s1072 = int_to_ptr.vmem [resolvable:$true] %s1071
          %1074 = dma.hbm_to_vmem [thread:$0]  %s1069, 32, %s1072, %s1060
        $region112: #{smotif_transformer_forward.1} parent=67 // pred_fallthru
          _
        // Predicated region
        $region113: #{smotif_transformer_forward.1} parent=67 // pred_check
          %p1075 = pneg %p531
        $region114: #{smotif_transformer_forward.1} parent=67 // pred_check_branch
          %1077 = sbr.rel (%p1075) target = $region116
        $region115: #{smotif_transformer_forward.1} parent=67 // pred_region
          %s1078 = sand.u32 %s56, 1
          %s1079 = scalar_lea.sflag [#allocation29], %s1078
          %s1080 = sand.u32 %s521, 1
          %s1081 = smul.addr %s1080, 2
          %s1082 = scalar_lea.vmem [#allocation30], %s1081
          %s1084 = ssub.s32 32, 32
          %1085 = vsyncadd %s1079, %s1084
          %s1086 = smul.addr %s64, 2
          %s1087 = smul.addr %s1086, 16
          %s1088 = scalar_lea.hbm %s18, %s1087
          %s1090 = sshll.u32 %s1082, 4
          %s1091 = int_to_ptr.vmem [resolvable:$true] %s1090
          %1093 = dma.hbm_to_vmem [thread:$0]  %s1088, 32, %s1091, %s1079
        $region116: #{smotif_transformer_forward.1} parent=67 // pred_fallthru
          _
      $region68: #{smotif_transformer_forward.1} parent=5 // pred_fallthru
        _
      %p1094 = scmp.le.s32.totalorder 1, %s56
      %p1095 = scmp.lt.s32.totalorder %s56, 3
      %p1096 = pnand %p1094, %p1095
      %p1097 = pneg %p1096
      // Predicated region
      $region117: #{smotif_transformer_forward.1} parent=5 // pred_check
        _
      $region118: #{smotif_transformer_forward.1} parent=5 // pred_check_branch
        %1099 = sbr.rel (%p1096) target = $region120
      $region119: #{smotif_transformer_forward.1} parent=5 // pred_region
        %s1100 = ssub.s32 %s56, 1
        // Predicated region
        $region121: #{smotif_transformer_forward.1} parent=119 // pred_check
          %p1101 = pneg %p141
        $region122: #{smotif_transformer_forward.1} parent=119 // pred_check_branch
          %1103 = sbr.rel (%p1101) target = $region124
        $region123: #{smotif_transformer_forward.1} parent=119 // pred_region
          %1104 = dma.done [#allocation5], 4096
        $region124: #{smotif_transformer_forward.1} parent=119 // pred_fallthru
          _
        // Predicated region
        $region125: #{smotif_transformer_forward.1} parent=119 // pred_check
          %p1105 = pneg %p162
        $region126: #{smotif_transformer_forward.1} parent=119 // pred_check_branch
          %1107 = sbr.rel (%p1105) target = $region128
        $region127: #{smotif_transformer_forward.1} parent=119 // pred_region
          %1108 = dma.done [#allocation8], 36864
        $region128: #{smotif_transformer_forward.1} parent=119 // pred_fallthru
          _
        // Predicated region
        $region129: #{smotif_transformer_forward.1} parent=119 // pred_check
          %p1109 = pneg %p183
        $region130: #{smotif_transformer_forward.1} parent=119 // pred_check_branch
          %1111 = sbr.rel (%p1109) target = $region132
        $region131: #{smotif_transformer_forward.1} parent=119 // pred_region
          %1112 = dma.done [#allocation8], 96
        $region132: #{smotif_transformer_forward.1} parent=119 // pred_fallthru
          _
        // Predicated region
        $region133: #{smotif_transformer_forward.1} parent=119 // pred_check
          %p1113 = pneg %p204
        $region134: #{smotif_transformer_forward.1} parent=119 // pred_check_branch
          %1115 = sbr.rel (%p1113) target = $region136
        $region135: #{smotif_transformer_forward.1} parent=119 // pred_region
          %1116 = dma.done [#allocation11], 32
        $region136: #{smotif_transformer_forward.1} parent=119 // pred_fallthru
          _
        // Predicated region
        $region137: #{smotif_transformer_forward.1} parent=119 // pred_check
          %p1117 = pneg %p225
        $region138: #{smotif_transformer_forward.1} parent=119 // pred_check_branch
          %1119 = sbr.rel (%p1117) target = $region140
        $region139: #{smotif_transformer_forward.1} parent=119 // pred_region
          %1120 = dma.done [#allocation11], 32
        $region140: #{smotif_transformer_forward.1} parent=119 // pred_fallthru
          _
        %s1121 = sand.u32 %s61, 1
        %s1122 = scalar_lea.sflag [#allocation14], %s1121
        %s1123 = sand.u32 %s238, 1
        %s1124 = smul.addr %s1123, 768
        %s1125 = scalar_lea.vmem [#allocation13], %s1124
        // Predicated region
        $region141: #{smotif_transformer_forward.1} parent=119 // pred_check
          %p1126 = pneg %p251
        $region142: #{smotif_transformer_forward.1} parent=119 // pred_check_branch
          %1128 = sbr.rel (%p1126) target = $region144
        $region143: #{smotif_transformer_forward.1} parent=119 // pred_region
          %1129 = dma.done %s1122, 12288
        $region144: #{smotif_transformer_forward.1} parent=119 // pred_fallthru
          _
        %s1130 = sand.u32 %s61, 1
        %s1131 = scalar_lea.sflag [#allocation14], %s1130
        %s1132 = sand.u32 %s264, 1
        %s1133 = smul.addr %s1132, 6
        %s1134 = scalar_lea.vmem [#allocation15], %s1133
        // Predicated region
        $region145: #{smotif_transformer_forward.1} parent=119 // pred_check
          %p1135 = pneg %p277
        $region146: #{smotif_transformer_forward.1} parent=119 // pred_check_branch
          %1137 = sbr.rel (%p1135) target = $region148
        $region147: #{smotif_transformer_forward.1} parent=119 // pred_region
          %1138 = dma.done %s1131, 96
        $region148: #{smotif_transformer_forward.1} parent=119 // pred_fallthru
          _
        %s1139 = sand.u32 %s61, 1
        %s1140 = scalar_lea.sflag [#allocation17], %s1139
        %s1141 = sand.u32 %s290, 1
        %s1142 = smul.addr %s1141, 256
        %s1143 = scalar_lea.vmem [#allocation16], %s1142
        // Predicated region
        $region149: #{smotif_transformer_forward.1} parent=119 // pred_check
          %p1144 = pneg %p303
        $region150: #{smotif_transformer_forward.1} parent=119 // pred_check_branch
          %1146 = sbr.rel (%p1144) target = $region152
        $region151: #{smotif_transformer_forward.1} parent=119 // pred_region
          %1147 = dma.done %s1140, 4096
        $region152: #{smotif_transformer_forward.1} parent=119 // pred_fallthru
          _
        %s1148 = sand.u32 %s61, 1
        %s1149 = scalar_lea.sflag [#allocation17], %s1148
        %s1150 = sand.u32 %s316, 1
        %s1151 = smul.addr %s1150, 2
        %s1152 = scalar_lea.vmem [#allocation18], %s1151
        // Predicated region
        $region153: #{smotif_transformer_forward.1} parent=119 // pred_check
          %p1153 = pneg %p329
        $region154: #{smotif_transformer_forward.1} parent=119 // pred_check_branch
          %1155 = sbr.rel (%p1153) target = $region156
        $region155: #{smotif_transformer_forward.1} parent=119 // pred_region
          %1156 = dma.done %s1149, 32
        $region156: #{smotif_transformer_forward.1} parent=119 // pred_fallthru
          _
        %s1157 = sand.u32 %s61, 1
        %s1158 = scalar_lea.sflag [#allocation20], %s1157
        %s1159 = sand.u32 %s342, 1
        %s1160 = smul.addr %s1159, 2
        %s1161 = scalar_lea.vmem [#allocation19], %s1160
        // Predicated region
        $region157: #{smotif_transformer_forward.1} parent=119 // pred_check
          %p1162 = pneg %p355
        $region158: #{smotif_transformer_forward.1} parent=119 // pred_check_branch
          %1164 = sbr.rel (%p1162) target = $region160
        $region159: #{smotif_transformer_forward.1} parent=119 // pred_region
          %1165 = dma.done %s1158, 32
        $region160: #{smotif_transformer_forward.1} parent=119 // pred_fallthru
          _
        %s1166 = sand.u32 %s61, 1
        %s1167 = scalar_lea.sflag [#allocation20], %s1166
        %s1168 = sand.u32 %s368, 1
        %s1169 = smul.addr %s1168, 2
        %s1170 = scalar_lea.vmem [#allocation21], %s1169
        // Predicated region
        $region161: #{smotif_transformer_forward.1} parent=119 // pred_check
          %p1171 = pneg %p381
        $region162: #{smotif_transformer_forward.1} parent=119 // pred_check_branch
          %1173 = sbr.rel (%p1171) target = $region164
        $region163: #{smotif_transformer_forward.1} parent=119 // pred_region
          %1174 = dma.done %s1167, 32
        $region164: #{smotif_transformer_forward.1} parent=119 // pred_fallthru
          _
        %s1175 = sand.u32 %s61, 1
        %s1176 = scalar_lea.sflag [#allocation23], %s1175
        %s1177 = sand.u32 %s394, 1
        %s1178 = smul.addr %s1177, 512
        %s1179 = scalar_lea.vmem [#allocation22], %s1178
        // Predicated region
        $region165: #{smotif_transformer_forward.1} parent=119 // pred_check
          %p1180 = pneg %p407
        $region166: #{smotif_transformer_forward.1} parent=119 // pred_check_branch
          %1182 = sbr.rel (%p1180) target = $region168
        $region167: #{smotif_transformer_forward.1} parent=119 // pred_region
          %1183 = dma.done %s1176, 8192
        $region168: #{smotif_transformer_forward.1} parent=119 // pred_fallthru
          _
        %s1184 = sand.u32 %s61, 1
        %s1185 = scalar_lea.sflag [#allocation23], %s1184
        %s1186 = sand.u32 %s420, 1
        %s1187 = smul.addr %s1186, 4
        %s1188 = scalar_lea.vmem [#allocation24], %s1187
        // Predicated region
        $region169: #{smotif_transformer_forward.1} parent=119 // pred_check
          %p1189 = pneg %p433
        $region170: #{smotif_transformer_forward.1} parent=119 // pred_check_branch
          %1191 = sbr.rel (%p1189) target = $region172
        $region171: #{smotif_transformer_forward.1} parent=119 // pred_region
          %1192 = dma.done %s1185, 64
        $region172: #{smotif_transformer_forward.1} parent=119 // pred_fallthru
          _
        %s1193 = sand.u32 %s61, 1
        %s1194 = scalar_lea.sflag [#allocation26], %s1193
        %s1195 = sand.u32 %s446, 1
        %s1196 = smul.addr %s1195, 512
        %s1197 = scalar_lea.vmem [#allocation25], %s1196
        // Predicated region
        $region173: #{smotif_transformer_forward.1} parent=119 // pred_check
          %p1198 = pneg %p459
        $region174: #{smotif_transformer_forward.1} parent=119 // pred_check_branch
          %1200 = sbr.rel (%p1198) target = $region176
        $region175: #{smotif_transformer_forward.1} parent=119 // pred_region
          %1201 = dma.done %s1194, 8192
        $region176: #{smotif_transformer_forward.1} parent=119 // pred_fallthru
          _
        %s1202 = sand.u32 %s61, 1
        %s1203 = scalar_lea.sflag [#allocation26], %s1202
        %s1204 = sand.u32 %s472, 1
        %s1205 = smul.addr %s1204, 2
        %s1206 = scalar_lea.vmem [#allocation27], %s1205
        // Predicated region
        $region177: #{smotif_transformer_forward.1} parent=119 // pred_check
          %p1207 = pneg %p485
        $region178: #{smotif_transformer_forward.1} parent=119 // pred_check_branch
          %1209 = sbr.rel (%p1207) target = $region180
        $region179: #{smotif_transformer_forward.1} parent=119 // pred_region
          %1210 = dma.done %s1203, 32
        $region180: #{smotif_transformer_forward.1} parent=119 // pred_fallthru
          _
        %s1211 = sand.u32 %s61, 1
        %s1212 = scalar_lea.sflag [#allocation29], %s1211
        %s1213 = sand.u32 %s498, 1
        %s1214 = smul.addr %s1213, 2
        %s1215 = scalar_lea.vmem [#allocation28], %s1214
        // Predicated region
        $region181: #{smotif_transformer_forward.1} parent=119 // pred_check
          %p1216 = pneg %p511
        $region182: #{smotif_transformer_forward.1} parent=119 // pred_check_branch
          %1218 = sbr.rel (%p1216) target = $region184
        $region183: #{smotif_transformer_forward.1} parent=119 // pred_region
          %1219 = dma.done %s1212, 32
        $region184: #{smotif_transformer_forward.1} parent=119 // pred_fallthru
          _
        %s1220 = sand.u32 %s61, 1
        %s1221 = scalar_lea.sflag [#allocation29], %s1220
        %s1222 = sand.u32 %s524, 1
        %s1223 = smul.addr %s1222, 2
        %s1224 = scalar_lea.vmem [#allocation30], %s1223
        // Predicated region
        $region185: #{smotif_transformer_forward.1} parent=119 // pred_check
          %p1225 = pneg %p537
        $region186: #{smotif_transformer_forward.1} parent=119 // pred_check_branch
          %1227 = sbr.rel (%p1225) target = $region188
        $region187: #{smotif_transformer_forward.1} parent=119 // pred_region
          %1228 = dma.done %s1221, 32
        $region188: #{smotif_transformer_forward.1} parent=119 // pred_fallthru
          _
        // Predicated region
        $region189: #{smotif_transformer_forward.1} parent=119 // pred_check
          %p1229 = pneg %p558
        $region190: #{smotif_transformer_forward.1} parent=119 // pred_check_branch
          %1231 = sbr.rel (%p1229) target = $region192
        $region191: #{smotif_transformer_forward.1} parent=119 // pred_region
          %1232 = dma.done [#allocation32], 32
        $region192: #{smotif_transformer_forward.1} parent=119 // pred_fallthru
          _
        // Predicated region
        $region193: #{smotif_transformer_forward.1} parent=119 // pred_check
          %p1233 = pneg %p579
        $region194: #{smotif_transformer_forward.1} parent=119 // pred_check_branch
          %1235 = sbr.rel (%p1233) target = $region196
        $region195: #{smotif_transformer_forward.1} parent=119 // pred_region
          %1236 = dma.done [#allocation32], 32
        $region196: #{smotif_transformer_forward.1} parent=119 // pred_fallthru
          _
        // Predicated region
        $region197: #{smotif_transformer_forward.1} parent=119 // pred_check
          %p1237 = pneg %p600
        $region198: #{smotif_transformer_forward.1} parent=119 // pred_check_branch
          %1239 = sbr.rel (%p1237) target = $region200
        $region199: #{smotif_transformer_forward.1} parent=119 // pred_region
          %1240 = dma.done [#allocation35], 2048
        $region200: #{smotif_transformer_forward.1} parent=119 // pred_fallthru
          _
        // Predicated region
        $region201: #{smotif_transformer_forward.1} parent=119 // pred_check
          %p1241 = pneg %p621
        $region202: #{smotif_transformer_forward.1} parent=119 // pred_check_branch
          %1243 = sbr.rel (%p1241) target = $region204
        $region203: #{smotif_transformer_forward.1} parent=119 // pred_region
          %1244 = dma.done [#allocation35], 16
        $region204: #{smotif_transformer_forward.1} parent=119 // pred_fallthru
          _
        // Predicated region
        $region205: #{smotif_transformer_forward.1} parent=119 // pred_check
          %p1245 = pneg %p642
        $region206: #{smotif_transformer_forward.1} parent=119 // pred_check_branch
          %1247 = sbr.rel (%p1245) target = $region208
        $region207: #{smotif_transformer_forward.1} parent=119 // pred_region
          %1248 = dma.done [#allocation38], 1024
        $region208: #{smotif_transformer_forward.1} parent=119 // pred_fallthru
          _
        // Predicated region
        $region209: #{smotif_transformer_forward.1} parent=119 // pred_check
          %p1249 = pneg %p663
        $region210: #{smotif_transformer_forward.1} parent=119 // pred_check_branch
          %1251 = sbr.rel (%p1249) target = $region212
        $region211: #{smotif_transformer_forward.1} parent=119 // pred_region
          %1252 = dma.done [#allocation38], 16
        $region212: #{smotif_transformer_forward.1} parent=119 // pred_fallthru
          _
        %s1253 = smul.u32 2, %s65
        %p1254 = scmp.lt.s32.totalorder %s1253, 1
        %s1255 = scalar_select %p1254, %s1253, 1
        %s1256 = smul.addr %s1255, 2
        %s1257 = smul.addr %s1256, 8
        %s1258 = scalar_lea.vmem %s0, %s1257
        %p1259 = pneg %p94
        %p1260 = pneg %p91
        %s1261 = smul.u32 2, %s65
        %p1262 = scmp.lt.s32.totalorder %s1261, 1
        %s1263 = scalar_select %p1262, %s1261, 1
        %s1264 = smul.addr %s1263, 2
        %s1265 = scalar_lea.vmem %s1, %s1264
        %p1266 = pneg %p120
        %p1267 = pneg %p117
        %p1268 = pneg %p141
        %p1269 = pneg %p138
        %p1270 = pneg %p162
        %p1271 = pneg %p159
        %p1272 = pneg %p183
        %p1273 = pneg %p180
        %p1274 = pneg %p204
        %p1275 = pneg %p201
        %p1276 = pneg %p225
        %p1277 = pneg %p222
        %s1278 = sand.u32 %s61, 1
        %s1279 = scalar_lea.sflag [#allocation14], %s1278
        %s1280 = sand.u32 %s238, 1
        %s1281 = smul.addr %s1280, 768
        %s1282 = scalar_lea.vmem [#allocation13], %s1281
        %p1283 = pneg %p251
        %p1284 = pneg %p248
        %s1285 = sand.u32 %s61, 1
        %s1286 = scalar_lea.sflag [#allocation14], %s1285
        %s1287 = sand.u32 %s264, 1
        %s1288 = smul.addr %s1287, 6
        %s1289 = scalar_lea.vmem [#allocation15], %s1288
        %p1290 = pneg %p277
        %p1291 = pneg %p274
        %s1292 = sand.u32 %s61, 1
        %s1293 = scalar_lea.sflag [#allocation17], %s1292
        %s1294 = sand.u32 %s290, 1
        %s1295 = smul.addr %s1294, 256
        %s1296 = scalar_lea.vmem [#allocation16], %s1295
        %p1297 = pneg %p303
        %p1298 = pneg %p300
        %s1299 = sand.u32 %s61, 1
        %s1300 = scalar_lea.sflag [#allocation17], %s1299
        %s1301 = sand.u32 %s316, 1
        %s1302 = smul.addr %s1301, 2
        %s1303 = scalar_lea.vmem [#allocation18], %s1302
        %p1304 = pneg %p329
        %p1305 = pneg %p326
        %s1306 = sand.u32 %s61, 1
        %s1307 = scalar_lea.sflag [#allocation20], %s1306
        %s1308 = sand.u32 %s342, 1
        %s1309 = smul.addr %s1308, 2
        %s1310 = scalar_lea.vmem [#allocation19], %s1309
        %p1311 = pneg %p355
        %p1312 = pneg %p352
        %s1313 = sand.u32 %s61, 1
        %s1314 = scalar_lea.sflag [#allocation20], %s1313
        %s1315 = sand.u32 %s368, 1
        %s1316 = smul.addr %s1315, 2
        %s1317 = scalar_lea.vmem [#allocation21], %s1316
        %p1318 = pneg %p381
        %p1319 = pneg %p378
        %s1320 = sand.u32 %s61, 1
        %s1321 = scalar_lea.sflag [#allocation23], %s1320
        %s1322 = sand.u32 %s394, 1
        %s1323 = smul.addr %s1322, 512
        %s1324 = scalar_lea.vmem [#allocation22], %s1323
        %p1325 = pneg %p407
        %p1326 = pneg %p404
        %s1327 = sand.u32 %s61, 1
        %s1328 = scalar_lea.sflag [#allocation23], %s1327
        %s1329 = sand.u32 %s420, 1
        %s1330 = smul.addr %s1329, 4
        %s1331 = scalar_lea.vmem [#allocation24], %s1330
        %p1332 = pneg %p433
        %p1333 = pneg %p430
        %s1334 = sand.u32 %s61, 1
        %s1335 = scalar_lea.sflag [#allocation26], %s1334
        %s1336 = sand.u32 %s446, 1
        %s1337 = smul.addr %s1336, 512
        %s1338 = scalar_lea.vmem [#allocation25], %s1337
        %p1339 = pneg %p459
        %p1340 = pneg %p456
        %s1341 = sand.u32 %s61, 1
        %s1342 = scalar_lea.sflag [#allocation26], %s1341
        %s1343 = sand.u32 %s472, 1
        %s1344 = smul.addr %s1343, 2
        %s1345 = scalar_lea.vmem [#allocation27], %s1344
        %p1346 = pneg %p485
        %p1347 = pneg %p482
        %s1348 = sand.u32 %s61, 1
        %s1349 = scalar_lea.sflag [#allocation29], %s1348
        %s1350 = sand.u32 %s498, 1
        %s1351 = smul.addr %s1350, 2
        %s1352 = scalar_lea.vmem [#allocation28], %s1351
        %p1353 = pneg %p511
        %p1354 = pneg %p508
        %s1355 = sand.u32 %s61, 1
        %s1356 = scalar_lea.sflag [#allocation29], %s1355
        %s1357 = sand.u32 %s524, 1
        %s1358 = smul.addr %s1357, 2
        %s1359 = scalar_lea.vmem [#allocation30], %s1358
        %p1360 = pneg %p537
        %p1361 = pneg %p534
        %p1362 = pneg %p558
        %p1363 = pneg %p555
        %p1364 = pneg %p579
        %p1365 = pneg %p576
        %p1366 = pneg %p600
        %p1367 = pneg %p597
        %p1368 = pneg %p621
        %p1369 = pneg %p618
        %p1370 = pneg %p642
        %p1371 = pneg %p639
        %p1372 = pneg %p663
        %p1373 = pneg %p660
        %p1374 = pneg %p689
        %p1375 = pneg %p686
        %s1376 = smul.u32 2, %s65
        %p1377 = scmp.lt.s32.totalorder %s1376, 1
        %s1378 = scalar_select %p1377, %s1376, 1
        %s1379 = smul.addr %s1378, 2
        %s1380 = smul.addr %s1379, 8
        %s1381 = scalar_lea.vmem %s0, %s1380
        %s1382 = smul.u32 2, %s65
        %s1383 = smul.u32 2, %s65
        %p1384 = scmp.lt.s32.totalorder %s1383, 1
        %s1385 = scalar_select %p1384, %s1383, 1
        %s1386 = smul.addr %s1385, 2
        %s1387 = scalar_lea.vmem %s1, %s1386
        %s1388 = smul.u32 2, %s65
        %s1389 = smul.u32 2, %s65
        %p1391 = scmp.eq.s32.totalorder %s66, 0
        // Predicated region
        $region213: #{smotif_transformer_forward.1} parent=119 // pred_check
          %p1392 = pneg %p1391
        $region214: #{smotif_transformer_forward.1} parent=119 // pred_check_branch
          %1394 = sbr.rel (%p1392) target = $region216
        $region215: #{smotif_transformer_forward.1} parent=119 // pred_region
          %v1395 = vld [vmem:[%s1381] sm:$0xff]
          %v1396 = vld [vmem:[%s1381 + $0x8] sm:$0xff]
          %v1397 = vld [vmem:[%s1381 + $0x10] sm:$0xff]
          %v1398 = vld [vmem:[%s1381 + $0x18] sm:$0xff]
          %v1399 = vlaneseq
          %v1400 = vand.u32 %v1399, 127
          %1401 = vset.pattern.permute.xlu0 0
          %1402 = vperm.xlu0 %1401, %v1395
          %v1403 = vpop.permute.xlu0 %1402
          %1404 = vset.pattern.permute.xlu0 0
          %1405 = vperm.xlu0 %1404, %v1396
          %v1406 = vpop.permute.xlu0 %1405
          %1407 = vset.pattern.permute.xlu0 0
          %1408 = vperm.xlu0 %1407, %v1397
          %v1409 = vpop.permute.xlu0 %1408
          %1410 = vset.pattern.permute.xlu0 0
          %1411 = vperm.xlu0 %1410, %v1398
          %v1412 = vpop.permute.xlu0 %1411
          %vm1413 = vcmp.eq.s32.totalorder %v1400, %v1403
          %vm1414 = vcmp.eq.s32.totalorder %v1400, %v1406
          %vm1415 = vcmp.eq.s32.totalorder %v1400, %v1409
          %vm1416 = vcmp.eq.s32.totalorder %v1400, %v1412
          %v1417 = vsel %vm1413, 1, 0
          %v1418 = vsel %vm1414, 1, 0
          %v1419 = vsel %vm1415, 1, 0
          %v1420 = vsel %vm1416, 1, 0
          %v1421 = vcvt.s32.f32 %v1417
          %v1422 = vcvt.s32.f32 %v1418
          %v1423 = vcvt.s32.f32 %v1419
          %v1424 = vcvt.s32.f32 %v1420
          %v1425 = vld [vmem:[#allocation4] sm:$0xff]
          %v1426 = vld [vmem:[#allocation4 + $0x8] sm:$0xff]
          %v1427 = vld [vmem:[#allocation4 + $0x10] sm:$0xff]
          %v1428 = vld [vmem:[#allocation4 + $0x18] sm:$0xff]
          %v1429 = vld [vmem:[#allocation4 + $0x20] sm:$0xff]
          %v1430 = vld [vmem:[#allocation4 + $0x28] sm:$0xff]
          %v1431 = vld [vmem:[#allocation4 + $0x30] sm:$0xff]
          %v1432 = vld [vmem:[#allocation4 + $0x38] sm:$0xff]
          %v1433 = vld [vmem:[#allocation4 + $0x40] sm:$0xff]
          %v1434 = vld [vmem:[#allocation4 + $0x48] sm:$0xff]
          %v1435 = vld [vmem:[#allocation4 + $0x50] sm:$0xff]
          %v1436 = vld [vmem:[#allocation4 + $0x58] sm:$0xff]
          %v1437 = vld [vmem:[#allocation4 + $0x60] sm:$0xff]
          %v1438 = vld [vmem:[#allocation4 + $0x68] sm:$0xff]
          %v1439 = vld [vmem:[#allocation4 + $0x70] sm:$0xff]
          %v1440 = vld [vmem:[#allocation4 + $0x78] sm:$0xff]
          %v1441 = vld [vmem:[#allocation4 + $0x80] sm:$0xff]
          %v1442 = vld [vmem:[#allocation4 + $0x88] sm:$0xff]
          %v1443 = vld [vmem:[#allocation4 + $0x90] sm:$0xff]
          %v1444 = vld [vmem:[#allocation4 + $0x98] sm:$0xff]
          %v1445 = vld [vmem:[#allocation4 + $0xa0] sm:$0xff]
          %v1446 = vld [vmem:[#allocation4 + $0xa8] sm:$0xff]
          %v1447 = vld [vmem:[#allocation4 + $0xb0] sm:$0xff]
          %v1448 = vld [vmem:[#allocation4 + $0xb8] sm:$0xff]
          %v1449 = vld [vmem:[#allocation4 + $0xc0] sm:$0xff]
          %v1450 = vld [vmem:[#allocation4 + $0xc8] sm:$0xff]
          %v1451 = vld [vmem:[#allocation4 + $0xd0] sm:$0xff]
          %v1452 = vld [vmem:[#allocation4 + $0xd8] sm:$0xff]
          %v1453 = vld [vmem:[#allocation4 + $0xe0] sm:$0xff]
          %v1454 = vld [vmem:[#allocation4 + $0xe8] sm:$0xff]
          %v1455 = vld [vmem:[#allocation4 + $0xf0] sm:$0xff]
          %v1456 = vld [vmem:[#allocation4 + $0xf8] sm:$0xff]
          %1457 = vmatprep.subr.mxu0 %v1426
          %1458 = vmatpush1.msra.mxu0 %v1425
          %1459 = vmatprep.subr.mxu0 %v1428
          %1460 = vmatpush1.msra.mxu0 %v1427
          %1461 = vmatprep.subr.mxu0 %v1430
          %1462 = vmatpush1.msra.mxu0 %v1429
          %1463 = vmatprep.subr.mxu0 %v1432
          %1464 = vmatpush1.msra.mxu0 %v1431
          %1465 = vmatprep.subr.mxu0 %v1434
          %1466 = vmatpush1.msra.mxu0 %v1433
          %1467 = vmatprep.subr.mxu0 %v1436
          %1468 = vmatpush1.msra.mxu0 %v1435
          %1469 = vmatprep.subr.mxu0 %v1438
          %1470 = vmatpush1.msra.mxu0 %v1437
          %1471 = vmatprep.subr.mxu0 %v1440
          %1472 = vmatpush1.msra.mxu0 %v1439
          %1473 = vmatprep.subr.mxu0 %v1442
          %1474 = vmatpush1.msra.mxu0 %v1441
          %1475 = vmatprep.subr.mxu0 %v1444
          %1476 = vmatpush1.msra.mxu0 %v1443
          %1477 = vmatprep.subr.mxu0 %v1446
          %1478 = vmatpush1.msra.mxu0 %v1445
          %1479 = vmatprep.subr.mxu0 %v1448
          %1480 = vmatpush1.msra.mxu0 %v1447
          %1481 = vmatprep.subr.mxu0 %v1450
          %1482 = vmatpush1.msra.mxu0 %v1449
          %1483 = vmatprep.subr.mxu0 %v1452
          %1484 = vmatpush1.msra.mxu0 %v1451
          %1485 = vmatprep.subr.mxu0 %v1454
          %1486 = vmatpush1.msra.mxu0 %v1453
          %1487 = vmatprep.subr.mxu0 %v1456
          %1488 = vmatpush1.msra.mxu0 %v1455
          %1489 = vmatprep.subr.mxu0 0.0
          %1490 = vmatpush1.msra.mxu0 0.0
          %1491 = vmatprep.subr.mxu0 0.0
          %1492 = vmatpush1.msra.mxu0 0.0
          %1493 = vmatprep.subr.mxu0 0.0
          %1494 = vmatpush1.msra.mxu0 0.0
          %1495 = vmatprep.subr.mxu0 0.0
          %1496 = vmatpush1.msra.mxu0 0.0
          %1497 = vmatprep.subr.mxu0 0.0
          %1498 = vmatpush1.msra.mxu0 0.0
          %1499 = vmatprep.subr.mxu0 0.0
          %1500 = vmatpush1.msra.mxu0 0.0
          %1501 = vmatprep.subr.mxu0 0.0
          %1502 = vmatpush1.msra.mxu0 0.0
          %1503 = vmatprep.subr.mxu0 0.0
          %1504 = vmatpush1.msra.mxu0 0.0
          %1505 = vmatprep.subr.mxu0 0.0
          %1506 = vmatpush1.msra.mxu0 0.0
          %1507 = vmatprep.subr.mxu0 0.0
          %1508 = vmatpush1.msra.mxu0 0.0
          %1509 = vmatprep.subr.mxu0 0.0
          %1510 = vmatpush1.msra.mxu0 0.0
          %1511 = vmatprep.subr.mxu0 0.0
          %1512 = vmatpush1.msra.mxu0 0.0
          %1513 = vmatprep.subr.mxu0 0.0
          %1514 = vmatpush1.msra.mxu0 0.0
          %1515 = vmatprep.subr.mxu0 0.0
          %1516 = vmatpush1.msra.mxu0 0.0
          %1517 = vmatprep.subr.mxu0 0.0
          %1518 = vmatpush1.msra.mxu0 0.0
          %1519 = vmatprep.subr.mxu0 0.0
          %1520 = vmatpush1.msra.mxu0 0.0
          %1521 = vmatprep.mubr.f32.mxu0 0.0
          %1522 = vmatmul.mubr.f32.gmra.mrb[0].mxu0 %v1421
          %v1523 = vpop.f32.mrb[0].mxu0
          %v1524 = vadd.f32 0.0, %v1523
          %v1525 = vpop.f32.mrb[0].mxu0
          %v1526 = vadd.f32 0.0, %v1525
          %1527 = vmatprep.mubr.f32.mxu0 0.0
          %1528 = vmatmul.mubr.f32.gmra.mrb[0].mxu0 %v1422
          %v1529 = vpop.f32.mrb[0].mxu0
          %v1530 = vadd.f32 0.0, %v1529
          %v1531 = vpop.f32.mrb[0].mxu0
          %v1532 = vadd.f32 0.0, %v1531
          %1533 = vmatprep.mubr.f32.mxu0 0.0
          %1534 = vmatmul.mubr.f32.gmra.mrb[0].mxu0 %v1423
          %v1535 = vpop.f32.mrb[0].mxu0
          %v1536 = vadd.f32 0.0, %v1535
          %v1537 = vpop.f32.mrb[0].mxu0
          %v1538 = vadd.f32 0.0, %v1537
          %1539 = vmatprep.mubr.f32.mxu0 0.0
          %1540 = vmatmul.mubr.f32.gmra.mrb[0].mxu0 %v1424
          %v1541 = vpop.f32.mrb[0].mxu0
          %v1542 = vadd.f32 0.0, %v1541
          %v1543 = vpop.f32.mrb[0].mxu0
          %v1544 = vadd.f32 0.0, %v1543
          %1545 = vdwg.mxu0
          %v1546 = vmul.f32 %v1524, 22.627417
          %v1547 = vmul.f32 %v1526, 22.627417
          %v1548 = vmul.f32 %v1530, 22.627417
          %v1549 = vmul.f32 %v1532, 22.627417
          %v1550 = vmul.f32 %v1536, 22.627417
          %v1551 = vmul.f32 %v1538, 22.627417
          %v1552 = vmul.f32 %v1542, 22.627417
          %v1553 = vmul.f32 %v1544, 22.627417
          %v1554 = vld [vmem:[%s1387] sm:$0x3]
          %v1555 = vld [vmem:[%s1387 + $0x2] sm:$0x3]
          %v1558 = vlaneseq
          %v1559 = vshrl.u32 %v1558, 7
          %v1560 = vsub.s32 0, %v1559
          %v1561 = vrot.slane %v1554, %v1560
          %v1562 = vlaneseq
          %v1563 = vshrl.u32 %v1562, 7
          %v1564 = vsub.s32 1, %v1563
          %v1565 = vrot.slane %v1554, %v1564
          %v1566 = vlaneseq
          %v1567 = vshrl.u32 %v1566, 7
          %v1568 = vsub.s32 0, %v1567
          %v1569 = vrot.slane %v1555, %v1568
          %v1570 = vlaneseq
          %v1571 = vshrl.u32 %v1570, 7
          %v1572 = vsub.s32 1, %v1571
          %v1573 = vrot.slane %v1555, %v1572
          %v1578 = vadd.f32 %v1546, %v1561
          %v1579 = vadd.f32 %v1547, %v1565
          %v1580 = vadd.f32 %v1548, %v1561
          %v1581 = vadd.f32 %v1549, %v1565
          %v1582 = vadd.f32 %v1550, %v1569
          %v1583 = vadd.f32 %v1551, %v1573
          %v1584 = vadd.f32 %v1552, %v1569
          %v1585 = vadd.f32 %v1553, %v1573
          %v1586 = vlaneseq
          %v1587 = vshrl.u32 %v1586, 7
          %v1588 = vadd.s32 %v1587, 8
          %vm1589 = vcmp.eq.s32.totalorder %v1587, 0
          %vm1590 = vcmp.eq.s32.totalorder %v1588, 0
          %vm1591 = vcmp.eq.s32.totalorder %v1587, 15
          %vm1592 = vcmp.eq.s32.totalorder %v1588, 15
          %1593 = vst [vmem:[#allocation3 + $0x10] sm:$0xff] %v1578
          %1594 = vst [vmem:[#allocation3 + $0x18] sm:$0xff] %v1579
          %1595 = vst [vmem:[#allocation3 + $0x20] sm:$0xff] %v1580
          %1596 = vst [vmem:[#allocation3 + $0x28] sm:$0xff] %v1581
          %1597 = vst [vmem:[#allocation3 + $0x30] sm:$0xff] %v1582
          %1598 = vst [vmem:[#allocation3 + $0x38] sm:$0xff] %v1583
          %1599 = vst [vmem:[#allocation3 + $0x40] sm:$0xff] %v1584
          %1600 = vst [vmem:[#allocation3 + $0x48] sm:$0xff] %v1585
          %v1601 = vld [vmem:[#allocation3] sm:$0x80]
          %v1602 = vld [vmem:[#allocation3 + $0x8] sm:$0x80]
          %v1603 = vld [vmem:[#allocation3 + $0x10] sm:$0xff]
          %v1604 = vld [vmem:[#allocation3 + $0x18] sm:$0xff]
          %v1605 = vld [vmem:[#allocation3 + $0x20] sm:$0xff]
          %v1606 = vld [vmem:[#allocation3 + $0x28] sm:$0xff]
          %v1607 = vld [vmem:[#allocation3 + $0x30] sm:$0xff]
          %v1608 = vld [vmem:[#allocation3 + $0x38] sm:$0xff]
          %v1609 = vld [vmem:[#allocation3 + $0x40] sm:$0x7f]
          %v1610 = vld [vmem:[#allocation3 + $0x48] sm:$0x7f]
          %vm1621 = vcmask 1040384
          %v1622 = vrot.slane %v1601, 7
          %v1623 = vrot.slane %v1603, 7
          %v1624 = vsel %vm1621, %v1622, %v1623
          %v1625 = vrot.slane %v1602, 7
          %v1626 = vrot.slane %v1604, 7
          %v1627 = vsel %vm1621, %v1625, %v1626
          %v1628 = vrot.slane %v1605, 7
          %v1629 = vsel %vm1621, %v1623, %v1628
          %v1630 = vrot.slane %v1606, 7
          %v1631 = vsel %vm1621, %v1626, %v1630
          %v1632 = vrot.slane %v1607, 7
          %v1633 = vsel %vm1621, %v1628, %v1632
          %v1634 = vrot.slane %v1608, 7
          %v1635 = vsel %vm1621, %v1630, %v1634
          %v1636 = vrot.slane %v1609, 7
          %v1637 = vsel %vm1621, %v1632, %v1636
          %v1638 = vrot.slane %v1610, 7
          %v1639 = vsel %vm1621, %v1634, %v1638
          %v1648 = vsel %vm1589, 0.0, %v1624
          %v1649 = vsel %vm1589, 0.0, %v1627
          %v1650 = vsel %vm1590, 0.0, %v1629
          %v1651 = vsel %vm1590, 0.0, %v1631
          %v1652 = vsel %vm1589, 0.0, %v1633
          %v1653 = vsel %vm1589, 0.0, %v1635
          %v1654 = vsel %vm1590, 0.0, %v1637
          %v1655 = vsel %vm1590, 0.0, %v1639
          %v1656 = vld [vmem:[#allocation3 + $0x10] sm:$0xfe]
          %v1657 = vld [vmem:[#allocation3 + $0x18] sm:$0xfe]
          %v1658 = vld [vmem:[#allocation3 + $0x20] sm:$0xff]
          %v1659 = vld [vmem:[#allocation3 + $0x28] sm:$0xff]
          %v1660 = vld [vmem:[#allocation3 + $0x30] sm:$0xff]
          %v1661 = vld [vmem:[#allocation3 + $0x38] sm:$0xff]
          %v1662 = vld [vmem:[#allocation3 + $0x40] sm:$0xff]
          %v1663 = vld [vmem:[#allocation3 + $0x48] sm:$0xff]
          %v1664 = vld [vmem:[#allocation3 + $0x50] sm:$0x1]
          %v1665 = vld [vmem:[#allocation3 + $0x58] sm:$0x1]
          %vm1676 = vcmask 1046528
          %v1677 = vrot.slane %v1656, 1
          %v1678 = vrot.slane %v1658, 1
          %v1679 = vsel %vm1676, %v1677, %v1678
          %v1680 = vrot.slane %v1657, 1
          %v1681 = vrot.slane %v1659, 1
          %v1682 = vsel %vm1676, %v1680, %v1681
          %v1683 = vrot.slane %v1660, 1
          %v1684 = vsel %vm1676, %v1678, %v1683
          %v1685 = vrot.slane %v1661, 1
          %v1686 = vsel %vm1676, %v1681, %v1685
          %v1687 = vrot.slane %v1662, 1
          %v1688 = vsel %vm1676, %v1683, %v1687
          %v1689 = vrot.slane %v1663, 1
          %v1690 = vsel %vm1676, %v1685, %v1689
          %v1691 = vrot.slane %v1664, 1
          %v1692 = vsel %vm1676, %v1687, %v1691
          %v1693 = vrot.slane %v1665, 1
          %v1694 = vsel %vm1676, %v1689, %v1693
          %v1703 = vsel %vm1591, 0.0, %v1679
          %v1704 = vsel %vm1591, 0.0, %v1682
          %v1705 = vsel %vm1592, 0.0, %v1684
          %v1706 = vsel %vm1592, 0.0, %v1686
          %v1707 = vsel %vm1591, 0.0, %v1688
          %v1708 = vsel %vm1591, 0.0, %v1690
          %v1709 = vsel %vm1592, 0.0, %v1692
          %v1710 = vsel %vm1592, 0.0, %v1694
          %v1711 = vpack.c.bf16 %v1650, %v1648
          %v1712 = vpack.c.bf16 %v1651, %v1649
          %v1713 = vpack.c.bf16 %v1654, %v1652
          %v1714 = vpack.c.bf16 %v1655, %v1653
          %v1715 = vld [vmem:[#allocation7] sm:$0xff]
          %v1716 = vld [vmem:[#allocation7 + $0x8] sm:$0xff]
          %v1717 = vld [vmem:[#allocation7 + $0x10] sm:$0xff]
          %v1718 = vld [vmem:[#allocation7 + $0x18] sm:$0xff]
          %v1719 = vld [vmem:[#allocation7 + $0x20] sm:$0xff]
          %v1720 = vld [vmem:[#allocation7 + $0x28] sm:$0xff]
          %v1721 = vld [vmem:[#allocation7 + $0x30] sm:$0xff]
          %v1722 = vld [vmem:[#allocation7 + $0x38] sm:$0xff]
          %v1723 = vld [vmem:[#allocation7 + $0x40] sm:$0xff]
          %v1724 = vld [vmem:[#allocation7 + $0x48] sm:$0xff]
          %v1725 = vld [vmem:[#allocation7 + $0x50] sm:$0xff]
          %v1726 = vld [vmem:[#allocation7 + $0x58] sm:$0xff]
          %v1727 = vld [vmem:[#allocation7 + $0x60] sm:$0xff]
          %v1728 = vld [vmem:[#allocation7 + $0x68] sm:$0xff]
          %v1729 = vld [vmem:[#allocation7 + $0x70] sm:$0xff]
          %v1730 = vld [vmem:[#allocation7 + $0x78] sm:$0xff]
          %v1731 = vld [vmem:[#allocation7 + $0x80] sm:$0xff]
          %v1732 = vld [vmem:[#allocation7 + $0x88] sm:$0xff]
          %v1733 = vld [vmem:[#allocation7 + $0x90] sm:$0xff]
          %v1734 = vld [vmem:[#allocation7 + $0x98] sm:$0xff]
          %v1735 = vld [vmem:[#allocation7 + $0xa0] sm:$0xff]
          %v1736 = vld [vmem:[#allocation7 + $0xa8] sm:$0xff]
          %v1737 = vld [vmem:[#allocation7 + $0xb0] sm:$0xff]
          %v1738 = vld [vmem:[#allocation7 + $0xb8] sm:$0xff]
          %v1739 = vld [vmem:[#allocation7 + $0xc0] sm:$0xff]
          %v1740 = vld [vmem:[#allocation7 + $0xc8] sm:$0xff]
          %v1741 = vld [vmem:[#allocation7 + $0xd0] sm:$0xff]
          %v1742 = vld [vmem:[#allocation7 + $0xd8] sm:$0xff]
          %v1743 = vld [vmem:[#allocation7 + $0xe0] sm:$0xff]
          %v1744 = vld [vmem:[#allocation7 + $0xe8] sm:$0xff]
          %v1745 = vld [vmem:[#allocation7 + $0xf0] sm:$0xff]
          %v1746 = vld [vmem:[#allocation7 + $0xf8] sm:$0xff]
          %v1747 = vpack.c.bf16 %v1580, %v1578
          %v1748 = vpack.c.bf16 %v1581, %v1579
          %v1749 = vpack.c.bf16 %v1584, %v1582
          %v1750 = vpack.c.bf16 %v1585, %v1583
          %s1751 = scalar_lea.vmem [#allocation7], 256
          %v1752 = vld [vmem:[%s1751] sm:$0xff]
          %v1753 = vld [vmem:[%s1751 + $0x8] sm:$0xff]
          %v1754 = vld [vmem:[%s1751 + $0x10] sm:$0xff]
          %v1755 = vld [vmem:[%s1751 + $0x18] sm:$0xff]
          %v1756 = vld [vmem:[%s1751 + $0x20] sm:$0xff]
          %v1757 = vld [vmem:[%s1751 + $0x28] sm:$0xff]
          %v1758 = vld [vmem:[%s1751 + $0x30] sm:$0xff]
          %v1759 = vld [vmem:[%s1751 + $0x38] sm:$0xff]
          %v1760 = vld [vmem:[%s1751 + $0x40] sm:$0xff]
          %v1761 = vld [vmem:[%s1751 + $0x48] sm:$0xff]
          %v1762 = vld [vmem:[%s1751 + $0x50] sm:$0xff]
          %v1763 = vld [vmem:[%s1751 + $0x58] sm:$0xff]
          %v1764 = vld [vmem:[%s1751 + $0x60] sm:$0xff]
          %v1765 = vld [vmem:[%s1751 + $0x68] sm:$0xff]
          %v1766 = vld [vmem:[%s1751 + $0x70] sm:$0xff]
          %v1767 = vld [vmem:[%s1751 + $0x78] sm:$0xff]
          %v1768 = vld [vmem:[%s1751 + $0x80] sm:$0xff]
          %v1769 = vld [vmem:[%s1751 + $0x88] sm:$0xff]
          %v1770 = vld [vmem:[%s1751 + $0x90] sm:$0xff]
          %v1771 = vld [vmem:[%s1751 + $0x98] sm:$0xff]
          %v1772 = vld [vmem:[%s1751 + $0xa0] sm:$0xff]
          %v1773 = vld [vmem:[%s1751 + $0xa8] sm:$0xff]
          %v1774 = vld [vmem:[%s1751 + $0xb0] sm:$0xff]
          %v1775 = vld [vmem:[%s1751 + $0xb8] sm:$0xff]
          %v1776 = vld [vmem:[%s1751 + $0xc0] sm:$0xff]
          %v1777 = vld [vmem:[%s1751 + $0xc8] sm:$0xff]
          %v1778 = vld [vmem:[%s1751 + $0xd0] sm:$0xff]
          %v1779 = vld [vmem:[%s1751 + $0xd8] sm:$0xff]
          %v1780 = vld [vmem:[%s1751 + $0xe0] sm:$0xff]
          %v1781 = vld [vmem:[%s1751 + $0xe8] sm:$0xff]
          %v1782 = vld [vmem:[%s1751 + $0xf0] sm:$0xff]
          %v1783 = vld [vmem:[%s1751 + $0xf8] sm:$0xff]
          %v1816 = vunpack.c.l.b16 %v1752
          %v1817 = vunpack.c.h.b16 %v1752
          %v1818 = vunpack.c.l.b16 %v1753
          %v1819 = vunpack.c.h.b16 %v1753
          %v1820 = vunpack.c.l.b16 %v1754
          %v1821 = vunpack.c.h.b16 %v1754
          %v1822 = vunpack.c.l.b16 %v1755
          %v1823 = vunpack.c.h.b16 %v1755
          %v1824 = vunpack.c.l.b16 %v1756
          %v1825 = vunpack.c.h.b16 %v1756
          %v1826 = vunpack.c.l.b16 %v1757
          %v1827 = vunpack.c.h.b16 %v1757
          %v1828 = vunpack.c.l.b16 %v1758
          %v1829 = vunpack.c.h.b16 %v1758
          %v1830 = vunpack.c.l.b16 %v1759
          %v1831 = vunpack.c.h.b16 %v1759
          %v1832 = vunpack.c.l.b16 %v1760
          %v1833 = vunpack.c.h.b16 %v1760
          %v1834 = vunpack.c.l.b16 %v1761
          %v1835 = vunpack.c.h.b16 %v1761
          %v1836 = vunpack.c.l.b16 %v1762
          %v1837 = vunpack.c.h.b16 %v1762
          %v1838 = vunpack.c.l.b16 %v1763
          %v1839 = vunpack.c.h.b16 %v1763
          %v1840 = vunpack.c.l.b16 %v1764
          %v1841 = vunpack.c.h.b16 %v1764
          %v1842 = vunpack.c.l.b16 %v1765
          %v1843 = vunpack.c.h.b16 %v1765
          %v1844 = vunpack.c.l.b16 %v1766
          %v1845 = vunpack.c.h.b16 %v1766
          %v1846 = vunpack.c.l.b16 %v1767
          %v1847 = vunpack.c.h.b16 %v1767
          %v1848 = vunpack.c.l.b16 %v1768
          %v1849 = vunpack.c.h.b16 %v1768
          %v1850 = vunpack.c.l.b16 %v1769
          %v1851 = vunpack.c.h.b16 %v1769
          %v1852 = vunpack.c.l.b16 %v1770
          %v1853 = vunpack.c.h.b16 %v1770
          %v1854 = vunpack.c.l.b16 %v1771
          %v1855 = vunpack.c.h.b16 %v1771
          %v1856 = vunpack.c.l.b16 %v1772
          %v1857 = vunpack.c.h.b16 %v1772
          %v1858 = vunpack.c.l.b16 %v1773
          %v1859 = vunpack.c.h.b16 %v1773
          %v1860 = vunpack.c.l.b16 %v1774
          %v1861 = vunpack.c.h.b16 %v1774
          %v1862 = vunpack.c.l.b16 %v1775
          %v1863 = vunpack.c.h.b16 %v1775
          %v1864 = vunpack.c.l.b16 %v1776
          %v1865 = vunpack.c.h.b16 %v1776
          %v1866 = vunpack.c.l.b16 %v1777
          %v1867 = vunpack.c.h.b16 %v1777
          %v1868 = vunpack.c.l.b16 %v1778
          %v1869 = vunpack.c.h.b16 %v1778
          %v1870 = vunpack.c.l.b16 %v1779
          %v1871 = vunpack.c.h.b16 %v1779
          %v1872 = vunpack.c.l.b16 %v1780
          %v1873 = vunpack.c.h.b16 %v1780
          %v1874 = vunpack.c.l.b16 %v1781
          %v1875 = vunpack.c.h.b16 %v1781
          %v1876 = vunpack.c.l.b16 %v1782
          %v1877 = vunpack.c.h.b16 %v1782
          %v1878 = vunpack.c.l.b16 %v1783
          %v1879 = vunpack.c.h.b16 %v1783
          %v1880 = vpack.c.b16 %v1818, %v1816
          %v1881 = vpack.c.b16 %v1819, %v1817
          %v1882 = vpack.c.b16 %v1822, %v1820
          %v1883 = vpack.c.b16 %v1823, %v1821
          %v1884 = vpack.c.b16 %v1826, %v1824
          %v1885 = vpack.c.b16 %v1827, %v1825
          %v1886 = vpack.c.b16 %v1830, %v1828
          %v1887 = vpack.c.b16 %v1831, %v1829
          %v1888 = vpack.c.b16 %v1834, %v1832
          %v1889 = vpack.c.b16 %v1835, %v1833
          %v1890 = vpack.c.b16 %v1838, %v1836
          %v1891 = vpack.c.b16 %v1839, %v1837
          %v1892 = vpack.c.b16 %v1842, %v1840
          %v1893 = vpack.c.b16 %v1843, %v1841
          %v1894 = vpack.c.b16 %v1846, %v1844
          %v1895 = vpack.c.b16 %v1847, %v1845
          %v1896 = vpack.c.b16 %v1850, %v1848
          %v1897 = vpack.c.b16 %v1851, %v1849
          %v1898 = vpack.c.b16 %v1854, %v1852
          %v1899 = vpack.c.b16 %v1855, %v1853
          %v1900 = vpack.c.b16 %v1858, %v1856
          %v1901 = vpack.c.b16 %v1859, %v1857
          %v1902 = vpack.c.b16 %v1862, %v1860
          %v1903 = vpack.c.b16 %v1863, %v1861
          %v1904 = vpack.c.b16 %v1866, %v1864
          %v1905 = vpack.c.b16 %v1867, %v1865
          %v1906 = vpack.c.b16 %v1870, %v1868
          %v1907 = vpack.c.b16 %v1871, %v1869
          %v1908 = vpack.c.b16 %v1874, %v1872
          %v1909 = vpack.c.b16 %v1875, %v1873
          %v1910 = vpack.c.b16 %v1878, %v1876
          %v1911 = vpack.c.b16 %v1879, %v1877
          %1944 = vmatprep.subr.bf16.mxu0 %v1881
          %1945 = vmatpush1.bf16.msra.mxu0 %v1880
          %1946 = vmatprep.subr.bf16.mxu0 %v1883
          %1947 = vmatpush1.bf16.msra.mxu0 %v1882
          %1948 = vmatprep.subr.bf16.mxu0 %v1885
          %1949 = vmatpush1.bf16.msra.mxu0 %v1884
          %1950 = vmatprep.subr.bf16.mxu0 %v1887
          %1951 = vmatpush1.bf16.msra.mxu0 %v1886
          %1952 = vmatprep.subr.bf16.mxu0 %v1889
          %1953 = vmatpush1.bf16.msra.mxu0 %v1888
          %1954 = vmatprep.subr.bf16.mxu0 %v1891
          %1955 = vmatpush1.bf16.msra.mxu0 %v1890
          %1956 = vmatprep.subr.bf16.mxu0 %v1893
          %1957 = vmatpush1.bf16.msra.mxu0 %v1892
          %1958 = vmatprep.subr.bf16.mxu0 %v1895
          %1959 = vmatpush1.bf16.msra.mxu0 %v1894
          %1960 = vmatprep.subr.bf16.mxu0 %v1897
          %1961 = vmatpush1.bf16.msra.mxu0 %v1896
          %1962 = vmatprep.subr.bf16.mxu0 %v1899
          %1963 = vmatpush1.bf16.msra.mxu0 %v1898
          %1964 = vmatprep.subr.bf16.mxu0 %v1901
          %1965 = vmatpush1.bf16.msra.mxu0 %v1900
          %1966 = vmatprep.subr.bf16.mxu0 %v1903
          %1967 = vmatpush1.bf16.msra.mxu0 %v1902
          %1968 = vmatprep.subr.bf16.mxu0 %v1905
          %1969 = vmatpush1.bf16.msra.mxu0 %v1904
          %1970 = vmatprep.subr.bf16.mxu0 %v1907
          %1971 = vmatpush1.bf16.msra.mxu0 %v1906
          %1972 = vmatprep.subr.bf16.mxu0 %v1909
          %1973 = vmatpush1.bf16.msra.mxu0 %v1908
          %1974 = vmatprep.subr.bf16.mxu0 %v1911
          %1975 = vmatpush1.bf16.msra.mxu0 %v1910
          %1976 = vmatprep.mubr.bf16.mxu0 %v1748
          %1977 = vmatmul.mubr.bf16.gmra.mrb[0].mxu0 %v1747
          %v1978 = vpop.f32.mrb[0].mxu0
          %v1979 = vadd.f32 0.0, %v1978
          %v1980 = vpop.f32.mrb[0].mxu0
          %v1981 = vadd.f32 0.0, %v1980
          %v1982 = vpop.f32.mrb[0].mxu0
          %v1983 = vadd.f32 0.0, %v1982
          %v1984 = vpop.f32.mrb[0].mxu0
          %v1985 = vadd.f32 0.0, %v1984
          %1986 = vmatprep.mubr.bf16.mxu0 %v1750
          %1987 = vmatmul.mubr.bf16.gmra.mrb[0].mxu0 %v1749
          %v1988 = vpop.f32.mrb[0].mxu0
          %v1989 = vadd.f32 0.0, %v1988
          %v1990 = vpop.f32.mrb[0].mxu0
          %v1991 = vadd.f32 0.0, %v1990
          %v1992 = vpop.f32.mrb[0].mxu0
          %v1993 = vadd.f32 0.0, %v1992
          %v1994 = vpop.f32.mrb[0].mxu0
          %v1995 = vadd.f32 0.0, %v1994
          %1996 = vdwg.mxu0
          %v2029 = vunpack.c.l.b16 %v1715
          %v2030 = vunpack.c.h.b16 %v1715
          %v2031 = vunpack.c.l.b16 %v1716
          %v2032 = vunpack.c.h.b16 %v1716
          %v2033 = vunpack.c.l.b16 %v1717
          %v2034 = vunpack.c.h.b16 %v1717
          %v2035 = vunpack.c.l.b16 %v1718
          %v2036 = vunpack.c.h.b16 %v1718
          %v2037 = vunpack.c.l.b16 %v1719
          %v2038 = vunpack.c.h.b16 %v1719
          %v2039 = vunpack.c.l.b16 %v1720
          %v2040 = vunpack.c.h.b16 %v1720
          %v2041 = vunpack.c.l.b16 %v1721
          %v2042 = vunpack.c.h.b16 %v1721
          %v2043 = vunpack.c.l.b16 %v1722
          %v2044 = vunpack.c.h.b16 %v1722
          %v2045 = vunpack.c.l.b16 %v1723
          %v2046 = vunpack.c.h.b16 %v1723
          %v2047 = vunpack.c.l.b16 %v1724
          %v2048 = vunpack.c.h.b16 %v1724
          %v2049 = vunpack.c.l.b16 %v1725
          %v2050 = vunpack.c.h.b16 %v1725
          %v2051 = vunpack.c.l.b16 %v1726
          %v2052 = vunpack.c.h.b16 %v1726
          %v2053 = vunpack.c.l.b16 %v1727
          %v2054 = vunpack.c.h.b16 %v1727
          %v2055 = vunpack.c.l.b16 %v1728
          %v2056 = vunpack.c.h.b16 %v1728
          %v2057 = vunpack.c.l.b16 %v1729
          %v2058 = vunpack.c.h.b16 %v1729
          %v2059 = vunpack.c.l.b16 %v1730
          %v2060 = vunpack.c.h.b16 %v1730
          %v2061 = vunpack.c.l.b16 %v1731
          %v2062 = vunpack.c.h.b16 %v1731
          %v2063 = vunpack.c.l.b16 %v1732
          %v2064 = vunpack.c.h.b16 %v1732
          %v2065 = vunpack.c.l.b16 %v1733
          %v2066 = vunpack.c.h.b16 %v1733
          %v2067 = vunpack.c.l.b16 %v1734
          %v2068 = vunpack.c.h.b16 %v1734
          %v2069 = vunpack.c.l.b16 %v1735
          %v2070 = vunpack.c.h.b16 %v1735
          %v2071 = vunpack.c.l.b16 %v1736
          %v2072 = vunpack.c.h.b16 %v1736
          %v2073 = vunpack.c.l.b16 %v1737
          %v2074 = vunpack.c.h.b16 %v1737
          %v2075 = vunpack.c.l.b16 %v1738
          %v2076 = vunpack.c.h.b16 %v1738
          %v2077 = vunpack.c.l.b16 %v1739
          %v2078 = vunpack.c.h.b16 %v1739
          %v2079 = vunpack.c.l.b16 %v1740
          %v2080 = vunpack.c.h.b16 %v1740
          %v2081 = vunpack.c.l.b16 %v1741
          %v2082 = vunpack.c.h.b16 %v1741
          %v2083 = vunpack.c.l.b16 %v1742
          %v2084 = vunpack.c.h.b16 %v1742
          %v2085 = vunpack.c.l.b16 %v1743
          %v2086 = vunpack.c.h.b16 %v1743
          %v2087 = vunpack.c.l.b16 %v1744
          %v2088 = vunpack.c.h.b16 %v1744
          %v2089 = vunpack.c.l.b16 %v1745
          %v2090 = vunpack.c.h.b16 %v1745
          %v2091 = vunpack.c.l.b16 %v1746
          %v2092 = vunpack.c.h.b16 %v1746
          %v2093 = vpack.c.b16 %v2031, %v2029
          %v2094 = vpack.c.b16 %v2032, %v2030
          %v2095 = vpack.c.b16 %v2035, %v2033
          %v2096 = vpack.c.b16 %v2036, %v2034
          %v2097 = vpack.c.b16 %v2039, %v2037
          %v2098 = vpack.c.b16 %v2040, %v2038
          %v2099 = vpack.c.b16 %v2043, %v2041
          %v2100 = vpack.c.b16 %v2044, %v2042
          %v2101 = vpack.c.b16 %v2047, %v2045
          %v2102 = vpack.c.b16 %v2048, %v2046
          %v2103 = vpack.c.b16 %v2051, %v2049
          %v2104 = vpack.c.b16 %v2052, %v2050
          %v2105 = vpack.c.b16 %v2055, %v2053
          %v2106 = vpack.c.b16 %v2056, %v2054
          %v2107 = vpack.c.b16 %v2059, %v2057
          %v2108 = vpack.c.b16 %v2060, %v2058
          %v2109 = vpack.c.b16 %v2063, %v2061
          %v2110 = vpack.c.b16 %v2064, %v2062
          %v2111 = vpack.c.b16 %v2067, %v2065
          %v2112 = vpack.c.b16 %v2068, %v2066
          %v2113 = vpack.c.b16 %v2071, %v2069
          %v2114 = vpack.c.b16 %v2072, %v2070
          %v2115 = vpack.c.b16 %v2075, %v2073
          %v2116 = vpack.c.b16 %v2076, %v2074
          %v2117 = vpack.c.b16 %v2079, %v2077
          %v2118 = vpack.c.b16 %v2080, %v2078
          %v2119 = vpack.c.b16 %v2083, %v2081
          %v2120 = vpack.c.b16 %v2084, %v2082
          %v2121 = vpack.c.b16 %v2087, %v2085
          %v2122 = vpack.c.b16 %v2088, %v2086
          %v2123 = vpack.c.b16 %v2091, %v2089
          %v2124 = vpack.c.b16 %v2092, %v2090
          %2157 = vmatprep.subr.bf16.mxu0 %v2094
          %2158 = vmatpush1.bf16.msra.mxu0 %v2093
          %2159 = vmatprep.subr.bf16.mxu0 %v2096
          %2160 = vmatpush1.bf16.msra.mxu0 %v2095
          %2161 = vmatprep.subr.bf16.mxu0 %v2098
          %2162 = vmatpush1.bf16.msra.mxu0 %v2097
          %2163 = vmatprep.subr.bf16.mxu0 %v2100
          %2164 = vmatpush1.bf16.msra.mxu0 %v2099
          %2165 = vmatprep.subr.bf16.mxu0 %v2102
          %2166 = vmatpush1.bf16.msra.mxu0 %v2101
          %2167 = vmatprep.subr.bf16.mxu0 %v2104
          %2168 = vmatpush1.bf16.msra.mxu0 %v2103
          %2169 = vmatprep.subr.bf16.mxu0 %v2106
          %2170 = vmatpush1.bf16.msra.mxu0 %v2105
          %2171 = vmatprep.subr.bf16.mxu0 %v2108
          %2172 = vmatpush1.bf16.msra.mxu0 %v2107
          %2173 = vmatprep.subr.bf16.mxu0 %v2110
          %2174 = vmatpush1.bf16.msra.mxu0 %v2109
          %2175 = vmatprep.subr.bf16.mxu0 %v2112
          %2176 = vmatpush1.bf16.msra.mxu0 %v2111
          %2177 = vmatprep.subr.bf16.mxu0 %v2114
          %2178 = vmatpush1.bf16.msra.mxu0 %v2113
          %2179 = vmatprep.subr.bf16.mxu0 %v2116
          %2180 = vmatpush1.bf16.msra.mxu0 %v2115
          %2181 = vmatprep.subr.bf16.mxu0 %v2118
          %2182 = vmatpush1.bf16.msra.mxu0 %v2117
          %2183 = vmatprep.subr.bf16.mxu0 %v2120
          %2184 = vmatpush1.bf16.msra.mxu0 %v2119
          %2185 = vmatprep.subr.bf16.mxu0 %v2122
          %2186 = vmatpush1.bf16.msra.mxu0 %v2121
          %2187 = vmatprep.subr.bf16.mxu0 %v2124
          %2188 = vmatpush1.bf16.msra.mxu0 %v2123
          %2189 = vmatprep.mubr.bf16.mxu0 %v1712
          %2190 = vmatmul.mubr.bf16.gmra.mrb[0].mxu0 %v1711
          %v2191 = vpop.f32.mrb[0].mxu0
          %v2192 = vadd.f32 %v1979, %v2191
          %v2193 = vpop.f32.mrb[0].mxu0
          %v2194 = vadd.f32 %v1981, %v2193
          %v2195 = vpop.f32.mrb[0].mxu0
          %v2196 = vadd.f32 %v1983, %v2195
          %v2197 = vpop.f32.mrb[0].mxu0
          %v2198 = vadd.f32 %v1985, %v2197
          %2199 = vmatprep.mubr.bf16.mxu0 %v1714
          %2200 = vmatmul.mubr.bf16.gmra.mrb[0].mxu0 %v1713
          %v2201 = vpop.f32.mrb[0].mxu0
          %v2202 = vadd.f32 %v1989, %v2201
          %v2203 = vpop.f32.mrb[0].mxu0
          %v2204 = vadd.f32 %v1991, %v2203
          %v2205 = vpop.f32.mrb[0].mxu0
          %v2206 = vadd.f32 %v1993, %v2205
          %v2207 = vpop.f32.mrb[0].mxu0
          %v2208 = vadd.f32 %v1995, %v2207
          %2209 = vdwg.mxu0
          %v2210 = vpack.c.bf16 %v1705, %v1703
          %v2211 = vpack.c.bf16 %v1706, %v1704
          %v2212 = vpack.c.bf16 %v1709, %v1707
          %v2213 = vpack.c.bf16 %v1710, %v1708
          %s2214 = scalar_lea.vmem [#allocation7], 512
          %v2215 = vld [vmem:[%s2214] sm:$0xff]
          %v2216 = vld [vmem:[%s2214 + $0x8] sm:$0xff]
          %v2217 = vld [vmem:[%s2214 + $0x10] sm:$0xff]
          %v2218 = vld [vmem:[%s2214 + $0x18] sm:$0xff]
          %v2219 = vld [vmem:[%s2214 + $0x20] sm:$0xff]
          %v2220 = vld [vmem:[%s2214 + $0x28] sm:$0xff]
          %v2221 = vld [vmem:[%s2214 + $0x30] sm:$0xff]
          %v2222 = vld [vmem:[%s2214 + $0x38] sm:$0xff]
          %v2223 = vld [vmem:[%s2214 + $0x40] sm:$0xff]
          %v2224 = vld [vmem:[%s2214 + $0x48] sm:$0xff]
          %v2225 = vld [vmem:[%s2214 + $0x50] sm:$0xff]
          %v2226 = vld [vmem:[%s2214 + $0x58] sm:$0xff]
          %v2227 = vld [vmem:[%s2214 + $0x60] sm:$0xff]
          %v2228 = vld [vmem:[%s2214 + $0x68] sm:$0xff]
          %v2229 = vld [vmem:[%s2214 + $0x70] sm:$0xff]
          %v2230 = vld [vmem:[%s2214 + $0x78] sm:$0xff]
          %v2231 = vld [vmem:[%s2214 + $0x80] sm:$0xff]
          %v2232 = vld [vmem:[%s2214 + $0x88] sm:$0xff]
          %v2233 = vld [vmem:[%s2214 + $0x90] sm:$0xff]
          %v2234 = vld [vmem:[%s2214 + $0x98] sm:$0xff]
          %v2235 = vld [vmem:[%s2214 + $0xa0] sm:$0xff]
          %v2236 = vld [vmem:[%s2214 + $0xa8] sm:$0xff]
          %v2237 = vld [vmem:[%s2214 + $0xb0] sm:$0xff]
          %v2238 = vld [vmem:[%s2214 + $0xb8] sm:$0xff]
          %v2239 = vld [vmem:[%s2214 + $0xc0] sm:$0xff]
          %v2240 = vld [vmem:[%s2214 + $0xc8] sm:$0xff]
          %v2241 = vld [vmem:[%s2214 + $0xd0] sm:$0xff]
          %v2242 = vld [vmem:[%s2214 + $0xd8] sm:$0xff]
          %v2243 = vld [vmem:[%s2214 + $0xe0] sm:$0xff]
          %v2244 = vld [vmem:[%s2214 + $0xe8] sm:$0xff]
          %v2245 = vld [vmem:[%s2214 + $0xf0] sm:$0xff]
          %v2246 = vld [vmem:[%s2214 + $0xf8] sm:$0xff]
          %v2279 = vunpack.c.l.b16 %v2215
          %v2280 = vunpack.c.h.b16 %v2215
          %v2281 = vunpack.c.l.b16 %v2216
          %v2282 = vunpack.c.h.b16 %v2216
          %v2283 = vunpack.c.l.b16 %v2217
          %v2284 = vunpack.c.h.b16 %v2217
          %v2285 = vunpack.c.l.b16 %v2218
          %v2286 = vunpack.c.h.b16 %v2218
          %v2287 = vunpack.c.l.b16 %v2219
          %v2288 = vunpack.c.h.b16 %v2219
          %v2289 = vunpack.c.l.b16 %v2220
          %v2290 = vunpack.c.h.b16 %v2220
          %v2291 = vunpack.c.l.b16 %v2221
          %v2292 = vunpack.c.h.b16 %v2221
          %v2293 = vunpack.c.l.b16 %v2222
          %v2294 = vunpack.c.h.b16 %v2222
          %v2295 = vunpack.c.l.b16 %v2223
          %v2296 = vunpack.c.h.b16 %v2223
          %v2297 = vunpack.c.l.b16 %v2224
          %v2298 = vunpack.c.h.b16 %v2224
          %v2299 = vunpack.c.l.b16 %v2225
          %v2300 = vunpack.c.h.b16 %v2225
          %v2301 = vunpack.c.l.b16 %v2226
          %v2302 = vunpack.c.h.b16 %v2226
          %v2303 = vunpack.c.l.b16 %v2227
          %v2304 = vunpack.c.h.b16 %v2227
          %v2305 = vunpack.c.l.b16 %v2228
          %v2306 = vunpack.c.h.b16 %v2228
          %v2307 = vunpack.c.l.b16 %v2229
          %v2308 = vunpack.c.h.b16 %v2229
          %v2309 = vunpack.c.l.b16 %v2230
          %v2310 = vunpack.c.h.b16 %v2230
          %v2311 = vunpack.c.l.b16 %v2231
          %v2312 = vunpack.c.h.b16 %v2231
          %v2313 = vunpack.c.l.b16 %v2232
          %v2314 = vunpack.c.h.b16 %v2232
          %v2315 = vunpack.c.l.b16 %v2233
          %v2316 = vunpack.c.h.b16 %v2233
          %v2317 = vunpack.c.l.b16 %v2234
          %v2318 = vunpack.c.h.b16 %v2234
          %v2319 = vunpack.c.l.b16 %v2235
          %v2320 = vunpack.c.h.b16 %v2235
          %v2321 = vunpack.c.l.b16 %v2236
          %v2322 = vunpack.c.h.b16 %v2236
          %v2323 = vunpack.c.l.b16 %v2237
          %v2324 = vunpack.c.h.b16 %v2237
          %v2325 = vunpack.c.l.b16 %v2238
          %v2326 = vunpack.c.h.b16 %v2238
          %v2327 = vunpack.c.l.b16 %v2239
          %v2328 = vunpack.c.h.b16 %v2239
          %v2329 = vunpack.c.l.b16 %v2240
          %v2330 = vunpack.c.h.b16 %v2240
          %v2331 = vunpack.c.l.b16 %v2241
          %v2332 = vunpack.c.h.b16 %v2241
          %v2333 = vunpack.c.l.b16 %v2242
          %v2334 = vunpack.c.h.b16 %v2242
          %v2335 = vunpack.c.l.b16 %v2243
          %v2336 = vunpack.c.h.b16 %v2243
          %v2337 = vunpack.c.l.b16 %v2244
          %v2338 = vunpack.c.h.b16 %v2244
          %v2339 = vunpack.c.l.b16 %v2245
          %v2340 = vunpack.c.h.b16 %v2245
          %v2341 = vunpack.c.l.b16 %v2246
          %v2342 = vunpack.c.h.b16 %v2246
          %v2343 = vpack.c.b16 %v2281, %v2279
          %v2344 = vpack.c.b16 %v2282, %v2280
          %v2345 = vpack.c.b16 %v2285, %v2283
          %v2346 = vpack.c.b16 %v2286, %v2284
          %v2347 = vpack.c.b16 %v2289, %v2287
          %v2348 = vpack.c.b16 %v2290, %v2288
          %v2349 = vpack.c.b16 %v2293, %v2291
          %v2350 = vpack.c.b16 %v2294, %v2292
          %v2351 = vpack.c.b16 %v2297, %v2295
          %v2352 = vpack.c.b16 %v2298, %v2296
          %v2353 = vpack.c.b16 %v2301, %v2299
          %v2354 = vpack.c.b16 %v2302, %v2300
          %v2355 = vpack.c.b16 %v2305, %v2303
          %v2356 = vpack.c.b16 %v2306, %v2304
          %v2357 = vpack.c.b16 %v2309, %v2307
          %v2358 = vpack.c.b16 %v2310, %v2308
          %v2359 = vpack.c.b16 %v2313, %v2311
          %v2360 = vpack.c.b16 %v2314, %v2312
          %v2361 = vpack.c.b16 %v2317, %v2315
          %v2362 = vpack.c.b16 %v2318, %v2316
          %v2363 = vpack.c.b16 %v2321, %v2319
          %v2364 = vpack.c.b16 %v2322, %v2320
          %v2365 = vpack.c.b16 %v2325, %v2323
          %v2366 = vpack.c.b16 %v2326, %v2324
          %v2367 = vpack.c.b16 %v2329, %v2327
          %v2368 = vpack.c.b16 %v2330, %v2328
          %v2369 = vpack.c.b16 %v2333, %v2331
          %v2370 = vpack.c.b16 %v2334, %v2332
          %v2371 = vpack.c.b16 %v2337, %v2335
          %v2372 = vpack.c.b16 %v2338, %v2336
          %v2373 = vpack.c.b16 %v2341, %v2339
          %v2374 = vpack.c.b16 %v2342, %v2340
          %2407 = vmatprep.subr.bf16.mxu0 %v2344
          %2408 = vmatpush1.bf16.msra.mxu0 %v2343
          %2409 = vmatprep.subr.bf16.mxu0 %v2346
          %2410 = vmatpush1.bf16.msra.mxu0 %v2345
          %2411 = vmatprep.subr.bf16.mxu0 %v2348
          %2412 = vmatpush1.bf16.msra.mxu0 %v2347
          %2413 = vmatprep.subr.bf16.mxu0 %v2350
          %2414 = vmatpush1.bf16.msra.mxu0 %v2349
          %2415 = vmatprep.subr.bf16.mxu0 %v2352
          %2416 = vmatpush1.bf16.msra.mxu0 %v2351
          %2417 = vmatprep.subr.bf16.mxu0 %v2354
          %2418 = vmatpush1.bf16.msra.mxu0 %v2353
          %2419 = vmatprep.subr.bf16.mxu0 %v2356
          %2420 = vmatpush1.bf16.msra.mxu0 %v2355
          %2421 = vmatprep.subr.bf16.mxu0 %v2358
          %2422 = vmatpush1.bf16.msra.mxu0 %v2357
          %2423 = vmatprep.subr.bf16.mxu0 %v2360
          %2424 = vmatpush1.bf16.msra.mxu0 %v2359
          %2425 = vmatprep.subr.bf16.mxu0 %v2362
          %2426 = vmatpush1.bf16.msra.mxu0 %v2361
          %2427 = vmatprep.subr.bf16.mxu0 %v2364
          %2428 = vmatpush1.bf16.msra.mxu0 %v2363
          %2429 = vmatprep.subr.bf16.mxu0 %v2366
          %2430 = vmatpush1.bf16.msra.mxu0 %v2365
          %2431 = vmatprep.subr.bf16.mxu0 %v2368
          %2432 = vmatpush1.bf16.msra.mxu0 %v2367
          %2433 = vmatprep.subr.bf16.mxu0 %v2370
          %2434 = vmatpush1.bf16.msra.mxu0 %v2369
          %2435 = vmatprep.subr.bf16.mxu0 %v2372
          %2436 = vmatpush1.bf16.msra.mxu0 %v2371
          %2437 = vmatprep.subr.bf16.mxu0 %v2374
          %2438 = vmatpush1.bf16.msra.mxu0 %v2373
          %2439 = vmatprep.mubr.bf16.mxu0 %v2211
          %2440 = vmatmul.mubr.bf16.gmra.mrb[0].mxu0 %v2210
          %v2441 = vpop.f32.mrb[0].mxu0
          %v2442 = vadd.f32 0.0, %v2441
          %v2443 = vpop.f32.mrb[0].mxu0
          %v2444 = vadd.f32 0.0, %v2443
          %v2445 = vpop.f32.mrb[0].mxu0
          %v2446 = vadd.f32 0.0, %v2445
          %v2447 = vpop.f32.mrb[0].mxu0
          %v2448 = vadd.f32 0.0, %v2447
          %2449 = vmatprep.mubr.bf16.mxu0 %v2213
          %2450 = vmatmul.mubr.bf16.gmra.mrb[0].mxu0 %v2212
          %v2451 = vpop.f32.mrb[0].mxu0
          %v2452 = vadd.f32 0.0, %v2451
          %v2453 = vpop.f32.mrb[0].mxu0
          %v2454 = vadd.f32 0.0, %v2453
          %v2455 = vpop.f32.mrb[0].mxu0
          %v2456 = vadd.f32 0.0, %v2455
          %v2457 = vpop.f32.mrb[0].mxu0
          %v2458 = vadd.f32 0.0, %v2457
          %2459 = vdwg.mxu0
          %v2460 = vadd.f32 %v2192, %v2442
          %v2461 = vadd.f32 %v2194, %v2444
          %v2462 = vadd.f32 %v2196, %v2446
          %v2463 = vadd.f32 %v2198, %v2448
          %v2464 = vadd.f32 %v2202, %v2452
          %v2465 = vadd.f32 %v2204, %v2454
          %v2466 = vadd.f32 %v2206, %v2456
          %v2467 = vadd.f32 %v2208, %v2458
          %v2468 = vld [vmem:[#allocation9] sm:$0x3]
          %v2470 = vlaneseq
          %v2471 = vshrl.u32 %v2470, 7
          %v2472 = vsub.s32 0, %v2471
          %v2473 = vrot.slane %v2468, %v2472
          %v2474 = vlaneseq
          %v2475 = vshrl.u32 %v2474, 7
          %v2476 = vsub.s32 1, %v2475
          %v2477 = vrot.slane %v2468, %v2476
          %v2480 = vadd.f32 %v2460, %v2473
          %v2481 = vadd.f32 %v2461, %v2477
          %v2482 = vadd.f32 %v2462, %v2473
          %v2483 = vadd.f32 %v2463, %v2477
          %v2484 = vadd.f32 %v2464, %v2473
          %v2485 = vadd.f32 %v2465, %v2477
          %v2486 = vadd.f32 %v2466, %v2473
          %v2487 = vadd.f32 %v2467, %v2477
          %v2488 = vmax.f32 %v2480, 0.0
          %v2489 = vmax.f32 %v2481, 0.0
          %v2490 = vmax.f32 %v2482, 0.0
          %v2491 = vmax.f32 %v2483, 0.0
          %v2492 = vmax.f32 %v2484, 0.0
          %v2493 = vmax.f32 %v2485, 0.0
          %v2494 = vmax.f32 %v2486, 0.0
          %v2495 = vmax.f32 %v2487, 0.0
          %2496 = vst [vmem:[#allocation3 + $0x10] sm:$0xff] %v2488
          %2497 = vst [vmem:[#allocation3 + $0x18] sm:$0xff] %v2489
          %2498 = vst [vmem:[#allocation3 + $0x20] sm:$0xff] %v2490
          %2499 = vst [vmem:[#allocation3 + $0x28] sm:$0xff] %v2491
          %2500 = vst [vmem:[#allocation3 + $0x30] sm:$0xff] %v2492
          %2501 = vst [vmem:[#allocation3 + $0x38] sm:$0xff] %v2493
          %2502 = vst [vmem:[#allocation3 + $0x40] sm:$0xff] %v2494
          %2503 = vst [vmem:[#allocation3 + $0x48] sm:$0xff] %v2495
          %v2504 = vld [vmem:[#allocation3] sm:$0x80]
          %v2505 = vld [vmem:[#allocation3 + $0x8] sm:$0x80]
          %v2506 = vld [vmem:[#allocation3 + $0x10] sm:$0xff]
          %v2507 = vld [vmem:[#allocation3 + $0x18] sm:$0xff]
          %v2508 = vld [vmem:[#allocation3 + $0x20] sm:$0xff]
          %v2509 = vld [vmem:[#allocation3 + $0x28] sm:$0xff]
          %v2510 = vld [vmem:[#allocation3 + $0x30] sm:$0xff]
          %v2511 = vld [vmem:[#allocation3 + $0x38] sm:$0xff]
          %v2512 = vld [vmem:[#allocation3 + $0x40] sm:$0x7f]
          %v2513 = vld [vmem:[#allocation3 + $0x48] sm:$0x7f]
          %v2524 = vrot.slane %v2504, 7
          %v2525 = vrot.slane %v2506, 7
          %v2526 = vsel %vm1621, %v2524, %v2525
          %v2527 = vrot.slane %v2505, 7
          %v2528 = vrot.slane %v2507, 7
          %v2529 = vsel %vm1621, %v2527, %v2528
          %v2530 = vrot.slane %v2508, 7
          %v2531 = vsel %vm1621, %v2525, %v2530
          %v2532 = vrot.slane %v2509, 7
          %v2533 = vsel %vm1621, %v2528, %v2532
          %v2534 = vrot.slane %v2510, 7
          %v2535 = vsel %vm1621, %v2530, %v2534
          %v2536 = vrot.slane %v2511, 7
          %v2537 = vsel %vm1621, %v2532, %v2536
          %v2538 = vrot.slane %v2512, 7
          %v2539 = vsel %vm1621, %v2534, %v2538
          %v2540 = vrot.slane %v2513, 7
          %v2541 = vsel %vm1621, %v2536, %v2540
          %v2550 = vsel %vm1589, 0.0, %v2526
          %v2551 = vsel %vm1589, 0.0, %v2529
          %v2552 = vsel %vm1590, 0.0, %v2531
          %v2553 = vsel %vm1590, 0.0, %v2533
          %v2554 = vsel %vm1589, 0.0, %v2535
          %v2555 = vsel %vm1589, 0.0, %v2537
          %v2556 = vsel %vm1590, 0.0, %v2539
          %v2557 = vsel %vm1590, 0.0, %v2541
          %v2558 = vld [vmem:[#allocation3 + $0x10] sm:$0xfe]
          %v2559 = vld [vmem:[#allocation3 + $0x18] sm:$0xfe]
          %v2560 = vld [vmem:[#allocation3 + $0x20] sm:$0xff]
          %v2561 = vld [vmem:[#allocation3 + $0x28] sm:$0xff]
          %v2562 = vld [vmem:[#allocation3 + $0x30] sm:$0xff]
          %v2563 = vld [vmem:[#allocation3 + $0x38] sm:$0xff]
          %v2564 = vld [vmem:[#allocation3 + $0x40] sm:$0xff]
          %v2565 = vld [vmem:[#allocation3 + $0x48] sm:$0xff]
          %v2566 = vld [vmem:[#allocation3 + $0x50] sm:$0x1]
          %v2567 = vld [vmem:[#allocation3 + $0x58] sm:$0x1]
          %v2578 = vrot.slane %v2558, 1
          %v2579 = vrot.slane %v2560, 1
          %v2580 = vsel %vm1676, %v2578, %v2579
          %v2581 = vrot.slane %v2559, 1
          %v2582 = vrot.slane %v2561, 1
          %v2583 = vsel %vm1676, %v2581, %v2582
          %v2584 = vrot.slane %v2562, 1
          %v2585 = vsel %vm1676, %v2579, %v2584
          %v2586 = vrot.slane %v2563, 1
          %v2587 = vsel %vm1676, %v2582, %v2586
          %v2588 = vrot.slane %v2564, 1
          %v2589 = vsel %vm1676, %v2584, %v2588
          %v2590 = vrot.slane %v2565, 1
          %v2591 = vsel %vm1676, %v2586, %v2590
          %v2592 = vrot.slane %v2566, 1
          %v2593 = vsel %vm1676, %v2588, %v2592
          %v2594 = vrot.slane %v2567, 1
          %v2595 = vsel %vm1676, %v2590, %v2594
          %v2604 = vsel %vm1591, 0.0, %v2580
          %v2605 = vsel %vm1591, 0.0, %v2583
          %v2606 = vsel %vm1592, 0.0, %v2585
          %v2607 = vsel %vm1592, 0.0, %v2587
          %v2608 = vsel %vm1591, 0.0, %v2589
          %v2609 = vsel %vm1591, 0.0, %v2591
          %v2610 = vsel %vm1592, 0.0, %v2593
          %v2611 = vsel %vm1592, 0.0, %v2595
          %v2612 = vpack.c.bf16 %v2552, %v2550
          %v2613 = vpack.c.bf16 %v2553, %v2551
          %v2614 = vpack.c.bf16 %v2556, %v2554
          %v2615 = vpack.c.bf16 %v2557, %v2555
          %s2616 = scalar_lea.vmem [#allocation7], 768
          %v2617 = vld [vmem:[%s2616] sm:$0xff]
          %v2618 = vld [vmem:[%s2616 + $0x8] sm:$0xff]
          %v2619 = vld [vmem:[%s2616 + $0x10] sm:$0xff]
          %v2620 = vld [vmem:[%s2616 + $0x18] sm:$0xff]
          %v2621 = vld [vmem:[%s2616 + $0x20] sm:$0xff]
          %v2622 = vld [vmem:[%s2616 + $0x28] sm:$0xff]
          %v2623 = vld [vmem:[%s2616 + $0x30] sm:$0xff]
          %v2624 = vld [vmem:[%s2616 + $0x38] sm:$0xff]
          %v2625 = vld [vmem:[%s2616 + $0x40] sm:$0xff]
          %v2626 = vld [vmem:[%s2616 + $0x48] sm:$0xff]
          %v2627 = vld [vmem:[%s2616 + $0x50] sm:$0xff]
          %v2628 = vld [vmem:[%s2616 + $0x58] sm:$0xff]
          %v2629 = vld [vmem:[%s2616 + $0x60] sm:$0xff]
          %v2630 = vld [vmem:[%s2616 + $0x68] sm:$0xff]
          %v2631 = vld [vmem:[%s2616 + $0x70] sm:$0xff]
          %v2632 = vld [vmem:[%s2616 + $0x78] sm:$0xff]
          %v2633 = vld [vmem:[%s2616 + $0x80] sm:$0xff]
          %v2634 = vld [vmem:[%s2616 + $0x88] sm:$0xff]
          %v2635 = vld [vmem:[%s2616 + $0x90] sm:$0xff]
          %v2636 = vld [vmem:[%s2616 + $0x98] sm:$0xff]
          %v2637 = vld [vmem:[%s2616 + $0xa0] sm:$0xff]
          %v2638 = vld [vmem:[%s2616 + $0xa8] sm:$0xff]
          %v2639 = vld [vmem:[%s2616 + $0xb0] sm:$0xff]
          %v2640 = vld [vmem:[%s2616 + $0xb8] sm:$0xff]
          %v2641 = vld [vmem:[%s2616 + $0xc0] sm:$0xff]
          %v2642 = vld [vmem:[%s2616 + $0xc8] sm:$0xff]
          %v2643 = vld [vmem:[%s2616 + $0xd0] sm:$0xff]
          %v2644 = vld [vmem:[%s2616 + $0xd8] sm:$0xff]
          %v2645 = vld [vmem:[%s2616 + $0xe0] sm:$0xff]
          %v2646 = vld [vmem:[%s2616 + $0xe8] sm:$0xff]
          %v2647 = vld [vmem:[%s2616 + $0xf0] sm:$0xff]
          %v2648 = vld [vmem:[%s2616 + $0xf8] sm:$0xff]
          %v2649 = vpack.c.bf16 %v2490, %v2488
          %v2650 = vpack.c.bf16 %v2491, %v2489
          %v2651 = vpack.c.bf16 %v2494, %v2492
          %v2652 = vpack.c.bf16 %v2495, %v2493
          %s2653 = scalar_lea.vmem [#allocation7], 1024
          %v2654 = vld [vmem:[%s2653] sm:$0xff]
          %v2655 = vld [vmem:[%s2653 + $0x8] sm:$0xff]
          %v2656 = vld [vmem:[%s2653 + $0x10] sm:$0xff]
          %v2657 = vld [vmem:[%s2653 + $0x18] sm:$0xff]
          %v2658 = vld [vmem:[%s2653 + $0x20] sm:$0xff]
          %v2659 = vld [vmem:[%s2653 + $0x28] sm:$0xff]
          %v2660 = vld [vmem:[%s2653 + $0x30] sm:$0xff]
          %v2661 = vld [vmem:[%s2653 + $0x38] sm:$0xff]
          %v2662 = vld [vmem:[%s2653 + $0x40] sm:$0xff]
          %v2663 = vld [vmem:[%s2653 + $0x48] sm:$0xff]
          %v2664 = vld [vmem:[%s2653 + $0x50] sm:$0xff]
          %v2665 = vld [vmem:[%s2653 + $0x58] sm:$0xff]
          %v2666 = vld [vmem:[%s2653 + $0x60] sm:$0xff]
          %v2667 = vld [vmem:[%s2653 + $0x68] sm:$0xff]
          %v2668 = vld [vmem:[%s2653 + $0x70] sm:$0xff]
          %v2669 = vld [vmem:[%s2653 + $0x78] sm:$0xff]
          %v2670 = vld [vmem:[%s2653 + $0x80] sm:$0xff]
          %v2671 = vld [vmem:[%s2653 + $0x88] sm:$0xff]
          %v2672 = vld [vmem:[%s2653 + $0x90] sm:$0xff]
          %v2673 = vld [vmem:[%s2653 + $0x98] sm:$0xff]
          %v2674 = vld [vmem:[%s2653 + $0xa0] sm:$0xff]
          %v2675 = vld [vmem:[%s2653 + $0xa8] sm:$0xff]
          %v2676 = vld [vmem:[%s2653 + $0xb0] sm:$0xff]
          %v2677 = vld [vmem:[%s2653 + $0xb8] sm:$0xff]
          %v2678 = vld [vmem:[%s2653 + $0xc0] sm:$0xff]
          %v2679 = vld [vmem:[%s2653 + $0xc8] sm:$0xff]
          %v2680 = vld [vmem:[%s2653 + $0xd0] sm:$0xff]
          %v2681 = vld [vmem:[%s2653 + $0xd8] sm:$0xff]
          %v2682 = vld [vmem:[%s2653 + $0xe0] sm:$0xff]
          %v2683 = vld [vmem:[%s2653 + $0xe8] sm:$0xff]
          %v2684 = vld [vmem:[%s2653 + $0xf0] sm:$0xff]
          %v2685 = vld [vmem:[%s2653 + $0xf8] sm:$0xff]
          %v2718 = vunpack.c.l.b16 %v2654
          %v2719 = vunpack.c.h.b16 %v2654
          %v2720 = vunpack.c.l.b16 %v2655
          %v2721 = vunpack.c.h.b16 %v2655
          %v2722 = vunpack.c.l.b16 %v2656
          %v2723 = vunpack.c.h.b16 %v2656
          %v2724 = vunpack.c.l.b16 %v2657
          %v2725 = vunpack.c.h.b16 %v2657
          %v2726 = vunpack.c.l.b16 %v2658
          %v2727 = vunpack.c.h.b16 %v2658
          %v2728 = vunpack.c.l.b16 %v2659
          %v2729 = vunpack.c.h.b16 %v2659
          %v2730 = vunpack.c.l.b16 %v2660
          %v2731 = vunpack.c.h.b16 %v2660
          %v2732 = vunpack.c.l.b16 %v2661
          %v2733 = vunpack.c.h.b16 %v2661
          %v2734 = vunpack.c.l.b16 %v2662
          %v2735 = vunpack.c.h.b16 %v2662
          %v2736 = vunpack.c.l.b16 %v2663
          %v2737 = vunpack.c.h.b16 %v2663
          %v2738 = vunpack.c.l.b16 %v2664
          %v2739 = vunpack.c.h.b16 %v2664
          %v2740 = vunpack.c.l.b16 %v2665
          %v2741 = vunpack.c.h.b16 %v2665
          %v2742 = vunpack.c.l.b16 %v2666
          %v2743 = vunpack.c.h.b16 %v2666
          %v2744 = vunpack.c.l.b16 %v2667
          %v2745 = vunpack.c.h.b16 %v2667
          %v2746 = vunpack.c.l.b16 %v2668
          %v2747 = vunpack.c.h.b16 %v2668
          %v2748 = vunpack.c.l.b16 %v2669
          %v2749 = vunpack.c.h.b16 %v2669
          %v2750 = vunpack.c.l.b16 %v2670
          %v2751 = vunpack.c.h.b16 %v2670
          %v2752 = vunpack.c.l.b16 %v2671
          %v2753 = vunpack.c.h.b16 %v2671
          %v2754 = vunpack.c.l.b16 %v2672
          %v2755 = vunpack.c.h.b16 %v2672
          %v2756 = vunpack.c.l.b16 %v2673
          %v2757 = vunpack.c.h.b16 %v2673
          %v2758 = vunpack.c.l.b16 %v2674
          %v2759 = vunpack.c.h.b16 %v2674
          %v2760 = vunpack.c.l.b16 %v2675
          %v2761 = vunpack.c.h.b16 %v2675
          %v2762 = vunpack.c.l.b16 %v2676
          %v2763 = vunpack.c.h.b16 %v2676
          %v2764 = vunpack.c.l.b16 %v2677
          %v2765 = vunpack.c.h.b16 %v2677
          %v2766 = vunpack.c.l.b16 %v2678
          %v2767 = vunpack.c.h.b16 %v2678
          %v2768 = vunpack.c.l.b16 %v2679
          %v2769 = vunpack.c.h.b16 %v2679
          %v2770 = vunpack.c.l.b16 %v2680
          %v2771 = vunpack.c.h.b16 %v2680
          %v2772 = vunpack.c.l.b16 %v2681
          %v2773 = vunpack.c.h.b16 %v2681
          %v2774 = vunpack.c.l.b16 %v2682
          %v2775 = vunpack.c.h.b16 %v2682
          %v2776 = vunpack.c.l.b16 %v2683
          %v2777 = vunpack.c.h.b16 %v2683
          %v2778 = vunpack.c.l.b16 %v2684
          %v2779 = vunpack.c.h.b16 %v2684
          %v2780 = vunpack.c.l.b16 %v2685
          %v2781 = vunpack.c.h.b16 %v2685
          %v2782 = vpack.c.b16 %v2720, %v2718
          %v2783 = vpack.c.b16 %v2721, %v2719
          %v2784 = vpack.c.b16 %v2724, %v2722
          %v2785 = vpack.c.b16 %v2725, %v2723
          %v2786 = vpack.c.b16 %v2728, %v2726
          %v2787 = vpack.c.b16 %v2729, %v2727
          %v2788 = vpack.c.b16 %v2732, %v2730
          %v2789 = vpack.c.b16 %v2733, %v2731
          %v2790 = vpack.c.b16 %v2736, %v2734
          %v2791 = vpack.c.b16 %v2737, %v2735
          %v2792 = vpack.c.b16 %v2740, %v2738
          %v2793 = vpack.c.b16 %v2741, %v2739
          %v2794 = vpack.c.b16 %v2744, %v2742
          %v2795 = vpack.c.b16 %v2745, %v2743
          %v2796 = vpack.c.b16 %v2748, %v2746
          %v2797 = vpack.c.b16 %v2749, %v2747
          %v2798 = vpack.c.b16 %v2752, %v2750
          %v2799 = vpack.c.b16 %v2753, %v2751
          %v2800 = vpack.c.b16 %v2756, %v2754
          %v2801 = vpack.c.b16 %v2757, %v2755
          %v2802 = vpack.c.b16 %v2760, %v2758
          %v2803 = vpack.c.b16 %v2761, %v2759
          %v2804 = vpack.c.b16 %v2764, %v2762
          %v2805 = vpack.c.b16 %v2765, %v2763
          %v2806 = vpack.c.b16 %v2768, %v2766
          %v2807 = vpack.c.b16 %v2769, %v2767
          %v2808 = vpack.c.b16 %v2772, %v2770
          %v2809 = vpack.c.b16 %v2773, %v2771
          %v2810 = vpack.c.b16 %v2776, %v2774
          %v2811 = vpack.c.b16 %v2777, %v2775
          %v2812 = vpack.c.b16 %v2780, %v2778
          %v2813 = vpack.c.b16 %v2781, %v2779
          %2846 = vmatprep.subr.bf16.mxu0 %v2783
          %2847 = vmatpush1.bf16.msra.mxu0 %v2782
          %2848 = vmatprep.subr.bf16.mxu0 %v2785
          %2849 = vmatpush1.bf16.msra.mxu0 %v2784
          %2850 = vmatprep.subr.bf16.mxu0 %v2787
          %2851 = vmatpush1.bf16.msra.mxu0 %v2786
          %2852 = vmatprep.subr.bf16.mxu0 %v2789
          %2853 = vmatpush1.bf16.msra.mxu0 %v2788
          %2854 = vmatprep.subr.bf16.mxu0 %v2791
          %2855 = vmatpush1.bf16.msra.mxu0 %v2790
          %2856 = vmatprep.subr.bf16.mxu0 %v2793
          %2857 = vmatpush1.bf16.msra.mxu0 %v2792
          %2858 = vmatprep.subr.bf16.mxu0 %v2795
          %2859 = vmatpush1.bf16.msra.mxu0 %v2794
          %2860 = vmatprep.subr.bf16.mxu0 %v2797
          %2861 = vmatpush1.bf16.msra.mxu0 %v2796
          %2862 = vmatprep.subr.bf16.mxu0 %v2799
          %2863 = vmatpush1.bf16.msra.mxu0 %v2798
          %2864 = vmatprep.subr.bf16.mxu0 %v2801
          %2865 = vmatpush1.bf16.msra.mxu0 %v2800
          %2866 = vmatprep.subr.bf16.mxu0 %v2803
          %2867 = vmatpush1.bf16.msra.mxu0 %v2802
          %2868 = vmatprep.subr.bf16.mxu0 %v2805
          %2869 = vmatpush1.bf16.msra.mxu0 %v2804
          %2870 = vmatprep.subr.bf16.mxu0 %v2807
          %2871 = vmatpush1.bf16.msra.mxu0 %v2806
          %2872 = vmatprep.subr.bf16.mxu0 %v2809
          %2873 = vmatpush1.bf16.msra.mxu0 %v2808
          %2874 = vmatprep.subr.bf16.mxu0 %v2811
          %2875 = vmatpush1.bf16.msra.mxu0 %v2810
          %2876 = vmatprep.subr.bf16.mxu0 %v2813
          %2877 = vmatpush1.bf16.msra.mxu0 %v2812
          %2878 = vmatprep.mubr.bf16.mxu0 %v2650
          %2879 = vmatmul.mubr.bf16.gmra.mrb[0].mxu0 %v2649
          %v2880 = vpop.f32.mrb[0].mxu0
          %v2881 = vadd.f32 0.0, %v2880
          %v2882 = vpop.f32.mrb[0].mxu0
          %v2883 = vadd.f32 0.0, %v2882
          %v2884 = vpop.f32.mrb[0].mxu0
          %v2885 = vadd.f32 0.0, %v2884
          %v2886 = vpop.f32.mrb[0].mxu0
          %v2887 = vadd.f32 0.0, %v2886
          %2888 = vmatprep.mubr.bf16.mxu0 %v2652
          %2889 = vmatmul.mubr.bf16.gmra.mrb[0].mxu0 %v2651
          %v2890 = vpop.f32.mrb[0].mxu0
          %v2891 = vadd.f32 0.0, %v2890
          %v2892 = vpop.f32.mrb[0].mxu0
          %v2893 = vadd.f32 0.0, %v2892
          %v2894 = vpop.f32.mrb[0].mxu0
          %v2895 = vadd.f32 0.0, %v2894
          %v2896 = vpop.f32.mrb[0].mxu0
          %v2897 = vadd.f32 0.0, %v2896
          %2898 = vdwg.mxu0
          %v2931 = vunpack.c.l.b16 %v2617
          %v2932 = vunpack.c.h.b16 %v2617
          %v2933 = vunpack.c.l.b16 %v2618
          %v2934 = vunpack.c.h.b16 %v2618
          %v2935 = vunpack.c.l.b16 %v2619
          %v2936 = vunpack.c.h.b16 %v2619
          %v2937 = vunpack.c.l.b16 %v2620
          %v2938 = vunpack.c.h.b16 %v2620
          %v2939 = vunpack.c.l.b16 %v2621
          %v2940 = vunpack.c.h.b16 %v2621
          %v2941 = vunpack.c.l.b16 %v2622
          %v2942 = vunpack.c.h.b16 %v2622
          %v2943 = vunpack.c.l.b16 %v2623
          %v2944 = vunpack.c.h.b16 %v2623
          %v2945 = vunpack.c.l.b16 %v2624
          %v2946 = vunpack.c.h.b16 %v2624
          %v2947 = vunpack.c.l.b16 %v2625
          %v2948 = vunpack.c.h.b16 %v2625
          %v2949 = vunpack.c.l.b16 %v2626
          %v2950 = vunpack.c.h.b16 %v2626
          %v2951 = vunpack.c.l.b16 %v2627
          %v2952 = vunpack.c.h.b16 %v2627
          %v2953 = vunpack.c.l.b16 %v2628
          %v2954 = vunpack.c.h.b16 %v2628
          %v2955 = vunpack.c.l.b16 %v2629
          %v2956 = vunpack.c.h.b16 %v2629
          %v2957 = vunpack.c.l.b16 %v2630
          %v2958 = vunpack.c.h.b16 %v2630
          %v2959 = vunpack.c.l.b16 %v2631
          %v2960 = vunpack.c.h.b16 %v2631
          %v2961 = vunpack.c.l.b16 %v2632
          %v2962 = vunpack.c.h.b16 %v2632
          %v2963 = vunpack.c.l.b16 %v2633
          %v2964 = vunpack.c.h.b16 %v2633
          %v2965 = vunpack.c.l.b16 %v2634
          %v2966 = vunpack.c.h.b16 %v2634
          %v2967 = vunpack.c.l.b16 %v2635
          %v2968 = vunpack.c.h.b16 %v2635
          %v2969 = vunpack.c.l.b16 %v2636
          %v2970 = vunpack.c.h.b16 %v2636
          %v2971 = vunpack.c.l.b16 %v2637
          %v2972 = vunpack.c.h.b16 %v2637
          %v2973 = vunpack.c.l.b16 %v2638
          %v2974 = vunpack.c.h.b16 %v2638
          %v2975 = vunpack.c.l.b16 %v2639
          %v2976 = vunpack.c.h.b16 %v2639
          %v2977 = vunpack.c.l.b16 %v2640
          %v2978 = vunpack.c.h.b16 %v2640
          %v2979 = vunpack.c.l.b16 %v2641
          %v2980 = vunpack.c.h.b16 %v2641
          %v2981 = vunpack.c.l.b16 %v2642
          %v2982 = vunpack.c.h.b16 %v2642
          %v2983 = vunpack.c.l.b16 %v2643
          %v2984 = vunpack.c.h.b16 %v2643
          %v2985 = vunpack.c.l.b16 %v2644
          %v2986 = vunpack.c.h.b16 %v2644
          %v2987 = vunpack.c.l.b16 %v2645
          %v2988 = vunpack.c.h.b16 %v2645
          %v2989 = vunpack.c.l.b16 %v2646
          %v2990 = vunpack.c.h.b16 %v2646
          %v2991 = vunpack.c.l.b16 %v2647
          %v2992 = vunpack.c.h.b16 %v2647
          %v2993 = vunpack.c.l.b16 %v2648
          %v2994 = vunpack.c.h.b16 %v2648
          %v2995 = vpack.c.b16 %v2933, %v2931
          %v2996 = vpack.c.b16 %v2934, %v2932
          %v2997 = vpack.c.b16 %v2937, %v2935
          %v2998 = vpack.c.b16 %v2938, %v2936
          %v2999 = vpack.c.b16 %v2941, %v2939
          %v3000 = vpack.c.b16 %v2942, %v2940
          %v3001 = vpack.c.b16 %v2945, %v2943
          %v3002 = vpack.c.b16 %v2946, %v2944
          %v3003 = vpack.c.b16 %v2949, %v2947
          %v3004 = vpack.c.b16 %v2950, %v2948
          %v3005 = vpack.c.b16 %v2953, %v2951
          %v3006 = vpack.c.b16 %v2954, %v2952
          %v3007 = vpack.c.b16 %v2957, %v2955
          %v3008 = vpack.c.b16 %v2958, %v2956
          %v3009 = vpack.c.b16 %v2961, %v2959
          %v3010 = vpack.c.b16 %v2962, %v2960
          %v3011 = vpack.c.b16 %v2965, %v2963
          %v3012 = vpack.c.b16 %v2966, %v2964
          %v3013 = vpack.c.b16 %v2969, %v2967
          %v3014 = vpack.c.b16 %v2970, %v2968
          %v3015 = vpack.c.b16 %v2973, %v2971
          %v3016 = vpack.c.b16 %v2974, %v2972
          %v3017 = vpack.c.b16 %v2977, %v2975
          %v3018 = vpack.c.b16 %v2978, %v2976
          %v3019 = vpack.c.b16 %v2981, %v2979
          %v3020 = vpack.c.b16 %v2982, %v2980
          %v3021 = vpack.c.b16 %v2985, %v2983
          %v3022 = vpack.c.b16 %v2986, %v2984
          %v3023 = vpack.c.b16 %v2989, %v2987
          %v3024 = vpack.c.b16 %v2990, %v2988
          %v3025 = vpack.c.b16 %v2993, %v2991
          %v3026 = vpack.c.b16 %v2994, %v2992
          %3059 = vmatprep.subr.bf16.mxu0 %v2996
          %3060 = vmatpush1.bf16.msra.mxu0 %v2995
          %3061 = vmatprep.subr.bf16.mxu0 %v2998
          %3062 = vmatpush1.bf16.msra.mxu0 %v2997
          %3063 = vmatprep.subr.bf16.mxu0 %v3000
          %3064 = vmatpush1.bf16.msra.mxu0 %v2999
          %3065 = vmatprep.subr.bf16.mxu0 %v3002
          %3066 = vmatpush1.bf16.msra.mxu0 %v3001
          %3067 = vmatprep.subr.bf16.mxu0 %v3004
          %3068 = vmatpush1.bf16.msra.mxu0 %v3003
          %3069 = vmatprep.subr.bf16.mxu0 %v3006
          %3070 = vmatpush1.bf16.msra.mxu0 %v3005
          %3071 = vmatprep.subr.bf16.mxu0 %v3008
          %3072 = vmatpush1.bf16.msra.mxu0 %v3007
          %3073 = vmatprep.subr.bf16.mxu0 %v3010
          %3074 = vmatpush1.bf16.msra.mxu0 %v3009
          %3075 = vmatprep.subr.bf16.mxu0 %v3012
          %3076 = vmatpush1.bf16.msra.mxu0 %v3011
          %3077 = vmatprep.subr.bf16.mxu0 %v3014
          %3078 = vmatpush1.bf16.msra.mxu0 %v3013
          %3079 = vmatprep.subr.bf16.mxu0 %v3016
          %3080 = vmatpush1.bf16.msra.mxu0 %v3015
          %3081 = vmatprep.subr.bf16.mxu0 %v3018
          %3082 = vmatpush1.bf16.msra.mxu0 %v3017
          %3083 = vmatprep.subr.bf16.mxu0 %v3020
          %3084 = vmatpush1.bf16.msra.mxu0 %v3019
          %3085 = vmatprep.subr.bf16.mxu0 %v3022
          %3086 = vmatpush1.bf16.msra.mxu0 %v3021
          %3087 = vmatprep.subr.bf16.mxu0 %v3024
          %3088 = vmatpush1.bf16.msra.mxu0 %v3023
          %3089 = vmatprep.subr.bf16.mxu0 %v3026
          %3090 = vmatpush1.bf16.msra.mxu0 %v3025
          %3091 = vmatprep.mubr.bf16.mxu0 %v2613
          %3092 = vmatmul.mubr.bf16.gmra.mrb[0].mxu0 %v2612
          %v3093 = vpop.f32.mrb[0].mxu0
          %v3094 = vadd.f32 %v2881, %v3093
          %v3095 = vpop.f32.mrb[0].mxu0
          %v3096 = vadd.f32 %v2883, %v3095
          %v3097 = vpop.f32.mrb[0].mxu0
          %v3098 = vadd.f32 %v2885, %v3097
          %v3099 = vpop.f32.mrb[0].mxu0
          %v3100 = vadd.f32 %v2887, %v3099
          %3101 = vmatprep.mubr.bf16.mxu0 %v2615
          %3102 = vmatmul.mubr.bf16.gmra.mrb[0].mxu0 %v2614
          %v3103 = vpop.f32.mrb[0].mxu0
          %v3104 = vadd.f32 %v2891, %v3103
          %v3105 = vpop.f32.mrb[0].mxu0
          %v3106 = vadd.f32 %v2893, %v3105
          %v3107 = vpop.f32.mrb[0].mxu0
          %v3108 = vadd.f32 %v2895, %v3107
          %v3109 = vpop.f32.mrb[0].mxu0
          %v3110 = vadd.f32 %v2897, %v3109
          %3111 = vdwg.mxu0
          %v3112 = vpack.c.bf16 %v2606, %v2604
          %v3113 = vpack.c.bf16 %v2607, %v2605
          %v3114 = vpack.c.bf16 %v2610, %v2608
          %v3115 = vpack.c.bf16 %v2611, %v2609
          %s3116 = scalar_lea.vmem [#allocation7], 1280
          %v3117 = vld [vmem:[%s3116] sm:$0xff]
          %v3118 = vld [vmem:[%s3116 + $0x8] sm:$0xff]
          %v3119 = vld [vmem:[%s3116 + $0x10] sm:$0xff]
          %v3120 = vld [vmem:[%s3116 + $0x18] sm:$0xff]
          %v3121 = vld [vmem:[%s3116 + $0x20] sm:$0xff]
          %v3122 = vld [vmem:[%s3116 + $0x28] sm:$0xff]
          %v3123 = vld [vmem:[%s3116 + $0x30] sm:$0xff]
          %v3124 = vld [vmem:[%s3116 + $0x38] sm:$0xff]
          %v3125 = vld [vmem:[%s3116 + $0x40] sm:$0xff]
          %v3126 = vld [vmem:[%s3116 + $0x48] sm:$0xff]
          %v3127 = vld [vmem:[%s3116 + $0x50] sm:$0xff]
          %v3128 = vld [vmem:[%s3116 + $0x58] sm:$0xff]
          %v3129 = vld [vmem:[%s3116 + $0x60] sm:$0xff]
          %v3130 = vld [vmem:[%s3116 + $0x68] sm:$0xff]
          %v3131 = vld [vmem:[%s3116 + $0x70] sm:$0xff]
          %v3132 = vld [vmem:[%s3116 + $0x78] sm:$0xff]
          %v3133 = vld [vmem:[%s3116 + $0x80] sm:$0xff]
          %v3134 = vld [vmem:[%s3116 + $0x88] sm:$0xff]
          %v3135 = vld [vmem:[%s3116 + $0x90] sm:$0xff]
          %v3136 = vld [vmem:[%s3116 + $0x98] sm:$0xff]
          %v3137 = vld [vmem:[%s3116 + $0xa0] sm:$0xff]
          %v3138 = vld [vmem:[%s3116 + $0xa8] sm:$0xff]
          %v3139 = vld [vmem:[%s3116 + $0xb0] sm:$0xff]
          %v3140 = vld [vmem:[%s3116 + $0xb8] sm:$0xff]
          %v3141 = vld [vmem:[%s3116 + $0xc0] sm:$0xff]
          %v3142 = vld [vmem:[%s3116 + $0xc8] sm:$0xff]
          %v3143 = vld [vmem:[%s3116 + $0xd0] sm:$0xff]
          %v3144 = vld [vmem:[%s3116 + $0xd8] sm:$0xff]
          %v3145 = vld [vmem:[%s3116 + $0xe0] sm:$0xff]
          %v3146 = vld [vmem:[%s3116 + $0xe8] sm:$0xff]
          %v3147 = vld [vmem:[%s3116 + $0xf0] sm:$0xff]
          %v3148 = vld [vmem:[%s3116 + $0xf8] sm:$0xff]
          %v3181 = vunpack.c.l.b16 %v3117
          %v3182 = vunpack.c.h.b16 %v3117
          %v3183 = vunpack.c.l.b16 %v3118
          %v3184 = vunpack.c.h.b16 %v3118
          %v3185 = vunpack.c.l.b16 %v3119
          %v3186 = vunpack.c.h.b16 %v3119
          %v3187 = vunpack.c.l.b16 %v3120
          %v3188 = vunpack.c.h.b16 %v3120
          %v3189 = vunpack.c.l.b16 %v3121
          %v3190 = vunpack.c.h.b16 %v3121
          %v3191 = vunpack.c.l.b16 %v3122
          %v3192 = vunpack.c.h.b16 %v3122
          %v3193 = vunpack.c.l.b16 %v3123
          %v3194 = vunpack.c.h.b16 %v3123
          %v3195 = vunpack.c.l.b16 %v3124
          %v3196 = vunpack.c.h.b16 %v3124
          %v3197 = vunpack.c.l.b16 %v3125
          %v3198 = vunpack.c.h.b16 %v3125
          %v3199 = vunpack.c.l.b16 %v3126
          %v3200 = vunpack.c.h.b16 %v3126
          %v3201 = vunpack.c.l.b16 %v3127
          %v3202 = vunpack.c.h.b16 %v3127
          %v3203 = vunpack.c.l.b16 %v3128
          %v3204 = vunpack.c.h.b16 %v3128
          %v3205 = vunpack.c.l.b16 %v3129
          %v3206 = vunpack.c.h.b16 %v3129
          %v3207 = vunpack.c.l.b16 %v3130
          %v3208 = vunpack.c.h.b16 %v3130
          %v3209 = vunpack.c.l.b16 %v3131
          %v3210 = vunpack.c.h.b16 %v3131
          %v3211 = vunpack.c.l.b16 %v3132
          %v3212 = vunpack.c.h.b16 %v3132
          %v3213 = vunpack.c.l.b16 %v3133
          %v3214 = vunpack.c.h.b16 %v3133
          %v3215 = vunpack.c.l.b16 %v3134
          %v3216 = vunpack.c.h.b16 %v3134
          %v3217 = vunpack.c.l.b16 %v3135
          %v3218 = vunpack.c.h.b16 %v3135
          %v3219 = vunpack.c.l.b16 %v3136
          %v3220 = vunpack.c.h.b16 %v3136
          %v3221 = vunpack.c.l.b16 %v3137
          %v3222 = vunpack.c.h.b16 %v3137
          %v3223 = vunpack.c.l.b16 %v3138
          %v3224 = vunpack.c.h.b16 %v3138
          %v3225 = vunpack.c.l.b16 %v3139
          %v3226 = vunpack.c.h.b16 %v3139
          %v3227 = vunpack.c.l.b16 %v3140
          %v3228 = vunpack.c.h.b16 %v3140
          %v3229 = vunpack.c.l.b16 %v3141
          %v3230 = vunpack.c.h.b16 %v3141
          %v3231 = vunpack.c.l.b16 %v3142
          %v3232 = vunpack.c.h.b16 %v3142
          %v3233 = vunpack.c.l.b16 %v3143
          %v3234 = vunpack.c.h.b16 %v3143
          %v3235 = vunpack.c.l.b16 %v3144
          %v3236 = vunpack.c.h.b16 %v3144
          %v3237 = vunpack.c.l.b16 %v3145
          %v3238 = vunpack.c.h.b16 %v3145
          %v3239 = vunpack.c.l.b16 %v3146
          %v3240 = vunpack.c.h.b16 %v3146
          %v3241 = vunpack.c.l.b16 %v3147
          %v3242 = vunpack.c.h.b16 %v3147
          %v3243 = vunpack.c.l.b16 %v3148
          %v3244 = vunpack.c.h.b16 %v3148
          %v3245 = vpack.c.b16 %v3183, %v3181
          %v3246 = vpack.c.b16 %v3184, %v3182
          %v3247 = vpack.c.b16 %v3187, %v3185
          %v3248 = vpack.c.b16 %v3188, %v3186
          %v3249 = vpack.c.b16 %v3191, %v3189
          %v3250 = vpack.c.b16 %v3192, %v3190
          %v3251 = vpack.c.b16 %v3195, %v3193
          %v3252 = vpack.c.b16 %v3196, %v3194
          %v3253 = vpack.c.b16 %v3199, %v3197
          %v3254 = vpack.c.b16 %v3200, %v3198
          %v3255 = vpack.c.b16 %v3203, %v3201
          %v3256 = vpack.c.b16 %v3204, %v3202
          %v3257 = vpack.c.b16 %v3207, %v3205
          %v3258 = vpack.c.b16 %v3208, %v3206
          %v3259 = vpack.c.b16 %v3211, %v3209
          %v3260 = vpack.c.b16 %v3212, %v3210
          %v3261 = vpack.c.b16 %v3215, %v3213
          %v3262 = vpack.c.b16 %v3216, %v3214
          %v3263 = vpack.c.b16 %v3219, %v3217
          %v3264 = vpack.c.b16 %v3220, %v3218
          %v3265 = vpack.c.b16 %v3223, %v3221
          %v3266 = vpack.c.b16 %v3224, %v3222
          %v3267 = vpack.c.b16 %v3227, %v3225
          %v3268 = vpack.c.b16 %v3228, %v3226
          %v3269 = vpack.c.b16 %v3231, %v3229
          %v3270 = vpack.c.b16 %v3232, %v3230
          %v3271 = vpack.c.b16 %v3235, %v3233
          %v3272 = vpack.c.b16 %v3236, %v3234
          %v3273 = vpack.c.b16 %v3239, %v3237
          %v3274 = vpack.c.b16 %v3240, %v3238
          %v3275 = vpack.c.b16 %v3243, %v3241
          %v3276 = vpack.c.b16 %v3244, %v3242
          %3309 = vmatprep.subr.bf16.mxu0 %v3246
          %3310 = vmatpush1.bf16.msra.mxu0 %v3245
          %3311 = vmatprep.subr.bf16.mxu0 %v3248
          %3312 = vmatpush1.bf16.msra.mxu0 %v3247
          %3313 = vmatprep.subr.bf16.mxu0 %v3250
          %3314 = vmatpush1.bf16.msra.mxu0 %v3249
          %3315 = vmatprep.subr.bf16.mxu0 %v3252
          %3316 = vmatpush1.bf16.msra.mxu0 %v3251
          %3317 = vmatprep.subr.bf16.mxu0 %v3254
          %3318 = vmatpush1.bf16.msra.mxu0 %v3253
          %3319 = vmatprep.subr.bf16.mxu0 %v3256
          %3320 = vmatpush1.bf16.msra.mxu0 %v3255
          %3321 = vmatprep.subr.bf16.mxu0 %v3258
          %3322 = vmatpush1.bf16.msra.mxu0 %v3257
          %3323 = vmatprep.subr.bf16.mxu0 %v3260
          %3324 = vmatpush1.bf16.msra.mxu0 %v3259
          %3325 = vmatprep.subr.bf16.mxu0 %v3262
          %3326 = vmatpush1.bf16.msra.mxu0 %v3261
          %3327 = vmatprep.subr.bf16.mxu0 %v3264
          %3328 = vmatpush1.bf16.msra.mxu0 %v3263
          %3329 = vmatprep.subr.bf16.mxu0 %v3266
          %3330 = vmatpush1.bf16.msra.mxu0 %v3265
          %3331 = vmatprep.subr.bf16.mxu0 %v3268
          %3332 = vmatpush1.bf16.msra.mxu0 %v3267
          %3333 = vmatprep.subr.bf16.mxu0 %v3270
          %3334 = vmatpush1.bf16.msra.mxu0 %v3269
          %3335 = vmatprep.subr.bf16.mxu0 %v3272
          %3336 = vmatpush1.bf16.msra.mxu0 %v3271
          %3337 = vmatprep.subr.bf16.mxu0 %v3274
          %3338 = vmatpush1.bf16.msra.mxu0 %v3273
          %3339 = vmatprep.subr.bf16.mxu0 %v3276
          %3340 = vmatpush1.bf16.msra.mxu0 %v3275
          %3341 = vmatprep.mubr.bf16.mxu0 %v3113
          %3342 = vmatmul.mubr.bf16.gmra.mrb[0].mxu0 %v3112
          %v3343 = vpop.f32.mrb[0].mxu0
          %v3344 = vadd.f32 0.0, %v3343
          %v3345 = vpop.f32.mrb[0].mxu0
          %v3346 = vadd.f32 0.0, %v3345
          %v3347 = vpop.f32.mrb[0].mxu0
          %v3348 = vadd.f32 0.0, %v3347
          %v3349 = vpop.f32.mrb[0].mxu0
          %v3350 = vadd.f32 0.0, %v3349
          %3351 = vmatprep.mubr.bf16.mxu0 %v3115
          %3352 = vmatmul.mubr.bf16.gmra.mrb[0].mxu0 %v3114
          %v3353 = vpop.f32.mrb[0].mxu0
          %v3354 = vadd.f32 0.0, %v3353
          %v3355 = vpop.f32.mrb[0].mxu0
          %v3356 = vadd.f32 0.0, %v3355
          %v3357 = vpop.f32.mrb[0].mxu0
          %v3358 = vadd.f32 0.0, %v3357
          %v3359 = vpop.f32.mrb[0].mxu0
          %v3360 = vadd.f32 0.0, %v3359
          %3361 = vdwg.mxu0
          %v3362 = vadd.f32 %v3094, %v3344
          %v3363 = vadd.f32 %v3096, %v3346
          %v3364 = vadd.f32 %v3098, %v3348
          %v3365 = vadd.f32 %v3100, %v3350
          %v3366 = vadd.f32 %v3104, %v3354
          %v3367 = vadd.f32 %v3106, %v3356
          %v3368 = vadd.f32 %v3108, %v3358
          %v3369 = vadd.f32 %v3110, %v3360
          %s3370 = scalar_lea.vmem [#allocation9], 2
          %v3371 = vld [vmem:[%s3370] sm:$0x3]
          %v3373 = vlaneseq
          %v3374 = vshrl.u32 %v3373, 7
          %v3375 = vsub.s32 0, %v3374
          %v3376 = vrot.slane %v3371, %v3375
          %v3377 = vlaneseq
          %v3378 = vshrl.u32 %v3377, 7
          %v3379 = vsub.s32 1, %v3378
          %v3380 = vrot.slane %v3371, %v3379
          %v3383 = vadd.f32 %v3362, %v3376
          %v3384 = vadd.f32 %v3363, %v3380
          %v3385 = vadd.f32 %v3364, %v3376
          %v3386 = vadd.f32 %v3365, %v3380
          %v3387 = vadd.f32 %v3366, %v3376
          %v3388 = vadd.f32 %v3367, %v3380
          %v3389 = vadd.f32 %v3368, %v3376
          %v3390 = vadd.f32 %v3369, %v3380
          %v3391 = vmax.f32 %v3383, 0.0
          %v3392 = vmax.f32 %v3384, 0.0
          %v3393 = vmax.f32 %v3385, 0.0
          %v3394 = vmax.f32 %v3386, 0.0
          %v3395 = vmax.f32 %v3387, 0.0
          %v3396 = vmax.f32 %v3388, 0.0
          %v3397 = vmax.f32 %v3389, 0.0
          %v3398 = vmax.f32 %v3390, 0.0
          %3399 = vst [vmem:[#allocation3 + $0x10] sm:$0xff] %v3391
          %3400 = vst [vmem:[#allocation3 + $0x18] sm:$0xff] %v3392
          %3401 = vst [vmem:[#allocation3 + $0x20] sm:$0xff] %v3393
          %3402 = vst [vmem:[#allocation3 + $0x28] sm:$0xff] %v3394
          %3403 = vst [vmem:[#allocation3 + $0x30] sm:$0xff] %v3395
          %3404 = vst [vmem:[#allocation3 + $0x38] sm:$0xff] %v3396
          %3405 = vst [vmem:[#allocation3 + $0x40] sm:$0xff] %v3397
          %3406 = vst [vmem:[#allocation3 + $0x48] sm:$0xff] %v3398
          %v3407 = vld [vmem:[#allocation3] sm:$0x80]
          %v3408 = vld [vmem:[#allocation3 + $0x8] sm:$0x80]
          %v3409 = vld [vmem:[#allocation3 + $0x10] sm:$0xff]
          %v3410 = vld [vmem:[#allocation3 + $0x18] sm:$0xff]
          %v3411 = vld [vmem:[#allocation3 + $0x20] sm:$0xff]
          %v3412 = vld [vmem:[#allocation3 + $0x28] sm:$0xff]
          %v3413 = vld [vmem:[#allocation3 + $0x30] sm:$0xff]
          %v3414 = vld [vmem:[#allocation3 + $0x38] sm:$0xff]
          %v3415 = vld [vmem:[#allocation3 + $0x40] sm:$0x7f]
          %v3416 = vld [vmem:[#allocation3 + $0x48] sm:$0x7f]
          %v3427 = vrot.slane %v3407, 7
          %v3428 = vrot.slane %v3409, 7
          %v3429 = vsel %vm1621, %v3427, %v3428
          %v3430 = vrot.slane %v3408, 7
          %v3431 = vrot.slane %v3410, 7
          %v3432 = vsel %vm1621, %v3430, %v3431
          %v3433 = vrot.slane %v3411, 7
          %v3434 = vsel %vm1621, %v3428, %v3433
          %v3435 = vrot.slane %v3412, 7
          %v3436 = vsel %vm1621, %v3431, %v3435
          %v3437 = vrot.slane %v3413, 7
          %v3438 = vsel %vm1621, %v3433, %v3437
          %v3439 = vrot.slane %v3414, 7
          %v3440 = vsel %vm1621, %v3435, %v3439
          %v3441 = vrot.slane %v3415, 7
          %v3442 = vsel %vm1621, %v3437, %v3441
          %v3443 = vrot.slane %v3416, 7
          %v3444 = vsel %vm1621, %v3439, %v3443
          %v3453 = vsel %vm1589, 0.0, %v3429
          %v3454 = vsel %vm1589, 0.0, %v3432
          %v3455 = vsel %vm1590, 0.0, %v3434
          %v3456 = vsel %vm1590, 0.0, %v3436
          %v3457 = vsel %vm1589, 0.0, %v3438
          %v3458 = vsel %vm1589, 0.0, %v3440
          %v3459 = vsel %vm1590, 0.0, %v3442
          %v3460 = vsel %vm1590, 0.0, %v3444
          %v3461 = vld [vmem:[#allocation3 + $0x10] sm:$0xfe]
          %v3462 = vld [vmem:[#allocation3 + $0x18] sm:$0xfe]
          %v3463 = vld [vmem:[#allocation3 + $0x20] sm:$0xff]
          %v3464 = vld [vmem:[#allocation3 + $0x28] sm:$0xff]
          %v3465 = vld [vmem:[#allocation3 + $0x30] sm:$0xff]
          %v3466 = vld [vmem:[#allocation3 + $0x38] sm:$0xff]
          %v3467 = vld [vmem:[#allocation3 + $0x40] sm:$0xff]
          %v3468 = vld [vmem:[#allocation3 + $0x48] sm:$0xff]
          %v3469 = vld [vmem:[#allocation3 + $0x50] sm:$0x1]
          %v3470 = vld [vmem:[#allocation3 + $0x58] sm:$0x1]
          %v3481 = vrot.slane %v3461, 1
          %v3482 = vrot.slane %v3463, 1
          %v3483 = vsel %vm1676, %v3481, %v3482
          %v3484 = vrot.slane %v3462, 1
          %v3485 = vrot.slane %v3464, 1
          %v3486 = vsel %vm1676, %v3484, %v3485
          %v3487 = vrot.slane %v3465, 1
          %v3488 = vsel %vm1676, %v3482, %v3487
          %v3489 = vrot.slane %v3466, 1
          %v3490 = vsel %vm1676, %v3485, %v3489
          %v3491 = vrot.slane %v3467, 1
          %v3492 = vsel %vm1676, %v3487, %v3491
          %v3493 = vrot.slane %v3468, 1
          %v3494 = vsel %vm1676, %v3489, %v3493
          %v3495 = vrot.slane %v3469, 1
          %v3496 = vsel %vm1676, %v3491, %v3495
          %v3497 = vrot.slane %v3470, 1
          %v3498 = vsel %vm1676, %v3493, %v3497
          %v3507 = vsel %vm1591, 0.0, %v3483
          %v3508 = vsel %vm1591, 0.0, %v3486
          %v3509 = vsel %vm1592, 0.0, %v3488
          %v3510 = vsel %vm1592, 0.0, %v3490
          %v3511 = vsel %vm1591, 0.0, %v3492
          %v3512 = vsel %vm1591, 0.0, %v3494
          %v3513 = vsel %vm1592, 0.0, %v3496
          %v3514 = vsel %vm1592, 0.0, %v3498
          %v3515 = vpack.c.bf16 %v3455, %v3453
          %v3516 = vpack.c.bf16 %v3456, %v3454
          %v3517 = vpack.c.bf16 %v3459, %v3457
          %v3518 = vpack.c.bf16 %v3460, %v3458
          %s3519 = scalar_lea.vmem [#allocation7], 1536
          %v3520 = vld [vmem:[%s3519] sm:$0xff]
          %v3521 = vld [vmem:[%s3519 + $0x8] sm:$0xff]
          %v3522 = vld [vmem:[%s3519 + $0x10] sm:$0xff]
          %v3523 = vld [vmem:[%s3519 + $0x18] sm:$0xff]
          %v3524 = vld [vmem:[%s3519 + $0x20] sm:$0xff]
          %v3525 = vld [vmem:[%s3519 + $0x28] sm:$0xff]
          %v3526 = vld [vmem:[%s3519 + $0x30] sm:$0xff]
          %v3527 = vld [vmem:[%s3519 + $0x38] sm:$0xff]
          %v3528 = vld [vmem:[%s3519 + $0x40] sm:$0xff]
          %v3529 = vld [vmem:[%s3519 + $0x48] sm:$0xff]
          %v3530 = vld [vmem:[%s3519 + $0x50] sm:$0xff]
          %v3531 = vld [vmem:[%s3519 + $0x58] sm:$0xff]
          %v3532 = vld [vmem:[%s3519 + $0x60] sm:$0xff]
          %v3533 = vld [vmem:[%s3519 + $0x68] sm:$0xff]
          %v3534 = vld [vmem:[%s3519 + $0x70] sm:$0xff]
          %v3535 = vld [vmem:[%s3519 + $0x78] sm:$0xff]
          %v3536 = vld [vmem:[%s3519 + $0x80] sm:$0xff]
          %v3537 = vld [vmem:[%s3519 + $0x88] sm:$0xff]
          %v3538 = vld [vmem:[%s3519 + $0x90] sm:$0xff]
          %v3539 = vld [vmem:[%s3519 + $0x98] sm:$0xff]
          %v3540 = vld [vmem:[%s3519 + $0xa0] sm:$0xff]
          %v3541 = vld [vmem:[%s3519 + $0xa8] sm:$0xff]
          %v3542 = vld [vmem:[%s3519 + $0xb0] sm:$0xff]
          %v3543 = vld [vmem:[%s3519 + $0xb8] sm:$0xff]
          %v3544 = vld [vmem:[%s3519 + $0xc0] sm:$0xff]
          %v3545 = vld [vmem:[%s3519 + $0xc8] sm:$0xff]
          %v3546 = vld [vmem:[%s3519 + $0xd0] sm:$0xff]
          %v3547 = vld [vmem:[%s3519 + $0xd8] sm:$0xff]
          %v3548 = vld [vmem:[%s3519 + $0xe0] sm:$0xff]
          %v3549 = vld [vmem:[%s3519 + $0xe8] sm:$0xff]
          %v3550 = vld [vmem:[%s3519 + $0xf0] sm:$0xff]
          %v3551 = vld [vmem:[%s3519 + $0xf8] sm:$0xff]
          %v3552 = vpack.c.bf16 %v3393, %v3391
          %v3553 = vpack.c.bf16 %v3394, %v3392
          %v3554 = vpack.c.bf16 %v3397, %v3395
          %v3555 = vpack.c.bf16 %v3398, %v3396
          %s3556 = scalar_lea.vmem [#allocation7], 1792
          %v3557 = vld [vmem:[%s3556] sm:$0xff]
          %v3558 = vld [vmem:[%s3556 + $0x8] sm:$0xff]
          %v3559 = vld [vmem:[%s3556 + $0x10] sm:$0xff]
          %v3560 = vld [vmem:[%s3556 + $0x18] sm:$0xff]
          %v3561 = vld [vmem:[%s3556 + $0x20] sm:$0xff]
          %v3562 = vld [vmem:[%s3556 + $0x28] sm:$0xff]
          %v3563 = vld [vmem:[%s3556 + $0x30] sm:$0xff]
          %v3564 = vld [vmem:[%s3556 + $0x38] sm:$0xff]
          %v3565 = vld [vmem:[%s3556 + $0x40] sm:$0xff]
          %v3566 = vld [vmem:[%s3556 + $0x48] sm:$0xff]
          %v3567 = vld [vmem:[%s3556 + $0x50] sm:$0xff]
          %v3568 = vld [vmem:[%s3556 + $0x58] sm:$0xff]
          %v3569 = vld [vmem:[%s3556 + $0x60] sm:$0xff]
          %v3570 = vld [vmem:[%s3556 + $0x68] sm:$0xff]
          %v3571 = vld [vmem:[%s3556 + $0x70] sm:$0xff]
          %v3572 = vld [vmem:[%s3556 + $0x78] sm:$0xff]
          %v3573 = vld [vmem:[%s3556 + $0x80] sm:$0xff]
          %v3574 = vld [vmem:[%s3556 + $0x88] sm:$0xff]
          %v3575 = vld [vmem:[%s3556 + $0x90] sm:$0xff]
          %v3576 = vld [vmem:[%s3556 + $0x98] sm:$0xff]
          %v3577 = vld [vmem:[%s3556 + $0xa0] sm:$0xff]
          %v3578 = vld [vmem:[%s3556 + $0xa8] sm:$0xff]
          %v3579 = vld [vmem:[%s3556 + $0xb0] sm:$0xff]
          %v3580 = vld [vmem:[%s3556 + $0xb8] sm:$0xff]
          %v3581 = vld [vmem:[%s3556 + $0xc0] sm:$0xff]
          %v3582 = vld [vmem:[%s3556 + $0xc8] sm:$0xff]
          %v3583 = vld [vmem:[%s3556 + $0xd0] sm:$0xff]
          %v3584 = vld [vmem:[%s3556 + $0xd8] sm:$0xff]
          %v3585 = vld [vmem:[%s3556 + $0xe0] sm:$0xff]
          %v3586 = vld [vmem:[%s3556 + $0xe8] sm:$0xff]
          %v3587 = vld [vmem:[%s3556 + $0xf0] sm:$0xff]
          %v3588 = vld [vmem:[%s3556 + $0xf8] sm:$0xff]
          %v3621 = vunpack.c.l.b16 %v3557
          %v3622 = vunpack.c.h.b16 %v3557
          %v3623 = vunpack.c.l.b16 %v3558
          %v3624 = vunpack.c.h.b16 %v3558
          %v3625 = vunpack.c.l.b16 %v3559
          %v3626 = vunpack.c.h.b16 %v3559
          %v3627 = vunpack.c.l.b16 %v3560
          %v3628 = vunpack.c.h.b16 %v3560
          %v3629 = vunpack.c.l.b16 %v3561
          %v3630 = vunpack.c.h.b16 %v3561
          %v3631 = vunpack.c.l.b16 %v3562
          %v3632 = vunpack.c.h.b16 %v3562
          %v3633 = vunpack.c.l.b16 %v3563
          %v3634 = vunpack.c.h.b16 %v3563
          %v3635 = vunpack.c.l.b16 %v3564
          %v3636 = vunpack.c.h.b16 %v3564
          %v3637 = vunpack.c.l.b16 %v3565
          %v3638 = vunpack.c.h.b16 %v3565
          %v3639 = vunpack.c.l.b16 %v3566
          %v3640 = vunpack.c.h.b16 %v3566
          %v3641 = vunpack.c.l.b16 %v3567
          %v3642 = vunpack.c.h.b16 %v3567
          %v3643 = vunpack.c.l.b16 %v3568
          %v3644 = vunpack.c.h.b16 %v3568
          %v3645 = vunpack.c.l.b16 %v3569
          %v3646 = vunpack.c.h.b16 %v3569
          %v3647 = vunpack.c.l.b16 %v3570
          %v3648 = vunpack.c.h.b16 %v3570
          %v3649 = vunpack.c.l.b16 %v3571
          %v3650 = vunpack.c.h.b16 %v3571
          %v3651 = vunpack.c.l.b16 %v3572
          %v3652 = vunpack.c.h.b16 %v3572
          %v3653 = vunpack.c.l.b16 %v3573
          %v3654 = vunpack.c.h.b16 %v3573
          %v3655 = vunpack.c.l.b16 %v3574
          %v3656 = vunpack.c.h.b16 %v3574
          %v3657 = vunpack.c.l.b16 %v3575
          %v3658 = vunpack.c.h.b16 %v3575
          %v3659 = vunpack.c.l.b16 %v3576
          %v3660 = vunpack.c.h.b16 %v3576
          %v3661 = vunpack.c.l.b16 %v3577
          %v3662 = vunpack.c.h.b16 %v3577
          %v3663 = vunpack.c.l.b16 %v3578
          %v3664 = vunpack.c.h.b16 %v3578
          %v3665 = vunpack.c.l.b16 %v3579
          %v3666 = vunpack.c.h.b16 %v3579
          %v3667 = vunpack.c.l.b16 %v3580
          %v3668 = vunpack.c.h.b16 %v3580
          %v3669 = vunpack.c.l.b16 %v3581
          %v3670 = vunpack.c.h.b16 %v3581
          %v3671 = vunpack.c.l.b16 %v3582
          %v3672 = vunpack.c.h.b16 %v3582
          %v3673 = vunpack.c.l.b16 %v3583
          %v3674 = vunpack.c.h.b16 %v3583
          %v3675 = vunpack.c.l.b16 %v3584
          %v3676 = vunpack.c.h.b16 %v3584
          %v3677 = vunpack.c.l.b16 %v3585
          %v3678 = vunpack.c.h.b16 %v3585
          %v3679 = vunpack.c.l.b16 %v3586
          %v3680 = vunpack.c.h.b16 %v3586
          %v3681 = vunpack.c.l.b16 %v3587
          %v3682 = vunpack.c.h.b16 %v3587
          %v3683 = vunpack.c.l.b16 %v3588
          %v3684 = vunpack.c.h.b16 %v3588
          %v3685 = vpack.c.b16 %v3623, %v3621
          %v3686 = vpack.c.b16 %v3624, %v3622
          %v3687 = vpack.c.b16 %v3627, %v3625
          %v3688 = vpack.c.b16 %v3628, %v3626
          %v3689 = vpack.c.b16 %v3631, %v3629
          %v3690 = vpack.c.b16 %v3632, %v3630
          %v3691 = vpack.c.b16 %v3635, %v3633
          %v3692 = vpack.c.b16 %v3636, %v3634
          %v3693 = vpack.c.b16 %v3639, %v3637
          %v3694 = vpack.c.b16 %v3640, %v3638
          %v3695 = vpack.c.b16 %v3643, %v3641
          %v3696 = vpack.c.b16 %v3644, %v3642
          %v3697 = vpack.c.b16 %v3647, %v3645
          %v3698 = vpack.c.b16 %v3648, %v3646
          %v3699 = vpack.c.b16 %v3651, %v3649
          %v3700 = vpack.c.b16 %v3652, %v3650
          %v3701 = vpack.c.b16 %v3655, %v3653
          %v3702 = vpack.c.b16 %v3656, %v3654
          %v3703 = vpack.c.b16 %v3659, %v3657
          %v3704 = vpack.c.b16 %v3660, %v3658
          %v3705 = vpack.c.b16 %v3663, %v3661
          %v3706 = vpack.c.b16 %v3664, %v3662
          %v3707 = vpack.c.b16 %v3667, %v3665
          %v3708 = vpack.c.b16 %v3668, %v3666
          %v3709 = vpack.c.b16 %v3671, %v3669
          %v3710 = vpack.c.b16 %v3672, %v3670
          %v3711 = vpack.c.b16 %v3675, %v3673
          %v3712 = vpack.c.b16 %v3676, %v3674
          %v3713 = vpack.c.b16 %v3679, %v3677
          %v3714 = vpack.c.b16 %v3680, %v3678
          %v3715 = vpack.c.b16 %v3683, %v3681
          %v3716 = vpack.c.b16 %v3684, %v3682
          %3749 = vmatprep.subr.bf16.mxu0 %v3686
          %3750 = vmatpush1.bf16.msra.mxu0 %v3685
          %3751 = vmatprep.subr.bf16.mxu0 %v3688
          %3752 = vmatpush1.bf16.msra.mxu0 %v3687
          %3753 = vmatprep.subr.bf16.mxu0 %v3690
          %3754 = vmatpush1.bf16.msra.mxu0 %v3689
          %3755 = vmatprep.subr.bf16.mxu0 %v3692
          %3756 = vmatpush1.bf16.msra.mxu0 %v3691
          %3757 = vmatprep.subr.bf16.mxu0 %v3694
          %3758 = vmatpush1.bf16.msra.mxu0 %v3693
          %3759 = vmatprep.subr.bf16.mxu0 %v3696
          %3760 = vmatpush1.bf16.msra.mxu0 %v3695
          %3761 = vmatprep.subr.bf16.mxu0 %v3698
          %3762 = vmatpush1.bf16.msra.mxu0 %v3697
          %3763 = vmatprep.subr.bf16.mxu0 %v3700
          %3764 = vmatpush1.bf16.msra.mxu0 %v3699
          %3765 = vmatprep.subr.bf16.mxu0 %v3702
          %3766 = vmatpush1.bf16.msra.mxu0 %v3701
          %3767 = vmatprep.subr.bf16.mxu0 %v3704
          %3768 = vmatpush1.bf16.msra.mxu0 %v3703
          %3769 = vmatprep.subr.bf16.mxu0 %v3706
          %3770 = vmatpush1.bf16.msra.mxu0 %v3705
          %3771 = vmatprep.subr.bf16.mxu0 %v3708
          %3772 = vmatpush1.bf16.msra.mxu0 %v3707
          %3773 = vmatprep.subr.bf16.mxu0 %v3710
          %3774 = vmatpush1.bf16.msra.mxu0 %v3709
          %3775 = vmatprep.subr.bf16.mxu0 %v3712
          %3776 = vmatpush1.bf16.msra.mxu0 %v3711
          %3777 = vmatprep.subr.bf16.mxu0 %v3714
          %3778 = vmatpush1.bf16.msra.mxu0 %v3713
          %3779 = vmatprep.subr.bf16.mxu0 %v3716
          %3780 = vmatpush1.bf16.msra.mxu0 %v3715
          %3781 = vmatprep.mubr.bf16.mxu0 %v3553
          %3782 = vmatmul.mubr.bf16.gmra.mrb[0].mxu0 %v3552
          %v3783 = vpop.f32.mrb[0].mxu0
          %v3784 = vadd.f32 0.0, %v3783
          %v3785 = vpop.f32.mrb[0].mxu0
          %v3786 = vadd.f32 0.0, %v3785
          %v3787 = vpop.f32.mrb[0].mxu0
          %v3788 = vadd.f32 0.0, %v3787
          %v3789 = vpop.f32.mrb[0].mxu0
          %v3790 = vadd.f32 0.0, %v3789
          %3791 = vmatprep.mubr.bf16.mxu0 %v3555
          %3792 = vmatmul.mubr.bf16.gmra.mrb[0].mxu0 %v3554
          %v3793 = vpop.f32.mrb[0].mxu0
          %v3794 = vadd.f32 0.0, %v3793
          %v3795 = vpop.f32.mrb[0].mxu0
          %v3796 = vadd.f32 0.0, %v3795
          %v3797 = vpop.f32.mrb[0].mxu0
          %v3798 = vadd.f32 0.0, %v3797
          %v3799 = vpop.f32.mrb[0].mxu0
          %v3800 = vadd.f32 0.0, %v3799
          %3801 = vdwg.mxu0
          %v3834 = vunpack.c.l.b16 %v3520
          %v3835 = vunpack.c.h.b16 %v3520
          %v3836 = vunpack.c.l.b16 %v3521
          %v3837 = vunpack.c.h.b16 %v3521
          %v3838 = vunpack.c.l.b16 %v3522
          %v3839 = vunpack.c.h.b16 %v3522
          %v3840 = vunpack.c.l.b16 %v3523
          %v3841 = vunpack.c.h.b16 %v3523
          %v3842 = vunpack.c.l.b16 %v3524
          %v3843 = vunpack.c.h.b16 %v3524
          %v3844 = vunpack.c.l.b16 %v3525
          %v3845 = vunpack.c.h.b16 %v3525
          %v3846 = vunpack.c.l.b16 %v3526
          %v3847 = vunpack.c.h.b16 %v3526
          %v3848 = vunpack.c.l.b16 %v3527
          %v3849 = vunpack.c.h.b16 %v3527
          %v3850 = vunpack.c.l.b16 %v3528
          %v3851 = vunpack.c.h.b16 %v3528
          %v3852 = vunpack.c.l.b16 %v3529
          %v3853 = vunpack.c.h.b16 %v3529
          %v3854 = vunpack.c.l.b16 %v3530
          %v3855 = vunpack.c.h.b16 %v3530
          %v3856 = vunpack.c.l.b16 %v3531
          %v3857 = vunpack.c.h.b16 %v3531
          %v3858 = vunpack.c.l.b16 %v3532
          %v3859 = vunpack.c.h.b16 %v3532
          %v3860 = vunpack.c.l.b16 %v3533
          %v3861 = vunpack.c.h.b16 %v3533
          %v3862 = vunpack.c.l.b16 %v3534
          %v3863 = vunpack.c.h.b16 %v3534
          %v3864 = vunpack.c.l.b16 %v3535
          %v3865 = vunpack.c.h.b16 %v3535
          %v3866 = vunpack.c.l.b16 %v3536
          %v3867 = vunpack.c.h.b16 %v3536
          %v3868 = vunpack.c.l.b16 %v3537
          %v3869 = vunpack.c.h.b16 %v3537
          %v3870 = vunpack.c.l.b16 %v3538
          %v3871 = vunpack.c.h.b16 %v3538
          %v3872 = vunpack.c.l.b16 %v3539
          %v3873 = vunpack.c.h.b16 %v3539
          %v3874 = vunpack.c.l.b16 %v3540
          %v3875 = vunpack.c.h.b16 %v3540
          %v3876 = vunpack.c.l.b16 %v3541
          %v3877 = vunpack.c.h.b16 %v3541
          %v3878 = vunpack.c.l.b16 %v3542
          %v3879 = vunpack.c.h.b16 %v3542
          %v3880 = vunpack.c.l.b16 %v3543
          %v3881 = vunpack.c.h.b16 %v3543
          %v3882 = vunpack.c.l.b16 %v3544
          %v3883 = vunpack.c.h.b16 %v3544
          %v3884 = vunpack.c.l.b16 %v3545
          %v3885 = vunpack.c.h.b16 %v3545
          %v3886 = vunpack.c.l.b16 %v3546
          %v3887 = vunpack.c.h.b16 %v3546
          %v3888 = vunpack.c.l.b16 %v3547
          %v3889 = vunpack.c.h.b16 %v3547
          %v3890 = vunpack.c.l.b16 %v3548
          %v3891 = vunpack.c.h.b16 %v3548
          %v3892 = vunpack.c.l.b16 %v3549
          %v3893 = vunpack.c.h.b16 %v3549
          %v3894 = vunpack.c.l.b16 %v3550
          %v3895 = vunpack.c.h.b16 %v3550
          %v3896 = vunpack.c.l.b16 %v3551
          %v3897 = vunpack.c.h.b16 %v3551
          %v3898 = vpack.c.b16 %v3836, %v3834
          %v3899 = vpack.c.b16 %v3837, %v3835
          %v3900 = vpack.c.b16 %v3840, %v3838
          %v3901 = vpack.c.b16 %v3841, %v3839
          %v3902 = vpack.c.b16 %v3844, %v3842
          %v3903 = vpack.c.b16 %v3845, %v3843
          %v3904 = vpack.c.b16 %v3848, %v3846
          %v3905 = vpack.c.b16 %v3849, %v3847
          %v3906 = vpack.c.b16 %v3852, %v3850
          %v3907 = vpack.c.b16 %v3853, %v3851
          %v3908 = vpack.c.b16 %v3856, %v3854
          %v3909 = vpack.c.b16 %v3857, %v3855
          %v3910 = vpack.c.b16 %v3860, %v3858
          %v3911 = vpack.c.b16 %v3861, %v3859
          %v3912 = vpack.c.b16 %v3864, %v3862
          %v3913 = vpack.c.b16 %v3865, %v3863
          %v3914 = vpack.c.b16 %v3868, %v3866
          %v3915 = vpack.c.b16 %v3869, %v3867
          %v3916 = vpack.c.b16 %v3872, %v3870
          %v3917 = vpack.c.b16 %v3873, %v3871
          %v3918 = vpack.c.b16 %v3876, %v3874
          %v3919 = vpack.c.b16 %v3877, %v3875
          %v3920 = vpack.c.b16 %v3880, %v3878
          %v3921 = vpack.c.b16 %v3881, %v3879
          %v3922 = vpack.c.b16 %v3884, %v3882
          %v3923 = vpack.c.b16 %v3885, %v3883
          %v3924 = vpack.c.b16 %v3888, %v3886
          %v3925 = vpack.c.b16 %v3889, %v3887
          %v3926 = vpack.c.b16 %v3892, %v3890
          %v3927 = vpack.c.b16 %v3893, %v3891
          %v3928 = vpack.c.b16 %v3896, %v3894
          %v3929 = vpack.c.b16 %v3897, %v3895
          %3962 = vmatprep.subr.bf16.mxu0 %v3899
          %3963 = vmatpush1.bf16.msra.mxu0 %v3898
          %3964 = vmatprep.subr.bf16.mxu0 %v3901
          %3965 = vmatpush1.bf16.msra.mxu0 %v3900
          %3966 = vmatprep.subr.bf16.mxu0 %v3903
          %3967 = vmatpush1.bf16.msra.mxu0 %v3902
          %3968 = vmatprep.subr.bf16.mxu0 %v3905
          %3969 = vmatpush1.bf16.msra.mxu0 %v3904
          %3970 = vmatprep.subr.bf16.mxu0 %v3907
          %3971 = vmatpush1.bf16.msra.mxu0 %v3906
          %3972 = vmatprep.subr.bf16.mxu0 %v3909
          %3973 = vmatpush1.bf16.msra.mxu0 %v3908
          %3974 = vmatprep.subr.bf16.mxu0 %v3911
          %3975 = vmatpush1.bf16.msra.mxu0 %v3910
          %3976 = vmatprep.subr.bf16.mxu0 %v3913
          %3977 = vmatpush1.bf16.msra.mxu0 %v3912
          %3978 = vmatprep.subr.bf16.mxu0 %v3915
          %3979 = vmatpush1.bf16.msra.mxu0 %v3914
          %3980 = vmatprep.subr.bf16.mxu0 %v3917
          %3981 = vmatpush1.bf16.msra.mxu0 %v3916
          %3982 = vmatprep.subr.bf16.mxu0 %v3919
          %3983 = vmatpush1.bf16.msra.mxu0 %v3918
          %3984 = vmatprep.subr.bf16.mxu0 %v3921
          %3985 = vmatpush1.bf16.msra.mxu0 %v3920
          %3986 = vmatprep.subr.bf16.mxu0 %v3923
          %3987 = vmatpush1.bf16.msra.mxu0 %v3922
          %3988 = vmatprep.subr.bf16.mxu0 %v3925
          %3989 = vmatpush1.bf16.msra.mxu0 %v3924
          %3990 = vmatprep.subr.bf16.mxu0 %v3927
          %3991 = vmatpush1.bf16.msra.mxu0 %v3926
          %3992 = vmatprep.subr.bf16.mxu0 %v3929
          %3993 = vmatpush1.bf16.msra.mxu0 %v3928
          %3994 = vmatprep.mubr.bf16.mxu0 %v3516
          %3995 = vmatmul.mubr.bf16.gmra.mrb[0].mxu0 %v3515
          %v3996 = vpop.f32.mrb[0].mxu0
          %v3997 = vadd.f32 %v3784, %v3996
          %v3998 = vpop.f32.mrb[0].mxu0
          %v3999 = vadd.f32 %v3786, %v3998
          %v4000 = vpop.f32.mrb[0].mxu0
          %v4001 = vadd.f32 %v3788, %v4000
          %v4002 = vpop.f32.mrb[0].mxu0
          %v4003 = vadd.f32 %v3790, %v4002
          %4004 = vmatprep.mubr.bf16.mxu0 %v3518
          %4005 = vmatmul.mubr.bf16.gmra.mrb[0].mxu0 %v3517
          %v4006 = vpop.f32.mrb[0].mxu0
          %v4007 = vadd.f32 %v3794, %v4006
          %v4008 = vpop.f32.mrb[0].mxu0
          %v4009 = vadd.f32 %v3796, %v4008
          %v4010 = vpop.f32.mrb[0].mxu0
          %v4011 = vadd.f32 %v3798, %v4010
          %v4012 = vpop.f32.mrb[0].mxu0
          %v4013 = vadd.f32 %v3800, %v4012
          %4014 = vdwg.mxu0
          %v4015 = vpack.c.bf16 %v3509, %v3507
          %v4016 = vpack.c.bf16 %v3510, %v3508
          %v4017 = vpack.c.bf16 %v3513, %v3511
          %v4018 = vpack.c.bf16 %v3514, %v3512
          %s4019 = scalar_lea.vmem [#allocation7], 2048
          %v4020 = vld [vmem:[%s4019] sm:$0xff]
          %v4021 = vld [vmem:[%s4019 + $0x8] sm:$0xff]
          %v4022 = vld [vmem:[%s4019 + $0x10] sm:$0xff]
          %v4023 = vld [vmem:[%s4019 + $0x18] sm:$0xff]
          %v4024 = vld [vmem:[%s4019 + $0x20] sm:$0xff]
          %v4025 = vld [vmem:[%s4019 + $0x28] sm:$0xff]
          %v4026 = vld [vmem:[%s4019 + $0x30] sm:$0xff]
          %v4027 = vld [vmem:[%s4019 + $0x38] sm:$0xff]
          %v4028 = vld [vmem:[%s4019 + $0x40] sm:$0xff]
          %v4029 = vld [vmem:[%s4019 + $0x48] sm:$0xff]
          %v4030 = vld [vmem:[%s4019 + $0x50] sm:$0xff]
          %v4031 = vld [vmem:[%s4019 + $0x58] sm:$0xff]
          %v4032 = vld [vmem:[%s4019 + $0x60] sm:$0xff]
          %v4033 = vld [vmem:[%s4019 + $0x68] sm:$0xff]
          %v4034 = vld [vmem:[%s4019 + $0x70] sm:$0xff]
          %v4035 = vld [vmem:[%s4019 + $0x78] sm:$0xff]
          %v4036 = vld [vmem:[%s4019 + $0x80] sm:$0xff]
          %v4037 = vld [vmem:[%s4019 + $0x88] sm:$0xff]
          %v4038 = vld [vmem:[%s4019 + $0x90] sm:$0xff]
          %v4039 = vld [vmem:[%s4019 + $0x98] sm:$0xff]
          %v4040 = vld [vmem:[%s4019 + $0xa0] sm:$0xff]
          %v4041 = vld [vmem:[%s4019 + $0xa8] sm:$0xff]
          %v4042 = vld [vmem:[%s4019 + $0xb0] sm:$0xff]
          %v4043 = vld [vmem:[%s4019 + $0xb8] sm:$0xff]
          %v4044 = vld [vmem:[%s4019 + $0xc0] sm:$0xff]
          %v4045 = vld [vmem:[%s4019 + $0xc8] sm:$0xff]
          %v4046 = vld [vmem:[%s4019 + $0xd0] sm:$0xff]
          %v4047 = vld [vmem:[%s4019 + $0xd8] sm:$0xff]
          %v4048 = vld [vmem:[%s4019 + $0xe0] sm:$0xff]
          %v4049 = vld [vmem:[%s4019 + $0xe8] sm:$0xff]
          %v4050 = vld [vmem:[%s4019 + $0xf0] sm:$0xff]
          %v4051 = vld [vmem:[%s4019 + $0xf8] sm:$0xff]
          %v4084 = vunpack.c.l.b16 %v4020
          %v4085 = vunpack.c.h.b16 %v4020
          %v4086 = vunpack.c.l.b16 %v4021
          %v4087 = vunpack.c.h.b16 %v4021
          %v4088 = vunpack.c.l.b16 %v4022
          %v4089 = vunpack.c.h.b16 %v4022
          %v4090 = vunpack.c.l.b16 %v4023
          %v4091 = vunpack.c.h.b16 %v4023
          %v4092 = vunpack.c.l.b16 %v4024
          %v4093 = vunpack.c.h.b16 %v4024
          %v4094 = vunpack.c.l.b16 %v4025
          %v4095 = vunpack.c.h.b16 %v4025
          %v4096 = vunpack.c.l.b16 %v4026
          %v4097 = vunpack.c.h.b16 %v4026
          %v4098 = vunpack.c.l.b16 %v4027
          %v4099 = vunpack.c.h.b16 %v4027
          %v4100 = vunpack.c.l.b16 %v4028
          %v4101 = vunpack.c.h.b16 %v4028
          %v4102 = vunpack.c.l.b16 %v4029
          %v4103 = vunpack.c.h.b16 %v4029
          %v4104 = vunpack.c.l.b16 %v4030
          %v4105 = vunpack.c.h.b16 %v4030
          %v4106 = vunpack.c.l.b16 %v4031
          %v4107 = vunpack.c.h.b16 %v4031
          %v4108 = vunpack.c.l.b16 %v4032
          %v4109 = vunpack.c.h.b16 %v4032
          %v4110 = vunpack.c.l.b16 %v4033
          %v4111 = vunpack.c.h.b16 %v4033
          %v4112 = vunpack.c.l.b16 %v4034
          %v4113 = vunpack.c.h.b16 %v4034
          %v4114 = vunpack.c.l.b16 %v4035
          %v4115 = vunpack.c.h.b16 %v4035
          %v4116 = vunpack.c.l.b16 %v4036
          %v4117 = vunpack.c.h.b16 %v4036
          %v4118 = vunpack.c.l.b16 %v4037
          %v4119 = vunpack.c.h.b16 %v4037
          %v4120 = vunpack.c.l.b16 %v4038
          %v4121 = vunpack.c.h.b16 %v4038
          %v4122 = vunpack.c.l.b16 %v4039
          %v4123 = vunpack.c.h.b16 %v4039
          %v4124 = vunpack.c.l.b16 %v4040
          %v4125 = vunpack.c.h.b16 %v4040
          %v4126 = vunpack.c.l.b16 %v4041
          %v4127 = vunpack.c.h.b16 %v4041
          %v4128 = vunpack.c.l.b16 %v4042
          %v4129 = vunpack.c.h.b16 %v4042
          %v4130 = vunpack.c.l.b16 %v4043
          %v4131 = vunpack.c.h.b16 %v4043
          %v4132 = vunpack.c.l.b16 %v4044
          %v4133 = vunpack.c.h.b16 %v4044
          %v4134 = vunpack.c.l.b16 %v4045
          %v4135 = vunpack.c.h.b16 %v4045
          %v4136 = vunpack.c.l.b16 %v4046
          %v4137 = vunpack.c.h.b16 %v4046
          %v4138 = vunpack.c.l.b16 %v4047
          %v4139 = vunpack.c.h.b16 %v4047
          %v4140 = vunpack.c.l.b16 %v4048
          %v4141 = vunpack.c.h.b16 %v4048
          %v4142 = vunpack.c.l.b16 %v4049
          %v4143 = vunpack.c.h.b16 %v4049
          %v4144 = vunpack.c.l.b16 %v4050
          %v4145 = vunpack.c.h.b16 %v4050
          %v4146 = vunpack.c.l.b16 %v4051
          %v4147 = vunpack.c.h.b16 %v4051
          %v4148 = vpack.c.b16 %v4086, %v4084
          %v4149 = vpack.c.b16 %v4087, %v4085
          %v4150 = vpack.c.b16 %v4090, %v4088
          %v4151 = vpack.c.b16 %v4091, %v4089
          %v4152 = vpack.c.b16 %v4094, %v4092
          %v4153 = vpack.c.b16 %v4095, %v4093
          %v4154 = vpack.c.b16 %v4098, %v4096
          %v4155 = vpack.c.b16 %v4099, %v4097
          %v4156 = vpack.c.b16 %v4102, %v4100
          %v4157 = vpack.c.b16 %v4103, %v4101
          %v4158 = vpack.c.b16 %v4106, %v4104
          %v4159 = vpack.c.b16 %v4107, %v4105
          %v4160 = vpack.c.b16 %v4110, %v4108
          %v4161 = vpack.c.b16 %v4111, %v4109
          %v4162 = vpack.c.b16 %v4114, %v4112
          %v4163 = vpack.c.b16 %v4115, %v4113
          %v4164 = vpack.c.b16 %v4118, %v4116
          %v4165 = vpack.c.b16 %v4119, %v4117
          %v4166 = vpack.c.b16 %v4122, %v4120
          %v4167 = vpack.c.b16 %v4123, %v4121
          %v4168 = vpack.c.b16 %v4126, %v4124
          %v4169 = vpack.c.b16 %v4127, %v4125
          %v4170 = vpack.c.b16 %v4130, %v4128
          %v4171 = vpack.c.b16 %v4131, %v4129
          %v4172 = vpack.c.b16 %v4134, %v4132
          %v4173 = vpack.c.b16 %v4135, %v4133
          %v4174 = vpack.c.b16 %v4138, %v4136
          %v4175 = vpack.c.b16 %v4139, %v4137
          %v4176 = vpack.c.b16 %v4142, %v4140
          %v4177 = vpack.c.b16 %v4143, %v4141
          %v4178 = vpack.c.b16 %v4146, %v4144
          %v4179 = vpack.c.b16 %v4147, %v4145
          %4212 = vmatprep.subr.bf16.mxu0 %v4149
          %4213 = vmatpush1.bf16.msra.mxu0 %v4148
          %4214 = vmatprep.subr.bf16.mxu0 %v4151
          %4215 = vmatpush1.bf16.msra.mxu0 %v4150
          %4216 = vmatprep.subr.bf16.mxu0 %v4153
          %4217 = vmatpush1.bf16.msra.mxu0 %v4152
          %4218 = vmatprep.subr.bf16.mxu0 %v4155
          %4219 = vmatpush1.bf16.msra.mxu0 %v4154
          %4220 = vmatprep.subr.bf16.mxu0 %v4157
          %4221 = vmatpush1.bf16.msra.mxu0 %v4156
          %4222 = vmatprep.subr.bf16.mxu0 %v4159
          %4223 = vmatpush1.bf16.msra.mxu0 %v4158
          %4224 = vmatprep.subr.bf16.mxu0 %v4161
          %4225 = vmatpush1.bf16.msra.mxu0 %v4160
          %4226 = vmatprep.subr.bf16.mxu0 %v4163
          %4227 = vmatpush1.bf16.msra.mxu0 %v4162
          %4228 = vmatprep.subr.bf16.mxu0 %v4165
          %4229 = vmatpush1.bf16.msra.mxu0 %v4164
          %4230 = vmatprep.subr.bf16.mxu0 %v4167
          %4231 = vmatpush1.bf16.msra.mxu0 %v4166
          %4232 = vmatprep.subr.bf16.mxu0 %v4169
          %4233 = vmatpush1.bf16.msra.mxu0 %v4168
          %4234 = vmatprep.subr.bf16.mxu0 %v4171
          %4235 = vmatpush1.bf16.msra.mxu0 %v4170
          %4236 = vmatprep.subr.bf16.mxu0 %v4173
          %4237 = vmatpush1.bf16.msra.mxu0 %v4172
          %4238 = vmatprep.subr.bf16.mxu0 %v4175
          %4239 = vmatpush1.bf16.msra.mxu0 %v4174
          %4240 = vmatprep.subr.bf16.mxu0 %v4177
          %4241 = vmatpush1.bf16.msra.mxu0 %v4176
          %4242 = vmatprep.subr.bf16.mxu0 %v4179
          %4243 = vmatpush1.bf16.msra.mxu0 %v4178
          %4244 = vmatprep.mubr.bf16.mxu0 %v4016
          %4245 = vmatmul.mubr.bf16.gmra.mrb[0].mxu0 %v4015
          %v4246 = vpop.f32.mrb[0].mxu0
          %v4247 = vadd.f32 0.0, %v4246
          %v4248 = vpop.f32.mrb[0].mxu0
          %v4249 = vadd.f32 0.0, %v4248
          %v4250 = vpop.f32.mrb[0].mxu0
          %v4251 = vadd.f32 0.0, %v4250
          %v4252 = vpop.f32.mrb[0].mxu0
          %v4253 = vadd.f32 0.0, %v4252
          %4254 = vmatprep.mubr.bf16.mxu0 %v4018
          %4255 = vmatmul.mubr.bf16.gmra.mrb[0].mxu0 %v4017
          %v4256 = vpop.f32.mrb[0].mxu0
          %v4257 = vadd.f32 0.0, %v4256
          %v4258 = vpop.f32.mrb[0].mxu0
          %v4259 = vadd.f32 0.0, %v4258
          %v4260 = vpop.f32.mrb[0].mxu0
          %v4261 = vadd.f32 0.0, %v4260
          %v4262 = vpop.f32.mrb[0].mxu0
          %v4263 = vadd.f32 0.0, %v4262
          %4264 = vdwg.mxu0
          %v4265 = vadd.f32 %v3997, %v4247
          %v4266 = vadd.f32 %v3999, %v4249
          %v4267 = vadd.f32 %v4001, %v4251
          %v4268 = vadd.f32 %v4003, %v4253
          %v4269 = vadd.f32 %v4007, %v4257
          %v4270 = vadd.f32 %v4009, %v4259
          %v4271 = vadd.f32 %v4011, %v4261
          %v4272 = vadd.f32 %v4013, %v4263
          %s4273 = scalar_lea.vmem [#allocation9], 4
          %v4274 = vld [vmem:[%s4273] sm:$0x3]
          %v4276 = vlaneseq
          %v4277 = vshrl.u32 %v4276, 7
          %v4278 = vsub.s32 0, %v4277
          %v4279 = vrot.slane %v4274, %v4278
          %v4280 = vlaneseq
          %v4281 = vshrl.u32 %v4280, 7
          %v4282 = vsub.s32 1, %v4281
          %v4283 = vrot.slane %v4274, %v4282
          %v4286 = vadd.f32 %v4265, %v4279
          %v4287 = vadd.f32 %v4266, %v4283
          %v4288 = vadd.f32 %v4267, %v4279
          %v4289 = vadd.f32 %v4268, %v4283
          %v4290 = vadd.f32 %v4269, %v4279
          %v4291 = vadd.f32 %v4270, %v4283
          %v4292 = vadd.f32 %v4271, %v4279
          %v4293 = vadd.f32 %v4272, %v4283
          %v4294 = vmax.f32 %v4286, 0.0
          %v4295 = vmax.f32 %v4287, 0.0
          %v4296 = vmax.f32 %v4288, 0.0
          %v4297 = vmax.f32 %v4289, 0.0
          %v4298 = vmax.f32 %v4290, 0.0
          %v4299 = vmax.f32 %v4291, 0.0
          %v4300 = vmax.f32 %v4292, 0.0
          %v4301 = vmax.f32 %v4293, 0.0
          %v4302 = vld [vmem:[#allocation10] sm:$0x3]
          %v4303 = vld [vmem:[#allocation12] sm:$0x3]
          %v4304 = vadd.f32 %v4294, %v4295
          %4305 = vadd.xlane.f32.xlu0 %v4304
          %v4306 = vpop.xlane.xlu0 %4305
          %v4307 = vadd.f32 %v4296, %v4297
          %4308 = vadd.xlane.f32.xlu0 %v4307
          %v4309 = vpop.xlane.xlu0 %4308
          %v4310 = vadd.f32 %v4298, %v4299
          %4311 = vadd.xlane.f32.xlu0 %v4310
          %v4312 = vpop.xlane.xlu0 %4311
          %v4313 = vadd.f32 %v4300, %v4301
          %4314 = vadd.xlane.f32.xlu0 %v4313
          %v4315 = vpop.xlane.xlu0 %4314
          %v4316 = vrcp.pop 256.0
          %v4317 = vmul.f32 %v4306, %v4316
          %v4318 = vmul.f32 %v4309, %v4316
          %v4319 = vmul.f32 %v4312, %v4316
          %v4320 = vmul.f32 %v4315, %v4316
          %v4321 = vsub.f32 %v4294, %v4317
          %v4322 = vsub.f32 %v4295, %v4317
          %v4323 = vsub.f32 %v4296, %v4318
          %v4324 = vsub.f32 %v4297, %v4318
          %v4325 = vsub.f32 %v4298, %v4319
          %v4326 = vsub.f32 %v4299, %v4319
          %v4327 = vsub.f32 %v4300, %v4320
          %v4328 = vsub.f32 %v4301, %v4320
          %v4329 = vmul.f32 %v4321, %v4321
          %v4330 = vmul.f32 %v4322, %v4322
          %v4331 = vmul.f32 %v4323, %v4323
          %v4332 = vmul.f32 %v4324, %v4324
          %v4333 = vmul.f32 %v4325, %v4325
          %v4334 = vmul.f32 %v4326, %v4326
          %v4335 = vmul.f32 %v4327, %v4327
          %v4336 = vmul.f32 %v4328, %v4328
          %v4337 = vadd.f32 %v4329, %v4330
          %4338 = vadd.xlane.f32.xlu0 %v4337
          %v4339 = vpop.xlane.xlu0 %4338
          %v4340 = vadd.f32 %v4331, %v4332
          %4341 = vadd.xlane.f32.xlu0 %v4340
          %v4342 = vpop.xlane.xlu0 %4341
          %v4343 = vadd.f32 %v4333, %v4334
          %4344 = vadd.xlane.f32.xlu0 %v4343
          %v4345 = vpop.xlane.xlu0 %4344
          %v4346 = vadd.f32 %v4335, %v4336
          %4347 = vadd.xlane.f32.xlu0 %v4346
          %v4348 = vpop.xlane.xlu0 %4347
          %v4349 = vmul.f32 %v4339, %v4316
          %v4350 = vmul.f32 %v4342, %v4316
          %v4351 = vmul.f32 %v4345, %v4316
          %v4352 = vmul.f32 %v4348, %v4316
          %v4353 = vadd.f32 %v4349, 1e-05
          %v4354 = vadd.f32 %v4350, 1e-05
          %v4355 = vadd.f32 %v4351, 1e-05
          %v4356 = vadd.f32 %v4352, 1e-05
          %v4357 = vrsqrt.pop %v4353
          %v4358 = vrsqrt.pop %v4354
          %v4359 = vrsqrt.pop %v4355
          %v4360 = vrsqrt.pop %v4356
          %v4361 = vmul.f32 %v4321, %v4357
          %v4362 = vmul.f32 %v4322, %v4357
          %v4363 = vmul.f32 %v4323, %v4358
          %v4364 = vmul.f32 %v4324, %v4358
          %v4365 = vmul.f32 %v4325, %v4359
          %v4366 = vmul.f32 %v4326, %v4359
          %v4367 = vmul.f32 %v4327, %v4360
          %v4368 = vmul.f32 %v4328, %v4360
          %v4370 = vlaneseq
          %v4371 = vshrl.u32 %v4370, 7
          %v4372 = vsub.s32 0, %v4371
          %v4373 = vrot.slane %v4302, %v4372
          %v4374 = vlaneseq
          %v4375 = vshrl.u32 %v4374, 7
          %v4376 = vsub.s32 1, %v4375
          %v4377 = vrot.slane %v4302, %v4376
          %v4380 = vmul.f32 %v4361, %v4373
          %v4381 = vmul.f32 %v4362, %v4377
          %v4382 = vmul.f32 %v4363, %v4373
          %v4383 = vmul.f32 %v4364, %v4377
          %v4384 = vmul.f32 %v4365, %v4373
          %v4385 = vmul.f32 %v4366, %v4377
          %v4386 = vmul.f32 %v4367, %v4373
          %v4387 = vmul.f32 %v4368, %v4377
          %v4389 = vlaneseq
          %v4390 = vshrl.u32 %v4389, 7
          %v4391 = vsub.s32 0, %v4390
          %v4392 = vrot.slane %v4303, %v4391
          %v4393 = vlaneseq
          %v4394 = vshrl.u32 %v4393, 7
          %v4395 = vsub.s32 1, %v4394
          %v4396 = vrot.slane %v4303, %v4395
          %v4399 = vadd.f32 %v4380, %v4392
          %v4400 = vadd.f32 %v4381, %v4396
          %v4401 = vadd.f32 %v4382, %v4392
          %v4402 = vadd.f32 %v4383, %v4396
          %v4403 = vadd.f32 %v4384, %v4392
          %v4404 = vadd.f32 %v4385, %v4396
          %v4405 = vadd.f32 %v4386, %v4392
          %v4406 = vadd.f32 %v4387, %v4396
          %4407 = vst [vmem:[#allocation2] sm:$0xff] %v4399
          %4408 = vst [vmem:[#allocation2 + $0x8] sm:$0xff] %v4400
          %4409 = vst [vmem:[#allocation2 + $0x10] sm:$0xff] %v4401
          %4410 = vst [vmem:[#allocation2 + $0x18] sm:$0xff] %v4402
          %4411 = vst [vmem:[#allocation2 + $0x20] sm:$0xff] %v4403
          %4412 = vst [vmem:[#allocation2 + $0x28] sm:$0xff] %v4404
          %4413 = vst [vmem:[#allocation2 + $0x30] sm:$0xff] %v4405
          %4414 = vst [vmem:[#allocation2 + $0x38] sm:$0xff] %v4406
        $region216: #{smotif_transformer_forward.1} parent=119 // pred_fallthru
          _
        %v4415 = vld [vmem:[#allocation2] sm:$0xff]
        %v4416 = vld [vmem:[#allocation2 + $0x8] sm:$0xff]
        %v4417 = vld [vmem:[#allocation2 + $0x10] sm:$0xff]
        %v4418 = vld [vmem:[#allocation2 + $0x18] sm:$0xff]
        %v4419 = vld [vmem:[#allocation2 + $0x20] sm:$0xff]
        %v4420 = vld [vmem:[#allocation2 + $0x28] sm:$0xff]
        %v4421 = vld [vmem:[#allocation2 + $0x30] sm:$0xff]
        %v4422 = vld [vmem:[#allocation2 + $0x38] sm:$0xff]
        %v4423 = vpack.c.bf16 %v4417, %v4415
        %v4424 = vpack.c.bf16 %v4418, %v4416
        %v4425 = vpack.c.bf16 %v4421, %v4419
        %v4426 = vpack.c.bf16 %v4422, %v4420
        %v4427 = vld [vmem:[%s1125] sm:$0xff]
        %v4428 = vld [vmem:[%s1125 + $0x8] sm:$0xff]
        %v4429 = vld [vmem:[%s1125 + $0x10] sm:$0xff]
        %v4430 = vld [vmem:[%s1125 + $0x18] sm:$0xff]
        %v4431 = vld [vmem:[%s1125 + $0x20] sm:$0xff]
        %v4432 = vld [vmem:[%s1125 + $0x28] sm:$0xff]
        %v4433 = vld [vmem:[%s1125 + $0x30] sm:$0xff]
        %v4434 = vld [vmem:[%s1125 + $0x38] sm:$0xff]
        %v4435 = vld [vmem:[%s1125 + $0x40] sm:$0xff]
        %v4436 = vld [vmem:[%s1125 + $0x48] sm:$0xff]
        %v4437 = vld [vmem:[%s1125 + $0x50] sm:$0xff]
        %v4438 = vld [vmem:[%s1125 + $0x58] sm:$0xff]
        %v4439 = vld [vmem:[%s1125 + $0x60] sm:$0xff]
        %v4440 = vld [vmem:[%s1125 + $0x68] sm:$0xff]
        %v4441 = vld [vmem:[%s1125 + $0x70] sm:$0xff]
        %v4442 = vld [vmem:[%s1125 + $0x78] sm:$0xff]
        %v4443 = vld [vmem:[%s1125 + $0x80] sm:$0xff]
        %v4444 = vld [vmem:[%s1125 + $0x88] sm:$0xff]
        %v4445 = vld [vmem:[%s1125 + $0x90] sm:$0xff]
        %v4446 = vld [vmem:[%s1125 + $0x98] sm:$0xff]
        %v4447 = vld [vmem:[%s1125 + $0xa0] sm:$0xff]
        %v4448 = vld [vmem:[%s1125 + $0xa8] sm:$0xff]
        %v4449 = vld [vmem:[%s1125 + $0xb0] sm:$0xff]
        %v4450 = vld [vmem:[%s1125 + $0xb8] sm:$0xff]
        %v4451 = vld [vmem:[%s1125 + $0xc0] sm:$0xff]
        %v4452 = vld [vmem:[%s1125 + $0xc8] sm:$0xff]
        %v4453 = vld [vmem:[%s1125 + $0xd0] sm:$0xff]
        %v4454 = vld [vmem:[%s1125 + $0xd8] sm:$0xff]
        %v4455 = vld [vmem:[%s1125 + $0xe0] sm:$0xff]
        %v4456 = vld [vmem:[%s1125 + $0xe8] sm:$0xff]
        %v4457 = vld [vmem:[%s1125 + $0xf0] sm:$0xff]
        %v4458 = vld [vmem:[%s1125 + $0xf8] sm:$0xff]
        %v4459 = vld [vmem:[%s1125 + $0x100] sm:$0xff]
        %v4460 = vld [vmem:[%s1125 + $0x108] sm:$0xff]
        %v4461 = vld [vmem:[%s1125 + $0x110] sm:$0xff]
        %v4462 = vld [vmem:[%s1125 + $0x118] sm:$0xff]
        %v4463 = vld [vmem:[%s1125 + $0x120] sm:$0xff]
        %v4464 = vld [vmem:[%s1125 + $0x128] sm:$0xff]
        %v4465 = vld [vmem:[%s1125 + $0x130] sm:$0xff]
        %v4466 = vld [vmem:[%s1125 + $0x138] sm:$0xff]
        %v4467 = vld [vmem:[%s1125 + $0x140] sm:$0xff]
        %v4468 = vld [vmem:[%s1125 + $0x148] sm:$0xff]
        %v4469 = vld [vmem:[%s1125 + $0x150] sm:$0xff]
        %v4470 = vld [vmem:[%s1125 + $0x158] sm:$0xff]
        %v4471 = vld [vmem:[%s1125 + $0x160] sm:$0xff]
        %v4472 = vld [vmem:[%s1125 + $0x168] sm:$0xff]
        %v4473 = vld [vmem:[%s1125 + $0x170] sm:$0xff]
        %v4474 = vld [vmem:[%s1125 + $0x178] sm:$0xff]
        %v4475 = vld [vmem:[%s1125 + $0x180] sm:$0xff]
        %v4476 = vld [vmem:[%s1125 + $0x188] sm:$0xff]
        %v4477 = vld [vmem:[%s1125 + $0x190] sm:$0xff]
        %v4478 = vld [vmem:[%s1125 + $0x198] sm:$0xff]
        %v4479 = vld [vmem:[%s1125 + $0x1a0] sm:$0xff]
        %v4480 = vld [vmem:[%s1125 + $0x1a8] sm:$0xff]
        %v4481 = vld [vmem:[%s1125 + $0x1b0] sm:$0xff]
        %v4482 = vld [vmem:[%s1125 + $0x1b8] sm:$0xff]
        %v4483 = vld [vmem:[%s1125 + $0x1c0] sm:$0xff]
        %v4484 = vld [vmem:[%s1125 + $0x1c8] sm:$0xff]
        %v4485 = vld [vmem:[%s1125 + $0x1d0] sm:$0xff]
        %v4486 = vld [vmem:[%s1125 + $0x1d8] sm:$0xff]
        %v4487 = vld [vmem:[%s1125 + $0x1e0] sm:$0xff]
        %v4488 = vld [vmem:[%s1125 + $0x1e8] sm:$0xff]
        %v4489 = vld [vmem:[%s1125 + $0x1f0] sm:$0xff]
        %v4490 = vld [vmem:[%s1125 + $0x1f8] sm:$0xff]
        %v4491 = vld [vmem:[%s1125 + $0x200] sm:$0xff]
        %v4492 = vld [vmem:[%s1125 + $0x208] sm:$0xff]
        %v4493 = vld [vmem:[%s1125 + $0x210] sm:$0xff]
        %v4494 = vld [vmem:[%s1125 + $0x218] sm:$0xff]
        %v4495 = vld [vmem:[%s1125 + $0x220] sm:$0xff]
        %v4496 = vld [vmem:[%s1125 + $0x228] sm:$0xff]
        %v4497 = vld [vmem:[%s1125 + $0x230] sm:$0xff]
        %v4498 = vld [vmem:[%s1125 + $0x238] sm:$0xff]
        %v4499 = vld [vmem:[%s1125 + $0x240] sm:$0xff]
        %v4500 = vld [vmem:[%s1125 + $0x248] sm:$0xff]
        %v4501 = vld [vmem:[%s1125 + $0x250] sm:$0xff]
        %v4502 = vld [vmem:[%s1125 + $0x258] sm:$0xff]
        %v4503 = vld [vmem:[%s1125 + $0x260] sm:$0xff]
        %v4504 = vld [vmem:[%s1125 + $0x268] sm:$0xff]
        %v4505 = vld [vmem:[%s1125 + $0x270] sm:$0xff]
        %v4506 = vld [vmem:[%s1125 + $0x278] sm:$0xff]
        %v4507 = vld [vmem:[%s1125 + $0x280] sm:$0xff]
        %v4508 = vld [vmem:[%s1125 + $0x288] sm:$0xff]
        %v4509 = vld [vmem:[%s1125 + $0x290] sm:$0xff]
        %v4510 = vld [vmem:[%s1125 + $0x298] sm:$0xff]
        %v4511 = vld [vmem:[%s1125 + $0x2a0] sm:$0xff]
        %v4512 = vld [vmem:[%s1125 + $0x2a8] sm:$0xff]
        %v4513 = vld [vmem:[%s1125 + $0x2b0] sm:$0xff]
        %v4514 = vld [vmem:[%s1125 + $0x2b8] sm:$0xff]
        %v4515 = vld [vmem:[%s1125 + $0x2c0] sm:$0xff]
        %v4516 = vld [vmem:[%s1125 + $0x2c8] sm:$0xff]
        %v4517 = vld [vmem:[%s1125 + $0x2d0] sm:$0xff]
        %v4518 = vld [vmem:[%s1125 + $0x2d8] sm:$0xff]
        %v4519 = vld [vmem:[%s1125 + $0x2e0] sm:$0xff]
        %v4520 = vld [vmem:[%s1125 + $0x2e8] sm:$0xff]
        %v4521 = vld [vmem:[%s1125 + $0x2f0] sm:$0xff]
        %v4522 = vld [vmem:[%s1125 + $0x2f8] sm:$0xff]
        %v4523 = vld [vmem:[%s1134] sm:$0x3f]
        %v4525 = vlaneseq
        %v4526 = vshrl.u32 %v4525, 7
        %v4527 = vsub.s32 0, %v4526
        %v4528 = vrot.slane %v4523, %v4527
        %v4529 = vlaneseq
        %v4530 = vshrl.u32 %v4529, 7
        %v4531 = vsub.s32 1, %v4530
        %v4532 = vrot.slane %v4523, %v4531
        %v4533 = vlaneseq
        %v4534 = vshrl.u32 %v4533, 7
        %v4535 = vsub.s32 2, %v4534
        %v4536 = vrot.slane %v4523, %v4535
        %v4537 = vlaneseq
        %v4538 = vshrl.u32 %v4537, 7
        %v4539 = vsub.s32 3, %v4538
        %v4540 = vrot.slane %v4523, %v4539
        %v4541 = vlaneseq
        %v4542 = vshrl.u32 %v4541, 7
        %v4543 = vsub.s32 4, %v4542
        %v4544 = vrot.slane %v4523, %v4543
        %v4545 = vlaneseq
        %v4546 = vshrl.u32 %v4545, 7
        %v4547 = vsub.s32 5, %v4546
        %v4548 = vrot.slane %v4523, %v4547
        %v4651 = vunpack.c.l.b16 %v4427
        %v4652 = vunpack.c.h.b16 %v4427
        %v4653 = vunpack.c.l.b16 %v4428
        %v4654 = vunpack.c.h.b16 %v4428
        %v4655 = vunpack.c.l.b16 %v4429
        %v4656 = vunpack.c.h.b16 %v4429
        %v4657 = vunpack.c.l.b16 %v4430
        %v4658 = vunpack.c.h.b16 %v4430
        %v4659 = vunpack.c.l.b16 %v4431
        %v4660 = vunpack.c.h.b16 %v4431
        %v4661 = vunpack.c.l.b16 %v4432
        %v4662 = vunpack.c.h.b16 %v4432
        %v4663 = vunpack.c.l.b16 %v4433
        %v4664 = vunpack.c.h.b16 %v4433
        %v4665 = vunpack.c.l.b16 %v4434
        %v4666 = vunpack.c.h.b16 %v4434
        %v4667 = vunpack.c.l.b16 %v4435
        %v4668 = vunpack.c.h.b16 %v4435
        %v4669 = vunpack.c.l.b16 %v4436
        %v4670 = vunpack.c.h.b16 %v4436
        %v4671 = vunpack.c.l.b16 %v4437
        %v4672 = vunpack.c.h.b16 %v4437
        %v4673 = vunpack.c.l.b16 %v4438
        %v4674 = vunpack.c.h.b16 %v4438
        %v4675 = vunpack.c.l.b16 %v4439
        %v4676 = vunpack.c.h.b16 %v4439
        %v4677 = vunpack.c.l.b16 %v4440
        %v4678 = vunpack.c.h.b16 %v4440
        %v4679 = vunpack.c.l.b16 %v4441
        %v4680 = vunpack.c.h.b16 %v4441
        %v4681 = vunpack.c.l.b16 %v4442
        %v4682 = vunpack.c.h.b16 %v4442
        %v4683 = vunpack.c.l.b16 %v4443
        %v4684 = vunpack.c.h.b16 %v4443
        %v4685 = vunpack.c.l.b16 %v4444
        %v4686 = vunpack.c.h.b16 %v4444
        %v4687 = vunpack.c.l.b16 %v4445
        %v4688 = vunpack.c.h.b16 %v4445
        %v4689 = vunpack.c.l.b16 %v4446
        %v4690 = vunpack.c.h.b16 %v4446
        %v4691 = vunpack.c.l.b16 %v4447
        %v4692 = vunpack.c.h.b16 %v4447
        %v4693 = vunpack.c.l.b16 %v4448
        %v4694 = vunpack.c.h.b16 %v4448
        %v4695 = vunpack.c.l.b16 %v4449
        %v4696 = vunpack.c.h.b16 %v4449
        %v4697 = vunpack.c.l.b16 %v4450
        %v4698 = vunpack.c.h.b16 %v4450
        %v4699 = vunpack.c.l.b16 %v4451
        %v4700 = vunpack.c.h.b16 %v4451
        %v4701 = vunpack.c.l.b16 %v4452
        %v4702 = vunpack.c.h.b16 %v4452
        %v4703 = vunpack.c.l.b16 %v4453
        %v4704 = vunpack.c.h.b16 %v4453
        %v4705 = vunpack.c.l.b16 %v4454
        %v4706 = vunpack.c.h.b16 %v4454
        %v4707 = vunpack.c.l.b16 %v4455
        %v4708 = vunpack.c.h.b16 %v4455
        %v4709 = vunpack.c.l.b16 %v4456
        %v4710 = vunpack.c.h.b16 %v4456
        %v4711 = vunpack.c.l.b16 %v4457
        %v4712 = vunpack.c.h.b16 %v4457
        %v4713 = vunpack.c.l.b16 %v4458
        %v4714 = vunpack.c.h.b16 %v4458
        %v4715 = vunpack.c.l.b16 %v4459
        %v4716 = vunpack.c.h.b16 %v4459
        %v4717 = vunpack.c.l.b16 %v4460
        %v4718 = vunpack.c.h.b16 %v4460
        %v4719 = vunpack.c.l.b16 %v4461
        %v4720 = vunpack.c.h.b16 %v4461
        %v4721 = vunpack.c.l.b16 %v4462
        %v4722 = vunpack.c.h.b16 %v4462
        %v4723 = vunpack.c.l.b16 %v4463
        %v4724 = vunpack.c.h.b16 %v4463
        %v4725 = vunpack.c.l.b16 %v4464
        %v4726 = vunpack.c.h.b16 %v4464
        %v4727 = vunpack.c.l.b16 %v4465
        %v4728 = vunpack.c.h.b16 %v4465
        %v4729 = vunpack.c.l.b16 %v4466
        %v4730 = vunpack.c.h.b16 %v4466
        %v4731 = vunpack.c.l.b16 %v4467
        %v4732 = vunpack.c.h.b16 %v4467
        %v4733 = vunpack.c.l.b16 %v4468
        %v4734 = vunpack.c.h.b16 %v4468
        %v4735 = vunpack.c.l.b16 %v4469
        %v4736 = vunpack.c.h.b16 %v4469
        %v4737 = vunpack.c.l.b16 %v4470
        %v4738 = vunpack.c.h.b16 %v4470
        %v4739 = vunpack.c.l.b16 %v4471
        %v4740 = vunpack.c.h.b16 %v4471
        %v4741 = vunpack.c.l.b16 %v4472
        %v4742 = vunpack.c.h.b16 %v4472
        %v4743 = vunpack.c.l.b16 %v4473
        %v4744 = vunpack.c.h.b16 %v4473
        %v4745 = vunpack.c.l.b16 %v4474
        %v4746 = vunpack.c.h.b16 %v4474
        %v4747 = vunpack.c.l.b16 %v4475
        %v4748 = vunpack.c.h.b16 %v4475
        %v4749 = vunpack.c.l.b16 %v4476
        %v4750 = vunpack.c.h.b16 %v4476
        %v4751 = vunpack.c.l.b16 %v4477
        %v4752 = vunpack.c.h.b16 %v4477
        %v4753 = vunpack.c.l.b16 %v4478
        %v4754 = vunpack.c.h.b16 %v4478
        %v4755 = vunpack.c.l.b16 %v4479
        %v4756 = vunpack.c.h.b16 %v4479
        %v4757 = vunpack.c.l.b16 %v4480
        %v4758 = vunpack.c.h.b16 %v4480
        %v4759 = vunpack.c.l.b16 %v4481
        %v4760 = vunpack.c.h.b16 %v4481
        %v4761 = vunpack.c.l.b16 %v4482
        %v4762 = vunpack.c.h.b16 %v4482
        %v4763 = vunpack.c.l.b16 %v4483
        %v4764 = vunpack.c.h.b16 %v4483
        %v4765 = vunpack.c.l.b16 %v4484
        %v4766 = vunpack.c.h.b16 %v4484
        %v4767 = vunpack.c.l.b16 %v4485
        %v4768 = vunpack.c.h.b16 %v4485
        %v4769 = vunpack.c.l.b16 %v4486
        %v4770 = vunpack.c.h.b16 %v4486
        %v4771 = vunpack.c.l.b16 %v4487
        %v4772 = vunpack.c.h.b16 %v4487
        %v4773 = vunpack.c.l.b16 %v4488
        %v4774 = vunpack.c.h.b16 %v4488
        %v4775 = vunpack.c.l.b16 %v4489
        %v4776 = vunpack.c.h.b16 %v4489
        %v4777 = vunpack.c.l.b16 %v4490
        %v4778 = vunpack.c.h.b16 %v4490
        %v4779 = vunpack.c.l.b16 %v4491
        %v4780 = vunpack.c.h.b16 %v4491
        %v4781 = vunpack.c.l.b16 %v4492
        %v4782 = vunpack.c.h.b16 %v4492
        %v4783 = vunpack.c.l.b16 %v4493
        %v4784 = vunpack.c.h.b16 %v4493
        %v4785 = vunpack.c.l.b16 %v4494
        %v4786 = vunpack.c.h.b16 %v4494
        %v4787 = vunpack.c.l.b16 %v4495
        %v4788 = vunpack.c.h.b16 %v4495
        %v4789 = vunpack.c.l.b16 %v4496
        %v4790 = vunpack.c.h.b16 %v4496
        %v4791 = vunpack.c.l.b16 %v4497
        %v4792 = vunpack.c.h.b16 %v4497
        %v4793 = vunpack.c.l.b16 %v4498
        %v4794 = vunpack.c.h.b16 %v4498
        %v4795 = vunpack.c.l.b16 %v4499
        %v4796 = vunpack.c.h.b16 %v4499
        %v4797 = vunpack.c.l.b16 %v4500
        %v4798 = vunpack.c.h.b16 %v4500
        %v4799 = vunpack.c.l.b16 %v4501
        %v4800 = vunpack.c.h.b16 %v4501
        %v4801 = vunpack.c.l.b16 %v4502
        %v4802 = vunpack.c.h.b16 %v4502
        %v4803 = vunpack.c.l.b16 %v4503
        %v4804 = vunpack.c.h.b16 %v4503
        %v4805 = vunpack.c.l.b16 %v4504
        %v4806 = vunpack.c.h.b16 %v4504
        %v4807 = vunpack.c.l.b16 %v4505
        %v4808 = vunpack.c.h.b16 %v4505
        %v4809 = vunpack.c.l.b16 %v4506
        %v4810 = vunpack.c.h.b16 %v4506
        %v4811 = vunpack.c.l.b16 %v4507
        %v4812 = vunpack.c.h.b16 %v4507
        %v4813 = vunpack.c.l.b16 %v4508
        %v4814 = vunpack.c.h.b16 %v4508
        %v4815 = vunpack.c.l.b16 %v4509
        %v4816 = vunpack.c.h.b16 %v4509
        %v4817 = vunpack.c.l.b16 %v4510
        %v4818 = vunpack.c.h.b16 %v4510
        %v4819 = vunpack.c.l.b16 %v4511
        %v4820 = vunpack.c.h.b16 %v4511
        %v4821 = vunpack.c.l.b16 %v4512
        %v4822 = vunpack.c.h.b16 %v4512
        %v4823 = vunpack.c.l.b16 %v4513
        %v4824 = vunpack.c.h.b16 %v4513
        %v4825 = vunpack.c.l.b16 %v4514
        %v4826 = vunpack.c.h.b16 %v4514
        %v4827 = vunpack.c.l.b16 %v4515
        %v4828 = vunpack.c.h.b16 %v4515
        %v4829 = vunpack.c.l.b16 %v4516
        %v4830 = vunpack.c.h.b16 %v4516
        %v4831 = vunpack.c.l.b16 %v4517
        %v4832 = vunpack.c.h.b16 %v4517
        %v4833 = vunpack.c.l.b16 %v4518
        %v4834 = vunpack.c.h.b16 %v4518
        %v4835 = vunpack.c.l.b16 %v4519
        %v4836 = vunpack.c.h.b16 %v4519
        %v4837 = vunpack.c.l.b16 %v4520
        %v4838 = vunpack.c.h.b16 %v4520
        %v4839 = vunpack.c.l.b16 %v4521
        %v4840 = vunpack.c.h.b16 %v4521
        %v4841 = vunpack.c.l.b16 %v4522
        %v4842 = vunpack.c.h.b16 %v4522
        %v4843 = vpack.c.b16 %v4657, %v4651
        %v4844 = vpack.c.b16 %v4658, %v4652
        %v4845 = vpack.c.b16 %v4659, %v4653
        %v4846 = vpack.c.b16 %v4660, %v4654
        %v4847 = vpack.c.b16 %v4661, %v4655
        %v4848 = vpack.c.b16 %v4662, %v4656
        %v4849 = vpack.c.b16 %v4669, %v4663
        %v4850 = vpack.c.b16 %v4670, %v4664
        %v4851 = vpack.c.b16 %v4671, %v4665
        %v4852 = vpack.c.b16 %v4672, %v4666
        %v4853 = vpack.c.b16 %v4673, %v4667
        %v4854 = vpack.c.b16 %v4674, %v4668
        %v4855 = vpack.c.b16 %v4681, %v4675
        %v4856 = vpack.c.b16 %v4682, %v4676
        %v4857 = vpack.c.b16 %v4683, %v4677
        %v4858 = vpack.c.b16 %v4684, %v4678
        %v4859 = vpack.c.b16 %v4685, %v4679
        %v4860 = vpack.c.b16 %v4686, %v4680
        %v4861 = vpack.c.b16 %v4693, %v4687
        %v4862 = vpack.c.b16 %v4694, %v4688
        %v4863 = vpack.c.b16 %v4695, %v4689
        %v4864 = vpack.c.b16 %v4696, %v4690
        %v4865 = vpack.c.b16 %v4697, %v4691
        %v4866 = vpack.c.b16 %v4698, %v4692
        %v4867 = vpack.c.b16 %v4705, %v4699
        %v4868 = vpack.c.b16 %v4706, %v4700
        %v4869 = vpack.c.b16 %v4707, %v4701
        %v4870 = vpack.c.b16 %v4708, %v4702
        %v4871 = vpack.c.b16 %v4709, %v4703
        %v4872 = vpack.c.b16 %v4710, %v4704
        %v4873 = vpack.c.b16 %v4717, %v4711
        %v4874 = vpack.c.b16 %v4718, %v4712
        %v4875 = vpack.c.b16 %v4719, %v4713
        %v4876 = vpack.c.b16 %v4720, %v4714
        %v4877 = vpack.c.b16 %v4721, %v4715
        %v4878 = vpack.c.b16 %v4722, %v4716
        %v4879 = vpack.c.b16 %v4729, %v4723
        %v4880 = vpack.c.b16 %v4730, %v4724
        %v4881 = vpack.c.b16 %v4731, %v4725
        %v4882 = vpack.c.b16 %v4732, %v4726
        %v4883 = vpack.c.b16 %v4733, %v4727
        %v4884 = vpack.c.b16 %v4734, %v4728
        %v4885 = vpack.c.b16 %v4741, %v4735
        %v4886 = vpack.c.b16 %v4742, %v4736
        %v4887 = vpack.c.b16 %v4743, %v4737
        %v4888 = vpack.c.b16 %v4744, %v4738
        %v4889 = vpack.c.b16 %v4745, %v4739
        %v4890 = vpack.c.b16 %v4746, %v4740
        %v4891 = vpack.c.b16 %v4753, %v4747
        %v4892 = vpack.c.b16 %v4754, %v4748
        %v4893 = vpack.c.b16 %v4755, %v4749
        %v4894 = vpack.c.b16 %v4756, %v4750
        %v4895 = vpack.c.b16 %v4757, %v4751
        %v4896 = vpack.c.b16 %v4758, %v4752
        %v4897 = vpack.c.b16 %v4765, %v4759
        %v4898 = vpack.c.b16 %v4766, %v4760
        %v4899 = vpack.c.b16 %v4767, %v4761
        %v4900 = vpack.c.b16 %v4768, %v4762
        %v4901 = vpack.c.b16 %v4769, %v4763
        %v4902 = vpack.c.b16 %v4770, %v4764
        %v4903 = vpack.c.b16 %v4777, %v4771
        %v4904 = vpack.c.b16 %v4778, %v4772
        %v4905 = vpack.c.b16 %v4779, %v4773
        %v4906 = vpack.c.b16 %v4780, %v4774
        %v4907 = vpack.c.b16 %v4781, %v4775
        %v4908 = vpack.c.b16 %v4782, %v4776
        %v4909 = vpack.c.b16 %v4789, %v4783
        %v4910 = vpack.c.b16 %v4790, %v4784
        %v4911 = vpack.c.b16 %v4791, %v4785
        %v4912 = vpack.c.b16 %v4792, %v4786
        %v4913 = vpack.c.b16 %v4793, %v4787
        %v4914 = vpack.c.b16 %v4794, %v4788
        %v4915 = vpack.c.b16 %v4801, %v4795
        %v4916 = vpack.c.b16 %v4802, %v4796
        %v4917 = vpack.c.b16 %v4803, %v4797
        %v4918 = vpack.c.b16 %v4804, %v4798
        %v4919 = vpack.c.b16 %v4805, %v4799
        %v4920 = vpack.c.b16 %v4806, %v4800
        %v4921 = vpack.c.b16 %v4813, %v4807
        %v4922 = vpack.c.b16 %v4814, %v4808
        %v4923 = vpack.c.b16 %v4815, %v4809
        %v4924 = vpack.c.b16 %v4816, %v4810
        %v4925 = vpack.c.b16 %v4817, %v4811
        %v4926 = vpack.c.b16 %v4818, %v4812
        %v4927 = vpack.c.b16 %v4825, %v4819
        %v4928 = vpack.c.b16 %v4826, %v4820
        %v4929 = vpack.c.b16 %v4827, %v4821
        %v4930 = vpack.c.b16 %v4828, %v4822
        %v4931 = vpack.c.b16 %v4829, %v4823
        %v4932 = vpack.c.b16 %v4830, %v4824
        %v4933 = vpack.c.b16 %v4837, %v4831
        %v4934 = vpack.c.b16 %v4838, %v4832
        %v4935 = vpack.c.b16 %v4839, %v4833
        %v4936 = vpack.c.b16 %v4840, %v4834
        %v4937 = vpack.c.b16 %v4841, %v4835
        %v4938 = vpack.c.b16 %v4842, %v4836
        %5035 = vmatprep.subr.bf16.mxu0 %v4844
        %5036 = vmatpush1.bf16.msra.mxu0 %v4843
        %5037 = vmatprep.subr.bf16.mxu0 %v4850
        %5038 = vmatpush1.bf16.msra.mxu0 %v4849
        %5039 = vmatprep.subr.bf16.mxu0 %v4856
        %5040 = vmatpush1.bf16.msra.mxu0 %v4855
        %5041 = vmatprep.subr.bf16.mxu0 %v4862
        %5042 = vmatpush1.bf16.msra.mxu0 %v4861
        %5043 = vmatprep.subr.bf16.mxu0 %v4868
        %5044 = vmatpush1.bf16.msra.mxu0 %v4867
        %5045 = vmatprep.subr.bf16.mxu0 %v4874
        %5046 = vmatpush1.bf16.msra.mxu0 %v4873
        %5047 = vmatprep.subr.bf16.mxu0 %v4880
        %5048 = vmatpush1.bf16.msra.mxu0 %v4879
        %5049 = vmatprep.subr.bf16.mxu0 %v4886
        %5050 = vmatpush1.bf16.msra.mxu0 %v4885
        %5051 = vmatprep.subr.bf16.mxu0 %v4892
        %5052 = vmatpush1.bf16.msra.mxu0 %v4891
        %5053 = vmatprep.subr.bf16.mxu0 %v4898
        %5054 = vmatpush1.bf16.msra.mxu0 %v4897
        %5055 = vmatprep.subr.bf16.mxu0 %v4904
        %5056 = vmatpush1.bf16.msra.mxu0 %v4903
        %5057 = vmatprep.subr.bf16.mxu0 %v4910
        %5058 = vmatpush1.bf16.msra.mxu0 %v4909
        %5059 = vmatprep.subr.bf16.mxu0 %v4916
        %5060 = vmatpush1.bf16.msra.mxu0 %v4915
        %5061 = vmatprep.subr.bf16.mxu0 %v4922
        %5062 = vmatpush1.bf16.msra.mxu0 %v4921
        %5063 = vmatprep.subr.bf16.mxu0 %v4928
        %5064 = vmatpush1.bf16.msra.mxu0 %v4927
        %5065 = vmatprep.subr.bf16.mxu0 %v4934
        %5066 = vmatpush1.bf16.msra.mxu0 %v4933
        %5067 = vmatprep.mubr.bf16.mxu0 %v4424
        %5068 = vmatmul.mubr.bf16.gmra.mrb[0].mxu0 %v4423
        %v5069 = vpop.f32.mrb[0].mxu0
        %v5070 = vadd.f32 %v4528, %v5069
        %v5071 = vpop.f32.mrb[0].mxu0
        %v5072 = vadd.f32 %v4532, %v5071
        %v5073 = vpop.f32.mrb[0].mxu0
        %v5074 = vadd.f32 %v4528, %v5073
        %v5075 = vpop.f32.mrb[0].mxu0
        %v5076 = vadd.f32 %v4532, %v5075
        %5077 = vmatprep.mubr.bf16.mxu0 %v4426
        %5078 = vmatmul.mubr.bf16.gmra.mrb[0].mxu0 %v4425
        %v5079 = vpop.f32.mrb[0].mxu0
        %v5080 = vadd.f32 %v4528, %v5079
        %v5081 = vpop.f32.mrb[0].mxu0
        %v5082 = vadd.f32 %v4532, %v5081
        %v5083 = vpop.f32.mrb[0].mxu0
        %v5084 = vadd.f32 %v4528, %v5083
        %v5085 = vpop.f32.mrb[0].mxu0
        %v5086 = vadd.f32 %v4532, %v5085
        %5087 = vdwg.mxu0
        %5088 = vmatprep.subr.bf16.mxu0 %v4846
        %5089 = vmatpush1.bf16.msra.mxu0 %v4845
        %5090 = vmatprep.subr.bf16.mxu0 %v4852
        %5091 = vmatpush1.bf16.msra.mxu0 %v4851
        %5092 = vmatprep.subr.bf16.mxu0 %v4858
        %5093 = vmatpush1.bf16.msra.mxu0 %v4857
        %5094 = vmatprep.subr.bf16.mxu0 %v4864
        %5095 = vmatpush1.bf16.msra.mxu0 %v4863
        %5096 = vmatprep.subr.bf16.mxu0 %v4870
        %5097 = vmatpush1.bf16.msra.mxu0 %v4869
        %5098 = vmatprep.subr.bf16.mxu0 %v4876
        %5099 = vmatpush1.bf16.msra.mxu0 %v4875
        %5100 = vmatprep.subr.bf16.mxu0 %v4882
        %5101 = vmatpush1.bf16.msra.mxu0 %v4881
        %5102 = vmatprep.subr.bf16.mxu0 %v4888
        %5103 = vmatpush1.bf16.msra.mxu0 %v4887
        %5104 = vmatprep.subr.bf16.mxu0 %v4894
        %5105 = vmatpush1.bf16.msra.mxu0 %v4893
        %5106 = vmatprep.subr.bf16.mxu0 %v4900
        %5107 = vmatpush1.bf16.msra.mxu0 %v4899
        %5108 = vmatprep.subr.bf16.mxu0 %v4906
        %5109 = vmatpush1.bf16.msra.mxu0 %v4905
        %5110 = vmatprep.subr.bf16.mxu0 %v4912
        %5111 = vmatpush1.bf16.msra.mxu0 %v4911
        %5112 = vmatprep.subr.bf16.mxu0 %v4918
        %5113 = vmatpush1.bf16.msra.mxu0 %v4917
        %5114 = vmatprep.subr.bf16.mxu0 %v4924
        %5115 = vmatpush1.bf16.msra.mxu0 %v4923
        %5116 = vmatprep.subr.bf16.mxu0 %v4930
        %5117 = vmatpush1.bf16.msra.mxu0 %v4929
        %5118 = vmatprep.subr.bf16.mxu0 %v4936
        %5119 = vmatpush1.bf16.msra.mxu0 %v4935
        %5120 = vmatprep.mubr.bf16.mxu0 %v4424
        %5121 = vmatmul.mubr.bf16.gmra.mrb[0].mxu0 %v4423
        %v5122 = vpop.f32.mrb[0].mxu0
        %v5123 = vadd.f32 %v4536, %v5122
        %v5124 = vpop.f32.mrb[0].mxu0
        %v5125 = vadd.f32 %v4540, %v5124
        %v5126 = vpop.f32.mrb[0].mxu0
        %v5127 = vadd.f32 %v4536, %v5126
        %v5128 = vpop.f32.mrb[0].mxu0
        %v5129 = vadd.f32 %v4540, %v5128
        %5130 = vmatprep.mubr.bf16.mxu0 %v4426
        %5131 = vmatmul.mubr.bf16.gmra.mrb[0].mxu0 %v4425
        %v5132 = vpop.f32.mrb[0].mxu0
        %v5133 = vadd.f32 %v4536, %v5132
        %v5134 = vpop.f32.mrb[0].mxu0
        %v5135 = vadd.f32 %v4540, %v5134
        %v5136 = vpop.f32.mrb[0].mxu0
        %v5137 = vadd.f32 %v4536, %v5136
        %v5138 = vpop.f32.mrb[0].mxu0
        %v5139 = vadd.f32 %v4540, %v5138
        %5140 = vdwg.mxu0
        %5141 = vmatprep.subr.bf16.mxu0 %v4848
        %5142 = vmatpush1.bf16.msra.mxu0 %v4847
        %5143 = vmatprep.subr.bf16.mxu0 %v4854
        %5144 = vmatpush1.bf16.msra.mxu0 %v4853
        %5145 = vmatprep.subr.bf16.mxu0 %v4860
        %5146 = vmatpush1.bf16.msra.mxu0 %v4859
        %5147 = vmatprep.subr.bf16.mxu0 %v4866
        %5148 = vmatpush1.bf16.msra.mxu0 %v4865
        %5149 = vmatprep.subr.bf16.mxu0 %v4872
        %5150 = vmatpush1.bf16.msra.mxu0 %v4871
        %5151 = vmatprep.subr.bf16.mxu0 %v4878
        %5152 = vmatpush1.bf16.msra.mxu0 %v4877
        %5153 = vmatprep.subr.bf16.mxu0 %v4884
        %5154 = vmatpush1.bf16.msra.mxu0 %v4883
        %5155 = vmatprep.subr.bf16.mxu0 %v4890
        %5156 = vmatpush1.bf16.msra.mxu0 %v4889
        %5157 = vmatprep.subr.bf16.mxu0 %v4896
        %5158 = vmatpush1.bf16.msra.mxu0 %v4895
        %5159 = vmatprep.subr.bf16.mxu0 %v4902
        %5160 = vmatpush1.bf16.msra.mxu0 %v4901
        %5161 = vmatprep.subr.bf16.mxu0 %v4908
        %5162 = vmatpush1.bf16.msra.mxu0 %v4907
        %5163 = vmatprep.subr.bf16.mxu0 %v4914
        %5164 = vmatpush1.bf16.msra.mxu0 %v4913
        %5165 = vmatprep.subr.bf16.mxu0 %v4920
        %5166 = vmatpush1.bf16.msra.mxu0 %v4919
        %5167 = vmatprep.subr.bf16.mxu0 %v4926
        %5168 = vmatpush1.bf16.msra.mxu0 %v4925
        %5169 = vmatprep.subr.bf16.mxu0 %v4932
        %5170 = vmatpush1.bf16.msra.mxu0 %v4931
        %5171 = vmatprep.subr.bf16.mxu0 %v4938
        %5172 = vmatpush1.bf16.msra.mxu0 %v4937
        %5173 = vmatprep.mubr.bf16.mxu0 %v4424
        %5174 = vmatmul.mubr.bf16.gmra.mrb[0].mxu0 %v4423
        %v5175 = vpop.f32.mrb[0].mxu0
        %v5176 = vadd.f32 %v4544, %v5175
        %v5177 = vpop.f32.mrb[0].mxu0
        %v5178 = vadd.f32 %v4548, %v5177
        %v5179 = vpop.f32.mrb[0].mxu0
        %v5180 = vadd.f32 %v4544, %v5179
        %v5181 = vpop.f32.mrb[0].mxu0
        %v5182 = vadd.f32 %v4548, %v5181
        %5183 = vmatprep.mubr.bf16.mxu0 %v4426
        %5184 = vmatmul.mubr.bf16.gmra.mrb[0].mxu0 %v4425
        %v5185 = vpop.f32.mrb[0].mxu0
        %v5186 = vadd.f32 %v4544, %v5185
        %v5187 = vpop.f32.mrb[0].mxu0
        %v5188 = vadd.f32 %v4548, %v5187
        %v5189 = vpop.f32.mrb[0].mxu0
        %v5190 = vadd.f32 %v4544, %v5189
        %v5191 = vpop.f32.mrb[0].mxu0
        %v5192 = vadd.f32 %v4548, %v5191
        %5193 = vdwg.mxu0
        %v5194 = vmul.f32 %v5070, 0.088388346
        %v5195 = vmul.f32 %v5072, 0.088388346
        %v5196 = vmul.f32 %v5074, 0.088388346
        %v5197 = vmul.f32 %v5076, 0.088388346
        %v5198 = vmul.f32 %v5080, 0.088388346
        %v5199 = vmul.f32 %v5082, 0.088388346
        %v5200 = vmul.f32 %v5084, 0.088388346
        %v5201 = vmul.f32 %v5086, 0.088388346
        %v5202 = vpack.c.bf16 %v5196, %v5194
        %v5203 = vpack.c.bf16 %v5197, %v5195
        %v5204 = vpack.c.bf16 %v5200, %v5198
        %v5205 = vpack.c.bf16 %v5201, %v5199
        %v5206 = vpack.c.bf16 %v5127, %v5123
        %v5207 = vpack.c.bf16 %v5129, %v5125
        %v5208 = vpack.c.bf16 %v5137, %v5133
        %v5209 = vpack.c.bf16 %v5139, %v5135
        %v5210 = vpack.c.bf16 %v5180, %v5176
        %v5211 = vpack.c.bf16 %v5182, %v5178
        %v5212 = vpack.c.bf16 %v5190, %v5186
        %v5213 = vpack.c.bf16 %v5192, %v5188
        %5214 = vmatprep.subr.bf16.mxu0 0
        %5215 = vmatpush1.bf16.xpose.msra.mxu0 %v5206
        %5216 = vmatprep.subr.bf16.mxu0 0
        %5217 = vmatpush1.bf16.xpose.msra.mxu0 0
        %5218 = vmatprep.subr.bf16.mxu0 0
        %5219 = vmatpush1.bf16.xpose.msra.mxu0 0
        %5220 = vmatprep.subr.bf16.mxu0 0
        %5221 = vmatpush1.bf16.xpose.msra.mxu0 0
        %5222 = vmatprep.subr.bf16.mxu0 0
        %5223 = vmatpush1.bf16.xpose.msra.mxu0 0
        %5224 = vmatprep.subr.bf16.mxu0 0
        %5225 = vmatpush1.bf16.xpose.msra.mxu0 0
        %5226 = vmatprep.subr.bf16.mxu0 0
        %5227 = vmatpush1.bf16.xpose.msra.mxu0 0
        %5228 = vmatprep.subr.bf16.mxu0 0
        %5229 = vmatpush1.bf16.xpose.msra.mxu0 0
        %5230 = vmatprep.subr.bf16.mxu0 0
        %5231 = vmatpush1.bf16.xpose.msra.mxu0 0
        %5232 = vmatprep.subr.bf16.mxu0 0
        %5233 = vmatpush1.bf16.xpose.msra.mxu0 0
        %5234 = vmatprep.subr.bf16.mxu0 0
        %5235 = vmatpush1.bf16.xpose.msra.mxu0 0
        %5236 = vmatprep.subr.bf16.mxu0 0
        %5237 = vmatpush1.bf16.xpose.msra.mxu0 0
        %5238 = vmatprep.subr.bf16.mxu0 0
        %5239 = vmatpush1.bf16.xpose.msra.mxu0 0
        %5240 = vmatprep.subr.bf16.mxu0 0
        %5241 = vmatpush1.bf16.xpose.msra.mxu0 0
        %5242 = vmatprep.subr.bf16.mxu0 0
        %5243 = vmatpush1.bf16.xpose.msra.mxu0 0
        %5244 = vmatprep.subr.bf16.mxu0 0
        %5245 = vmatpush1.bf16.xpose.msra.mxu0 0
        %5246 = vmatprep.mubr.bf16.mxu0 0
        %5247 = vmatmul.mubr.bf16.gmra.mrb[0].mxu0 %v5202
        %v5248 = vpop.f32.mrb[0].mxu0
        %v5249 = vadd.f32 0.0, %v5248
        %v5250 = vpop.f32.mrb[0].mxu0
        %v5251 = vpop.f32.mrb[0].mxu0
        %v5252 = vadd.f32 0.0, %v5251
        %v5253 = vpop.f32.mrb[0].mxu0
        %5254 = vdwg.mxu0
        %5255 = vmatprep.subr.bf16.mxu0 0
        %5256 = vmatpush1.bf16.xpose.msra.mxu0 %v5208
        %5257 = vmatprep.subr.bf16.mxu0 0
        %5258 = vmatpush1.bf16.xpose.msra.mxu0 0
        %5259 = vmatprep.subr.bf16.mxu0 0
        %5260 = vmatpush1.bf16.xpose.msra.mxu0 0
        %5261 = vmatprep.subr.bf16.mxu0 0
        %5262 = vmatpush1.bf16.xpose.msra.mxu0 0
        %5263 = vmatprep.subr.bf16.mxu0 0
        %5264 = vmatpush1.bf16.xpose.msra.mxu0 0
        %5265 = vmatprep.subr.bf16.mxu0 0
        %5266 = vmatpush1.bf16.xpose.msra.mxu0 0
        %5267 = vmatprep.subr.bf16.mxu0 0
        %5268 = vmatpush1.bf16.xpose.msra.mxu0 0
        %5269 = vmatprep.subr.bf16.mxu0 0
        %5270 = vmatpush1.bf16.xpose.msra.mxu0 0
        %5271 = vmatprep.subr.bf16.mxu0 0
        %5272 = vmatpush1.bf16.xpose.msra.mxu0 0
        %5273 = vmatprep.subr.bf16.mxu0 0
        %5274 = vmatpush1.bf16.xpose.msra.mxu0 0
        %5275 = vmatprep.subr.bf16.mxu0 0
        %5276 = vmatpush1.bf16.xpose.msra.mxu0 0
        %5277 = vmatprep.subr.bf16.mxu0 0
        %5278 = vmatpush1.bf16.xpose.msra.mxu0 0
        %5279 = vmatprep.subr.bf16.mxu0 0
        %5280 = vmatpush1.bf16.xpose.msra.mxu0 0
        %5281 = vmatprep.subr.bf16.mxu0 0
        %5282 = vmatpush1.bf16.xpose.msra.mxu0 0
        %5283 = vmatprep.subr.bf16.mxu0 0
        %5284 = vmatpush1.bf16.xpose.msra.mxu0 0
        %5285 = vmatprep.subr.bf16.mxu0 0
        %5286 = vmatpush1.bf16.xpose.msra.mxu0 0
        %5287 = vmatprep.mubr.bf16.mxu0 0
        %5288 = vmatmul.mubr.bf16.gmra.mrb[0].mxu0 %v5204
        %v5289 = vpop.f32.mrb[0].mxu0
        %v5290 = vadd.f32 0.0, %v5289
        %v5291 = vpop.f32.mrb[0].mxu0
        %v5292 = vpop.f32.mrb[0].mxu0
        %v5293 = vadd.f32 0.0, %v5292
        %v5294 = vpop.f32.mrb[0].mxu0
        %5295 = vdwg.mxu0
        %vm5296 = vcmask 130048
        %v5297 = vsel %vm5296, %v5249, -inf
        %5298 = vmax.xlane.f32.xlu0 %v5297
        %v5299 = vpop.xlane.xlu0 %5298
        %v5300 = vsel %vm5296, %v5252, -inf
        %5301 = vmax.xlane.f32.xlu0 %v5300
        %v5302 = vpop.xlane.xlu0 %5301
        %v5303 = vsel %vm5296, %v5290, -inf
        %5304 = vmax.xlane.f32.xlu0 %v5303
        %v5305 = vpop.xlane.xlu0 %5304
        %v5306 = vsel %vm5296, %v5293, -inf
        %5307 = vmax.xlane.f32.xlu0 %v5306
        %v5308 = vpop.xlane.xlu0 %5307
        %v5309 = vsub.f32 %v5249, %v5299
        %v5310 = vsub.f32 %v5252, %v5302
        %v5311 = vsub.f32 %v5290, %v5305
        %v5312 = vsub.f32 %v5293, %v5308
        %v5313 = vmul.f32 %v5309, 1.442695
        %v5314 = vpow.pop %v5313
        %v5315 = vmul.f32 %v5310, 1.442695
        %v5316 = vpow.pop %v5315
        %v5317 = vmul.f32 %v5311, 1.442695
        %v5318 = vpow.pop %v5317
        %v5319 = vmul.f32 %v5312, 1.442695
        %v5320 = vpow.pop %v5319
        %v5321 = vsel %vm5296, %v5314, 0.0
        %5322 = vadd.xlane.f32.xlu0 %v5321
        %v5323 = vpop.xlane.xlu0 %5322
        %v5324 = vsel %vm5296, %v5316, 0.0
        %5325 = vadd.xlane.f32.xlu0 %v5324
        %v5326 = vpop.xlane.xlu0 %5325
        %v5327 = vsel %vm5296, %v5318, 0.0
        %5328 = vadd.xlane.f32.xlu0 %v5327
        %v5329 = vpop.xlane.xlu0 %5328
        %v5330 = vsel %vm5296, %v5320, 0.0
        %5331 = vadd.xlane.f32.xlu0 %v5330
        %v5332 = vpop.xlane.xlu0 %5331
        %v5333 = vrcp.pop %v5323
        %v5334 = vrcp.pop %v5326
        %v5335 = vrcp.pop %v5329
        %v5336 = vrcp.pop %v5332
        %v5337 = vmul.f32 %v5314, %v5333
        %v5338 = vmul.f32 %v5316, %v5334
        %v5339 = vmul.f32 %v5318, %v5335
        %v5340 = vmul.f32 %v5320, %v5336
        %v5341 = vpack.c.bf16 %v5338, %v5337
        %v5342 = vpack.c.bf16 %v5340, %v5339
        %v5344 = vsel %vm5296, %v5341, 0
        %5346 = vmatprep.subr.bf16.mxu0 0
        %5347 = vmatpush1.bf16.msra.mxu0 %v5210
        %5348 = vmatprep.subr.bf16.mxu0 0
        %5349 = vmatpush1.bf16.msra.mxu0 0
        %5350 = vmatprep.subr.bf16.mxu0 0
        %5351 = vmatpush1.bf16.msra.mxu0 0
        %5352 = vmatprep.subr.bf16.mxu0 0
        %5353 = vmatpush1.bf16.msra.mxu0 0
        %5354 = vmatprep.subr.bf16.mxu0 0
        %5355 = vmatpush1.bf16.msra.mxu0 0
        %5356 = vmatprep.subr.bf16.mxu0 0
        %5357 = vmatpush1.bf16.msra.mxu0 0
        %5358 = vmatprep.subr.bf16.mxu0 0
        %5359 = vmatpush1.bf16.msra.mxu0 0
        %5360 = vmatprep.subr.bf16.mxu0 0
        %5361 = vmatpush1.bf16.msra.mxu0 0
        %5362 = vmatprep.subr.bf16.mxu0 0
        %5363 = vmatpush1.bf16.msra.mxu0 0
        %5364 = vmatprep.subr.bf16.mxu0 0
        %5365 = vmatpush1.bf16.msra.mxu0 0
        %5366 = vmatprep.subr.bf16.mxu0 0
        %5367 = vmatpush1.bf16.msra.mxu0 0
        %5368 = vmatprep.subr.bf16.mxu0 0
        %5369 = vmatpush1.bf16.msra.mxu0 0
        %5370 = vmatprep.subr.bf16.mxu0 0
        %5371 = vmatpush1.bf16.msra.mxu0 0
        %5372 = vmatprep.subr.bf16.mxu0 0
        %5373 = vmatpush1.bf16.msra.mxu0 0
        %5374 = vmatprep.subr.bf16.mxu0 0
        %5375 = vmatpush1.bf16.msra.mxu0 0
        %5376 = vmatprep.subr.bf16.mxu0 0
        %5377 = vmatpush1.bf16.msra.mxu0 0
        %5378 = vmatprep.mubr.bf16.mxu0 0
        %5379 = vmatmul.mubr.bf16.gmra.mrb[0].mxu0 %v5344
        %v5380 = vpop.f32.mrb[0].mxu0
        %v5381 = vadd.f32 0.0, %v5380
        %v5382 = vpop.f32.mrb[0].mxu0
        %v5383 = vpop.f32.mrb[0].mxu0
        %v5384 = vadd.f32 0.0, %v5383
        %v5385 = vpop.f32.mrb[0].mxu0
        %5386 = vdwg.mxu0
        %v5388 = vsel %vm5296, %v5342, 0
        %5390 = vmatprep.subr.bf16.mxu0 0
        %5391 = vmatpush1.bf16.msra.mxu0 %v5212
        %5392 = vmatprep.subr.bf16.mxu0 0
        %5393 = vmatpush1.bf16.msra.mxu0 0
        %5394 = vmatprep.subr.bf16.mxu0 0
        %5395 = vmatpush1.bf16.msra.mxu0 0
        %5396 = vmatprep.subr.bf16.mxu0 0
        %5397 = vmatpush1.bf16.msra.mxu0 0
        %5398 = vmatprep.subr.bf16.mxu0 0
        %5399 = vmatpush1.bf16.msra.mxu0 0
        %5400 = vmatprep.subr.bf16.mxu0 0
        %5401 = vmatpush1.bf16.msra.mxu0 0
        %5402 = vmatprep.subr.bf16.mxu0 0
        %5403 = vmatpush1.bf16.msra.mxu0 0
        %5404 = vmatprep.subr.bf16.mxu0 0
        %5405 = vmatpush1.bf16.msra.mxu0 0
        %5406 = vmatprep.subr.bf16.mxu0 0
        %5407 = vmatpush1.bf16.msra.mxu0 0
        %5408 = vmatprep.subr.bf16.mxu0 0
        %5409 = vmatpush1.bf16.msra.mxu0 0
        %5410 = vmatprep.subr.bf16.mxu0 0
        %5411 = vmatpush1.bf16.msra.mxu0 0
        %5412 = vmatprep.subr.bf16.mxu0 0
        %5413 = vmatpush1.bf16.msra.mxu0 0
        %5414 = vmatprep.subr.bf16.mxu0 0
        %5415 = vmatpush1.bf16.msra.mxu0 0
        %5416 = vmatprep.subr.bf16.mxu0 0
        %5417 = vmatpush1.bf16.msra.mxu0 0
        %5418 = vmatprep.subr.bf16.mxu0 0
        %5419 = vmatpush1.bf16.msra.mxu0 0
        %5420 = vmatprep.subr.bf16.mxu0 0
        %5421 = vmatpush1.bf16.msra.mxu0 0
        %5422 = vmatprep.mubr.bf16.mxu0 0
        %5423 = vmatmul.mubr.bf16.gmra.mrb[0].mxu0 %v5388
        %v5424 = vpop.f32.mrb[0].mxu0
        %v5425 = vadd.f32 0.0, %v5424
        %v5426 = vpop.f32.mrb[0].mxu0
        %v5427 = vpop.f32.mrb[0].mxu0
        %v5428 = vadd.f32 0.0, %v5427
        %v5429 = vpop.f32.mrb[0].mxu0
        %5430 = vdwg.mxu0
        %5431 = vmatprep.subr.bf16.mxu0 0
        %5432 = vmatpush1.bf16.xpose.msra.mxu0 %v5207
        %5433 = vmatprep.subr.bf16.mxu0 0
        %5434 = vmatpush1.bf16.xpose.msra.mxu0 0
        %5435 = vmatprep.subr.bf16.mxu0 0
        %5436 = vmatpush1.bf16.xpose.msra.mxu0 0
        %5437 = vmatprep.subr.bf16.mxu0 0
        %5438 = vmatpush1.bf16.xpose.msra.mxu0 0
        %5439 = vmatprep.subr.bf16.mxu0 0
        %5440 = vmatpush1.bf16.xpose.msra.mxu0 0
        %5441 = vmatprep.subr.bf16.mxu0 0
        %5442 = vmatpush1.bf16.xpose.msra.mxu0 0
        %5443 = vmatprep.subr.bf16.mxu0 0
        %5444 = vmatpush1.bf16.xpose.msra.mxu0 0
        %5445 = vmatprep.subr.bf16.mxu0 0
        %5446 = vmatpush1.bf16.xpose.msra.mxu0 0
        %5447 = vmatprep.subr.bf16.mxu0 0
        %5448 = vmatpush1.bf16.xpose.msra.mxu0 0
        %5449 = vmatprep.subr.bf16.mxu0 0
        %5450 = vmatpush1.bf16.xpose.msra.mxu0 0
        %5451 = vmatprep.subr.bf16.mxu0 0
        %5452 = vmatpush1.bf16.xpose.msra.mxu0 0
        %5453 = vmatprep.subr.bf16.mxu0 0
        %5454 = vmatpush1.bf16.xpose.msra.mxu0 0
        %5455 = vmatprep.subr.bf16.mxu0 0
        %5456 = vmatpush1.bf16.xpose.msra.mxu0 0
        %5457 = vmatprep.subr.bf16.mxu0 0
        %5458 = vmatpush1.bf16.xpose.msra.mxu0 0
        %5459 = vmatprep.subr.bf16.mxu0 0
        %5460 = vmatpush1.bf16.xpose.msra.mxu0 0
        %5461 = vmatprep.subr.bf16.mxu0 0
        %5462 = vmatpush1.bf16.xpose.msra.mxu0 0
        %5463 = vmatprep.mubr.bf16.mxu0 0
        %5464 = vmatmul.mubr.bf16.gmra.mrb[0].mxu0 %v5203
        %v5465 = vpop.f32.mrb[0].mxu0
        %v5466 = vadd.f32 0.0, %v5465
        %v5467 = vpop.f32.mrb[0].mxu0
        %v5468 = vpop.f32.mrb[0].mxu0
        %v5469 = vadd.f32 0.0, %v5468
        %v5470 = vpop.f32.mrb[0].mxu0
        %5471 = vdwg.mxu0
        %5472 = vmatprep.subr.bf16.mxu0 0
        %5473 = vmatpush1.bf16.xpose.msra.mxu0 %v5209
        %5474 = vmatprep.subr.bf16.mxu0 0
        %5475 = vmatpush1.bf16.xpose.msra.mxu0 0
        %5476 = vmatprep.subr.bf16.mxu0 0
        %5477 = vmatpush1.bf16.xpose.msra.mxu0 0
        %5478 = vmatprep.subr.bf16.mxu0 0
        %5479 = vmatpush1.bf16.xpose.msra.mxu0 0
        %5480 = vmatprep.subr.bf16.mxu0 0
        %5481 = vmatpush1.bf16.xpose.msra.mxu0 0
        %5482 = vmatprep.subr.bf16.mxu0 0
        %5483 = vmatpush1.bf16.xpose.msra.mxu0 0
        %5484 = vmatprep.subr.bf16.mxu0 0
        %5485 = vmatpush1.bf16.xpose.msra.mxu0 0
        %5486 = vmatprep.subr.bf16.mxu0 0
        %5487 = vmatpush1.bf16.xpose.msra.mxu0 0
        %5488 = vmatprep.subr.bf16.mxu0 0
        %5489 = vmatpush1.bf16.xpose.msra.mxu0 0
        %5490 = vmatprep.subr.bf16.mxu0 0
        %5491 = vmatpush1.bf16.xpose.msra.mxu0 0
        %5492 = vmatprep.subr.bf16.mxu0 0
        %5493 = vmatpush1.bf16.xpose.msra.mxu0 0
        %5494 = vmatprep.subr.bf16.mxu0 0
        %5495 = vmatpush1.bf16.xpose.msra.mxu0 0
        %5496 = vmatprep.subr.bf16.mxu0 0
        %5497 = vmatpush1.bf16.xpose.msra.mxu0 0
        %5498 = vmatprep.subr.bf16.mxu0 0
        %5499 = vmatpush1.bf16.xpose.msra.mxu0 0
        %5500 = vmatprep.subr.bf16.mxu0 0
        %5501 = vmatpush1.bf16.xpose.msra.mxu0 0
        %5502 = vmatprep.subr.bf16.mxu0 0
        %5503 = vmatpush1.bf16.xpose.msra.mxu0 0
        %5504 = vmatprep.mubr.bf16.mxu0 0
        %5505 = vmatmul.mubr.bf16.gmra.mrb[0].mxu0 %v5205
        %v5506 = vpop.f32.mrb[0].mxu0
        %v5507 = vadd.f32 0.0, %v5506
        %v5508 = vpop.f32.mrb[0].mxu0
        %v5509 = vpop.f32.mrb[0].mxu0
        %v5510 = vadd.f32 0.0, %v5509
        %v5511 = vpop.f32.mrb[0].mxu0
        %5512 = vdwg.mxu0
        %v5513 = vsel %vm5296, %v5466, -inf
        %5514 = vmax.xlane.f32.xlu0 %v5513
        %v5515 = vpop.xlane.xlu0 %5514
        %v5516 = vsel %vm5296, %v5469, -inf
        %5517 = vmax.xlane.f32.xlu0 %v5516
        %v5518 = vpop.xlane.xlu0 %5517
        %v5519 = vsel %vm5296, %v5507, -inf
        %5520 = vmax.xlane.f32.xlu0 %v5519
        %v5521 = vpop.xlane.xlu0 %5520
        %v5522 = vsel %vm5296, %v5510, -inf
        %5523 = vmax.xlane.f32.xlu0 %v5522
        %v5524 = vpop.xlane.xlu0 %5523
        %v5525 = vsub.f32 %v5466, %v5515
        %v5526 = vsub.f32 %v5469, %v5518
        %v5527 = vsub.f32 %v5507, %v5521
        %v5528 = vsub.f32 %v5510, %v5524
        %v5529 = vmul.f32 %v5525, 1.442695
        %v5530 = vpow.pop %v5529
        %v5531 = vmul.f32 %v5526, 1.442695
        %v5532 = vpow.pop %v5531
        %v5533 = vmul.f32 %v5527, 1.442695
        %v5534 = vpow.pop %v5533
        %v5535 = vmul.f32 %v5528, 1.442695
        %v5536 = vpow.pop %v5535
        %v5537 = vsel %vm5296, %v5530, 0.0
        %5538 = vadd.xlane.f32.xlu0 %v5537
        %v5539 = vpop.xlane.xlu0 %5538
        %v5540 = vsel %vm5296, %v5532, 0.0
        %5541 = vadd.xlane.f32.xlu0 %v5540
        %v5542 = vpop.xlane.xlu0 %5541
        %v5543 = vsel %vm5296, %v5534, 0.0
        %5544 = vadd.xlane.f32.xlu0 %v5543
        %v5545 = vpop.xlane.xlu0 %5544
        %v5546 = vsel %vm5296, %v5536, 0.0
        %5547 = vadd.xlane.f32.xlu0 %v5546
        %v5548 = vpop.xlane.xlu0 %5547
        %v5549 = vrcp.pop %v5539
        %v5550 = vrcp.pop %v5542
        %v5551 = vrcp.pop %v5545
        %v5552 = vrcp.pop %v5548
        %v5553 = vmul.f32 %v5530, %v5549
        %v5554 = vmul.f32 %v5532, %v5550
        %v5555 = vmul.f32 %v5534, %v5551
        %v5556 = vmul.f32 %v5536, %v5552
        %v5557 = vpack.c.bf16 %v5554, %v5553
        %v5558 = vpack.c.bf16 %v5556, %v5555
        %v5560 = vsel %vm5296, %v5557, 0
        %5562 = vmatprep.subr.bf16.mxu0 0
        %5563 = vmatpush1.bf16.msra.mxu0 %v5211
        %5564 = vmatprep.subr.bf16.mxu0 0
        %5565 = vmatpush1.bf16.msra.mxu0 0
        %5566 = vmatprep.subr.bf16.mxu0 0
        %5567 = vmatpush1.bf16.msra.mxu0 0
        %5568 = vmatprep.subr.bf16.mxu0 0
        %5569 = vmatpush1.bf16.msra.mxu0 0
        %5570 = vmatprep.subr.bf16.mxu0 0
        %5571 = vmatpush1.bf16.msra.mxu0 0
        %5572 = vmatprep.subr.bf16.mxu0 0
        %5573 = vmatpush1.bf16.msra.mxu0 0
        %5574 = vmatprep.subr.bf16.mxu0 0
        %5575 = vmatpush1.bf16.msra.mxu0 0
        %5576 = vmatprep.subr.bf16.mxu0 0
        %5577 = vmatpush1.bf16.msra.mxu0 0
        %5578 = vmatprep.subr.bf16.mxu0 0
        %5579 = vmatpush1.bf16.msra.mxu0 0
        %5580 = vmatprep.subr.bf16.mxu0 0
        %5581 = vmatpush1.bf16.msra.mxu0 0
        %5582 = vmatprep.subr.bf16.mxu0 0
        %5583 = vmatpush1.bf16.msra.mxu0 0
        %5584 = vmatprep.subr.bf16.mxu0 0
        %5585 = vmatpush1.bf16.msra.mxu0 0
        %5586 = vmatprep.subr.bf16.mxu0 0
        %5587 = vmatpush1.bf16.msra.mxu0 0
        %5588 = vmatprep.subr.bf16.mxu0 0
        %5589 = vmatpush1.bf16.msra.mxu0 0
        %5590 = vmatprep.subr.bf16.mxu0 0
        %5591 = vmatpush1.bf16.msra.mxu0 0
        %5592 = vmatprep.subr.bf16.mxu0 0
        %5593 = vmatpush1.bf16.msra.mxu0 0
        %5594 = vmatprep.mubr.bf16.mxu0 0
        %5595 = vmatmul.mubr.bf16.gmra.mrb[0].mxu0 %v5560
        %v5596 = vpop.f32.mrb[0].mxu0
        %v5597 = vadd.f32 0.0, %v5596
        %v5598 = vpop.f32.mrb[0].mxu0
        %v5599 = vpop.f32.mrb[0].mxu0
        %v5600 = vadd.f32 0.0, %v5599
        %v5601 = vpop.f32.mrb[0].mxu0
        %5602 = vdwg.mxu0
        %v5604 = vsel %vm5296, %v5558, 0
        %5606 = vmatprep.subr.bf16.mxu0 0
        %5607 = vmatpush1.bf16.msra.mxu0 %v5213
        %5608 = vmatprep.subr.bf16.mxu0 0
        %5609 = vmatpush1.bf16.msra.mxu0 0
        %5610 = vmatprep.subr.bf16.mxu0 0
        %5611 = vmatpush1.bf16.msra.mxu0 0
        %5612 = vmatprep.subr.bf16.mxu0 0
        %5613 = vmatpush1.bf16.msra.mxu0 0
        %5614 = vmatprep.subr.bf16.mxu0 0
        %5615 = vmatpush1.bf16.msra.mxu0 0
        %5616 = vmatprep.subr.bf16.mxu0 0
        %5617 = vmatpush1.bf16.msra.mxu0 0
        %5618 = vmatprep.subr.bf16.mxu0 0
        %5619 = vmatpush1.bf16.msra.mxu0 0
        %5620 = vmatprep.subr.bf16.mxu0 0
        %5621 = vmatpush1.bf16.msra.mxu0 0
        %5622 = vmatprep.subr.bf16.mxu0 0
        %5623 = vmatpush1.bf16.msra.mxu0 0
        %5624 = vmatprep.subr.bf16.mxu0 0
        %5625 = vmatpush1.bf16.msra.mxu0 0
        %5626 = vmatprep.subr.bf16.mxu0 0
        %5627 = vmatpush1.bf16.msra.mxu0 0
        %5628 = vmatprep.subr.bf16.mxu0 0
        %5629 = vmatpush1.bf16.msra.mxu0 0
        %5630 = vmatprep.subr.bf16.mxu0 0
        %5631 = vmatpush1.bf16.msra.mxu0 0
        %5632 = vmatprep.subr.bf16.mxu0 0
        %5633 = vmatpush1.bf16.msra.mxu0 0
        %5634 = vmatprep.subr.bf16.mxu0 0
        %5635 = vmatpush1.bf16.msra.mxu0 0
        %5636 = vmatprep.subr.bf16.mxu0 0
        %5637 = vmatpush1.bf16.msra.mxu0 0
        %5638 = vmatprep.mubr.bf16.mxu0 0
        %5639 = vmatmul.mubr.bf16.gmra.mrb[0].mxu0 %v5604
        %v5640 = vpop.f32.mrb[0].mxu0
        %v5641 = vadd.f32 0.0, %v5640
        %v5642 = vpop.f32.mrb[0].mxu0
        %v5643 = vpop.f32.mrb[0].mxu0
        %v5644 = vadd.f32 0.0, %v5643
        %v5645 = vpop.f32.mrb[0].mxu0
        %5646 = vdwg.mxu0
        %v5647 = vpack.c.bf16 %v5384, %v5381
        %v5648 = vpack.c.bf16 %v5600, %v5597
        %v5649 = vpack.c.bf16 %v5428, %v5425
        %v5650 = vpack.c.bf16 %v5644, %v5641
        %v5651 = vld [vmem:[%s1143] sm:$0xff]
        %v5652 = vld [vmem:[%s1143 + $0x8] sm:$0xff]
        %v5653 = vld [vmem:[%s1143 + $0x10] sm:$0xff]
        %v5654 = vld [vmem:[%s1143 + $0x18] sm:$0xff]
        %v5655 = vld [vmem:[%s1143 + $0x20] sm:$0xff]
        %v5656 = vld [vmem:[%s1143 + $0x28] sm:$0xff]
        %v5657 = vld [vmem:[%s1143 + $0x30] sm:$0xff]
        %v5658 = vld [vmem:[%s1143 + $0x38] sm:$0xff]
        %v5659 = vld [vmem:[%s1143 + $0x40] sm:$0xff]
        %v5660 = vld [vmem:[%s1143 + $0x48] sm:$0xff]
        %v5661 = vld [vmem:[%s1143 + $0x50] sm:$0xff]
        %v5662 = vld [vmem:[%s1143 + $0x58] sm:$0xff]
        %v5663 = vld [vmem:[%s1143 + $0x60] sm:$0xff]
        %v5664 = vld [vmem:[%s1143 + $0x68] sm:$0xff]
        %v5665 = vld [vmem:[%s1143 + $0x70] sm:$0xff]
        %v5666 = vld [vmem:[%s1143 + $0x78] sm:$0xff]
        %v5667 = vld [vmem:[%s1143 + $0x80] sm:$0xff]
        %v5668 = vld [vmem:[%s1143 + $0x88] sm:$0xff]
        %v5669 = vld [vmem:[%s1143 + $0x90] sm:$0xff]
        %v5670 = vld [vmem:[%s1143 + $0x98] sm:$0xff]
        %v5671 = vld [vmem:[%s1143 + $0xa0] sm:$0xff]
        %v5672 = vld [vmem:[%s1143 + $0xa8] sm:$0xff]
        %v5673 = vld [vmem:[%s1143 + $0xb0] sm:$0xff]
        %v5674 = vld [vmem:[%s1143 + $0xb8] sm:$0xff]
        %v5675 = vld [vmem:[%s1143 + $0xc0] sm:$0xff]
        %v5676 = vld [vmem:[%s1143 + $0xc8] sm:$0xff]
        %v5677 = vld [vmem:[%s1143 + $0xd0] sm:$0xff]
        %v5678 = vld [vmem:[%s1143 + $0xd8] sm:$0xff]
        %v5679 = vld [vmem:[%s1143 + $0xe0] sm:$0xff]
        %v5680 = vld [vmem:[%s1143 + $0xe8] sm:$0xff]
        %v5681 = vld [vmem:[%s1143 + $0xf0] sm:$0xff]
        %v5682 = vld [vmem:[%s1143 + $0xf8] sm:$0xff]
        %v5683 = vld [vmem:[%s1152] sm:$0x3]
        %v5685 = vlaneseq
        %v5686 = vshrl.u32 %v5685, 7
        %v5687 = vsub.s32 0, %v5686
        %v5688 = vrot.slane %v5683, %v5687
        %v5689 = vlaneseq
        %v5690 = vshrl.u32 %v5689, 7
        %v5691 = vsub.s32 1, %v5690
        %v5692 = vrot.slane %v5683, %v5691
        %v5727 = vunpack.c.l.b16 %v5651
        %v5728 = vunpack.c.h.b16 %v5651
        %v5729 = vunpack.c.l.b16 %v5652
        %v5730 = vunpack.c.h.b16 %v5652
        %v5731 = vunpack.c.l.b16 %v5653
        %v5732 = vunpack.c.h.b16 %v5653
        %v5733 = vunpack.c.l.b16 %v5654
        %v5734 = vunpack.c.h.b16 %v5654
        %v5735 = vunpack.c.l.b16 %v5655
        %v5736 = vunpack.c.h.b16 %v5655
        %v5737 = vunpack.c.l.b16 %v5656
        %v5738 = vunpack.c.h.b16 %v5656
        %v5739 = vunpack.c.l.b16 %v5657
        %v5740 = vunpack.c.h.b16 %v5657
        %v5741 = vunpack.c.l.b16 %v5658
        %v5742 = vunpack.c.h.b16 %v5658
        %v5743 = vunpack.c.l.b16 %v5659
        %v5744 = vunpack.c.h.b16 %v5659
        %v5745 = vunpack.c.l.b16 %v5660
        %v5746 = vunpack.c.h.b16 %v5660
        %v5747 = vunpack.c.l.b16 %v5661
        %v5748 = vunpack.c.h.b16 %v5661
        %v5749 = vunpack.c.l.b16 %v5662
        %v5750 = vunpack.c.h.b16 %v5662
        %v5751 = vunpack.c.l.b16 %v5663
        %v5752 = vunpack.c.h.b16 %v5663
        %v5753 = vunpack.c.l.b16 %v5664
        %v5754 = vunpack.c.h.b16 %v5664
        %v5755 = vunpack.c.l.b16 %v5665
        %v5756 = vunpack.c.h.b16 %v5665
        %v5757 = vunpack.c.l.b16 %v5666
        %v5758 = vunpack.c.h.b16 %v5666
        %v5759 = vunpack.c.l.b16 %v5667
        %v5760 = vunpack.c.h.b16 %v5667
        %v5761 = vunpack.c.l.b16 %v5668
        %v5762 = vunpack.c.h.b16 %v5668
        %v5763 = vunpack.c.l.b16 %v5669
        %v5764 = vunpack.c.h.b16 %v5669
        %v5765 = vunpack.c.l.b16 %v5670
        %v5766 = vunpack.c.h.b16 %v5670
        %v5767 = vunpack.c.l.b16 %v5671
        %v5768 = vunpack.c.h.b16 %v5671
        %v5769 = vunpack.c.l.b16 %v5672
        %v5770 = vunpack.c.h.b16 %v5672
        %v5771 = vunpack.c.l.b16 %v5673
        %v5772 = vunpack.c.h.b16 %v5673
        %v5773 = vunpack.c.l.b16 %v5674
        %v5774 = vunpack.c.h.b16 %v5674
        %v5775 = vunpack.c.l.b16 %v5675
        %v5776 = vunpack.c.h.b16 %v5675
        %v5777 = vunpack.c.l.b16 %v5676
        %v5778 = vunpack.c.h.b16 %v5676
        %v5779 = vunpack.c.l.b16 %v5677
        %v5780 = vunpack.c.h.b16 %v5677
        %v5781 = vunpack.c.l.b16 %v5678
        %v5782 = vunpack.c.h.b16 %v5678
        %v5783 = vunpack.c.l.b16 %v5679
        %v5784 = vunpack.c.h.b16 %v5679
        %v5785 = vunpack.c.l.b16 %v5680
        %v5786 = vunpack.c.h.b16 %v5680
        %v5787 = vunpack.c.l.b16 %v5681
        %v5788 = vunpack.c.h.b16 %v5681
        %v5789 = vunpack.c.l.b16 %v5682
        %v5790 = vunpack.c.h.b16 %v5682
        %v5791 = vpack.c.b16 %v5729, %v5727
        %v5792 = vpack.c.b16 %v5730, %v5728
        %v5793 = vpack.c.b16 %v5733, %v5731
        %v5794 = vpack.c.b16 %v5734, %v5732
        %v5795 = vpack.c.b16 %v5737, %v5735
        %v5796 = vpack.c.b16 %v5738, %v5736
        %v5797 = vpack.c.b16 %v5741, %v5739
        %v5798 = vpack.c.b16 %v5742, %v5740
        %v5799 = vpack.c.b16 %v5745, %v5743
        %v5800 = vpack.c.b16 %v5746, %v5744
        %v5801 = vpack.c.b16 %v5749, %v5747
        %v5802 = vpack.c.b16 %v5750, %v5748
        %v5803 = vpack.c.b16 %v5753, %v5751
        %v5804 = vpack.c.b16 %v5754, %v5752
        %v5805 = vpack.c.b16 %v5757, %v5755
        %v5806 = vpack.c.b16 %v5758, %v5756
        %v5807 = vpack.c.b16 %v5761, %v5759
        %v5808 = vpack.c.b16 %v5762, %v5760
        %v5809 = vpack.c.b16 %v5765, %v5763
        %v5810 = vpack.c.b16 %v5766, %v5764
        %v5811 = vpack.c.b16 %v5769, %v5767
        %v5812 = vpack.c.b16 %v5770, %v5768
        %v5813 = vpack.c.b16 %v5773, %v5771
        %v5814 = vpack.c.b16 %v5774, %v5772
        %v5815 = vpack.c.b16 %v5777, %v5775
        %v5816 = vpack.c.b16 %v5778, %v5776
        %v5817 = vpack.c.b16 %v5781, %v5779
        %v5818 = vpack.c.b16 %v5782, %v5780
        %v5819 = vpack.c.b16 %v5785, %v5783
        %v5820 = vpack.c.b16 %v5786, %v5784
        %v5821 = vpack.c.b16 %v5789, %v5787
        %v5822 = vpack.c.b16 %v5790, %v5788
        %5855 = vmatprep.subr.bf16.mxu0 %v5792
        %5856 = vmatpush1.bf16.msra.mxu0 %v5791
        %5857 = vmatprep.subr.bf16.mxu0 %v5794
        %5858 = vmatpush1.bf16.msra.mxu0 %v5793
        %5859 = vmatprep.subr.bf16.mxu0 %v5796
        %5860 = vmatpush1.bf16.msra.mxu0 %v5795
        %5861 = vmatprep.subr.bf16.mxu0 %v5798
        %5862 = vmatpush1.bf16.msra.mxu0 %v5797
        %5863 = vmatprep.subr.bf16.mxu0 %v5800
        %5864 = vmatpush1.bf16.msra.mxu0 %v5799
        %5865 = vmatprep.subr.bf16.mxu0 %v5802
        %5866 = vmatpush1.bf16.msra.mxu0 %v5801
        %5867 = vmatprep.subr.bf16.mxu0 %v5804
        %5868 = vmatpush1.bf16.msra.mxu0 %v5803
        %5869 = vmatprep.subr.bf16.mxu0 %v5806
        %5870 = vmatpush1.bf16.msra.mxu0 %v5805
        %5871 = vmatprep.subr.bf16.mxu0 %v5808
        %5872 = vmatpush1.bf16.msra.mxu0 %v5807
        %5873 = vmatprep.subr.bf16.mxu0 %v5810
        %5874 = vmatpush1.bf16.msra.mxu0 %v5809
        %5875 = vmatprep.subr.bf16.mxu0 %v5812
        %5876 = vmatpush1.bf16.msra.mxu0 %v5811
        %5877 = vmatprep.subr.bf16.mxu0 %v5814
        %5878 = vmatpush1.bf16.msra.mxu0 %v5813
        %5879 = vmatprep.subr.bf16.mxu0 %v5816
        %5880 = vmatpush1.bf16.msra.mxu0 %v5815
        %5881 = vmatprep.subr.bf16.mxu0 %v5818
        %5882 = vmatpush1.bf16.msra.mxu0 %v5817
        %5883 = vmatprep.subr.bf16.mxu0 %v5820
        %5884 = vmatpush1.bf16.msra.mxu0 %v5819
        %5885 = vmatprep.subr.bf16.mxu0 %v5822
        %5886 = vmatpush1.bf16.msra.mxu0 %v5821
        %5887 = vmatprep.mubr.bf16.mxu0 %v5648
        %5888 = vmatmul.mubr.bf16.gmra.mrb[0].mxu0 %v5647
        %v5889 = vpop.f32.mrb[0].mxu0
        %v5890 = vadd.f32 %v5688, %v5889
        %v5891 = vpop.f32.mrb[0].mxu0
        %v5892 = vadd.f32 %v5692, %v5891
        %v5893 = vpop.f32.mrb[0].mxu0
        %v5894 = vadd.f32 %v5688, %v5893
        %v5895 = vpop.f32.mrb[0].mxu0
        %v5896 = vadd.f32 %v5692, %v5895
        %5897 = vmatprep.mubr.bf16.mxu0 %v5650
        %5898 = vmatmul.mubr.bf16.gmra.mrb[0].mxu0 %v5649
        %v5899 = vpop.f32.mrb[0].mxu0
        %v5900 = vadd.f32 %v5688, %v5899
        %v5901 = vpop.f32.mrb[0].mxu0
        %v5902 = vadd.f32 %v5692, %v5901
        %v5903 = vpop.f32.mrb[0].mxu0
        %v5904 = vadd.f32 %v5688, %v5903
        %v5905 = vpop.f32.mrb[0].mxu0
        %v5906 = vadd.f32 %v5692, %v5905
        %5907 = vdwg.mxu0
        %v5908 = vadd.f32 %v4415, %v5890
        %v5909 = vadd.f32 %v4416, %v5892
        %v5910 = vadd.f32 %v4417, %v5894
        %v5911 = vadd.f32 %v4418, %v5896
        %v5912 = vadd.f32 %v4419, %v5900
        %v5913 = vadd.f32 %v4420, %v5902
        %v5914 = vadd.f32 %v4421, %v5904
        %v5915 = vadd.f32 %v4422, %v5906
        %v5916 = vld [vmem:[%s1161] sm:$0x3]
        %v5917 = vld [vmem:[%s1170] sm:$0x3]
        %v5918 = vadd.f32 %v5908, %v5909
        %5919 = vadd.xlane.f32.xlu0 %v5918
        %v5920 = vpop.xlane.xlu0 %5919
        %v5921 = vadd.f32 %v5910, %v5911
        %5922 = vadd.xlane.f32.xlu0 %v5921
        %v5923 = vpop.xlane.xlu0 %5922
        %v5924 = vadd.f32 %v5912, %v5913
        %5925 = vadd.xlane.f32.xlu0 %v5924
        %v5926 = vpop.xlane.xlu0 %5925
        %v5927 = vadd.f32 %v5914, %v5915
        %5928 = vadd.xlane.f32.xlu0 %v5927
        %v5929 = vpop.xlane.xlu0 %5928
        %v5930 = vrcp.pop 256.0
        %v5931 = vmul.f32 %v5920, %v5930
        %v5932 = vmul.f32 %v5923, %v5930
        %v5933 = vmul.f32 %v5926, %v5930
        %v5934 = vmul.f32 %v5929, %v5930
        %v5935 = vsub.f32 %v5908, %v5931
        %v5936 = vsub.f32 %v5909, %v5931
        %v5937 = vsub.f32 %v5910, %v5932
        %v5938 = vsub.f32 %v5911, %v5932
        %v5939 = vsub.f32 %v5912, %v5933
        %v5940 = vsub.f32 %v5913, %v5933
        %v5941 = vsub.f32 %v5914, %v5934
        %v5942 = vsub.f32 %v5915, %v5934
        %v5943 = vmul.f32 %v5935, %v5935
        %v5944 = vmul.f32 %v5936, %v5936
        %v5945 = vmul.f32 %v5937, %v5937
        %v5946 = vmul.f32 %v5938, %v5938
        %v5947 = vmul.f32 %v5939, %v5939
        %v5948 = vmul.f32 %v5940, %v5940
        %v5949 = vmul.f32 %v5941, %v5941
        %v5950 = vmul.f32 %v5942, %v5942
        %v5951 = vadd.f32 %v5943, %v5944
        %5952 = vadd.xlane.f32.xlu0 %v5951
        %v5953 = vpop.xlane.xlu0 %5952
        %v5954 = vadd.f32 %v5945, %v5946
        %5955 = vadd.xlane.f32.xlu0 %v5954
        %v5956 = vpop.xlane.xlu0 %5955
        %v5957 = vadd.f32 %v5947, %v5948
        %5958 = vadd.xlane.f32.xlu0 %v5957
        %v5959 = vpop.xlane.xlu0 %5958
        %v5960 = vadd.f32 %v5949, %v5950
        %5961 = vadd.xlane.f32.xlu0 %v5960
        %v5962 = vpop.xlane.xlu0 %5961
        %v5963 = vmul.f32 %v5953, %v5930
        %v5964 = vmul.f32 %v5956, %v5930
        %v5965 = vmul.f32 %v5959, %v5930
        %v5966 = vmul.f32 %v5962, %v5930
        %v5967 = vadd.f32 %v5963, 1e-05
        %v5968 = vadd.f32 %v5964, 1e-05
        %v5969 = vadd.f32 %v5965, 1e-05
        %v5970 = vadd.f32 %v5966, 1e-05
        %v5971 = vrsqrt.pop %v5967
        %v5972 = vrsqrt.pop %v5968
        %v5973 = vrsqrt.pop %v5969
        %v5974 = vrsqrt.pop %v5970
        %v5975 = vmul.f32 %v5935, %v5971
        %v5976 = vmul.f32 %v5936, %v5971
        %v5977 = vmul.f32 %v5937, %v5972
        %v5978 = vmul.f32 %v5938, %v5972
        %v5979 = vmul.f32 %v5939, %v5973
        %v5980 = vmul.f32 %v5940, %v5973
        %v5981 = vmul.f32 %v5941, %v5974
        %v5982 = vmul.f32 %v5942, %v5974
        %v5984 = vlaneseq
        %v5985 = vshrl.u32 %v5984, 7
        %v5986 = vsub.s32 0, %v5985
        %v5987 = vrot.slane %v5916, %v5986
        %v5988 = vlaneseq
        %v5989 = vshrl.u32 %v5988, 7
        %v5990 = vsub.s32 1, %v5989
        %v5991 = vrot.slane %v5916, %v5990
        %v5994 = vmul.f32 %v5975, %v5987
        %v5995 = vmul.f32 %v5976, %v5991
        %v5996 = vmul.f32 %v5977, %v5987
        %v5997 = vmul.f32 %v5978, %v5991
        %v5998 = vmul.f32 %v5979, %v5987
        %v5999 = vmul.f32 %v5980, %v5991
        %v6000 = vmul.f32 %v5981, %v5987
        %v6001 = vmul.f32 %v5982, %v5991
        %v6003 = vlaneseq
        %v6004 = vshrl.u32 %v6003, 7
        %v6005 = vsub.s32 0, %v6004
        %v6006 = vrot.slane %v5917, %v6005
        %v6007 = vlaneseq
        %v6008 = vshrl.u32 %v6007, 7
        %v6009 = vsub.s32 1, %v6008
        %v6010 = vrot.slane %v5917, %v6009
        %v6013 = vadd.f32 %v5994, %v6006
        %v6014 = vadd.f32 %v5995, %v6010
        %v6015 = vadd.f32 %v5996, %v6006
        %v6016 = vadd.f32 %v5997, %v6010
        %v6017 = vadd.f32 %v5998, %v6006
        %v6018 = vadd.f32 %v5999, %v6010
        %v6019 = vadd.f32 %v6000, %v6006
        %v6020 = vadd.f32 %v6001, %v6010
        %v6021 = vpack.c.bf16 %v6015, %v6013
        %v6022 = vpack.c.bf16 %v6016, %v6014
        %v6023 = vpack.c.bf16 %v6019, %v6017
        %v6024 = vpack.c.bf16 %v6020, %v6018
        %v6025 = vld [vmem:[%s1179] sm:$0xff]
        %v6026 = vld [vmem:[%s1179 + $0x8] sm:$0xff]
        %v6027 = vld [vmem:[%s1179 + $0x10] sm:$0xff]
        %v6028 = vld [vmem:[%s1179 + $0x18] sm:$0xff]
        %v6029 = vld [vmem:[%s1179 + $0x20] sm:$0xff]
        %v6030 = vld [vmem:[%s1179 + $0x28] sm:$0xff]
        %v6031 = vld [vmem:[%s1179 + $0x30] sm:$0xff]
        %v6032 = vld [vmem:[%s1179 + $0x38] sm:$0xff]
        %v6033 = vld [vmem:[%s1179 + $0x40] sm:$0xff]
        %v6034 = vld [vmem:[%s1179 + $0x48] sm:$0xff]
        %v6035 = vld [vmem:[%s1179 + $0x50] sm:$0xff]
        %v6036 = vld [vmem:[%s1179 + $0x58] sm:$0xff]
        %v6037 = vld [vmem:[%s1179 + $0x60] sm:$0xff]
        %v6038 = vld [vmem:[%s1179 + $0x68] sm:$0xff]
        %v6039 = vld [vmem:[%s1179 + $0x70] sm:$0xff]
        %v6040 = vld [vmem:[%s1179 + $0x78] sm:$0xff]
        %v6041 = vld [vmem:[%s1179 + $0x80] sm:$0xff]
        %v6042 = vld [vmem:[%s1179 + $0x88] sm:$0xff]
        %v6043 = vld [vmem:[%s1179 + $0x90] sm:$0xff]
        %v6044 = vld [vmem:[%s1179 + $0x98] sm:$0xff]
        %v6045 = vld [vmem:[%s1179 + $0xa0] sm:$0xff]
        %v6046 = vld [vmem:[%s1179 + $0xa8] sm:$0xff]
        %v6047 = vld [vmem:[%s1179 + $0xb0] sm:$0xff]
        %v6048 = vld [vmem:[%s1179 + $0xb8] sm:$0xff]
        %v6049 = vld [vmem:[%s1179 + $0xc0] sm:$0xff]
        %v6050 = vld [vmem:[%s1179 + $0xc8] sm:$0xff]
        %v6051 = vld [vmem:[%s1179 + $0xd0] sm:$0xff]
        %v6052 = vld [vmem:[%s1179 + $0xd8] sm:$0xff]
        %v6053 = vld [vmem:[%s1179 + $0xe0] sm:$0xff]
        %v6054 = vld [vmem:[%s1179 + $0xe8] sm:$0xff]
        %v6055 = vld [vmem:[%s1179 + $0xf0] sm:$0xff]
        %v6056 = vld [vmem:[%s1179 + $0xf8] sm:$0xff]
        %v6057 = vld [vmem:[%s1179 + $0x100] sm:$0xff]
        %v6058 = vld [vmem:[%s1179 + $0x108] sm:$0xff]
        %v6059 = vld [vmem:[%s1179 + $0x110] sm:$0xff]
        %v6060 = vld [vmem:[%s1179 + $0x118] sm:$0xff]
        %v6061 = vld [vmem:[%s1179 + $0x120] sm:$0xff]
        %v6062 = vld [vmem:[%s1179 + $0x128] sm:$0xff]
        %v6063 = vld [vmem:[%s1179 + $0x130] sm:$0xff]
        %v6064 = vld [vmem:[%s1179 + $0x138] sm:$0xff]
        %v6065 = vld [vmem:[%s1179 + $0x140] sm:$0xff]
        %v6066 = vld [vmem:[%s1179 + $0x148] sm:$0xff]
        %v6067 = vld [vmem:[%s1179 + $0x150] sm:$0xff]
        %v6068 = vld [vmem:[%s1179 + $0x158] sm:$0xff]
        %v6069 = vld [vmem:[%s1179 + $0x160] sm:$0xff]
        %v6070 = vld [vmem:[%s1179 + $0x168] sm:$0xff]
        %v6071 = vld [vmem:[%s1179 + $0x170] sm:$0xff]
        %v6072 = vld [vmem:[%s1179 + $0x178] sm:$0xff]
        %v6073 = vld [vmem:[%s1179 + $0x180] sm:$0xff]
        %v6074 = vld [vmem:[%s1179 + $0x188] sm:$0xff]
        %v6075 = vld [vmem:[%s1179 + $0x190] sm:$0xff]
        %v6076 = vld [vmem:[%s1179 + $0x198] sm:$0xff]
        %v6077 = vld [vmem:[%s1179 + $0x1a0] sm:$0xff]
        %v6078 = vld [vmem:[%s1179 + $0x1a8] sm:$0xff]
        %v6079 = vld [vmem:[%s1179 + $0x1b0] sm:$0xff]
        %v6080 = vld [vmem:[%s1179 + $0x1b8] sm:$0xff]
        %v6081 = vld [vmem:[%s1179 + $0x1c0] sm:$0xff]
        %v6082 = vld [vmem:[%s1179 + $0x1c8] sm:$0xff]
        %v6083 = vld [vmem:[%s1179 + $0x1d0] sm:$0xff]
        %v6084 = vld [vmem:[%s1179 + $0x1d8] sm:$0xff]
        %v6085 = vld [vmem:[%s1179 + $0x1e0] sm:$0xff]
        %v6086 = vld [vmem:[%s1179 + $0x1e8] sm:$0xff]
        %v6087 = vld [vmem:[%s1179 + $0x1f0] sm:$0xff]
        %v6088 = vld [vmem:[%s1179 + $0x1f8] sm:$0xff]
        %v6089 = vld [vmem:[%s1188] sm:$0xf]
        %v6091 = vlaneseq
        %v6092 = vshrl.u32 %v6091, 7
        %v6093 = vsub.s32 0, %v6092
        %v6094 = vrot.slane %v6089, %v6093
        %v6095 = vlaneseq
        %v6096 = vshrl.u32 %v6095, 7
        %v6097 = vsub.s32 1, %v6096
        %v6098 = vrot.slane %v6089, %v6097
        %v6099 = vlaneseq
        %v6100 = vshrl.u32 %v6099, 7
        %v6101 = vsub.s32 2, %v6100
        %v6102 = vrot.slane %v6089, %v6101
        %v6103 = vlaneseq
        %v6104 = vshrl.u32 %v6103, 7
        %v6105 = vsub.s32 3, %v6104
        %v6106 = vrot.slane %v6089, %v6105
        %v6175 = vunpack.c.l.b16 %v6025
        %v6176 = vunpack.c.h.b16 %v6025
        %v6177 = vunpack.c.l.b16 %v6026
        %v6178 = vunpack.c.h.b16 %v6026
        %v6179 = vunpack.c.l.b16 %v6027
        %v6180 = vunpack.c.h.b16 %v6027
        %v6181 = vunpack.c.l.b16 %v6028
        %v6182 = vunpack.c.h.b16 %v6028
        %v6183 = vunpack.c.l.b16 %v6029
        %v6184 = vunpack.c.h.b16 %v6029
        %v6185 = vunpack.c.l.b16 %v6030
        %v6186 = vunpack.c.h.b16 %v6030
        %v6187 = vunpack.c.l.b16 %v6031
        %v6188 = vunpack.c.h.b16 %v6031
        %v6189 = vunpack.c.l.b16 %v6032
        %v6190 = vunpack.c.h.b16 %v6032
        %v6191 = vunpack.c.l.b16 %v6033
        %v6192 = vunpack.c.h.b16 %v6033
        %v6193 = vunpack.c.l.b16 %v6034
        %v6194 = vunpack.c.h.b16 %v6034
        %v6195 = vunpack.c.l.b16 %v6035
        %v6196 = vunpack.c.h.b16 %v6035
        %v6197 = vunpack.c.l.b16 %v6036
        %v6198 = vunpack.c.h.b16 %v6036
        %v6199 = vunpack.c.l.b16 %v6037
        %v6200 = vunpack.c.h.b16 %v6037
        %v6201 = vunpack.c.l.b16 %v6038
        %v6202 = vunpack.c.h.b16 %v6038
        %v6203 = vunpack.c.l.b16 %v6039
        %v6204 = vunpack.c.h.b16 %v6039
        %v6205 = vunpack.c.l.b16 %v6040
        %v6206 = vunpack.c.h.b16 %v6040
        %v6207 = vunpack.c.l.b16 %v6041
        %v6208 = vunpack.c.h.b16 %v6041
        %v6209 = vunpack.c.l.b16 %v6042
        %v6210 = vunpack.c.h.b16 %v6042
        %v6211 = vunpack.c.l.b16 %v6043
        %v6212 = vunpack.c.h.b16 %v6043
        %v6213 = vunpack.c.l.b16 %v6044
        %v6214 = vunpack.c.h.b16 %v6044
        %v6215 = vunpack.c.l.b16 %v6045
        %v6216 = vunpack.c.h.b16 %v6045
        %v6217 = vunpack.c.l.b16 %v6046
        %v6218 = vunpack.c.h.b16 %v6046
        %v6219 = vunpack.c.l.b16 %v6047
        %v6220 = vunpack.c.h.b16 %v6047
        %v6221 = vunpack.c.l.b16 %v6048
        %v6222 = vunpack.c.h.b16 %v6048
        %v6223 = vunpack.c.l.b16 %v6049
        %v6224 = vunpack.c.h.b16 %v6049
        %v6225 = vunpack.c.l.b16 %v6050
        %v6226 = vunpack.c.h.b16 %v6050
        %v6227 = vunpack.c.l.b16 %v6051
        %v6228 = vunpack.c.h.b16 %v6051
        %v6229 = vunpack.c.l.b16 %v6052
        %v6230 = vunpack.c.h.b16 %v6052
        %v6231 = vunpack.c.l.b16 %v6053
        %v6232 = vunpack.c.h.b16 %v6053
        %v6233 = vunpack.c.l.b16 %v6054
        %v6234 = vunpack.c.h.b16 %v6054
        %v6235 = vunpack.c.l.b16 %v6055
        %v6236 = vunpack.c.h.b16 %v6055
        %v6237 = vunpack.c.l.b16 %v6056
        %v6238 = vunpack.c.h.b16 %v6056
        %v6239 = vunpack.c.l.b16 %v6057
        %v6240 = vunpack.c.h.b16 %v6057
        %v6241 = vunpack.c.l.b16 %v6058
        %v6242 = vunpack.c.h.b16 %v6058
        %v6243 = vunpack.c.l.b16 %v6059
        %v6244 = vunpack.c.h.b16 %v6059
        %v6245 = vunpack.c.l.b16 %v6060
        %v6246 = vunpack.c.h.b16 %v6060
        %v6247 = vunpack.c.l.b16 %v6061
        %v6248 = vunpack.c.h.b16 %v6061
        %v6249 = vunpack.c.l.b16 %v6062
        %v6250 = vunpack.c.h.b16 %v6062
        %v6251 = vunpack.c.l.b16 %v6063
        %v6252 = vunpack.c.h.b16 %v6063
        %v6253 = vunpack.c.l.b16 %v6064
        %v6254 = vunpack.c.h.b16 %v6064
        %v6255 = vunpack.c.l.b16 %v6065
        %v6256 = vunpack.c.h.b16 %v6065
        %v6257 = vunpack.c.l.b16 %v6066
        %v6258 = vunpack.c.h.b16 %v6066
        %v6259 = vunpack.c.l.b16 %v6067
        %v6260 = vunpack.c.h.b16 %v6067
        %v6261 = vunpack.c.l.b16 %v6068
        %v6262 = vunpack.c.h.b16 %v6068
        %v6263 = vunpack.c.l.b16 %v6069
        %v6264 = vunpack.c.h.b16 %v6069
        %v6265 = vunpack.c.l.b16 %v6070
        %v6266 = vunpack.c.h.b16 %v6070
        %v6267 = vunpack.c.l.b16 %v6071
        %v6268 = vunpack.c.h.b16 %v6071
        %v6269 = vunpack.c.l.b16 %v6072
        %v6270 = vunpack.c.h.b16 %v6072
        %v6271 = vunpack.c.l.b16 %v6073
        %v6272 = vunpack.c.h.b16 %v6073
        %v6273 = vunpack.c.l.b16 %v6074
        %v6274 = vunpack.c.h.b16 %v6074
        %v6275 = vunpack.c.l.b16 %v6075
        %v6276 = vunpack.c.h.b16 %v6075
        %v6277 = vunpack.c.l.b16 %v6076
        %v6278 = vunpack.c.h.b16 %v6076
        %v6279 = vunpack.c.l.b16 %v6077
        %v6280 = vunpack.c.h.b16 %v6077
        %v6281 = vunpack.c.l.b16 %v6078
        %v6282 = vunpack.c.h.b16 %v6078
        %v6283 = vunpack.c.l.b16 %v6079
        %v6284 = vunpack.c.h.b16 %v6079
        %v6285 = vunpack.c.l.b16 %v6080
        %v6286 = vunpack.c.h.b16 %v6080
        %v6287 = vunpack.c.l.b16 %v6081
        %v6288 = vunpack.c.h.b16 %v6081
        %v6289 = vunpack.c.l.b16 %v6082
        %v6290 = vunpack.c.h.b16 %v6082
        %v6291 = vunpack.c.l.b16 %v6083
        %v6292 = vunpack.c.h.b16 %v6083
        %v6293 = vunpack.c.l.b16 %v6084
        %v6294 = vunpack.c.h.b16 %v6084
        %v6295 = vunpack.c.l.b16 %v6085
        %v6296 = vunpack.c.h.b16 %v6085
        %v6297 = vunpack.c.l.b16 %v6086
        %v6298 = vunpack.c.h.b16 %v6086
        %v6299 = vunpack.c.l.b16 %v6087
        %v6300 = vunpack.c.h.b16 %v6087
        %v6301 = vunpack.c.l.b16 %v6088
        %v6302 = vunpack.c.h.b16 %v6088
        %v6303 = vpack.c.b16 %v6179, %v6175
        %v6304 = vpack.c.b16 %v6180, %v6176
        %v6305 = vpack.c.b16 %v6181, %v6177
        %v6306 = vpack.c.b16 %v6182, %v6178
        %v6307 = vpack.c.b16 %v6187, %v6183
        %v6308 = vpack.c.b16 %v6188, %v6184
        %v6309 = vpack.c.b16 %v6189, %v6185
        %v6310 = vpack.c.b16 %v6190, %v6186
        %v6311 = vpack.c.b16 %v6195, %v6191
        %v6312 = vpack.c.b16 %v6196, %v6192
        %v6313 = vpack.c.b16 %v6197, %v6193
        %v6314 = vpack.c.b16 %v6198, %v6194
        %v6315 = vpack.c.b16 %v6203, %v6199
        %v6316 = vpack.c.b16 %v6204, %v6200
        %v6317 = vpack.c.b16 %v6205, %v6201
        %v6318 = vpack.c.b16 %v6206, %v6202
        %v6319 = vpack.c.b16 %v6211, %v6207
        %v6320 = vpack.c.b16 %v6212, %v6208
        %v6321 = vpack.c.b16 %v6213, %v6209
        %v6322 = vpack.c.b16 %v6214, %v6210
        %v6323 = vpack.c.b16 %v6219, %v6215
        %v6324 = vpack.c.b16 %v6220, %v6216
        %v6325 = vpack.c.b16 %v6221, %v6217
        %v6326 = vpack.c.b16 %v6222, %v6218
        %v6327 = vpack.c.b16 %v6227, %v6223
        %v6328 = vpack.c.b16 %v6228, %v6224
        %v6329 = vpack.c.b16 %v6229, %v6225
        %v6330 = vpack.c.b16 %v6230, %v6226
        %v6331 = vpack.c.b16 %v6235, %v6231
        %v6332 = vpack.c.b16 %v6236, %v6232
        %v6333 = vpack.c.b16 %v6237, %v6233
        %v6334 = vpack.c.b16 %v6238, %v6234
        %v6335 = vpack.c.b16 %v6243, %v6239
        %v6336 = vpack.c.b16 %v6244, %v6240
        %v6337 = vpack.c.b16 %v6245, %v6241
        %v6338 = vpack.c.b16 %v6246, %v6242
        %v6339 = vpack.c.b16 %v6251, %v6247
        %v6340 = vpack.c.b16 %v6252, %v6248
        %v6341 = vpack.c.b16 %v6253, %v6249
        %v6342 = vpack.c.b16 %v6254, %v6250
        %v6343 = vpack.c.b16 %v6259, %v6255
        %v6344 = vpack.c.b16 %v6260, %v6256
        %v6345 = vpack.c.b16 %v6261, %v6257
        %v6346 = vpack.c.b16 %v6262, %v6258
        %v6347 = vpack.c.b16 %v6267, %v6263
        %v6348 = vpack.c.b16 %v6268, %v6264
        %v6349 = vpack.c.b16 %v6269, %v6265
        %v6350 = vpack.c.b16 %v6270, %v6266
        %v6351 = vpack.c.b16 %v6275, %v6271
        %v6352 = vpack.c.b16 %v6276, %v6272
        %v6353 = vpack.c.b16 %v6277, %v6273
        %v6354 = vpack.c.b16 %v6278, %v6274
        %v6355 = vpack.c.b16 %v6283, %v6279
        %v6356 = vpack.c.b16 %v6284, %v6280
        %v6357 = vpack.c.b16 %v6285, %v6281
        %v6358 = vpack.c.b16 %v6286, %v6282
        %v6359 = vpack.c.b16 %v6291, %v6287
        %v6360 = vpack.c.b16 %v6292, %v6288
        %v6361 = vpack.c.b16 %v6293, %v6289
        %v6362 = vpack.c.b16 %v6294, %v6290
        %v6363 = vpack.c.b16 %v6299, %v6295
        %v6364 = vpack.c.b16 %v6300, %v6296
        %v6365 = vpack.c.b16 %v6301, %v6297
        %v6366 = vpack.c.b16 %v6302, %v6298
        %6431 = vmatprep.subr.bf16.mxu0 %v6304
        %6432 = vmatpush1.bf16.msra.mxu0 %v6303
        %6433 = vmatprep.subr.bf16.mxu0 %v6308
        %6434 = vmatpush1.bf16.msra.mxu0 %v6307
        %6435 = vmatprep.subr.bf16.mxu0 %v6312
        %6436 = vmatpush1.bf16.msra.mxu0 %v6311
        %6437 = vmatprep.subr.bf16.mxu0 %v6316
        %6438 = vmatpush1.bf16.msra.mxu0 %v6315
        %6439 = vmatprep.subr.bf16.mxu0 %v6320
        %6440 = vmatpush1.bf16.msra.mxu0 %v6319
        %6441 = vmatprep.subr.bf16.mxu0 %v6324
        %6442 = vmatpush1.bf16.msra.mxu0 %v6323
        %6443 = vmatprep.subr.bf16.mxu0 %v6328
        %6444 = vmatpush1.bf16.msra.mxu0 %v6327
        %6445 = vmatprep.subr.bf16.mxu0 %v6332
        %6446 = vmatpush1.bf16.msra.mxu0 %v6331
        %6447 = vmatprep.subr.bf16.mxu0 %v6336
        %6448 = vmatpush1.bf16.msra.mxu0 %v6335
        %6449 = vmatprep.subr.bf16.mxu0 %v6340
        %6450 = vmatpush1.bf16.msra.mxu0 %v6339
        %6451 = vmatprep.subr.bf16.mxu0 %v6344
        %6452 = vmatpush1.bf16.msra.mxu0 %v6343
        %6453 = vmatprep.subr.bf16.mxu0 %v6348
        %6454 = vmatpush1.bf16.msra.mxu0 %v6347
        %6455 = vmatprep.subr.bf16.mxu0 %v6352
        %6456 = vmatpush1.bf16.msra.mxu0 %v6351
        %6457 = vmatprep.subr.bf16.mxu0 %v6356
        %6458 = vmatpush1.bf16.msra.mxu0 %v6355
        %6459 = vmatprep.subr.bf16.mxu0 %v6360
        %6460 = vmatpush1.bf16.msra.mxu0 %v6359
        %6461 = vmatprep.subr.bf16.mxu0 %v6364
        %6462 = vmatpush1.bf16.msra.mxu0 %v6363
        %6463 = vmatprep.mubr.bf16.mxu0 %v6022
        %6464 = vmatmul.mubr.bf16.gmra.mrb[0].mxu0 %v6021
        %v6465 = vpop.f32.mrb[0].mxu0
        %v6466 = vadd.f32 %v6094, %v6465
        %v6467 = vpop.f32.mrb[0].mxu0
        %v6468 = vadd.f32 %v6098, %v6467
        %v6469 = vpop.f32.mrb[0].mxu0
        %v6470 = vadd.f32 %v6094, %v6469
        %v6471 = vpop.f32.mrb[0].mxu0
        %v6472 = vadd.f32 %v6098, %v6471
        %6473 = vmatprep.mubr.bf16.mxu0 %v6024
        %6474 = vmatmul.mubr.bf16.gmra.mrb[0].mxu0 %v6023
        %v6475 = vpop.f32.mrb[0].mxu0
        %v6476 = vadd.f32 %v6094, %v6475
        %v6477 = vpop.f32.mrb[0].mxu0
        %v6478 = vadd.f32 %v6098, %v6477
        %v6479 = vpop.f32.mrb[0].mxu0
        %v6480 = vadd.f32 %v6094, %v6479
        %v6481 = vpop.f32.mrb[0].mxu0
        %v6482 = vadd.f32 %v6098, %v6481
        %6483 = vdwg.mxu0
        %6484 = vmatprep.subr.bf16.mxu0 %v6306
        %6485 = vmatpush1.bf16.msra.mxu0 %v6305
        %6486 = vmatprep.subr.bf16.mxu0 %v6310
        %6487 = vmatpush1.bf16.msra.mxu0 %v6309
        %6488 = vmatprep.subr.bf16.mxu0 %v6314
        %6489 = vmatpush1.bf16.msra.mxu0 %v6313
        %6490 = vmatprep.subr.bf16.mxu0 %v6318
        %6491 = vmatpush1.bf16.msra.mxu0 %v6317
        %6492 = vmatprep.subr.bf16.mxu0 %v6322
        %6493 = vmatpush1.bf16.msra.mxu0 %v6321
        %6494 = vmatprep.subr.bf16.mxu0 %v6326
        %6495 = vmatpush1.bf16.msra.mxu0 %v6325
        %6496 = vmatprep.subr.bf16.mxu0 %v6330
        %6497 = vmatpush1.bf16.msra.mxu0 %v6329
        %6498 = vmatprep.subr.bf16.mxu0 %v6334
        %6499 = vmatpush1.bf16.msra.mxu0 %v6333
        %6500 = vmatprep.subr.bf16.mxu0 %v6338
        %6501 = vmatpush1.bf16.msra.mxu0 %v6337
        %6502 = vmatprep.subr.bf16.mxu0 %v6342
        %6503 = vmatpush1.bf16.msra.mxu0 %v6341
        %6504 = vmatprep.subr.bf16.mxu0 %v6346
        %6505 = vmatpush1.bf16.msra.mxu0 %v6345
        %6506 = vmatprep.subr.bf16.mxu0 %v6350
        %6507 = vmatpush1.bf16.msra.mxu0 %v6349
        %6508 = vmatprep.subr.bf16.mxu0 %v6354
        %6509 = vmatpush1.bf16.msra.mxu0 %v6353
        %6510 = vmatprep.subr.bf16.mxu0 %v6358
        %6511 = vmatpush1.bf16.msra.mxu0 %v6357
        %6512 = vmatprep.subr.bf16.mxu0 %v6362
        %6513 = vmatpush1.bf16.msra.mxu0 %v6361
        %6514 = vmatprep.subr.bf16.mxu0 %v6366
        %6515 = vmatpush1.bf16.msra.mxu0 %v6365
        %6516 = vmatprep.mubr.bf16.mxu0 %v6022
        %6517 = vmatmul.mubr.bf16.gmra.mrb[0].mxu0 %v6021
        %v6518 = vpop.f32.mrb[0].mxu0
        %v6519 = vadd.f32 %v6102, %v6518
        %v6520 = vpop.f32.mrb[0].mxu0
        %v6521 = vadd.f32 %v6106, %v6520
        %v6522 = vpop.f32.mrb[0].mxu0
        %v6523 = vadd.f32 %v6102, %v6522
        %v6524 = vpop.f32.mrb[0].mxu0
        %v6525 = vadd.f32 %v6106, %v6524
        %6526 = vmatprep.mubr.bf16.mxu0 %v6024
        %6527 = vmatmul.mubr.bf16.gmra.mrb[0].mxu0 %v6023
        %v6528 = vpop.f32.mrb[0].mxu0
        %v6529 = vadd.f32 %v6102, %v6528
        %v6530 = vpop.f32.mrb[0].mxu0
        %v6531 = vadd.f32 %v6106, %v6530
        %v6532 = vpop.f32.mrb[0].mxu0
        %v6533 = vadd.f32 %v6102, %v6532
        %v6534 = vpop.f32.mrb[0].mxu0
        %v6535 = vadd.f32 %v6106, %v6534
        %6536 = vdwg.mxu0
        %v6537 = vmax.f32 %v6466, 0.0
        %v6538 = vmax.f32 %v6468, 0.0
        %v6539 = vmax.f32 %v6519, 0.0
        %v6540 = vmax.f32 %v6521, 0.0
        %v6541 = vmax.f32 %v6470, 0.0
        %v6542 = vmax.f32 %v6472, 0.0
        %v6543 = vmax.f32 %v6523, 0.0
        %v6544 = vmax.f32 %v6525, 0.0
        %v6545 = vmax.f32 %v6476, 0.0
        %v6546 = vmax.f32 %v6478, 0.0
        %v6547 = vmax.f32 %v6529, 0.0
        %v6548 = vmax.f32 %v6531, 0.0
        %v6549 = vmax.f32 %v6480, 0.0
        %v6550 = vmax.f32 %v6482, 0.0
        %v6551 = vmax.f32 %v6533, 0.0
        %v6552 = vmax.f32 %v6535, 0.0
        %v6553 = vpack.c.bf16 %v6541, %v6537
        %v6554 = vpack.c.bf16 %v6542, %v6538
        %v6555 = vpack.c.bf16 %v6543, %v6539
        %v6556 = vpack.c.bf16 %v6544, %v6540
        %v6557 = vpack.c.bf16 %v6549, %v6545
        %v6558 = vpack.c.bf16 %v6550, %v6546
        %v6559 = vpack.c.bf16 %v6551, %v6547
        %v6560 = vpack.c.bf16 %v6552, %v6548
        %v6561 = vld [vmem:[%s1197] sm:$0xff]
        %v6562 = vld [vmem:[%s1197 + $0x8] sm:$0xff]
        %v6563 = vld [vmem:[%s1197 + $0x10] sm:$0xff]
        %v6564 = vld [vmem:[%s1197 + $0x18] sm:$0xff]
        %v6565 = vld [vmem:[%s1197 + $0x20] sm:$0xff]
        %v6566 = vld [vmem:[%s1197 + $0x28] sm:$0xff]
        %v6567 = vld [vmem:[%s1197 + $0x30] sm:$0xff]
        %v6568 = vld [vmem:[%s1197 + $0x38] sm:$0xff]
        %v6569 = vld [vmem:[%s1197 + $0x40] sm:$0xff]
        %v6570 = vld [vmem:[%s1197 + $0x48] sm:$0xff]
        %v6571 = vld [vmem:[%s1197 + $0x50] sm:$0xff]
        %v6572 = vld [vmem:[%s1197 + $0x58] sm:$0xff]
        %v6573 = vld [vmem:[%s1197 + $0x60] sm:$0xff]
        %v6574 = vld [vmem:[%s1197 + $0x68] sm:$0xff]
        %v6575 = vld [vmem:[%s1197 + $0x70] sm:$0xff]
        %v6576 = vld [vmem:[%s1197 + $0x78] sm:$0xff]
        %v6577 = vld [vmem:[%s1197 + $0x80] sm:$0xff]
        %v6578 = vld [vmem:[%s1197 + $0x88] sm:$0xff]
        %v6579 = vld [vmem:[%s1197 + $0x90] sm:$0xff]
        %v6580 = vld [vmem:[%s1197 + $0x98] sm:$0xff]
        %v6581 = vld [vmem:[%s1197 + $0xa0] sm:$0xff]
        %v6582 = vld [vmem:[%s1197 + $0xa8] sm:$0xff]
        %v6583 = vld [vmem:[%s1197 + $0xb0] sm:$0xff]
        %v6584 = vld [vmem:[%s1197 + $0xb8] sm:$0xff]
        %v6585 = vld [vmem:[%s1197 + $0xc0] sm:$0xff]
        %v6586 = vld [vmem:[%s1197 + $0xc8] sm:$0xff]
        %v6587 = vld [vmem:[%s1197 + $0xd0] sm:$0xff]
        %v6588 = vld [vmem:[%s1197 + $0xd8] sm:$0xff]
        %v6589 = vld [vmem:[%s1197 + $0xe0] sm:$0xff]
        %v6590 = vld [vmem:[%s1197 + $0xe8] sm:$0xff]
        %v6591 = vld [vmem:[%s1197 + $0xf0] sm:$0xff]
        %v6592 = vld [vmem:[%s1197 + $0xf8] sm:$0xff]
        %v6593 = vld [vmem:[%s1197 + $0x100] sm:$0xff]
        %v6594 = vld [vmem:[%s1197 + $0x108] sm:$0xff]
        %v6595 = vld [vmem:[%s1197 + $0x110] sm:$0xff]
        %v6596 = vld [vmem:[%s1197 + $0x118] sm:$0xff]
        %v6597 = vld [vmem:[%s1197 + $0x120] sm:$0xff]
        %v6598 = vld [vmem:[%s1197 + $0x128] sm:$0xff]
        %v6599 = vld [vmem:[%s1197 + $0x130] sm:$0xff]
        %v6600 = vld [vmem:[%s1197 + $0x138] sm:$0xff]
        %v6601 = vld [vmem:[%s1197 + $0x140] sm:$0xff]
        %v6602 = vld [vmem:[%s1197 + $0x148] sm:$0xff]
        %v6603 = vld [vmem:[%s1197 + $0x150] sm:$0xff]
        %v6604 = vld [vmem:[%s1197 + $0x158] sm:$0xff]
        %v6605 = vld [vmem:[%s1197 + $0x160] sm:$0xff]
        %v6606 = vld [vmem:[%s1197 + $0x168] sm:$0xff]
        %v6607 = vld [vmem:[%s1197 + $0x170] sm:$0xff]
        %v6608 = vld [vmem:[%s1197 + $0x178] sm:$0xff]
        %v6609 = vld [vmem:[%s1197 + $0x180] sm:$0xff]
        %v6610 = vld [vmem:[%s1197 + $0x188] sm:$0xff]
        %v6611 = vld [vmem:[%s1197 + $0x190] sm:$0xff]
        %v6612 = vld [vmem:[%s1197 + $0x198] sm:$0xff]
        %v6613 = vld [vmem:[%s1197 + $0x1a0] sm:$0xff]
        %v6614 = vld [vmem:[%s1197 + $0x1a8] sm:$0xff]
        %v6615 = vld [vmem:[%s1197 + $0x1b0] sm:$0xff]
        %v6616 = vld [vmem:[%s1197 + $0x1b8] sm:$0xff]
        %v6617 = vld [vmem:[%s1197 + $0x1c0] sm:$0xff]
        %v6618 = vld [vmem:[%s1197 + $0x1c8] sm:$0xff]
        %v6619 = vld [vmem:[%s1197 + $0x1d0] sm:$0xff]
        %v6620 = vld [vmem:[%s1197 + $0x1d8] sm:$0xff]
        %v6621 = vld [vmem:[%s1197 + $0x1e0] sm:$0xff]
        %v6622 = vld [vmem:[%s1197 + $0x1e8] sm:$0xff]
        %v6623 = vld [vmem:[%s1197 + $0x1f0] sm:$0xff]
        %v6624 = vld [vmem:[%s1197 + $0x1f8] sm:$0xff]
        %v6625 = vld [vmem:[%s1206] sm:$0x3]
        %v6627 = vlaneseq
        %v6628 = vshrl.u32 %v6627, 7
        %v6629 = vsub.s32 0, %v6628
        %v6630 = vrot.slane %v6625, %v6629
        %v6631 = vlaneseq
        %v6632 = vshrl.u32 %v6631, 7
        %v6633 = vsub.s32 1, %v6632
        %v6634 = vrot.slane %v6625, %v6633
        %v6701 = vunpack.c.l.b16 %v6561
        %v6702 = vunpack.c.h.b16 %v6561
        %v6703 = vunpack.c.l.b16 %v6562
        %v6704 = vunpack.c.h.b16 %v6562
        %v6705 = vunpack.c.l.b16 %v6563
        %v6706 = vunpack.c.h.b16 %v6563
        %v6707 = vunpack.c.l.b16 %v6564
        %v6708 = vunpack.c.h.b16 %v6564
        %v6709 = vunpack.c.l.b16 %v6565
        %v6710 = vunpack.c.h.b16 %v6565
        %v6711 = vunpack.c.l.b16 %v6566
        %v6712 = vunpack.c.h.b16 %v6566
        %v6713 = vunpack.c.l.b16 %v6567
        %v6714 = vunpack.c.h.b16 %v6567
        %v6715 = vunpack.c.l.b16 %v6568
        %v6716 = vunpack.c.h.b16 %v6568
        %v6717 = vunpack.c.l.b16 %v6569
        %v6718 = vunpack.c.h.b16 %v6569
        %v6719 = vunpack.c.l.b16 %v6570
        %v6720 = vunpack.c.h.b16 %v6570
        %v6721 = vunpack.c.l.b16 %v6571
        %v6722 = vunpack.c.h.b16 %v6571
        %v6723 = vunpack.c.l.b16 %v6572
        %v6724 = vunpack.c.h.b16 %v6572
        %v6725 = vunpack.c.l.b16 %v6573
        %v6726 = vunpack.c.h.b16 %v6573
        %v6727 = vunpack.c.l.b16 %v6574
        %v6728 = vunpack.c.h.b16 %v6574
        %v6729 = vunpack.c.l.b16 %v6575
        %v6730 = vunpack.c.h.b16 %v6575
        %v6731 = vunpack.c.l.b16 %v6576
        %v6732 = vunpack.c.h.b16 %v6576
        %v6733 = vunpack.c.l.b16 %v6577
        %v6734 = vunpack.c.h.b16 %v6577
        %v6735 = vunpack.c.l.b16 %v6578
        %v6736 = vunpack.c.h.b16 %v6578
        %v6737 = vunpack.c.l.b16 %v6579
        %v6738 = vunpack.c.h.b16 %v6579
        %v6739 = vunpack.c.l.b16 %v6580
        %v6740 = vunpack.c.h.b16 %v6580
        %v6741 = vunpack.c.l.b16 %v6581
        %v6742 = vunpack.c.h.b16 %v6581
        %v6743 = vunpack.c.l.b16 %v6582
        %v6744 = vunpack.c.h.b16 %v6582
        %v6745 = vunpack.c.l.b16 %v6583
        %v6746 = vunpack.c.h.b16 %v6583
        %v6747 = vunpack.c.l.b16 %v6584
        %v6748 = vunpack.c.h.b16 %v6584
        %v6749 = vunpack.c.l.b16 %v6585
        %v6750 = vunpack.c.h.b16 %v6585
        %v6751 = vunpack.c.l.b16 %v6586
        %v6752 = vunpack.c.h.b16 %v6586
        %v6753 = vunpack.c.l.b16 %v6587
        %v6754 = vunpack.c.h.b16 %v6587
        %v6755 = vunpack.c.l.b16 %v6588
        %v6756 = vunpack.c.h.b16 %v6588
        %v6757 = vunpack.c.l.b16 %v6589
        %v6758 = vunpack.c.h.b16 %v6589
        %v6759 = vunpack.c.l.b16 %v6590
        %v6760 = vunpack.c.h.b16 %v6590
        %v6761 = vunpack.c.l.b16 %v6591
        %v6762 = vunpack.c.h.b16 %v6591
        %v6763 = vunpack.c.l.b16 %v6592
        %v6764 = vunpack.c.h.b16 %v6592
        %v6765 = vunpack.c.l.b16 %v6593
        %v6766 = vunpack.c.h.b16 %v6593
        %v6767 = vunpack.c.l.b16 %v6594
        %v6768 = vunpack.c.h.b16 %v6594
        %v6769 = vunpack.c.l.b16 %v6595
        %v6770 = vunpack.c.h.b16 %v6595
        %v6771 = vunpack.c.l.b16 %v6596
        %v6772 = vunpack.c.h.b16 %v6596
        %v6773 = vunpack.c.l.b16 %v6597
        %v6774 = vunpack.c.h.b16 %v6597
        %v6775 = vunpack.c.l.b16 %v6598
        %v6776 = vunpack.c.h.b16 %v6598
        %v6777 = vunpack.c.l.b16 %v6599
        %v6778 = vunpack.c.h.b16 %v6599
        %v6779 = vunpack.c.l.b16 %v6600
        %v6780 = vunpack.c.h.b16 %v6600
        %v6781 = vunpack.c.l.b16 %v6601
        %v6782 = vunpack.c.h.b16 %v6601
        %v6783 = vunpack.c.l.b16 %v6602
        %v6784 = vunpack.c.h.b16 %v6602
        %v6785 = vunpack.c.l.b16 %v6603
        %v6786 = vunpack.c.h.b16 %v6603
        %v6787 = vunpack.c.l.b16 %v6604
        %v6788 = vunpack.c.h.b16 %v6604
        %v6789 = vunpack.c.l.b16 %v6605
        %v6790 = vunpack.c.h.b16 %v6605
        %v6791 = vunpack.c.l.b16 %v6606
        %v6792 = vunpack.c.h.b16 %v6606
        %v6793 = vunpack.c.l.b16 %v6607
        %v6794 = vunpack.c.h.b16 %v6607
        %v6795 = vunpack.c.l.b16 %v6608
        %v6796 = vunpack.c.h.b16 %v6608
        %v6797 = vunpack.c.l.b16 %v6609
        %v6798 = vunpack.c.h.b16 %v6609
        %v6799 = vunpack.c.l.b16 %v6610
        %v6800 = vunpack.c.h.b16 %v6610
        %v6801 = vunpack.c.l.b16 %v6611
        %v6802 = vunpack.c.h.b16 %v6611
        %v6803 = vunpack.c.l.b16 %v6612
        %v6804 = vunpack.c.h.b16 %v6612
        %v6805 = vunpack.c.l.b16 %v6613
        %v6806 = vunpack.c.h.b16 %v6613
        %v6807 = vunpack.c.l.b16 %v6614
        %v6808 = vunpack.c.h.b16 %v6614
        %v6809 = vunpack.c.l.b16 %v6615
        %v6810 = vunpack.c.h.b16 %v6615
        %v6811 = vunpack.c.l.b16 %v6616
        %v6812 = vunpack.c.h.b16 %v6616
        %v6813 = vunpack.c.l.b16 %v6617
        %v6814 = vunpack.c.h.b16 %v6617
        %v6815 = vunpack.c.l.b16 %v6618
        %v6816 = vunpack.c.h.b16 %v6618
        %v6817 = vunpack.c.l.b16 %v6619
        %v6818 = vunpack.c.h.b16 %v6619
        %v6819 = vunpack.c.l.b16 %v6620
        %v6820 = vunpack.c.h.b16 %v6620
        %v6821 = vunpack.c.l.b16 %v6621
        %v6822 = vunpack.c.h.b16 %v6621
        %v6823 = vunpack.c.l.b16 %v6622
        %v6824 = vunpack.c.h.b16 %v6622
        %v6825 = vunpack.c.l.b16 %v6623
        %v6826 = vunpack.c.h.b16 %v6623
        %v6827 = vunpack.c.l.b16 %v6624
        %v6828 = vunpack.c.h.b16 %v6624
        %v6829 = vpack.c.b16 %v6703, %v6701
        %v6830 = vpack.c.b16 %v6704, %v6702
        %v6831 = vpack.c.b16 %v6707, %v6705
        %v6832 = vpack.c.b16 %v6708, %v6706
        %v6833 = vpack.c.b16 %v6711, %v6709
        %v6834 = vpack.c.b16 %v6712, %v6710
        %v6835 = vpack.c.b16 %v6715, %v6713
        %v6836 = vpack.c.b16 %v6716, %v6714
        %v6837 = vpack.c.b16 %v6719, %v6717
        %v6838 = vpack.c.b16 %v6720, %v6718
        %v6839 = vpack.c.b16 %v6723, %v6721
        %v6840 = vpack.c.b16 %v6724, %v6722
        %v6841 = vpack.c.b16 %v6727, %v6725
        %v6842 = vpack.c.b16 %v6728, %v6726
        %v6843 = vpack.c.b16 %v6731, %v6729
        %v6844 = vpack.c.b16 %v6732, %v6730
        %v6845 = vpack.c.b16 %v6735, %v6733
        %v6846 = vpack.c.b16 %v6736, %v6734
        %v6847 = vpack.c.b16 %v6739, %v6737
        %v6848 = vpack.c.b16 %v6740, %v6738
        %v6849 = vpack.c.b16 %v6743, %v6741
        %v6850 = vpack.c.b16 %v6744, %v6742
        %v6851 = vpack.c.b16 %v6747, %v6745
        %v6852 = vpack.c.b16 %v6748, %v6746
        %v6853 = vpack.c.b16 %v6751, %v6749
        %v6854 = vpack.c.b16 %v6752, %v6750
        %v6855 = vpack.c.b16 %v6755, %v6753
        %v6856 = vpack.c.b16 %v6756, %v6754
        %v6857 = vpack.c.b16 %v6759, %v6757
        %v6858 = vpack.c.b16 %v6760, %v6758
        %v6859 = vpack.c.b16 %v6763, %v6761
        %v6860 = vpack.c.b16 %v6764, %v6762
        %v6861 = vpack.c.b16 %v6767, %v6765
        %v6862 = vpack.c.b16 %v6768, %v6766
        %v6863 = vpack.c.b16 %v6771, %v6769
        %v6864 = vpack.c.b16 %v6772, %v6770
        %v6865 = vpack.c.b16 %v6775, %v6773
        %v6866 = vpack.c.b16 %v6776, %v6774
        %v6867 = vpack.c.b16 %v6779, %v6777
        %v6868 = vpack.c.b16 %v6780, %v6778
        %v6869 = vpack.c.b16 %v6783, %v6781
        %v6870 = vpack.c.b16 %v6784, %v6782
        %v6871 = vpack.c.b16 %v6787, %v6785
        %v6872 = vpack.c.b16 %v6788, %v6786
        %v6873 = vpack.c.b16 %v6791, %v6789
        %v6874 = vpack.c.b16 %v6792, %v6790
        %v6875 = vpack.c.b16 %v6795, %v6793
        %v6876 = vpack.c.b16 %v6796, %v6794
        %v6877 = vpack.c.b16 %v6799, %v6797
        %v6878 = vpack.c.b16 %v6800, %v6798
        %v6879 = vpack.c.b16 %v6803, %v6801
        %v6880 = vpack.c.b16 %v6804, %v6802
        %v6881 = vpack.c.b16 %v6807, %v6805
        %v6882 = vpack.c.b16 %v6808, %v6806
        %v6883 = vpack.c.b16 %v6811, %v6809
        %v6884 = vpack.c.b16 %v6812, %v6810
        %v6885 = vpack.c.b16 %v6815, %v6813
        %v6886 = vpack.c.b16 %v6816, %v6814
        %v6887 = vpack.c.b16 %v6819, %v6817
        %v6888 = vpack.c.b16 %v6820, %v6818
        %v6889 = vpack.c.b16 %v6823, %v6821
        %v6890 = vpack.c.b16 %v6824, %v6822
        %v6891 = vpack.c.b16 %v6827, %v6825
        %v6892 = vpack.c.b16 %v6828, %v6826
        %6957 = vmatprep.subr.bf16.mxu0 %v6830
        %6958 = vmatpush1.bf16.msra.mxu0 %v6829
        %6959 = vmatprep.subr.bf16.mxu0 %v6832
        %6960 = vmatpush1.bf16.msra.mxu0 %v6831
        %6961 = vmatprep.subr.bf16.mxu0 %v6834
        %6962 = vmatpush1.bf16.msra.mxu0 %v6833
        %6963 = vmatprep.subr.bf16.mxu0 %v6836
        %6964 = vmatpush1.bf16.msra.mxu0 %v6835
        %6965 = vmatprep.subr.bf16.mxu0 %v6838
        %6966 = vmatpush1.bf16.msra.mxu0 %v6837
        %6967 = vmatprep.subr.bf16.mxu0 %v6840
        %6968 = vmatpush1.bf16.msra.mxu0 %v6839
        %6969 = vmatprep.subr.bf16.mxu0 %v6842
        %6970 = vmatpush1.bf16.msra.mxu0 %v6841
        %6971 = vmatprep.subr.bf16.mxu0 %v6844
        %6972 = vmatpush1.bf16.msra.mxu0 %v6843
        %6973 = vmatprep.subr.bf16.mxu0 %v6846
        %6974 = vmatpush1.bf16.msra.mxu0 %v6845
        %6975 = vmatprep.subr.bf16.mxu0 %v6848
        %6976 = vmatpush1.bf16.msra.mxu0 %v6847
        %6977 = vmatprep.subr.bf16.mxu0 %v6850
        %6978 = vmatpush1.bf16.msra.mxu0 %v6849
        %6979 = vmatprep.subr.bf16.mxu0 %v6852
        %6980 = vmatpush1.bf16.msra.mxu0 %v6851
        %6981 = vmatprep.subr.bf16.mxu0 %v6854
        %6982 = vmatpush1.bf16.msra.mxu0 %v6853
        %6983 = vmatprep.subr.bf16.mxu0 %v6856
        %6984 = vmatpush1.bf16.msra.mxu0 %v6855
        %6985 = vmatprep.subr.bf16.mxu0 %v6858
        %6986 = vmatpush1.bf16.msra.mxu0 %v6857
        %6987 = vmatprep.subr.bf16.mxu0 %v6860
        %6988 = vmatpush1.bf16.msra.mxu0 %v6859
        %6989 = vmatprep.mubr.bf16.mxu0 %v6554
        %6990 = vmatmul.mubr.bf16.gmra.mrb[0].mxu0 %v6553
        %v6991 = vpop.f32.mrb[0].mxu0
        %v6992 = vadd.f32 %v6630, %v6991
        %v6993 = vpop.f32.mrb[0].mxu0
        %v6994 = vadd.f32 %v6634, %v6993
        %v6995 = vpop.f32.mrb[0].mxu0
        %v6996 = vadd.f32 %v6630, %v6995
        %v6997 = vpop.f32.mrb[0].mxu0
        %v6998 = vadd.f32 %v6634, %v6997
        %6999 = vmatprep.mubr.bf16.mxu0 %v6558
        %7000 = vmatmul.mubr.bf16.gmra.mrb[0].mxu0 %v6557
        %v7001 = vpop.f32.mrb[0].mxu0
        %v7002 = vadd.f32 %v6630, %v7001
        %v7003 = vpop.f32.mrb[0].mxu0
        %v7004 = vadd.f32 %v6634, %v7003
        %v7005 = vpop.f32.mrb[0].mxu0
        %v7006 = vadd.f32 %v6630, %v7005
        %v7007 = vpop.f32.mrb[0].mxu0
        %v7008 = vadd.f32 %v6634, %v7007
        %7009 = vdwg.mxu0
        %7010 = vmatprep.subr.bf16.mxu0 %v6862
        %7011 = vmatpush1.bf16.msra.mxu0 %v6861
        %7012 = vmatprep.subr.bf16.mxu0 %v6864
        %7013 = vmatpush1.bf16.msra.mxu0 %v6863
        %7014 = vmatprep.subr.bf16.mxu0 %v6866
        %7015 = vmatpush1.bf16.msra.mxu0 %v6865
        %7016 = vmatprep.subr.bf16.mxu0 %v6868
        %7017 = vmatpush1.bf16.msra.mxu0 %v6867
        %7018 = vmatprep.subr.bf16.mxu0 %v6870
        %7019 = vmatpush1.bf16.msra.mxu0 %v6869
        %7020 = vmatprep.subr.bf16.mxu0 %v6872
        %7021 = vmatpush1.bf16.msra.mxu0 %v6871
        %7022 = vmatprep.subr.bf16.mxu0 %v6874
        %7023 = vmatpush1.bf16.msra.mxu0 %v6873
        %7024 = vmatprep.subr.bf16.mxu0 %v6876
        %7025 = vmatpush1.bf16.msra.mxu0 %v6875
        %7026 = vmatprep.subr.bf16.mxu0 %v6878
        %7027 = vmatpush1.bf16.msra.mxu0 %v6877
        %7028 = vmatprep.subr.bf16.mxu0 %v6880
        %7029 = vmatpush1.bf16.msra.mxu0 %v6879
        %7030 = vmatprep.subr.bf16.mxu0 %v6882
        %7031 = vmatpush1.bf16.msra.mxu0 %v6881
        %7032 = vmatprep.subr.bf16.mxu0 %v6884
        %7033 = vmatpush1.bf16.msra.mxu0 %v6883
        %7034 = vmatprep.subr.bf16.mxu0 %v6886
        %7035 = vmatpush1.bf16.msra.mxu0 %v6885
        %7036 = vmatprep.subr.bf16.mxu0 %v6888
        %7037 = vmatpush1.bf16.msra.mxu0 %v6887
        %7038 = vmatprep.subr.bf16.mxu0 %v6890
        %7039 = vmatpush1.bf16.msra.mxu0 %v6889
        %7040 = vmatprep.subr.bf16.mxu0 %v6892
        %7041 = vmatpush1.bf16.msra.mxu0 %v6891
        %7042 = vmatprep.mubr.bf16.mxu0 %v6556
        %7043 = vmatmul.mubr.bf16.gmra.mrb[0].mxu0 %v6555
        %v7044 = vpop.f32.mrb[0].mxu0
        %v7045 = vadd.f32 %v6992, %v7044
        %v7046 = vpop.f32.mrb[0].mxu0
        %v7047 = vadd.f32 %v6994, %v7046
        %v7048 = vpop.f32.mrb[0].mxu0
        %v7049 = vadd.f32 %v6996, %v7048
        %v7050 = vpop.f32.mrb[0].mxu0
        %v7051 = vadd.f32 %v6998, %v7050
        %7052 = vmatprep.mubr.bf16.mxu0 %v6560
        %7053 = vmatmul.mubr.bf16.gmra.mrb[0].mxu0 %v6559
        %v7054 = vpop.f32.mrb[0].mxu0
        %v7055 = vadd.f32 %v7002, %v7054
        %v7056 = vpop.f32.mrb[0].mxu0
        %v7057 = vadd.f32 %v7004, %v7056
        %v7058 = vpop.f32.mrb[0].mxu0
        %v7059 = vadd.f32 %v7006, %v7058
        %v7060 = vpop.f32.mrb[0].mxu0
        %v7061 = vadd.f32 %v7008, %v7060
        %7062 = vdwg.mxu0
        %v7063 = vadd.f32 %v6013, %v7045
        %v7064 = vadd.f32 %v6014, %v7047
        %v7065 = vadd.f32 %v6015, %v7049
        %v7066 = vadd.f32 %v6016, %v7051
        %v7067 = vadd.f32 %v6017, %v7055
        %v7068 = vadd.f32 %v6018, %v7057
        %v7069 = vadd.f32 %v6019, %v7059
        %v7070 = vadd.f32 %v6020, %v7061
        %v7071 = vld [vmem:[%s1215] sm:$0x3]
        %v7072 = vld [vmem:[%s1224] sm:$0x3]
        %v7073 = vadd.f32 %v7063, %v7064
        %7074 = vadd.xlane.f32.xlu0 %v7073
        %v7075 = vpop.xlane.xlu0 %7074
        %v7076 = vadd.f32 %v7065, %v7066
        %7077 = vadd.xlane.f32.xlu0 %v7076
        %v7078 = vpop.xlane.xlu0 %7077
        %v7079 = vadd.f32 %v7067, %v7068
        %7080 = vadd.xlane.f32.xlu0 %v7079
        %v7081 = vpop.xlane.xlu0 %7080
        %v7082 = vadd.f32 %v7069, %v7070
        %7083 = vadd.xlane.f32.xlu0 %v7082
        %v7084 = vpop.xlane.xlu0 %7083
        %v7085 = vmul.f32 %v7075, %v5930
        %v7086 = vmul.f32 %v7078, %v5930
        %v7087 = vmul.f32 %v7081, %v5930
        %v7088 = vmul.f32 %v7084, %v5930
        %v7089 = vsub.f32 %v7063, %v7085
        %v7090 = vsub.f32 %v7064, %v7085
        %v7091 = vsub.f32 %v7065, %v7086
        %v7092 = vsub.f32 %v7066, %v7086
        %v7093 = vsub.f32 %v7067, %v7087
        %v7094 = vsub.f32 %v7068, %v7087
        %v7095 = vsub.f32 %v7069, %v7088
        %v7096 = vsub.f32 %v7070, %v7088
        %v7097 = vmul.f32 %v7089, %v7089
        %v7098 = vmul.f32 %v7090, %v7090
        %v7099 = vmul.f32 %v7091, %v7091
        %v7100 = vmul.f32 %v7092, %v7092
        %v7101 = vmul.f32 %v7093, %v7093
        %v7102 = vmul.f32 %v7094, %v7094
        %v7103 = vmul.f32 %v7095, %v7095
        %v7104 = vmul.f32 %v7096, %v7096
        %v7105 = vadd.f32 %v7097, %v7098
        %7106 = vadd.xlane.f32.xlu0 %v7105
        %v7107 = vpop.xlane.xlu0 %7106
        %v7108 = vadd.f32 %v7099, %v7100
        %7109 = vadd.xlane.f32.xlu0 %v7108
        %v7110 = vpop.xlane.xlu0 %7109
        %v7111 = vadd.f32 %v7101, %v7102
        %7112 = vadd.xlane.f32.xlu0 %v7111
        %v7113 = vpop.xlane.xlu0 %7112
        %v7114 = vadd.f32 %v7103, %v7104
        %7115 = vadd.xlane.f32.xlu0 %v7114
        %v7116 = vpop.xlane.xlu0 %7115
        %v7117 = vmul.f32 %v7107, %v5930
        %v7118 = vmul.f32 %v7110, %v5930
        %v7119 = vmul.f32 %v7113, %v5930
        %v7120 = vmul.f32 %v7116, %v5930
        %v7121 = vadd.f32 %v7117, 1e-05
        %v7122 = vadd.f32 %v7118, 1e-05
        %v7123 = vadd.f32 %v7119, 1e-05
        %v7124 = vadd.f32 %v7120, 1e-05
        %v7125 = vrsqrt.pop %v7121
        %v7126 = vrsqrt.pop %v7122
        %v7127 = vrsqrt.pop %v7123
        %v7128 = vrsqrt.pop %v7124
        %v7129 = vmul.f32 %v7089, %v7125
        %v7130 = vmul.f32 %v7090, %v7125
        %v7131 = vmul.f32 %v7091, %v7126
        %v7132 = vmul.f32 %v7092, %v7126
        %v7133 = vmul.f32 %v7093, %v7127
        %v7134 = vmul.f32 %v7094, %v7127
        %v7135 = vmul.f32 %v7095, %v7128
        %v7136 = vmul.f32 %v7096, %v7128
        %v7138 = vlaneseq
        %v7139 = vshrl.u32 %v7138, 7
        %v7140 = vsub.s32 0, %v7139
        %v7141 = vrot.slane %v7071, %v7140
        %v7142 = vlaneseq
        %v7143 = vshrl.u32 %v7142, 7
        %v7144 = vsub.s32 1, %v7143
        %v7145 = vrot.slane %v7071, %v7144
        %v7148 = vmul.f32 %v7129, %v7141
        %v7149 = vmul.f32 %v7130, %v7145
        %v7150 = vmul.f32 %v7131, %v7141
        %v7151 = vmul.f32 %v7132, %v7145
        %v7152 = vmul.f32 %v7133, %v7141
        %v7153 = vmul.f32 %v7134, %v7145
        %v7154 = vmul.f32 %v7135, %v7141
        %v7155 = vmul.f32 %v7136, %v7145
        %v7157 = vlaneseq
        %v7158 = vshrl.u32 %v7157, 7
        %v7159 = vsub.s32 0, %v7158
        %v7160 = vrot.slane %v7072, %v7159
        %v7161 = vlaneseq
        %v7162 = vshrl.u32 %v7161, 7
        %v7163 = vsub.s32 1, %v7162
        %v7164 = vrot.slane %v7072, %v7163
        %v7167 = vadd.f32 %v7148, %v7160
        %v7168 = vadd.f32 %v7149, %v7164
        %v7169 = vadd.f32 %v7150, %v7160
        %v7170 = vadd.f32 %v7151, %v7164
        %v7171 = vadd.f32 %v7152, %v7160
        %v7172 = vadd.f32 %v7153, %v7164
        %v7173 = vadd.f32 %v7154, %v7160
        %v7174 = vadd.f32 %v7155, %v7164
        %7175 = vst [vmem:[#allocation2] sm:$0xff] %v7167
        %7176 = vst [vmem:[#allocation2 + $0x8] sm:$0xff] %v7168
        %7177 = vst [vmem:[#allocation2 + $0x10] sm:$0xff] %v7169
        %7178 = vst [vmem:[#allocation2 + $0x18] sm:$0xff] %v7170
        %7179 = vst [vmem:[#allocation2 + $0x20] sm:$0xff] %v7171
        %7180 = vst [vmem:[#allocation2 + $0x28] sm:$0xff] %v7172
        %7181 = vst [vmem:[#allocation2 + $0x30] sm:$0xff] %v7173
        %7182 = vst [vmem:[#allocation2 + $0x38] sm:$0xff] %v7174
        %p7183 = scmp.eq.s32.totalorder %s66, 1
        // Predicated region
        $region217: #{smotif_transformer_forward.1} parent=119 // pred_check
          %p7184 = pneg %p7183
        $region218: #{smotif_transformer_forward.1} parent=119 // pred_check_branch
          %7186 = sbr.rel (%p7184) target = $region220
        $region219: #{smotif_transformer_forward.1} parent=119 // pred_region
          %v7187 = vld [vmem:[#allocation31] sm:$0x3]
          %v7188 = vld [vmem:[#allocation33] sm:$0x3]
          %v7189 = vadd.f32 %v7167, %v7168
          %7190 = vadd.xlane.f32.xlu0 %v7189
          %v7191 = vpop.xlane.xlu0 %7190
          %v7192 = vadd.f32 %v7169, %v7170
          %7193 = vadd.xlane.f32.xlu0 %v7192
          %v7194 = vpop.xlane.xlu0 %7193
          %v7195 = vadd.f32 %v7171, %v7172
          %7196 = vadd.xlane.f32.xlu0 %v7195
          %v7197 = vpop.xlane.xlu0 %7196
          %v7198 = vadd.f32 %v7173, %v7174
          %7199 = vadd.xlane.f32.xlu0 %v7198
          %v7200 = vpop.xlane.xlu0 %7199
          %v7201 = vmul.f32 %v7191, %v5930
          %v7202 = vmul.f32 %v7194, %v5930
          %v7203 = vmul.f32 %v7197, %v5930
          %v7204 = vmul.f32 %v7200, %v5930
          %v7205 = vsub.f32 %v7167, %v7201
          %v7206 = vsub.f32 %v7168, %v7201
          %v7207 = vsub.f32 %v7169, %v7202
          %v7208 = vsub.f32 %v7170, %v7202
          %v7209 = vsub.f32 %v7171, %v7203
          %v7210 = vsub.f32 %v7172, %v7203
          %v7211 = vsub.f32 %v7173, %v7204
          %v7212 = vsub.f32 %v7174, %v7204
          %v7213 = vmul.f32 %v7205, %v7205
          %v7214 = vmul.f32 %v7206, %v7206
          %v7215 = vmul.f32 %v7207, %v7207
          %v7216 = vmul.f32 %v7208, %v7208
          %v7217 = vmul.f32 %v7209, %v7209
          %v7218 = vmul.f32 %v7210, %v7210
          %v7219 = vmul.f32 %v7211, %v7211
          %v7220 = vmul.f32 %v7212, %v7212
          %v7221 = vadd.f32 %v7213, %v7214
          %7222 = vadd.xlane.f32.xlu0 %v7221
          %v7223 = vpop.xlane.xlu0 %7222
          %v7224 = vadd.f32 %v7215, %v7216
          %7225 = vadd.xlane.f32.xlu0 %v7224
          %v7226 = vpop.xlane.xlu0 %7225
          %v7227 = vadd.f32 %v7217, %v7218
          %7228 = vadd.xlane.f32.xlu0 %v7227
          %v7229 = vpop.xlane.xlu0 %7228
          %v7230 = vadd.f32 %v7219, %v7220
          %7231 = vadd.xlane.f32.xlu0 %v7230
          %v7232 = vpop.xlane.xlu0 %7231
          %v7233 = vmul.f32 %v7223, %v5930
          %v7234 = vmul.f32 %v7226, %v5930
          %v7235 = vmul.f32 %v7229, %v5930
          %v7236 = vmul.f32 %v7232, %v5930
          %v7237 = vadd.f32 %v7233, 1e-05
          %v7238 = vadd.f32 %v7234, 1e-05
          %v7239 = vadd.f32 %v7235, 1e-05
          %v7240 = vadd.f32 %v7236, 1e-05
          %v7241 = vrsqrt.pop %v7237
          %v7242 = vrsqrt.pop %v7238
          %v7243 = vrsqrt.pop %v7239
          %v7244 = vrsqrt.pop %v7240
          %v7245 = vmul.f32 %v7205, %v7241
          %v7246 = vmul.f32 %v7206, %v7241
          %v7247 = vmul.f32 %v7207, %v7242
          %v7248 = vmul.f32 %v7208, %v7242
          %v7249 = vmul.f32 %v7209, %v7243
          %v7250 = vmul.f32 %v7210, %v7243
          %v7251 = vmul.f32 %v7211, %v7244
          %v7252 = vmul.f32 %v7212, %v7244
          %v7254 = vlaneseq
          %v7255 = vshrl.u32 %v7254, 7
          %v7256 = vsub.s32 0, %v7255
          %v7257 = vrot.slane %v7187, %v7256
          %v7258 = vlaneseq
          %v7259 = vshrl.u32 %v7258, 7
          %v7260 = vsub.s32 1, %v7259
          %v7261 = vrot.slane %v7187, %v7260
          %v7264 = vmul.f32 %v7245, %v7257
          %v7265 = vmul.f32 %v7246, %v7261
          %v7266 = vmul.f32 %v7247, %v7257
          %v7267 = vmul.f32 %v7248, %v7261
          %v7268 = vmul.f32 %v7249, %v7257
          %v7269 = vmul.f32 %v7250, %v7261
          %v7270 = vmul.f32 %v7251, %v7257
          %v7271 = vmul.f32 %v7252, %v7261
          %v7273 = vlaneseq
          %v7274 = vshrl.u32 %v7273, 7
          %v7275 = vsub.s32 0, %v7274
          %v7276 = vrot.slane %v7188, %v7275
          %v7277 = vlaneseq
          %v7278 = vshrl.u32 %v7277, 7
          %v7279 = vsub.s32 1, %v7278
          %v7280 = vrot.slane %v7188, %v7279
          %v7283 = vadd.f32 %v7264, %v7276
          %v7284 = vadd.f32 %v7265, %v7280
          %v7285 = vadd.f32 %v7266, %v7276
          %v7286 = vadd.f32 %v7267, %v7280
          %v7287 = vadd.f32 %v7268, %v7276
          %v7288 = vadd.f32 %v7269, %v7280
          %v7289 = vadd.f32 %v7270, %v7276
          %v7290 = vadd.f32 %v7271, %v7280
          %v7291 = vadd.f32 %v7283, %v7285
          %v7292 = vrot.slane %v7291, 4
          %v7293 = vadd.f32 %v7291, %v7292
          %v7294 = vrot.slane %v7293, 2
          %v7295 = vadd.f32 %v7293, %v7294
          %v7296 = vrot.slane %v7295, 1
          %v7297 = vadd.f32 %v7295, %v7296
          %v7298 = vadd.f32 %v7284, %v7286
          %v7299 = vrot.slane %v7298, 4
          %v7300 = vadd.f32 %v7298, %v7299
          %v7301 = vrot.slane %v7300, 2
          %v7302 = vadd.f32 %v7300, %v7301
          %v7303 = vrot.slane %v7302, 1
          %v7304 = vadd.f32 %v7302, %v7303
          %v7305 = vadd.f32 %v7287, %v7289
          %v7306 = vrot.slane %v7305, 4
          %v7307 = vadd.f32 %v7305, %v7306
          %v7308 = vrot.slane %v7307, 2
          %v7309 = vadd.f32 %v7307, %v7308
          %v7310 = vrot.slane %v7309, 1
          %v7311 = vadd.f32 %v7309, %v7310
          %v7312 = vadd.f32 %v7288, %v7290
          %v7313 = vrot.slane %v7312, 4
          %v7314 = vadd.f32 %v7312, %v7313
          %v7315 = vrot.slane %v7314, 2
          %v7316 = vadd.f32 %v7314, %v7315
          %v7317 = vrot.slane %v7316, 1
          %v7318 = vadd.f32 %v7316, %v7317
          %v7319 = vrcp.pop 16.0
          %v7320 = vmul.f32 %v7297, %v7319
          %v7321 = vmul.f32 %v7304, %v7319
          %v7322 = vmul.f32 %v7311, %v7319
          %v7323 = vmul.f32 %v7318, %v7319
          %v7324 = vpack.c.bf16 %v7320, %v7320
          %v7325 = vpack.c.bf16 %v7321, %v7321
          %v7326 = vpack.c.bf16 %v7322, %v7322
          %v7327 = vpack.c.bf16 %v7323, %v7323
          %v7328 = vld [vmem:[#allocation34] sm:$0xf]
          %v7329 = vld [vmem:[#allocation34 + $0x4] sm:$0xf]
          %v7330 = vld [vmem:[#allocation34 + $0x8] sm:$0xf]
          %v7331 = vld [vmem:[#allocation34 + $0xc] sm:$0xf]
          %v7332 = vld [vmem:[#allocation34 + $0x10] sm:$0xf]
          %v7333 = vld [vmem:[#allocation34 + $0x14] sm:$0xf]
          %v7334 = vld [vmem:[#allocation34 + $0x18] sm:$0xf]
          %v7335 = vld [vmem:[#allocation34 + $0x1c] sm:$0xf]
          %v7336 = vld [vmem:[#allocation34 + $0x20] sm:$0xf]
          %v7337 = vld [vmem:[#allocation34 + $0x24] sm:$0xf]
          %v7338 = vld [vmem:[#allocation34 + $0x28] sm:$0xf]
          %v7339 = vld [vmem:[#allocation34 + $0x2c] sm:$0xf]
          %v7340 = vld [vmem:[#allocation34 + $0x30] sm:$0xf]
          %v7341 = vld [vmem:[#allocation34 + $0x34] sm:$0xf]
          %v7342 = vld [vmem:[#allocation34 + $0x38] sm:$0xf]
          %v7343 = vld [vmem:[#allocation34 + $0x3c] sm:$0xf]
          %v7344 = vld [vmem:[#allocation34 + $0x40] sm:$0xf]
          %v7345 = vld [vmem:[#allocation34 + $0x44] sm:$0xf]
          %v7346 = vld [vmem:[#allocation34 + $0x48] sm:$0xf]
          %v7347 = vld [vmem:[#allocation34 + $0x4c] sm:$0xf]
          %v7348 = vld [vmem:[#allocation34 + $0x50] sm:$0xf]
          %v7349 = vld [vmem:[#allocation34 + $0x54] sm:$0xf]
          %v7350 = vld [vmem:[#allocation34 + $0x58] sm:$0xf]
          %v7351 = vld [vmem:[#allocation34 + $0x5c] sm:$0xf]
          %v7352 = vld [vmem:[#allocation34 + $0x60] sm:$0xf]
          %v7353 = vld [vmem:[#allocation34 + $0x64] sm:$0xf]
          %v7354 = vld [vmem:[#allocation34 + $0x68] sm:$0xf]
          %v7355 = vld [vmem:[#allocation34 + $0x6c] sm:$0xf]
          %v7356 = vld [vmem:[#allocation34 + $0x70] sm:$0xf]
          %v7357 = vld [vmem:[#allocation34 + $0x74] sm:$0xf]
          %v7358 = vld [vmem:[#allocation34 + $0x78] sm:$0xf]
          %v7359 = vld [vmem:[#allocation34 + $0x7c] sm:$0xf]
          %v7360 = vld [vmem:[#allocation36] sm:$0x1]
          %v7362 = vlaneseq
          %v7363 = vshrl.u32 %v7362, 7
          %v7364 = vsub.s32 0, %v7363
          %v7365 = vrot.slane %v7360, %v7364
          %v7371 = vunpack.c.l.b16 %v7324
          %v7372 = vunpack.c.l.b16 %v7325
          %v7373 = vunpack.c.l.b16 %v7326
          %v7374 = vunpack.c.l.b16 %v7327
          %vm7375 = vcmask 1041409
          %v7376 = vsel %vm7375, %v7373, %v7371
          %v7377 = vsel %vm7375, %v7374, %v7372
          %v7378 = vpack.c.b16 %v7376, %v7376
          %v7379 = vpack.c.b16 %v7377, %v7377
          %v7414 = vunpack.c.l.b16 %v7328
          %v7415 = vunpack.c.l.b16 %v7329
          %v7416 = vunpack.c.l.b16 %v7330
          %v7417 = vunpack.c.l.b16 %v7331
          %v7418 = vunpack.c.l.b16 %v7332
          %v7419 = vunpack.c.l.b16 %v7333
          %v7420 = vunpack.c.l.b16 %v7334
          %v7421 = vunpack.c.l.b16 %v7335
          %v7422 = vunpack.c.l.b16 %v7336
          %v7423 = vunpack.c.l.b16 %v7337
          %v7424 = vunpack.c.l.b16 %v7338
          %v7425 = vunpack.c.l.b16 %v7339
          %v7426 = vunpack.c.l.b16 %v7340
          %v7427 = vunpack.c.l.b16 %v7341
          %v7428 = vunpack.c.l.b16 %v7342
          %v7429 = vunpack.c.l.b16 %v7343
          %v7430 = vunpack.c.l.b16 %v7344
          %v7431 = vunpack.c.l.b16 %v7345
          %v7432 = vunpack.c.l.b16 %v7346
          %v7433 = vunpack.c.l.b16 %v7347
          %v7434 = vunpack.c.l.b16 %v7348
          %v7435 = vunpack.c.l.b16 %v7349
          %v7436 = vunpack.c.l.b16 %v7350
          %v7437 = vunpack.c.l.b16 %v7351
          %v7438 = vunpack.c.l.b16 %v7352
          %v7439 = vunpack.c.l.b16 %v7353
          %v7440 = vunpack.c.l.b16 %v7354
          %v7441 = vunpack.c.l.b16 %v7355
          %v7442 = vunpack.c.l.b16 %v7356
          %v7443 = vunpack.c.l.b16 %v7357
          %v7444 = vunpack.c.l.b16 %v7358
          %v7445 = vunpack.c.l.b16 %v7359
          %v7446 = vpack.c.b16 %v7415, %v7414
          %v7447 = vpack.c.b16 %v7417, %v7416
          %v7448 = vpack.c.b16 %v7419, %v7418
          %v7449 = vpack.c.b16 %v7421, %v7420
          %v7450 = vpack.c.b16 %v7423, %v7422
          %v7451 = vpack.c.b16 %v7425, %v7424
          %v7452 = vpack.c.b16 %v7427, %v7426
          %v7453 = vpack.c.b16 %v7429, %v7428
          %v7454 = vpack.c.b16 %v7431, %v7430
          %v7455 = vpack.c.b16 %v7433, %v7432
          %v7456 = vpack.c.b16 %v7435, %v7434
          %v7457 = vpack.c.b16 %v7437, %v7436
          %v7458 = vpack.c.b16 %v7439, %v7438
          %v7459 = vpack.c.b16 %v7441, %v7440
          %v7460 = vpack.c.b16 %v7443, %v7442
          %v7461 = vpack.c.b16 %v7445, %v7444
          %7478 = vmatprep.subr.bf16.mxu0 0
          %7479 = vmatpush1.bf16.msra.mxu0 %v7446
          %7480 = vmatprep.subr.bf16.mxu0 0
          %7481 = vmatpush1.bf16.msra.mxu0 %v7447
          %7482 = vmatprep.subr.bf16.mxu0 0
          %7483 = vmatpush1.bf16.msra.mxu0 %v7448
          %7484 = vmatprep.subr.bf16.mxu0 0
          %7485 = vmatpush1.bf16.msra.mxu0 %v7449
          %7486 = vmatprep.subr.bf16.mxu0 0
          %7487 = vmatpush1.bf16.msra.mxu0 %v7450
          %7488 = vmatprep.subr.bf16.mxu0 0
          %7489 = vmatpush1.bf16.msra.mxu0 %v7451
          %7490 = vmatprep.subr.bf16.mxu0 0
          %7491 = vmatpush1.bf16.msra.mxu0 %v7452
          %7492 = vmatprep.subr.bf16.mxu0 0
          %7493 = vmatpush1.bf16.msra.mxu0 %v7453
          %7494 = vmatprep.subr.bf16.mxu0 0
          %7495 = vmatpush1.bf16.msra.mxu0 %v7454
          %7496 = vmatprep.subr.bf16.mxu0 0
          %7497 = vmatpush1.bf16.msra.mxu0 %v7455
          %7498 = vmatprep.subr.bf16.mxu0 0
          %7499 = vmatpush1.bf16.msra.mxu0 %v7456
          %7500 = vmatprep.subr.bf16.mxu0 0
          %7501 = vmatpush1.bf16.msra.mxu0 %v7457
          %7502 = vmatprep.subr.bf16.mxu0 0
          %7503 = vmatpush1.bf16.msra.mxu0 %v7458
          %7504 = vmatprep.subr.bf16.mxu0 0
          %7505 = vmatpush1.bf16.msra.mxu0 %v7459
          %7506 = vmatprep.subr.bf16.mxu0 0
          %7507 = vmatpush1.bf16.msra.mxu0 %v7460
          %7508 = vmatprep.subr.bf16.mxu0 0
          %7509 = vmatpush1.bf16.msra.mxu0 %v7461
          %7510 = vmatprep.mubr.bf16.mxu0 %v7379
          %7511 = vmatmul.mubr.bf16.gmra.mrb[0].mxu0 %v7378
          %v7512 = vpop.f32.mrb[0].mxu0
          %v7513 = vadd.f32 %v7365, %v7512
          %v7514 = vpop.f32.mrb[0].mxu0
          %v7515 = vpop.f32.mrb[0].mxu0
          %v7516 = vpop.f32.mrb[0].mxu0
          %7517 = vdwg.mxu0
          %v7518 = vmax.f32 %v7513, 0.0
          %v7519 = vpack.c.bf16 %v7518, %v7518
          %v7520 = vld [vmem:[#allocation37] sm:$0xf]
          %v7521 = vld [vmem:[#allocation37 + $0x4] sm:$0xf]
          %v7522 = vld [vmem:[#allocation37 + $0x8] sm:$0xf]
          %v7523 = vld [vmem:[#allocation37 + $0xc] sm:$0xf]
          %v7524 = vld [vmem:[#allocation37 + $0x10] sm:$0xf]
          %v7525 = vld [vmem:[#allocation37 + $0x14] sm:$0xf]
          %v7526 = vld [vmem:[#allocation37 + $0x18] sm:$0xf]
          %v7527 = vld [vmem:[#allocation37 + $0x1c] sm:$0xf]
          %v7528 = vld [vmem:[#allocation37 + $0x20] sm:$0xf]
          %v7529 = vld [vmem:[#allocation37 + $0x24] sm:$0xf]
          %v7530 = vld [vmem:[#allocation37 + $0x28] sm:$0xf]
          %v7531 = vld [vmem:[#allocation37 + $0x2c] sm:$0xf]
          %v7532 = vld [vmem:[#allocation37 + $0x30] sm:$0xf]
          %v7533 = vld [vmem:[#allocation37 + $0x34] sm:$0xf]
          %v7534 = vld [vmem:[#allocation37 + $0x38] sm:$0xf]
          %v7535 = vld [vmem:[#allocation37 + $0x3c] sm:$0xf]
          %v7536 = vld [vmem:[#allocation39] sm:$0x1]
          %v7538 = vlaneseq
          %v7539 = vshrl.u32 %v7538, 7
          %v7540 = vsub.s32 0, %v7539
          %v7541 = vrot.slane %v7536, %v7540
          %v7559 = vunpack.c.l.b16 %v7520
          %v7560 = vunpack.c.l.b16 %v7521
          %v7561 = vunpack.c.l.b16 %v7522
          %v7562 = vunpack.c.l.b16 %v7523
          %v7563 = vunpack.c.l.b16 %v7524
          %v7564 = vunpack.c.l.b16 %v7525
          %v7565 = vunpack.c.l.b16 %v7526
          %v7566 = vunpack.c.l.b16 %v7527
          %v7567 = vunpack.c.l.b16 %v7528
          %v7568 = vunpack.c.l.b16 %v7529
          %v7569 = vunpack.c.l.b16 %v7530
          %v7570 = vunpack.c.l.b16 %v7531
          %v7571 = vunpack.c.l.b16 %v7532
          %v7572 = vunpack.c.l.b16 %v7533
          %v7573 = vunpack.c.l.b16 %v7534
          %v7574 = vunpack.c.l.b16 %v7535
          %v7575 = vpack.c.b16 %v7560, %v7559
          %v7576 = vpack.c.b16 %v7562, %v7561
          %v7577 = vpack.c.b16 %v7564, %v7563
          %v7578 = vpack.c.b16 %v7566, %v7565
          %v7579 = vpack.c.b16 %v7568, %v7567
          %v7580 = vpack.c.b16 %v7570, %v7569
          %v7581 = vpack.c.b16 %v7572, %v7571
          %v7582 = vpack.c.b16 %v7574, %v7573
          %7591 = vmatprep.subr.bf16.mxu0 0
          %7592 = vmatpush1.bf16.msra.mxu0 %v7575
          %7593 = vmatprep.subr.bf16.mxu0 0
          %7594 = vmatpush1.bf16.msra.mxu0 %v7576
          %7595 = vmatprep.subr.bf16.mxu0 0
          %7596 = vmatpush1.bf16.msra.mxu0 %v7577
          %7597 = vmatprep.subr.bf16.mxu0 0
          %7598 = vmatpush1.bf16.msra.mxu0 %v7578
          %7599 = vmatprep.subr.bf16.mxu0 0
          %7600 = vmatpush1.bf16.msra.mxu0 %v7579
          %7601 = vmatprep.subr.bf16.mxu0 0
          %7602 = vmatpush1.bf16.msra.mxu0 %v7580
          %7603 = vmatprep.subr.bf16.mxu0 0
          %7604 = vmatpush1.bf16.msra.mxu0 %v7581
          %7605 = vmatprep.subr.bf16.mxu0 0
          %7606 = vmatpush1.bf16.msra.mxu0 %v7582
          %7607 = vmatprep.subr.bf16.mxu0 0
          %7608 = vmatpush1.bf16.msra.mxu0 0
          %7609 = vmatprep.subr.bf16.mxu0 0
          %7610 = vmatpush1.bf16.msra.mxu0 0
          %7611 = vmatprep.subr.bf16.mxu0 0
          %7612 = vmatpush1.bf16.msra.mxu0 0
          %7613 = vmatprep.subr.bf16.mxu0 0
          %7614 = vmatpush1.bf16.msra.mxu0 0
          %7615 = vmatprep.subr.bf16.mxu0 0
          %7616 = vmatpush1.bf16.msra.mxu0 0
          %7617 = vmatprep.subr.bf16.mxu0 0
          %7618 = vmatpush1.bf16.msra.mxu0 0
          %7619 = vmatprep.subr.bf16.mxu0 0
          %7620 = vmatpush1.bf16.msra.mxu0 0
          %7621 = vmatprep.subr.bf16.mxu0 0
          %7622 = vmatpush1.bf16.msra.mxu0 0
          %7623 = vmatprep.mubr.bf16.mxu0 0
          %7624 = vmatmul.mubr.bf16.gmra.mrb[0].mxu0 %v7519
          %v7625 = vpop.f32.mrb[0].mxu0
          %v7626 = vadd.f32 %v7541, %v7625
          %v7627 = vpop.f32.mrb[0].mxu0
          %v7628 = vpop.f32.mrb[0].mxu0
          %v7629 = vpop.f32.mrb[0].mxu0
          %7630 = vdwg.mxu0
          %v7633 = vunpack.c.l.s4 1966171168
          %v7634 = vunpack.c.0.s8 %v7633
          %v7635 = vlaneseq
          %v7636 = vshrl.u32 %v7635, 7
          %v7637 = vsub.s32 %v7634, %v7636
          %v7638 = vrot.slane %v7626, %v7637
          %v7639 = vcombine.high %v7638, %v7638
          %v7641 = vunpack.c.l.s4 1966171168
          %v7642 = vunpack.c.0.s8 %v7641
          %v7643 = vlaneseq
          %v7644 = vshrl.u32 %v7643, 7
          %v7645 = vsub.s32 %v7642, %v7644
          %v7646 = vrot.slane %v7638, %v7645
          %v7648 = vunpack.c.l.s4 1966171168
          %v7649 = vunpack.c.0.s8 %v7648
          %v7650 = vlaneseq
          %v7651 = vshrl.u32 %v7650, 7
          %v7652 = vsub.s32 %v7649, %v7651
          %v7653 = vrot.slane %v7639, %v7652
          %7656 = vst [vmem:[#allocation40] sm:$0x1] %v7646
          %7657 = vst [vmem:[#allocation40 + $0x1] sm:$0x1] %v7653
        $region220: #{smotif_transformer_forward.1} parent=119 // pred_fallthru
          _
        // Predicated region
        $region221: #{smotif_transformer_forward.1} parent=119 // pred_check
          %p7658 = pneg %p686
        $region222: #{smotif_transformer_forward.1} parent=119 // pred_check_branch
          %7660 = sbr.rel (%p7658) target = $region224
        $region223: #{smotif_transformer_forward.1} parent=119 // pred_region
          %s7661 = smul.u32 2, %s65
          %s7663 = ssub.s32 32, 32
          %7664 = vsyncadd [#allocation6], %s7663
          %s7665 = smul.addr %s7661, 16
          %s7666 = scalar_lea.hbm %s25, %s7665
          %s7667 = sshll.u32 [#allocation40], 4
          %s7668 = int_to_ptr.vmem [resolvable:$true] %s7667
          %7673 = dma.vmem_to_hbm [thread:$0]  %s7668, 32, %s7666, [#allocation6], 16, 16, 1
        $region224: #{smotif_transformer_forward.1} parent=119 // pred_fallthru
          _
        // Predicated region
        $region225: #{smotif_transformer_forward.1} parent=119 // pred_check
          %p7674 = pneg %p686
        $region226: #{smotif_transformer_forward.1} parent=119 // pred_check_branch
          %7676 = sbr.rel (%p7674) target = $region228
        $region227: #{smotif_transformer_forward.1} parent=119 // pred_region
          %7677 = dma.done [#allocation6], 32
        $region228: #{smotif_transformer_forward.1} parent=119 // pred_fallthru
          _
      $region120: #{smotif_transformer_forward.1} parent=5 // pred_fallthru
        _
      %p7678 = scmp.le.s32.totalorder 2, %s56
      // Predicated region
      $region229: #{smotif_transformer_forward.1} parent=5 // pred_check
        %p7679 = pneg %p7678
      $region230: #{smotif_transformer_forward.1} parent=5 // pred_check_branch
        %7681 = sbr.rel (%p7679) target = $region232
      $region231: #{smotif_transformer_forward.1} parent=5 // pred_region
        %s7682 = ssub.s32 %s56, 2
      $region232: #{smotif_transformer_forward.1} parent=5 // pred_fallthru
        _
    $region6: #{smotif_transformer_forward.1} parent=1 // loop_footer
      %s60 = sadd.s32 1, %s56
    $region7: #{smotif_transformer_forward.1} parent=1 // loop_footer_branch
      %55 = sbr.rel target = $region3
    $region8: #{smotif_transformer_forward.1} parent=1 // loop_exit
      _
    %7683 = vsyncpa [#allocation5], 1
    %s7684 = scalar_lea.sflag [#allocation5], 1
    %7685 = vsyncpa %s7684, 1
    %7686 = vsyncpa [#allocation8], 1
    %7687 = vsyncpa [#allocation11], 1
    %7688 = vsyncpa [#allocation14], 1
    %s7689 = scalar_lea.sflag [#allocation14], 1
    %7690 = vsyncpa %s7689, 1
    %7691 = vsyncpa [#allocation17], 1
    %s7692 = scalar_lea.sflag [#allocation17], 1
    %7693 = vsyncpa %s7692, 1
    %7694 = vsyncpa [#allocation20], 1
    %s7695 = scalar_lea.sflag [#allocation20], 1
    %7696 = vsyncpa %s7695, 1
    %7697 = vsyncpa [#allocation23], 1
    %s7698 = scalar_lea.sflag [#allocation23], 1
    %7699 = vsyncpa %s7698, 1
    %7700 = vsyncpa [#allocation26], 1
    %s7701 = scalar_lea.sflag [#allocation26], 1
    %7702 = vsyncpa %s7701, 1
    %7703 = vsyncpa [#allocation29], 1
    %s7704 = scalar_lea.sflag [#allocation29], 1
    %7705 = vsyncpa %s7704, 1
    %7706 = vsyncpa [#allocation32], 1
    %7707 = vsyncpa [#allocation35], 1
    %7708 = vsyncpa [#allocation38], 1
    %7709 = vsyncpa [#allocation6], 1
    %s7710 = scalar_lea.sflag [#allocation6], 1
    %7711 = vsyncpa %s7710, 1

</llo_original>
